<compile_context>
chip_gen: v5e
topology: v5e:2x2
jax: 0.10.0
libtpu: 0.0.40
codegen_flags: <defaults>
</compile_context>

<pallas_src>
import functools

import jax
import jax.numpy as jnp
from jax import lax
from jax.experimental import pallas as pl
from jax.experimental.pallas import tpu as pltpu


def _round_up(x, m):
    return (x + m - 1) // m * m


# ---------------------------------------------------------------------------
# Kernel 1: multi-layer LSTM recurrence (single grid step).
#   Per layer: one batched input-projection matmul, then a fori_loop over T.
# ---------------------------------------------------------------------------
def _lstm_kernel(num_layers, hidden_pad, seq_len, batch_pad, unroll,
                 x_ref, *refs):
    # refs = [w_ih_l, w_hh_l, bias_l] * L + [h_top_ref, seq_scratch, gates_scratch]
    L, H, T, B = num_layers, hidden_pad, seq_len, batch_pad
    w_ih = [refs[3 * l + 0] for l in range(L)]
    w_hh = [refs[3 * l + 1] for l in range(L)]
    bias = [refs[3 * l + 2] for l in range(L)]
    h_top_ref = refs[3 * L + 0]          # (T*B, H) f32   (output)
    seq_ref = refs[3 * L + 1]            # (T*B, H) f32   (scratch)
    gates_ref = refs[3 * L + 2]          # (T*B, 4H) f32  (scratch)

    for l in range(L):
        # ----- batched input projection over ALL timesteps (one MXU matmul) -----
        if l == 0:
            x_all = x_ref[...]                               # (T*B, E_pad) bf16
        else:
            x_all = seq_ref[...].astype(jnp.bfloat16)        # (T*B, H) f32 -> bf16
        gates_ref[...] = (
            jnp.dot(x_all, w_ih[l][...], preferred_element_type=jnp.float32)
            + bias[l][...])                                  # (T*B, 4H) f32

        out_ref = h_top_ref if l == L - 1 else seq_ref

        # ----- recurrence over T: only the small h @ W_hh matmul per step -----
        def step(t, carry):
            h_prev, c_prev = carry                           # (B, H) f32 each
            row = t * B
            if not isinstance(row, int):
                row = pl.multiple_of(row, B)
            g = gates_ref[pl.ds(row, B), :] + jnp.dot(
                h_prev.astype(jnp.bfloat16), w_hh[l][...],
                preferred_element_type=jnp.float32)          # (B, 4H) f32

            # PyTorch gate order: i, f, g, o (lane-aligned: H % 128 == 0).
            i_g = jax.nn.sigmoid(g[:, 0 * H:1 * H])
            f_g = jax.nn.sigmoid(g[:, 1 * H:2 * H])
            g_g = jnp.tanh(g[:, 2 * H:3 * H])
            o_g = jax.nn.sigmoid(g[:, 3 * H:4 * H])

            c_new = f_g * c_prev + i_g * g_g
            h_new = o_g * jnp.tanh(c_new)

            out_ref[pl.ds(row, B), :] = h_new.astype(out_ref.dtype)
            return h_new, c_new

        zero = jnp.zeros((B, H), jnp.float32)
        lax.fori_loop(0, T, step, (zero, zero), unroll=unroll)


def _run_recurrence(x_rows, seq_len, batch_pad, kparams):
    """x_rows: (T*B_pad, E_pad) bf16 -> (T*B_pad, H_pad) f32 top-layer hidden."""
    L = kparams["num_layers"]
    H_pad = kparams["hidden_pad"]
    E_pad = kparams["embed_pad"]
    R = seq_len * batch_pad

    args = [x_rows]
    in_specs = [pl.BlockSpec((R, E_pad), lambda i: (0, 0))]
    for l in range(L):
        w_ih = kparams["w_ih"][l]                 # (in_pad, 4*H_pad) bf16
        w_hh = kparams["w_hh"][l]                 # (H_pad, 4*H_pad) bf16
        b = kparams["lstm_b"][l]                  # (1, 4*H_pad) f32
        args += [w_ih, w_hh, b]
        in_specs += [pl.BlockSpec(w_ih.shape, lambda i: (0, 0)),
                     pl.BlockSpec(w_hh.shape, lambda i: (0, 0)),
                     pl.BlockSpec(b.shape, lambda i: (0, 0))]

    return pl.pallas_call(
        functools.partial(_lstm_kernel, L, H_pad, seq_len, batch_pad,
                          seq_len <= 32),
        out_shape=jax.ShapeDtypeStruct((R, H_pad), jnp.float32),
        grid_spec=pltpu.PrefetchScalarGridSpec(
            num_scalar_prefetch=0,
            grid=(1,),
            in_specs=in_specs,
            out_specs=pl.BlockSpec((R, H_pad), lambda i: (0, 0)),
            scratch_shapes=[pltpu.VMEM((R, H_pad), jnp.float32),
                            pltpu.VMEM((R, 4 * H_pad), jnp.float32)]),
        compiler_params=pltpu.CompilerParams(
            dimension_semantics=("arbitrary",)),              # serial recurrence
    )(*args)


# ---------------------------------------------------------------------------
# Kernel 2: batched vocab projection (parallel grid over row / vocab tiles)
# ---------------------------------------------------------------------------
def _proj_kernel(h_ref, w_ref, b_ref, o_ref):
    h = h_ref[...].astype(jnp.bfloat16)
    o_ref[...] = (jnp.dot(h, w_ref[...], preferred_element_type=jnp.float32)
                  + b_ref[...]).astype(o_ref.dtype)


def _run_projection(h_rows, w_out, b_out):
    R, H_pad = h_rows.shape
    V_pad = w_out.shape[1]

    if R >= 256:
        TM = 256
        R_pad = _round_up(R, TM)
    else:
        TM = _round_up(R, 8)
        R_pad = TM
    if R_pad != R:
        h_rows = jnp.pad(h_rows, ((0, R_pad - R), (0, 0)))

    if V_pad >= 512 and V_pad % 512 == 0:
        TV = 512
    elif V_pad >= 256 and V_pad % 256 == 0:
        TV = 256
    else:
        TV = 128

    out = pl.pallas_call(
        _proj_kernel,
        out_shape=jax.ShapeDtypeStruct((R_pad, V_pad), jnp.float32),
        grid_spec=pltpu.PrefetchScalarGridSpec(
            num_scalar_prefetch=0,
            grid=(R_pad // TM, V_pad // TV),
            in_specs=[pl.BlockSpec((TM, H_pad), lambda i, j: (i, 0)),
                      pl.BlockSpec((H_pad, TV), lambda i, j: (0, j)),
                      pl.BlockSpec((1, TV), lambda i, j: (0, j))],
            out_specs=pl.BlockSpec((TM, TV), lambda i, j: (i, j)),
        ),
        compiler_params=pltpu.CompilerParams(
            dimension_semantics=("parallel", "parallel")),
    )(h_rows, w_out, b_out)
    return out[:R]


# ---------------------------------------------------------------------------
# Parameter prep (done once): transpose, fuse biases, pad, cast to bf16.
# ---------------------------------------------------------------------------
def prepare_kernel_params(raw):
    V, E = raw["embedding"].shape
    H = raw["hidden_size"]
    L = raw["num_layers"]
    E_pad = _round_up(E, 128)
    H_pad = _round_up(H, 128)
    V_pad = _round_up(V, 128)

    emb_pad = jnp.zeros((V, E_pad), jnp.float32).at[:, :E].set(raw["embedding"])
    emb_pad = emb_pad.astype(jnp.bfloat16)

    w_ih_list, w_hh_list, b_list = [], [], []
    for l in range(L):
        p = raw["lstm"][l]
        in_dim = E if l == 0 else H
        in_pad = E_pad if l == 0 else H_pad
        w_ih_t = p["w_ih"].T                              # (in_dim, 4H)
        w_hh_t = p["w_hh"].T                              # (H, 4H)
        bias = p["b_ih"] + p["b_hh"]                      # (4H,)

        w_ih = jnp.zeros((in_pad, 4 * H_pad), jnp.float32)
        w_hh = jnp.zeros((H_pad, 4 * H_pad), jnp.float32)
        b = jnp.zeros((1, 4 * H_pad), jnp.float32)
        for g in range(4):                                # gates -> 128-aligned slots
            w_ih = w_ih.at[:in_dim, g * H_pad:g * H_pad + H].set(
                w_ih_t[:, g * H:(g + 1) * H])
            w_hh = w_hh.at[:H, g * H_pad:g * H_pad + H].set(
                w_hh_t[:, g * H:(g + 1) * H])
            b = b.at[0, g * H_pad:g * H_pad + H].set(bias[g * H:(g + 1) * H])
        w_ih_list.append(w_ih.astype(jnp.bfloat16))
        w_hh_list.append(w_hh.astype(jnp.bfloat16))
        b_list.append(b)

    w_out = jnp.zeros((H_pad, V_pad), jnp.float32).at[:H, :V].set(raw["w_out"].T)
    b_out = jnp.zeros((1, V_pad), jnp.float32).at[0, :V].set(raw["b_out"])

    return {
        "num_layers": L, "hidden_size": H, "hidden_pad": H_pad,
        "embed_size": E, "embed_pad": E_pad,
        "vocab_size": V, "vocab_pad": V_pad,
        "embedding": emb_pad,
        "w_ih": w_ih_list, "w_hh": w_hh_list, "lstm_b": b_list,
        "w_out": w_out.astype(jnp.bfloat16), "b_out": b_out,
    }


def decoder_forward(features, captions, kparams):
    """features: (B, E) f32, captions: (S, B) int32. Returns (S+1, B, V) f32."""
    B, E = features.shape
    S = captions.shape[0]
    T = S + 1
    E_pad = kparams["embed_pad"]
    H_pad = kparams["hidden_pad"]
    V = kparams["vocab_size"]
    B_pad = _round_up(B, 8)

    # Embedding lookup in plain JAX (gather); dropout(0.5) -> identity (eval mode).
    emb = jnp.take(kparams["embedding"], captions, axis=0)          # (S, B, E_pad) bf16
    feat = jnp.zeros((1, B, E_pad), jnp.bfloat16).at[0, :, :E].set(
        features.astype(jnp.bfloat16))
    x = jnp.concatenate([feat, emb], axis=0)                        # (T, B, E_pad) bf16
    if B_pad != B:
        x = jnp.pad(x, ((0, 0), (0, B_pad - B), (0, 0)))
    x_rows = x.reshape(T * B_pad, E_pad)                            # lane-dense rows

    h_rows = _run_recurrence(x_rows, T, B_pad, kparams)             # (T*B_pad, H_pad) f32
    logits = _run_projection(h_rows, kparams["w_out"], kparams["b_out"])
    return logits.reshape(T, B_pad, -1)[:, :B, :V]


# ---------------------------------------------------------------------------
# Pure-JAX reference (PyTorch semantics, eval-mode dropout).
# ---------------------------------------------------------------------------
def reference_forward(features, captions, params, cast_bf16=False):
    def mm(a, w):
        if cast_bf16:
            a = a.astype(jnp.bfloat16)
            w = w.astype(jnp.bfloat16)
        return jnp.dot(a, w, preferred_element_type=jnp.float32)

    emb = params["embedding"][captions]
    x = jnp.concatenate([features[None], emb], axis=0)
    T, B, _ = x.shape
    H = params["hidden_size"]
    L = params["num_layers"]
    h = [jnp.zeros((B, H), jnp.float32) for _ in range(L)]
    c = [jnp.zeros((B, H), jnp.float32) for _ in range(L)]
    outs = []
    for t in range(T):
        inp = x[t]
        for l in range(L):
            p = params["lstm"][l]
            gates = (mm(inp, p["w_ih"].T) + mm(h[l], p["w_hh"].T)
                     + p["b_ih"] + p["b_hh"])
            i, f, g, o = jnp.split(gates, 4, axis=-1)
            c[l] = jax.nn.sigmoid(f) * c[l] + jax.nn.sigmoid(i) * jnp.tanh(g)
            h[l] = jax.nn.sigmoid(o) * jnp.tanh(c[l])
            inp = h[l]
        outs.append(mm(inp, params["w_out"].T) + params["b_out"])
    return jnp.stack(outs, axis=0)


def init_params(key, embed_size, hidden_size, vocab_size, num_layers):
    keys = jax.random.split(key, 4 + 4 * num_layers)
    k = 1.0 / jnp.sqrt(hidden_size)
    params = {
        "hidden_size": hidden_size,
        "num_layers": num_layers,
        "embedding": jax.random.normal(keys[0], (vocab_size, embed_size), jnp.float32),
        "w_out": jax.random.uniform(keys[1], (vocab_size, hidden_size), jnp.float32, -k, k),
        "b_out": jax.random.uniform(keys[2], (vocab_size,), jnp.float32, -k, k),
        "lstm": [],
    }
    for l in range(num_layers):
        in_dim = embed_size if l == 0 else hidden_size
        kk = keys[4 + 4 * l: 8 + 4 * l]
        params["lstm"].append({
            "w_ih": jax.random.uniform(kk[0], (4 * hidden_size, in_dim), jnp.float32, -k, k),
            "w_hh": jax.random.uniform(kk[1], (4 * hidden_size, hidden_size), jnp.float32, -k, k),
            "b_ih": jax.random.uniform(kk[2], (4 * hidden_size,), jnp.float32, -k, k),
            "b_hh": jax.random.uniform(kk[3], (4 * hidden_size,), jnp.float32, -k, k),
        })
    return params


if __name__ == "__main__":
    embed_size, hidden_size, vocab_size, num_layers = 32, 32, 64, 2
    batch, seq_len = 4, 8

    root = jax.random.PRNGKey(0)
    k_params, k_feat, k_cap = jax.random.split(root, 3)
    raw_params = init_params(k_params, embed_size, hidden_size, vocab_size, num_layers)
    kparams = prepare_kernel_params(raw_params)

    features = jax.random.normal(k_feat, (batch, embed_size), jnp.float32)             # (B, E)
    captions = jax.random.randint(k_cap, (seq_len, batch), 0, vocab_size, jnp.int32)   # (S, B)

    out = jax.block_until_ready(decoder_forward(features, captions, kparams))
    assert out.shape == (seq_len + 1, batch, vocab_size)

    # Tight check vs a reference that emulates bf16 matmul operands (structural correctness).
    ref_bf16 = reference_forward(features, captions, raw_params, cast_bf16=True)
    err_bf16 = float(jnp.max(jnp.abs(out - ref_bf16)))
    assert jnp.allclose(out, ref_bf16, atol=5e-3, rtol=5e-3), f"mismatch vs bf16 ref: {err_bf16}"

    # Looser check vs the full-f32 reference (bf16 weight quantization drift).
    ref_f32 = reference_forward(features, captions, raw_params, cast_bf16=False)
    err_f32 = float(jnp.max(jnp.abs(out - ref_f32)))
    assert jnp.allclose(out, ref_f32, atol=5e-2, rtol=5e-2), f"drift vs f32 ref: {err_f32}"

    print("KERNEL_OK")
</pallas_src>

<mosaic_0001>
module attributes {stable_mosaic.version = 11 : i64} {
  func.func @_lstm_kernel(%arg0: i32, %arg1: memref<72x128xbf16, #tpu.memory_space<vmem>>, %arg2: memref<128x512xbf16, #tpu.memory_space<vmem>>, %arg3: memref<128x512xbf16, #tpu.memory_space<vmem>>, %arg4: memref<1x512xf32, #tpu.memory_space<vmem>>, %arg5: memref<128x512xbf16, #tpu.memory_space<vmem>>, %arg6: memref<128x512xbf16, #tpu.memory_space<vmem>>, %arg7: memref<1x512xf32, #tpu.memory_space<vmem>>, %arg8: memref<72x128xf32, #tpu.memory_space<vmem>>, %arg9: memref<72x128xf32, #tpu.memory_space<vmem>>, %arg10: memref<72x512xf32, #tpu.memory_space<vmem>>) attributes {dimension_semantics = [#tpu.dimension_semantics<arbitrary>], iteration_bounds = array<i64: 1>, scalar_prefetch = 0 : i64, scratch_operands = 2 : i64, tpu.core_type = #tpu.core_type<tc>, window_params = [{pipeline_mode = #tpu.pipeline_mode<synchronous>, transform_indices = @transform_0, window_bounds = array<i64: 72, 128>}, {pipeline_mode = #tpu.pipeline_mode<synchronous>, transform_indices = @transform_1, window_bounds = array<i64: 128, 512>}, {pipeline_mode = #tpu.pipeline_mode<synchronous>, transform_indices = @transform_2, window_bounds = array<i64: 128, 512>}, {pipeline_mode = #tpu.pipeline_mode<synchronous>, transform_indices = @transform_3, window_bounds = array<i64: 1, 512>}, {pipeline_mode = #tpu.pipeline_mode<synchronous>, transform_indices = @transform_4, window_bounds = array<i64: 128, 512>}, {pipeline_mode = #tpu.pipeline_mode<synchronous>, transform_indices = @transform_5, window_bounds = array<i64: 128, 512>}, {pipeline_mode = #tpu.pipeline_mode<synchronous>, transform_indices = @transform_6, window_bounds = array<i64: 1, 512>}, {pipeline_mode = #tpu.pipeline_mode<synchronous>, transform_indices = @transform_7, window_bounds = array<i64: 72, 128>}]} {
    %c0 = arith.constant 0 : index
    %c0_0 = arith.constant 0 : index
    %0 = vector.load %arg1[%c0, %c0_0] : memref<72x128xbf16, #tpu.memory_space<vmem>>, vector<72x128xbf16>
    %c0_1 = arith.constant 0 : index
    %c0_2 = arith.constant 0 : index
    %1 = vector.load %arg2[%c0_1, %c0_2] : memref<128x512xbf16, #tpu.memory_space<vmem>>, vector<128x512xbf16>
    %cst = arith.constant dense<0.000000e+00> : vector<72x512xf32>
    %2 = tpu.matmul %0, %1, %cst {dimension_numbers = #tpu.dot_dimension_numbers<[1], [0], [0], [1], [0, 0, 1, 1], [], []>} : vector<72x128xbf16>, vector<128x512xbf16>, vector<72x512xf32> -> vector<72x512xf32>
    %c0_3 = arith.constant 0 : index
    %c0_4 = arith.constant 0 : index
    %3 = vector.load %arg4[%c0_3, %c0_4] : memref<1x512xf32, #tpu.memory_space<vmem>>, vector<1x512xf32>
    %4 = vector.broadcast %3 : vector<1x512xf32> to vector<72x512xf32>
    %5 = arith.addf %2, %4 : vector<72x512xf32>
    %c0_5 = arith.constant 0 : index
    %c0_6 = arith.constant 0 : index
    %6 = vector.load %arg10[%c0_5, %c0_6] : memref<72x512xf32, #tpu.memory_space<vmem>>, vector<72x512xf32>
    tpu.vector_store %arg10[%c0_5, %c0_6], %5 {strides = array<i32>} : memref<72x512xf32, #tpu.memory_space<vmem>>, vector<72x512xf32>,
    %cst_7 = arith.constant 0.000000e+00 : f32
    %7 = vector.broadcast %cst_7 : f32 to vector<8x128xf32>
    %c0_i32 = arith.constant 0 : i32
    %c8_i32 = arith.constant 8 : i32
    %8 = arith.muli %c0_i32, %c8_i32 : i32
    %9 = tpu.assume_multiple %8, 8 : i32
    %10 = arith.index_cast %9 : i32 to index
    %c0_8 = arith.constant 0 : index
    %11 = vector.load %arg10[%10, %c0_8] : memref<72x512xf32, #tpu.memory_space<vmem>>, vector<8x512xf32>
    %12 = arith.truncf %7 : vector<8x128xf32> to vector<8x128xbf16>
    %c0_9 = arith.constant 0 : index
    %c0_10 = arith.constant 0 : index
    %13 = vector.load %arg3[%c0_9, %c0_10] : memref<128x512xbf16, #tpu.memory_space<vmem>>, vector<128x512xbf16>
    %cst_11 = arith.constant dense<0.000000e+00> : vector<8x512xf32>
    %14 = tpu.matmul %12, %13, %cst_11 {dimension_numbers = #tpu.dot_dimension_numbers<[1], [0], [0], [1], [0, 0, 1, 1], [], []>} : vector<8x128xbf16>, vector<128x512xbf16>, vector<8x512xf32> -> vector<8x512xf32>
    %15 = arith.addf %11, %14 : vector<8x512xf32>
    %16 = vector.extract_strided_slice %15 {offsets = [0, 0], sizes = [8, 128], strides = [1, 1]} : vector<8x512xf32> to vector<8x128xf32>
    %17 = arith.negf %16 : vector<8x128xf32>
    %18 = math.exp %17 : vector<8x128xf32>
    %cst_12 = arith.constant 1.000000e+00 : f32
    %19 = vector.broadcast %cst_12 : f32 to vector<8x128xf32>
    %20 = arith.addf %19, %18 : vector<8x128xf32>
    %21 = arith.divf %19, %20 : vector<8x128xf32>
    %22 = vector.extract_strided_slice %15 {offsets = [0, 128], sizes = [8, 128], strides = [1, 1]} : vector<8x512xf32> to vector<8x128xf32>
    %23 = arith.negf %22 : vector<8x128xf32>
    %24 = math.exp %23 : vector<8x128xf32>
    %cst_13 = arith.constant 1.000000e+00 : f32
    %25 = vector.broadcast %cst_13 : f32 to vector<8x128xf32>
    %26 = arith.addf %25, %24 : vector<8x128xf32>
    %27 = arith.divf %25, %26 : vector<8x128xf32>
    %28 = vector.extract_strided_slice %15 {offsets = [0, 256], sizes = [8, 128], strides = [1, 1]} : vector<8x512xf32> to vector<8x128xf32>
    %29 = math.tanh %28 : vector<8x128xf32>
    %30 = vector.extract_strided_slice %15 {offsets = [0, 384], sizes = [8, 128], strides = [1, 1]} : vector<8x512xf32> to vector<8x128xf32>
    %31 = arith.negf %30 : vector<8x128xf32>
    %32 = math.exp %31 : vector<8x128xf32>
    %cst_14 = arith.constant 1.000000e+00 : f32
    %33 = vector.broadcast %cst_14 : f32 to vector<8x128xf32>
    %34 = arith.addf %33, %32 : vector<8x128xf32>
    %35 = arith.divf %33, %34 : vector<8x128xf32>
    %36 = arith.mulf %27, %7 : vector<8x128xf32>
    %37 = arith.mulf %21, %29 : vector<8x128xf32>
    %38 = arith.addf %36, %37 : vector<8x128xf32>
    %39 = math.tanh %38 : vector<8x128xf32>
    %40 = arith.mulf %35, %39 : vector<8x128xf32>
    %41 = arith.index_cast %9 : i32 to index
    %c0_15 = arith.constant 0 : index
    %42 = vector.load %arg9[%41, %c0_15] : memref<72x128xf32, #tpu.memory_space<vmem>>, vector<8x128xf32>
    tpu.vector_store %arg9[%41, %c0_15], %40 {strides = array<i32>} : memref<72x128xf32, #tpu.memory_space<vmem>>, vector<8x128xf32>,
    %c1_i32 = arith.constant 1 : i32
    %c8_i32_16 = arith.constant 8 : i32
    %43 = arith.muli %c1_i32, %c8_i32_16 : i32
    %44 = tpu.assume_multiple %43, 8 : i32
    %45 = arith.index_cast %44 : i32 to index
    %c0_17 = arith.constant 0 : index
    %46 = vector.load %arg10[%45, %c0_17] : memref<72x512xf32, #tpu.memory_space<vmem>>, vector<8x512xf32>
    %47 = arith.truncf %40 : vector<8x128xf32> to vector<8x128xbf16>
    %c0_18 = arith.constant 0 : index
    %c0_19 = arith.constant 0 : index
    %48 = vector.load %arg3[%c0_18, %c0_19] : memref<128x512xbf16, #tpu.memory_space<vmem>>, vector<128x512xbf16>
    %cst_20 = arith.constant dense<0.000000e+00> : vector<8x512xf32>
    %49 = tpu.matmul %47, %48, %cst_20 {dimension_numbers = #tpu.dot_dimension_numbers<[1], [0], [0], [1], [0, 0, 1, 1], [], []>} : vector<8x128xbf16>, vector<128x512xbf16>, vector<8x512xf32> -> vector<8x512xf32>
    %50 = arith.addf %46, %49 : vector<8x512xf32>
    %51 = vector.extract_strided_slice %50 {offsets = [0, 0], sizes = [8, 128], strides = [1, 1]} : vector<8x512xf32> to vector<8x128xf32>
    %52 = arith.negf %51 : vector<8x128xf32>
    %53 = math.exp %52 : vector<8x128xf32>
    %cst_21 = arith.constant 1.000000e+00 : f32
    %54 = vector.broadcast %cst_21 : f32 to vector<8x128xf32>
    %55 = arith.addf %54, %53 : vector<8x128xf32>
    %56 = arith.divf %54, %55 : vector<8x128xf32>
    %57 = vector.extract_strided_slice %50 {offsets = [0, 128], sizes = [8, 128], strides = [1, 1]} : vector<8x512xf32> to vector<8x128xf32>
    %58 = arith.negf %57 : vector<8x128xf32>
    %59 = math.exp %58 : vector<8x128xf32>
    %cst_22 = arith.constant 1.000000e+00 : f32
    %60 = vector.broadcast %cst_22 : f32 to vector<8x128xf32>
    %61 = arith.addf %60, %59 : vector<8x128xf32>
    %62 = arith.divf %60, %61 : vector<8x128xf32>
    %63 = vector.extract_strided_slice %50 {offsets = [0, 256], sizes = [8, 128], strides = [1, 1]} : vector<8x512xf32> to vector<8x128xf32>
    %64 = math.tanh %63 : vector<8x128xf32>
    %65 = vector.extract_strided_slice %50 {offsets = [0, 384], sizes = [8, 128], strides = [1, 1]} : vector<8x512xf32> to vector<8x128xf32>
    %66 = arith.negf %65 : vector<8x128xf32>
    %67 = math.exp %66 : vector<8x128xf32>
    %cst_23 = arith.constant 1.000000e+00 : f32
    %68 = vector.broadcast %cst_23 : f32 to vector<8x128xf32>
    %69 = arith.addf %68, %67 : vector<8x128xf32>
    %70 = arith.divf %68, %69 : vector<8x128xf32>
    %71 = arith.mulf %62, %38 : vector<8x128xf32>
    %72 = arith.mulf %56, %64 : vector<8x128xf32>
    %73 = arith.addf %71, %72 : vector<8x128xf32>
    %74 = math.tanh %73 : vector<8x128xf32>
    %75 = arith.mulf %70, %74 : vector<8x128xf32>
    %76 = arith.index_cast %44 : i32 to index
    %c0_24 = arith.constant 0 : index
    %77 = vector.load %arg9[%76, %c0_24] : memref<72x128xf32, #tpu.memory_space<vmem>>, vector<8x128xf32>
    tpu.vector_store %arg9[%76, %c0_24], %75 {strides = array<i32>} : memref<72x128xf32, #tpu.memory_space<vmem>>, vector<8x128xf32>,
    %c2_i32 = arith.constant 2 : i32
    %c8_i32_25 = arith.constant 8 : i32
    %78 = arith.muli %c2_i32, %c8_i32_25 : i32
    %79 = tpu.assume_multiple %78, 8 : i32
    %80 = arith.index_cast %79 : i32 to index
    %c0_26 = arith.constant 0 : index
    %81 = vector.load %arg10[%80, %c0_26] : memref<72x512xf32, #tpu.memory_space<vmem>>, vector<8x512xf32>
    %82 = arith.truncf %75 : vector<8x128xf32> to vector<8x128xbf16>
    %c0_27 = arith.constant 0 : index
    %c0_28 = arith.constant 0 : index
    %83 = vector.load %arg3[%c0_27, %c0_28] : memref<128x512xbf16, #tpu.memory_space<vmem>>, vector<128x512xbf16>
    %cst_29 = arith.constant dense<0.000000e+00> : vector<8x512xf32>
    %84 = tpu.matmul %82, %83, %cst_29 {dimension_numbers = #tpu.dot_dimension_numbers<[1], [0], [0], [1], [0, 0, 1, 1], [], []>} : vector<8x128xbf16>, vector<128x512xbf16>, vector<8x512xf32> -> vector<8x512xf32>
    %85 = arith.addf %81, %84 : vector<8x512xf32>
    %86 = vector.extract_strided_slice %85 {offsets = [0, 0], sizes = [8, 128], strides = [1, 1]} : vector<8x512xf32> to vector<8x128xf32>
    %87 = arith.negf %86 : vector<8x128xf32>
    %88 = math.exp %87 : vector<8x128xf32>
    %cst_30 = arith.constant 1.000000e+00 : f32
    %89 = vector.broadcast %cst_30 : f32 to vector<8x128xf32>
    %90 = arith.addf %89, %88 : vector<8x128xf32>
    %91 = arith.divf %89, %90 : vector<8x128xf32>
    %92 = vector.extract_strided_slice %85 {offsets = [0, 128], sizes = [8, 128], strides = [1, 1]} : vector<8x512xf32> to vector<8x128xf32>
    %93 = arith.negf %92 : vector<8x128xf32>
    %94 = math.exp %93 : vector<8x128xf32>
    %cst_31 = arith.constant 1.000000e+00 : f32
    %95 = vector.broadcast %cst_31 : f32 to vector<8x128xf32>
    %96 = arith.addf %95, %94 : vector<8x128xf32>
    %97 = arith.divf %95, %96 : vector<8x128xf32>
    %98 = vector.extract_strided_slice %85 {offsets = [0, 256], sizes = [8, 128], strides = [1, 1]} : vector<8x512xf32> to vector<8x128xf32>
    %99 = math.tanh %98 : vector<8x128xf32>
    %100 = vector.extract_strided_slice %85 {offsets = [0, 384], sizes = [8, 128], strides = [1, 1]} : vector<8x512xf32> to vector<8x128xf32>
    %101 = arith.negf %100 : vector<8x128xf32>
    %102 = math.exp %101 : vector<8x128xf32>
    %cst_32 = arith.constant 1.000000e+00 : f32
    %103 = vector.broadcast %cst_32 : f32 to vector<8x128xf32>
    %104 = arith.addf %103, %102 : vector<8x128xf32>
    %105 = arith.divf %103, %104 : vector<8x128xf32>
    %106 = arith.mulf %97, %73 : vector<8x128xf32>
    %107 = arith.mulf %91, %99 : vector<8x128xf32>
    %108 = arith.addf %106, %107 : vector<8x128xf32>
    %109 = math.tanh %108 : vector<8x128xf32>
    %110 = arith.mulf %105, %109 : vector<8x128xf32>
    %111 = arith.index_cast %79 : i32 to index
    %c0_33 = arith.constant 0 : index
    %112 = vector.load %arg9[%111, %c0_33] : memref<72x128xf32, #tpu.memory_space<vmem>>, vector<8x128xf32>
    tpu.vector_store %arg9[%111, %c0_33], %110 {strides = array<i32>} : memref<72x128xf32, #tpu.memory_space<vmem>>, vector<8x128xf32>,
    %c3_i32 = arith.constant 3 : i32
    %c8_i32_34 = arith.constant 8 : i32
    %113 = arith.muli %c3_i32, %c8_i32_34 : i32
    %114 = tpu.assume_multiple %113, 8 : i32
    %115 = arith.index_cast %114 : i32 to index
    %c0_35 = arith.constant 0 : index
    %116 = vector.load %arg10[%115, %c0_35] : memref<72x512xf32, #tpu.memory_space<vmem>>, vector<8x512xf32>
    %117 = arith.truncf %110 : vector<8x128xf32> to vector<8x128xbf16>
    %c0_36 = arith.constant 0 : index
    %c0_37 = arith.constant 0 : index
    %118 = vector.load %arg3[%c0_36, %c0_37] : memref<128x512xbf16, #tpu.memory_space<vmem>>, vector<128x512xbf16>
    %cst_38 = arith.constant dense<0.000000e+00> : vector<8x512xf32>
    %119 = tpu.matmul %117, %118, %cst_38 {dimension_numbers = #tpu.dot_dimension_numbers<[1], [0], [0], [1], [0, 0, 1, 1], [], []>} : vector<8x128xbf16>, vector<128x512xbf16>, vector<8x512xf32> -> vector<8x512xf32>
    %120 = arith.addf %116, %119 : vector<8x512xf32>
    %121 = vector.extract_strided_slice %120 {offsets = [0, 0], sizes = [8, 128], strides = [1, 1]} : vector<8x512xf32> to vector<8x128xf32>
    %122 = arith.negf %121 : vector<8x128xf32>
    %123 = math.exp %122 : vector<8x128xf32>
    %cst_39 = arith.constant 1.000000e+00 : f32
    %124 = vector.broadcast %cst_39 : f32 to vector<8x128xf32>
    %125 = arith.addf %124, %123 : vector<8x128xf32>
    %126 = arith.divf %124, %125 : vector<8x128xf32>
    %127 = vector.extract_strided_slice %120 {offsets = [0, 128], sizes = [8, 128], strides = [1, 1]} : vector<8x512xf32> to vector<8x128xf32>
    %128 = arith.negf %127 : vector<8x128xf32>
    %129 = math.exp %128 : vector<8x128xf32>
    %cst_40 = arith.constant 1.000000e+00 : f32
    %130 = vector.broadcast %cst_40 : f32 to vector<8x128xf32>
    %131 = arith.addf %130, %129 : vector<8x128xf32>
    %132 = arith.divf %130, %131 : vector<8x128xf32>
    %133 = vector.extract_strided_slice %120 {offsets = [0, 256], sizes = [8, 128], strides = [1, 1]} : vector<8x512xf32> to vector<8x128xf32>
    %134 = math.tanh %133 : vector<8x128xf32>
    %135 = vector.extract_strided_slice %120 {offsets = [0, 384], sizes = [8, 128], strides = [1, 1]} : vector<8x512xf32> to vector<8x128xf32>
    %136 = arith.negf %135 : vector<8x128xf32>
    %137 = math.exp %136 : vector<8x128xf32>
    %cst_41 = arith.constant 1.000000e+00 : f32
    %138 = vector.broadcast %cst_41 : f32 to vector<8x128xf32>
    %139 = arith.addf %138, %137 : vector<8x128xf32>
    %140 = arith.divf %138, %139 : vector<8x128xf32>
    %141 = arith.mulf %132, %108 : vector<8x128xf32>
    %142 = arith.mulf %126, %134 : vector<8x128xf32>
    %143 = arith.addf %141, %142 : vector<8x128xf32>
    %144 = math.tanh %143 : vector<8x128xf32>
    %145 = arith.mulf %140, %144 : vector<8x128xf32>
    %146 = arith.index_cast %114 : i32 to index
    %c0_42 = arith.constant 0 : index
    %147 = vector.load %arg9[%146, %c0_42] : memref<72x128xf32, #tpu.memory_space<vmem>>, vector<8x128xf32>
    tpu.vector_store %arg9[%146, %c0_42], %145 {strides = array<i32>} : memref<72x128xf32, #tpu.memory_space<vmem>>, vector<8x128xf32>,
    %c4_i32 = arith.constant 4 : i32
    %c8_i32_43 = arith.constant 8 : i32
    %148 = arith.muli %c4_i32, %c8_i32_43 : i32
    %149 = tpu.assume_multiple %148, 8 : i32
    %150 = arith.index_cast %149 : i32 to index
    %c0_44 = arith.constant 0 : index
    %151 = vector.load %arg10[%150, %c0_44] : memref<72x512xf32, #tpu.memory_space<vmem>>, vector<8x512xf32>
    %152 = arith.truncf %145 : vector<8x128xf32> to vector<8x128xbf16>
    %c0_45 = arith.constant 0 : index
    %c0_46 = arith.constant 0 : index
    %153 = vector.load %arg3[%c0_45, %c0_46] : memref<128x512xbf16, #tpu.memory_space<vmem>>, vector<128x512xbf16>
    %cst_47 = arith.constant dense<0.000000e+00> : vector<8x512xf32>
    %154 = tpu.matmul %152, %153, %cst_47 {dimension_numbers = #tpu.dot_dimension_numbers<[1], [0], [0], [1], [0, 0, 1, 1], [], []>} : vector<8x128xbf16>, vector<128x512xbf16>, vector<8x512xf32> -> vector<8x512xf32>
    %155 = arith.addf %151, %154 : vector<8x512xf32>
    %156 = vector.extract_strided_slice %155 {offsets = [0, 0], sizes = [8, 128], strides = [1, 1]} : vector<8x512xf32> to vector<8x128xf32>
    %157 = arith.negf %156 : vector<8x128xf32>
    %158 = math.exp %157 : vector<8x128xf32>
    %cst_48 = arith.constant 1.000000e+00 : f32
    %159 = vector.broadcast %cst_48 : f32 to vector<8x128xf32>
    %160 = arith.addf %159, %158 : vector<8x128xf32>
    %161 = arith.divf %159, %160 : vector<8x128xf32>
    %162 = vector.extract_strided_slice %155 {offsets = [0, 128], sizes = [8, 128], strides = [1, 1]} : vector<8x512xf32> to vector<8x128xf32>
    %163 = arith.negf %162 : vector<8x128xf32>
    %164 = math.exp %163 : vector<8x128xf32>
    %cst_49 = arith.constant 1.000000e+00 : f32
    %165 = vector.broadcast %cst_49 : f32 to vector<8x128xf32>
    %166 = arith.addf %165, %164 : vector<8x128xf32>
    %167 = arith.divf %165, %166 : vector<8x128xf32>
    %168 = vector.extract_strided_slice %155 {offsets = [0, 256], sizes = [8, 128], strides = [1, 1]} : vector<8x512xf32> to vector<8x128xf32>
    %169 = math.tanh %168 : vector<8x128xf32>
    %170 = vector.extract_strided_slice %155 {offsets = [0, 384], sizes = [8, 128], strides = [1, 1]} : vector<8x512xf32> to vector<8x128xf32>
    %171 = arith.negf %170 : vector<8x128xf32>
    %172 = math.exp %171 : vector<8x128xf32>
    %cst_50 = arith.constant 1.000000e+00 : f32
    %173 = vector.broadcast %cst_50 : f32 to vector<8x128xf32>
    %174 = arith.addf %173, %172 : vector<8x128xf32>
    %175 = arith.divf %173, %174 : vector<8x128xf32>
    %176 = arith.mulf %167, %143 : vector<8x128xf32>
    %177 = arith.mulf %161, %169 : vector<8x128xf32>
    %178 = arith.addf %176, %177 : vector<8x128xf32>
    %179 = math.tanh %178 : vector<8x128xf32>
    %180 = arith.mulf %175, %179 : vector<8x128xf32>
    %181 = arith.index_cast %149 : i32 to index
    %c0_51 = arith.constant 0 : index
    %182 = vector.load %arg9[%181, %c0_51] : memref<72x128xf32, #tpu.memory_space<vmem>>, vector<8x128xf32>
    tpu.vector_store %arg9[%181, %c0_51], %180 {strides = array<i32>} : memref<72x128xf32, #tpu.memory_space<vmem>>, vector<8x128xf32>,
    %c5_i32 = arith.constant 5 : i32
    %c8_i32_52 = arith.constant 8 : i32
    %183 = arith.muli %c5_i32, %c8_i32_52 : i32
    %184 = tpu.assume_multiple %183, 8 : i32
    %185 = arith.index_cast %184 : i32 to index
    %c0_53 = arith.constant 0 : index
    %186 = vector.load %arg10[%185, %c0_53] : memref<72x512xf32, #tpu.memory_space<vmem>>, vector<8x512xf32>
    %187 = arith.truncf %180 : vector<8x128xf32> to vector<8x128xbf16>
    %c0_54 = arith.constant 0 : index
    %c0_55 = arith.constant 0 : index
    %188 = vector.load %arg3[%c0_54, %c0_55] : memref<128x512xbf16, #tpu.memory_space<vmem>>, vector<128x512xbf16>
    %cst_56 = arith.constant dense<0.000000e+00> : vector<8x512xf32>
    %189 = tpu.matmul %187, %188, %cst_56 {dimension_numbers = #tpu.dot_dimension_numbers<[1], [0], [0], [1], [0, 0, 1, 1], [], []>} : vector<8x128xbf16>, vector<128x512xbf16>, vector<8x512xf32> -> vector<8x512xf32>
    %190 = arith.addf %186, %189 : vector<8x512xf32>
    %191 = vector.extract_strided_slice %190 {offsets = [0, 0], sizes = [8, 128], strides = [1, 1]} : vector<8x512xf32> to vector<8x128xf32>
    %192 = arith.negf %191 : vector<8x128xf32>
    %193 = math.exp %192 : vector<8x128xf32>
    %cst_57 = arith.constant 1.000000e+00 : f32
    %194 = vector.broadcast %cst_57 : f32 to vector<8x128xf32>
    %195 = arith.addf %194, %193 : vector<8x128xf32>
    %196 = arith.divf %194, %195 : vector<8x128xf32>
    %197 = vector.extract_strided_slice %190 {offsets = [0, 128], sizes = [8, 128], strides = [1, 1]} : vector<8x512xf32> to vector<8x128xf32>
    %198 = arith.negf %197 : vector<8x128xf32>
    %199 = math.exp %198 : vector<8x128xf32>
    %cst_58 = arith.constant 1.000000e+00 : f32
    %200 = vector.broadcast %cst_58 : f32 to vector<8x128xf32>
    %201 = arith.addf %200, %199 : vector<8x128xf32>
    %202 = arith.divf %200, %201 : vector<8x128xf32>
    %203 = vector.extract_strided_slice %190 {offsets = [0, 256], sizes = [8, 128], strides = [1, 1]} : vector<8x512xf32> to vector<8x128xf32>
    %204 = math.tanh %203 : vector<8x128xf32>
    %205 = vector.extract_strided_slice %190 {offsets = [0, 384], sizes = [8, 128], strides = [1, 1]} : vector<8x512xf32> to vector<8x128xf32>
    %206 = arith.negf %205 : vector<8x128xf32>
    %207 = math.exp %206 : vector<8x128xf32>
    %cst_59 = arith.constant 1.000000e+00 : f32
    %208 = vector.broadcast %cst_59 : f32 to vector<8x128xf32>
    %209 = arith.addf %208, %207 : vector<8x128xf32>
    %210 = arith.divf %208, %209 : vector<8x128xf32>
    %211 = arith.mulf %202, %178 : vector<8x128xf32>
    %212 = arith.mulf %196, %204 : vector<8x128xf32>
    %213 = arith.addf %211, %212 : vector<8x128xf32>
    %214 = math.tanh %213 : vector<8x128xf32>
    %215 = arith.mulf %210, %214 : vector<8x128xf32>
    %216 = arith.index_cast %184 : i32 to index
    %c0_60 = arith.constant 0 : index
    %217 = vector.load %arg9[%216, %c0_60] : memref<72x128xf32, #tpu.memory_space<vmem>>, vector<8x128xf32>
    tpu.vector_store %arg9[%216, %c0_60], %215 {strides = array<i32>} : memref<72x128xf32, #tpu.memory_space<vmem>>, vector<8x128xf32>,
    %c6_i32 = arith.constant 6 : i32
    %c8_i32_61 = arith.constant 8 : i32
    %218 = arith.muli %c6_i32, %c8_i32_61 : i32
    %219 = tpu.assume_multiple %218, 8 : i32
    %220 = arith.index_cast %219 : i32 to index
    %c0_62 = arith.constant 0 : index
    %221 = vector.load %arg10[%220, %c0_62] : memref<72x512xf32, #tpu.memory_space<vmem>>, vector<8x512xf32>
    %222 = arith.truncf %215 : vector<8x128xf32> to vector<8x128xbf16>
    %c0_63 = arith.constant 0 : index
    %c0_64 = arith.constant 0 : index
    %223 = vector.load %arg3[%c0_63, %c0_64] : memref<128x512xbf16, #tpu.memory_space<vmem>>, vector<128x512xbf16>
    %cst_65 = arith.constant dense<0.000000e+00> : vector<8x512xf32>
    %224 = tpu.matmul %222, %223, %cst_65 {dimension_numbers = #tpu.dot_dimension_numbers<[1], [0], [0], [1], [0, 0, 1, 1], [], []>} : vector<8x128xbf16>, vector<128x512xbf16>, vector<8x512xf32> -> vector<8x512xf32>
    %225 = arith.addf %221, %224 : vector<8x512xf32>
    %226 = vector.extract_strided_slice %225 {offsets = [0, 0], sizes = [8, 128], strides = [1, 1]} : vector<8x512xf32> to vector<8x128xf32>
    %227 = arith.negf %226 : vector<8x128xf32>
    %228 = math.exp %227 : vector<8x128xf32>
    %cst_66 = arith.constant 1.000000e+00 : f32
    %229 = vector.broadcast %cst_66 : f32 to vector<8x128xf32>
    %230 = arith.addf %229, %228 : vector<8x128xf32>
    %231 = arith.divf %229, %230 : vector<8x128xf32>
    %232 = vector.extract_strided_slice %225 {offsets = [0, 128], sizes = [8, 128], strides = [1, 1]} : vector<8x512xf32> to vector<8x128xf32>
    %233 = arith.negf %232 : vector<8x128xf32>
    %234 = math.exp %233 : vector<8x128xf32>
    %cst_67 = arith.constant 1.000000e+00 : f32
    %235 = vector.broadcast %cst_67 : f32 to vector<8x128xf32>
    %236 = arith.addf %235, %234 : vector<8x128xf32>
    %237 = arith.divf %235, %236 : vector<8x128xf32>
    %238 = vector.extract_strided_slice %225 {offsets = [0, 256], sizes = [8, 128], strides = [1, 1]} : vector<8x512xf32> to vector<8x128xf32>
    %239 = math.tanh %238 : vector<8x128xf32>
    %240 = vector.extract_strided_slice %225 {offsets = [0, 384], sizes = [8, 128], strides = [1, 1]} : vector<8x512xf32> to vector<8x128xf32>
    %241 = arith.negf %240 : vector<8x128xf32>
    %242 = math.exp %241 : vector<8x128xf32>
    %cst_68 = arith.constant 1.000000e+00 : f32
    %243 = vector.broadcast %cst_68 : f32 to vector<8x128xf32>
    %244 = arith.addf %243, %242 : vector<8x128xf32>
    %245 = arith.divf %243, %244 : vector<8x128xf32>
    %246 = arith.mulf %237, %213 : vector<8x128xf32>
    %247 = arith.mulf %231, %239 : vector<8x128xf32>
    %248 = arith.addf %246, %247 : vector<8x128xf32>
    %249 = math.tanh %248 : vector<8x128xf32>
    %250 = arith.mulf %245, %249 : vector<8x128xf32>
    %251 = arith.index_cast %219 : i32 to index
    %c0_69 = arith.constant 0 : index
    %252 = vector.load %arg9[%251, %c0_69] : memref<72x128xf32, #tpu.memory_space<vmem>>, vector<8x128xf32>
    tpu.vector_store %arg9[%251, %c0_69], %250 {strides = array<i32>} : memref<72x128xf32, #tpu.memory_space<vmem>>, vector<8x128xf32>,
    %c7_i32 = arith.constant 7 : i32
    %c8_i32_70 = arith.constant 8 : i32
    %253 = arith.muli %c7_i32, %c8_i32_70 : i32
    %254 = tpu.assume_multiple %253, 8 : i32
    %255 = arith.index_cast %254 : i32 to index
    %c0_71 = arith.constant 0 : index
    %256 = vector.load %arg10[%255, %c0_71] : memref<72x512xf32, #tpu.memory_space<vmem>>, vector<8x512xf32>
    %257 = arith.truncf %250 : vector<8x128xf32> to vector<8x128xbf16>
    %c0_72 = arith.constant 0 : index
    %c0_73 = arith.constant 0 : index
    %258 = vector.load %arg3[%c0_72, %c0_73] : memref<128x512xbf16, #tpu.memory_space<vmem>>, vector<128x512xbf16>
    %cst_74 = arith.constant dense<0.000000e+00> : vector<8x512xf32>
    %259 = tpu.matmul %257, %258, %cst_74 {dimension_numbers = #tpu.dot_dimension_numbers<[1], [0], [0], [1], [0, 0, 1, 1], [], []>} : vector<8x128xbf16>, vector<128x512xbf16>, vector<8x512xf32> -> vector<8x512xf32>
    %260 = arith.addf %256, %259 : vector<8x512xf32>
    %261 = vector.extract_strided_slice %260 {offsets = [0, 0], sizes = [8, 128], strides = [1, 1]} : vector<8x512xf32> to vector<8x128xf32>
    %262 = arith.negf %261 : vector<8x128xf32>
    %263 = math.exp %262 : vector<8x128xf32>
    %cst_75 = arith.constant 1.000000e+00 : f32
    %264 = vector.broadcast %cst_75 : f32 to vector<8x128xf32>
    %265 = arith.addf %264, %263 : vector<8x128xf32>
    %266 = arith.divf %264, %265 : vector<8x128xf32>
    %267 = vector.extract_strided_slice %260 {offsets = [0, 128], sizes = [8, 128], strides = [1, 1]} : vector<8x512xf32> to vector<8x128xf32>
    %268 = arith.negf %267 : vector<8x128xf32>
    %269 = math.exp %268 : vector<8x128xf32>
    %cst_76 = arith.constant 1.000000e+00 : f32
    %270 = vector.broadcast %cst_76 : f32 to vector<8x128xf32>
    %271 = arith.addf %270, %269 : vector<8x128xf32>
    %272 = arith.divf %270, %271 : vector<8x128xf32>
    %273 = vector.extract_strided_slice %260 {offsets = [0, 256], sizes = [8, 128], strides = [1, 1]} : vector<8x512xf32> to vector<8x128xf32>
    %274 = math.tanh %273 : vector<8x128xf32>
    %275 = vector.extract_strided_slice %260 {offsets = [0, 384], sizes = [8, 128], strides = [1, 1]} : vector<8x512xf32> to vector<8x128xf32>
    %276 = arith.negf %275 : vector<8x128xf32>
    %277 = math.exp %276 : vector<8x128xf32>
    %cst_77 = arith.constant 1.000000e+00 : f32
    %278 = vector.broadcast %cst_77 : f32 to vector<8x128xf32>
    %279 = arith.addf %278, %277 : vector<8x128xf32>
    %280 = arith.divf %278, %279 : vector<8x128xf32>
    %281 = arith.mulf %272, %248 : vector<8x128xf32>
    %282 = arith.mulf %266, %274 : vector<8x128xf32>
    %283 = arith.addf %281, %282 : vector<8x128xf32>
    %284 = math.tanh %283 : vector<8x128xf32>
    %285 = arith.mulf %280, %284 : vector<8x128xf32>
    %286 = arith.index_cast %254 : i32 to index
    %c0_78 = arith.constant 0 : index
    %287 = vector.load %arg9[%286, %c0_78] : memref<72x128xf32, #tpu.memory_space<vmem>>, vector<8x128xf32>
    tpu.vector_store %arg9[%286, %c0_78], %285 {strides = array<i32>} : memref<72x128xf32, #tpu.memory_space<vmem>>, vector<8x128xf32>,
    %c8_i32_79 = arith.constant 8 : i32
    %c8_i32_80 = arith.constant 8 : i32
    %288 = arith.muli %c8_i32_79, %c8_i32_80 : i32
    %289 = tpu.assume_multiple %288, 8 : i32
    %290 = arith.index_cast %289 : i32 to index
    %c0_81 = arith.constant 0 : index
    %291 = vector.load %arg10[%290, %c0_81] : memref<72x512xf32, #tpu.memory_space<vmem>>, vector<8x512xf32>
    %292 = arith.truncf %285 : vector<8x128xf32> to vector<8x128xbf16>
    %c0_82 = arith.constant 0 : index
    %c0_83 = arith.constant 0 : index
    %293 = vector.load %arg3[%c0_82, %c0_83] : memref<128x512xbf16, #tpu.memory_space<vmem>>, vector<128x512xbf16>
    %cst_84 = arith.constant dense<0.000000e+00> : vector<8x512xf32>
    %294 = tpu.matmul %292, %293, %cst_84 {dimension_numbers = #tpu.dot_dimension_numbers<[1], [0], [0], [1], [0, 0, 1, 1], [], []>} : vector<8x128xbf16>, vector<128x512xbf16>, vector<8x512xf32> -> vector<8x512xf32>
    %295 = arith.addf %291, %294 : vector<8x512xf32>
    %296 = vector.extract_strided_slice %295 {offsets = [0, 0], sizes = [8, 128], strides = [1, 1]} : vector<8x512xf32> to vector<8x128xf32>
    %297 = arith.negf %296 : vector<8x128xf32>
    %298 = math.exp %297 : vector<8x128xf32>
    %cst_85 = arith.constant 1.000000e+00 : f32
    %299 = vector.broadcast %cst_85 : f32 to vector<8x128xf32>
    %300 = arith.addf %299, %298 : vector<8x128xf32>
    %301 = arith.divf %299, %300 : vector<8x128xf32>
    %302 = vector.extract_strided_slice %295 {offsets = [0, 128], sizes = [8, 128], strides = [1, 1]} : vector<8x512xf32> to vector<8x128xf32>
    %303 = arith.negf %302 : vector<8x128xf32>
    %304 = math.exp %303 : vector<8x128xf32>
    %cst_86 = arith.constant 1.000000e+00 : f32
    %305 = vector.broadcast %cst_86 : f32 to vector<8x128xf32>
    %306 = arith.addf %305, %304 : vector<8x128xf32>
    %307 = arith.divf %305, %306 : vector<8x128xf32>
    %308 = vector.extract_strided_slice %295 {offsets = [0, 256], sizes = [8, 128], strides = [1, 1]} : vector<8x512xf32> to vector<8x128xf32>
    %309 = math.tanh %308 : vector<8x128xf32>
    %310 = vector.extract_strided_slice %295 {offsets = [0, 384], sizes = [8, 128], strides = [1, 1]} : vector<8x512xf32> to vector<8x128xf32>
    %311 = arith.negf %310 : vector<8x128xf32>
    %312 = math.exp %311 : vector<8x128xf32>
    %cst_87 = arith.constant 1.000000e+00 : f32
    %313 = vector.broadcast %cst_87 : f32 to vector<8x128xf32>
    %314 = arith.addf %313, %312 : vector<8x128xf32>
    %315 = arith.divf %313, %314 : vector<8x128xf32>
    %316 = arith.mulf %307, %283 : vector<8x128xf32>
    %317 = arith.mulf %301, %309 : vector<8x128xf32>
    %318 = arith.addf %316, %317 : vector<8x128xf32>
    %319 = math.tanh %318 : vector<8x128xf32>
    %320 = arith.mulf %315, %319 : vector<8x128xf32>
    %321 = arith.index_cast %289 : i32 to index
    %c0_88 = arith.constant 0 : index
    %322 = vector.load %arg9[%321, %c0_88] : memref<72x128xf32, #tpu.memory_space<vmem>>, vector<8x128xf32>
    tpu.vector_store %arg9[%321, %c0_88], %320 {strides = array<i32>} : memref<72x128xf32, #tpu.memory_space<vmem>>, vector<8x128xf32>,
    %c9_i32 = arith.constant 9 : i32
    %c0_89 = arith.constant 0 : index
    %c0_90 = arith.constant 0 : index
    %323 = vector.load %arg9[%c0_89, %c0_90] : memref<72x128xf32, #tpu.memory_space<vmem>>, vector<72x128xf32>
    %324 = arith.truncf %323 : vector<72x128xf32> to vector<72x128xbf16>
    %c0_91 = arith.constant 0 : index
    %c0_92 = arith.constant 0 : index
    %325 = vector.load %arg5[%c0_91, %c0_92] : memref<128x512xbf16, #tpu.memory_space<vmem>>, vector<128x512xbf16>
    %cst_93 = arith.constant dense<0.000000e+00> : vector<72x512xf32>
    %326 = tpu.matmul %324, %325, %cst_93 {dimension_numbers = #tpu.dot_dimension_numbers<[1], [0], [0], [1], [0, 0, 1, 1], [], []>} : vector<72x128xbf16>, vector<128x512xbf16>, vector<72x512xf32> -> vector<72x512xf32>
    %c0_94 = arith.constant 0 : index
    %c0_95 = arith.constant 0 : index
    %327 = vector.load %arg7[%c0_94, %c0_95] : memref<1x512xf32, #tpu.memory_space<vmem>>, vector<1x512xf32>
    %328 = vector.broadcast %327 : vector<1x512xf32> to vector<72x512xf32>
    %329 = arith.addf %326, %328 : vector<72x512xf32>
    %c0_96 = arith.constant 0 : index
    %c0_97 = arith.constant 0 : index
    %330 = vector.load %arg10[%c0_96, %c0_97] : memref<72x512xf32, #tpu.memory_space<vmem>>, vector<72x512xf32>
    tpu.vector_store %arg10[%c0_96, %c0_97], %329 {strides = array<i32>} : memref<72x512xf32, #tpu.memory_space<vmem>>, vector<72x512xf32>,
    %cst_98 = arith.constant 0.000000e+00 : f32
    %331 = vector.broadcast %cst_98 : f32 to vector<8x128xf32>
    %c0_i32_99 = arith.constant 0 : i32
    %c8_i32_100 = arith.constant 8 : i32
    %332 = arith.muli %c0_i32_99, %c8_i32_100 : i32
    %333 = tpu.assume_multiple %332, 8 : i32
    %334 = arith.index_cast %333 : i32 to index
    %c0_101 = arith.constant 0 : index
    %335 = vector.load %arg10[%334, %c0_101] : memref<72x512xf32, #tpu.memory_space<vmem>>, vector<8x512xf32>
    %336 = arith.truncf %331 : vector<8x128xf32> to vector<8x128xbf16>
    %c0_102 = arith.constant 0 : index
    %c0_103 = arith.constant 0 : index
    %337 = vector.load %arg6[%c0_102, %c0_103] : memref<128x512xbf16, #tpu.memory_space<vmem>>, vector<128x512xbf16>
    %cst_104 = arith.constant dense<0.000000e+00> : vector<8x512xf32>
    %338 = tpu.matmul %336, %337, %cst_104 {dimension_numbers = #tpu.dot_dimension_numbers<[1], [0], [0], [1], [0, 0, 1, 1], [], []>} : vector<8x128xbf16>, vector<128x512xbf16>, vector<8x512xf32> -> vector<8x512xf32>
    %339 = arith.addf %335, %338 : vector<8x512xf32>
    %340 = vector.extract_strided_slice %339 {offsets = [0, 0], sizes = [8, 128], strides = [1, 1]} : vector<8x512xf32> to vector<8x128xf32>
    %341 = arith.negf %340 : vector<8x128xf32>
    %342 = math.exp %341 : vector<8x128xf32>
    %cst_105 = arith.constant 1.000000e+00 : f32
    %343 = vector.broadcast %cst_105 : f32 to vector<8x128xf32>
    %344 = arith.addf %343, %342 : vector<8x128xf32>
    %345 = arith.divf %343, %344 : vector<8x128xf32>
    %346 = vector.extract_strided_slice %339 {offsets = [0, 128], sizes = [8, 128], strides = [1, 1]} : vector<8x512xf32> to vector<8x128xf32>
    %347 = arith.negf %346 : vector<8x128xf32>
    %348 = math.exp %347 : vector<8x128xf32>
    %cst_106 = arith.constant 1.000000e+00 : f32
    %349 = vector.broadcast %cst_106 : f32 to vector<8x128xf32>
    %350 = arith.addf %349, %348 : vector<8x128xf32>
    %351 = arith.divf %349, %350 : vector<8x128xf32>
    %352 = vector.extract_strided_slice %339 {offsets = [0, 256], sizes = [8, 128], strides = [1, 1]} : vector<8x512xf32> to vector<8x128xf32>
    %353 = math.tanh %352 : vector<8x128xf32>
    %354 = vector.extract_strided_slice %339 {offsets = [0, 384], sizes = [8, 128], strides = [1, 1]} : vector<8x512xf32> to vector<8x128xf32>
    %355 = arith.negf %354 : vector<8x128xf32>
    %356 = math.exp %355 : vector<8x128xf32>
    %cst_107 = arith.constant 1.000000e+00 : f32
    %357 = vector.broadcast %cst_107 : f32 to vector<8x128xf32>
    %358 = arith.addf %357, %356 : vector<8x128xf32>
    %359 = arith.divf %357, %358 : vector<8x128xf32>
    %360 = arith.mulf %351, %331 : vector<8x128xf32>
    %361 = arith.mulf %345, %353 : vector<8x128xf32>
    %362 = arith.addf %360, %361 : vector<8x128xf32>
    %363 = math.tanh %362 : vector<8x128xf32>
    %364 = arith.mulf %359, %363 : vector<8x128xf32>
    %365 = arith.index_cast %333 : i32 to index
    %c0_108 = arith.constant 0 : index
    %366 = vector.load %arg8[%365, %c0_108] : memref<72x128xf32, #tpu.memory_space<vmem>>, vector<8x128xf32>
    tpu.vector_store %arg8[%365, %c0_108], %364 {strides = array<i32>} : memref<72x128xf32, #tpu.memory_space<vmem>>, vector<8x128xf32>,
    %c1_i32_109 = arith.constant 1 : i32
    %c8_i32_110 = arith.constant 8 : i32
    %367 = arith.muli %c1_i32_109, %c8_i32_110 : i32
    %368 = tpu.assume_multiple %367, 8 : i32
    %369 = arith.index_cast %368 : i32 to index
    %c0_111 = arith.constant 0 : index
    %370 = vector.load %arg10[%369, %c0_111] : memref<72x512xf32, #tpu.memory_space<vmem>>, vector<8x512xf32>
    %371 = arith.truncf %364 : vector<8x128xf32> to vector<8x128xbf16>
    %c0_112 = arith.constant 0 : index
    %c0_113 = arith.constant 0 : index
    %372 = vector.load %arg6[%c0_112, %c0_113] : memref<128x512xbf16, #tpu.memory_space<vmem>>, vector<128x512xbf16>
    %cst_114 = arith.constant dense<0.000000e+00> : vector<8x512xf32>
    %373 = tpu.matmul %371, %372, %cst_114 {dimension_numbers = #tpu.dot_dimension_numbers<[1], [0], [0], [1], [0, 0, 1, 1], [], []>} : vector<8x128xbf16>, vector<128x512xbf16>, vector<8x512xf32> -> vector<8x512xf32>
    %374 = arith.addf %370, %373 : vector<8x512xf32>
    %375 = vector.extract_strided_slice %374 {offsets = [0, 0], sizes = [8, 128], strides = [1, 1]} : vector<8x512xf32> to vector<8x128xf32>
    %376 = arith.negf %375 : vector<8x128xf32>
    %377 = math.exp %376 : vector<8x128xf32>
    %cst_115 = arith.constant 1.000000e+00 : f32
    %378 = vector.broadcast %cst_115 : f32 to vector<8x128xf32>
    %379 = arith.addf %378, %377 : vector<8x128xf32>
    %380 = arith.divf %378, %379 : vector<8x128xf32>
    %381 = vector.extract_strided_slice %374 {offsets = [0, 128], sizes = [8, 128], strides = [1, 1]} : vector<8x512xf32> to vector<8x128xf32>
    %382 = arith.negf %381 : vector<8x128xf32>
    %383 = math.exp %382 : vector<8x128xf32>
    %cst_116 = arith.constant 1.000000e+00 : f32
    %384 = vector.broadcast %cst_116 : f32 to vector<8x128xf32>
    %385 = arith.addf %384, %383 : vector<8x128xf32>
    %386 = arith.divf %384, %385 : vector<8x128xf32>
    %387 = vector.extract_strided_slice %374 {offsets = [0, 256], sizes = [8, 128], strides = [1, 1]} : vector<8x512xf32> to vector<8x128xf32>
    %388 = math.tanh %387 : vector<8x128xf32>
    %389 = vector.extract_strided_slice %374 {offsets = [0, 384], sizes = [8, 128], strides = [1, 1]} : vector<8x512xf32> to vector<8x128xf32>
    %390 = arith.negf %389 : vector<8x128xf32>
    %391 = math.exp %390 : vector<8x128xf32>
    %cst_117 = arith.constant 1.000000e+00 : f32
    %392 = vector.broadcast %cst_117 : f32 to vector<8x128xf32>
    %393 = arith.addf %392, %391 : vector<8x128xf32>
    %394 = arith.divf %392, %393 : vector<8x128xf32>
    %395 = arith.mulf %386, %362 : vector<8x128xf32>
    %396 = arith.mulf %380, %388 : vector<8x128xf32>
    %397 = arith.addf %395, %396 : vector<8x128xf32>
    %398 = math.tanh %397 : vector<8x128xf32>
    %399 = arith.mulf %394, %398 : vector<8x128xf32>
    %400 = arith.index_cast %368 : i32 to index
    %c0_118 = arith.constant 0 : index
    %401 = vector.load %arg8[%400, %c0_118] : memref<72x128xf32, #tpu.memory_space<vmem>>, vector<8x128xf32>
    tpu.vector_store %arg8[%400, %c0_118], %399 {strides = array<i32>} : memref<72x128xf32, #tpu.memory_space<vmem>>, vector<8x128xf32>,
    %c2_i32_119 = arith.constant 2 : i32
    %c8_i32_120 = arith.constant 8 : i32
    %402 = arith.muli %c2_i32_119, %c8_i32_120 : i32
    %403 = tpu.assume_multiple %402, 8 : i32
    %404 = arith.index_cast %403 : i32 to index
    %c0_121 = arith.constant 0 : index
    %405 = vector.load %arg10[%404, %c0_121] : memref<72x512xf32, #tpu.memory_space<vmem>>, vector<8x512xf32>
    %406 = arith.truncf %399 : vector<8x128xf32> to vector<8x128xbf16>
    %c0_122 = arith.constant 0 : index
    %c0_123 = arith.constant 0 : index
    %407 = vector.load %arg6[%c0_122, %c0_123] : memref<128x512xbf16, #tpu.memory_space<vmem>>, vector<128x512xbf16>
    %cst_124 = arith.constant dense<0.000000e+00> : vector<8x512xf32>
    %408 = tpu.matmul %406, %407, %cst_124 {dimension_numbers = #tpu.dot_dimension_numbers<[1], [0], [0], [1], [0, 0, 1, 1], [], []>} : vector<8x128xbf16>, vector<128x512xbf16>, vector<8x512xf32> -> vector<8x512xf32>
    %409 = arith.addf %405, %408 : vector<8x512xf32>
    %410 = vector.extract_strided_slice %409 {offsets = [0, 0], sizes = [8, 128], strides = [1, 1]} : vector<8x512xf32> to vector<8x128xf32>
    %411 = arith.negf %410 : vector<8x128xf32>
    %412 = math.exp %411 : vector<8x128xf32>
    %cst_125 = arith.constant 1.000000e+00 : f32
    %413 = vector.broadcast %cst_125 : f32 to vector<8x128xf32>
    %414 = arith.addf %413, %412 : vector<8x128xf32>
    %415 = arith.divf %413, %414 : vector<8x128xf32>
    %416 = vector.extract_strided_slice %409 {offsets = [0, 128], sizes = [8, 128], strides = [1, 1]} : vector<8x512xf32> to vector<8x128xf32>
    %417 = arith.negf %416 : vector<8x128xf32>
    %418 = math.exp %417 : vector<8x128xf32>
    %cst_126 = arith.constant 1.000000e+00 : f32
    %419 = vector.broadcast %cst_126 : f32 to vector<8x128xf32>
    %420 = arith.addf %419, %418 : vector<8x128xf32>
    %421 = arith.divf %419, %420 : vector<8x128xf32>
    %422 = vector.extract_strided_slice %409 {offsets = [0, 256], sizes = [8, 128], strides = [1, 1]} : vector<8x512xf32> to vector<8x128xf32>
    %423 = math.tanh %422 : vector<8x128xf32>
    %424 = vector.extract_strided_slice %409 {offsets = [0, 384], sizes = [8, 128], strides = [1, 1]} : vector<8x512xf32> to vector<8x128xf32>
    %425 = arith.negf %424 : vector<8x128xf32>
    %426 = math.exp %425 : vector<8x128xf32>
    %cst_127 = arith.constant 1.000000e+00 : f32
    %427 = vector.broadcast %cst_127 : f32 to vector<8x128xf32>
    %428 = arith.addf %427, %426 : vector<8x128xf32>
    %429 = arith.divf %427, %428 : vector<8x128xf32>
    %430 = arith.mulf %421, %397 : vector<8x128xf32>
    %431 = arith.mulf %415, %423 : vector<8x128xf32>
    %432 = arith.addf %430, %431 : vector<8x128xf32>
    %433 = math.tanh %432 : vector<8x128xf32>
    %434 = arith.mulf %429, %433 : vector<8x128xf32>
    %435 = arith.index_cast %403 : i32 to index
    %c0_128 = arith.constant 0 : index
    %436 = vector.load %arg8[%435, %c0_128] : memref<72x128xf32, #tpu.memory_space<vmem>>, vector<8x128xf32>
    tpu.vector_store %arg8[%435, %c0_128], %434 {strides = array<i32>} : memref<72x128xf32, #tpu.memory_space<vmem>>, vector<8x128xf32>,
    %c3_i32_129 = arith.constant 3 : i32
    %c8_i32_130 = arith.constant 8 : i32
    %437 = arith.muli %c3_i32_129, %c8_i32_130 : i32
    %438 = tpu.assume_multiple %437, 8 : i32
    %439 = arith.index_cast %438 : i32 to index
    %c0_131 = arith.constant 0 : index
    %440 = vector.load %arg10[%439, %c0_131] : memref<72x512xf32, #tpu.memory_space<vmem>>, vector<8x512xf32>
    %441 = arith.truncf %434 : vector<8x128xf32> to vector<8x128xbf16>
    %c0_132 = arith.constant 0 : index
    %c0_133 = arith.constant 0 : index
    %442 = vector.load %arg6[%c0_132, %c0_133] : memref<128x512xbf16, #tpu.memory_space<vmem>>, vector<128x512xbf16>
    %cst_134 = arith.constant dense<0.000000e+00> : vector<8x512xf32>
    %443 = tpu.matmul %441, %442, %cst_134 {dimension_numbers = #tpu.dot_dimension_numbers<[1], [0], [0], [1], [0, 0, 1, 1], [], []>} : vector<8x128xbf16>, vector<128x512xbf16>, vector<8x512xf32> -> vector<8x512xf32>
    %444 = arith.addf %440, %443 : vector<8x512xf32>
    %445 = vector.extract_strided_slice %444 {offsets = [0, 0], sizes = [8, 128], strides = [1, 1]} : vector<8x512xf32> to vector<8x128xf32>
    %446 = arith.negf %445 : vector<8x128xf32>
    %447 = math.exp %446 : vector<8x128xf32>
    %cst_135 = arith.constant 1.000000e+00 : f32
    %448 = vector.broadcast %cst_135 : f32 to vector<8x128xf32>
    %449 = arith.addf %448, %447 : vector<8x128xf32>
    %450 = arith.divf %448, %449 : vector<8x128xf32>
    %451 = vector.extract_strided_slice %444 {offsets = [0, 128], sizes = [8, 128], strides = [1, 1]} : vector<8x512xf32> to vector<8x128xf32>
    %452 = arith.negf %451 : vector<8x128xf32>
    %453 = math.exp %452 : vector<8x128xf32>
    %cst_136 = arith.constant 1.000000e+00 : f32
    %454 = vector.broadcast %cst_136 : f32 to vector<8x128xf32>
    %455 = arith.addf %454, %453 : vector<8x128xf32>
    %456 = arith.divf %454, %455 : vector<8x128xf32>
    %457 = vector.extract_strided_slice %444 {offsets = [0, 256], sizes = [8, 128], strides = [1, 1]} : vector<8x512xf32> to vector<8x128xf32>
    %458 = math.tanh %457 : vector<8x128xf32>
    %459 = vector.extract_strided_slice %444 {offsets = [0, 384], sizes = [8, 128], strides = [1, 1]} : vector<8x512xf32> to vector<8x128xf32>
    %460 = arith.negf %459 : vector<8x128xf32>
    %461 = math.exp %460 : vector<8x128xf32>
    %cst_137 = arith.constant 1.000000e+00 : f32
    %462 = vector.broadcast %cst_137 : f32 to vector<8x128xf32>
    %463 = arith.addf %462, %461 : vector<8x128xf32>
    %464 = arith.divf %462, %463 : vector<8x128xf32>
    %465 = arith.mulf %456, %432 : vector<8x128xf32>
    %466 = arith.mulf %450, %458 : vector<8x128xf32>
    %467 = arith.addf %465, %466 : vector<8x128xf32>
    %468 = math.tanh %467 : vector<8x128xf32>
    %469 = arith.mulf %464, %468 : vector<8x128xf32>
    %470 = arith.index_cast %438 : i32 to index
    %c0_138 = arith.constant 0 : index
    %471 = vector.load %arg8[%470, %c0_138] : memref<72x128xf32, #tpu.memory_space<vmem>>, vector<8x128xf32>
    tpu.vector_store %arg8[%470, %c0_138], %469 {strides = array<i32>} : memref<72x128xf32, #tpu.memory_space<vmem>>, vector<8x128xf32>,
    %c4_i32_139 = arith.constant 4 : i32
    %c8_i32_140 = arith.constant 8 : i32
    %472 = arith.muli %c4_i32_139, %c8_i32_140 : i32
    %473 = tpu.assume_multiple %472, 8 : i32
    %474 = arith.index_cast %473 : i32 to index
    %c0_141 = arith.constant 0 : index
    %475 = vector.load %arg10[%474, %c0_141] : memref<72x512xf32, #tpu.memory_space<vmem>>, vector<8x512xf32>
    %476 = arith.truncf %469 : vector<8x128xf32> to vector<8x128xbf16>
    %c0_142 = arith.constant 0 : index
    %c0_143 = arith.constant 0 : index
    %477 = vector.load %arg6[%c0_142, %c0_143] : memref<128x512xbf16, #tpu.memory_space<vmem>>, vector<128x512xbf16>
    %cst_144 = arith.constant dense<0.000000e+00> : vector<8x512xf32>
    %478 = tpu.matmul %476, %477, %cst_144 {dimension_numbers = #tpu.dot_dimension_numbers<[1], [0], [0], [1], [0, 0, 1, 1], [], []>} : vector<8x128xbf16>, vector<128x512xbf16>, vector<8x512xf32> -> vector<8x512xf32>
    %479 = arith.addf %475, %478 : vector<8x512xf32>
    %480 = vector.extract_strided_slice %479 {offsets = [0, 0], sizes = [8, 128], strides = [1, 1]} : vector<8x512xf32> to vector<8x128xf32>
    %481 = arith.negf %480 : vector<8x128xf32>
    %482 = math.exp %481 : vector<8x128xf32>
    %cst_145 = arith.constant 1.000000e+00 : f32
    %483 = vector.broadcast %cst_145 : f32 to vector<8x128xf32>
    %484 = arith.addf %483, %482 : vector<8x128xf32>
    %485 = arith.divf %483, %484 : vector<8x128xf32>
    %486 = vector.extract_strided_slice %479 {offsets = [0, 128], sizes = [8, 128], strides = [1, 1]} : vector<8x512xf32> to vector<8x128xf32>
    %487 = arith.negf %486 : vector<8x128xf32>
    %488 = math.exp %487 : vector<8x128xf32>
    %cst_146 = arith.constant 1.000000e+00 : f32
    %489 = vector.broadcast %cst_146 : f32 to vector<8x128xf32>
    %490 = arith.addf %489, %488 : vector<8x128xf32>
    %491 = arith.divf %489, %490 : vector<8x128xf32>
    %492 = vector.extract_strided_slice %479 {offsets = [0, 256], sizes = [8, 128], strides = [1, 1]} : vector<8x512xf32> to vector<8x128xf32>
    %493 = math.tanh %492 : vector<8x128xf32>
    %494 = vector.extract_strided_slice %479 {offsets = [0, 384], sizes = [8, 128], strides = [1, 1]} : vector<8x512xf32> to vector<8x128xf32>
    %495 = arith.negf %494 : vector<8x128xf32>
    %496 = math.exp %495 : vector<8x128xf32>
    %cst_147 = arith.constant 1.000000e+00 : f32
    %497 = vector.broadcast %cst_147 : f32 to vector<8x128xf32>
    %498 = arith.addf %497, %496 : vector<8x128xf32>
    %499 = arith.divf %497, %498 : vector<8x128xf32>
    %500 = arith.mulf %491, %467 : vector<8x128xf32>
    %501 = arith.mulf %485, %493 : vector<8x128xf32>
    %502 = arith.addf %500, %501 : vector<8x128xf32>
    %503 = math.tanh %502 : vector<8x128xf32>
    %504 = arith.mulf %499, %503 : vector<8x128xf32>
    %505 = arith.index_cast %473 : i32 to index
    %c0_148 = arith.constant 0 : index
    %506 = vector.load %arg8[%505, %c0_148] : memref<72x128xf32, #tpu.memory_space<vmem>>, vector<8x128xf32>
    tpu.vector_store %arg8[%505, %c0_148], %504 {strides = array<i32>} : memref<72x128xf32, #tpu.memory_space<vmem>>, vector<8x128xf32>,
    %c5_i32_149 = arith.constant 5 : i32
    %c8_i32_150 = arith.constant 8 : i32
    %507 = arith.muli %c5_i32_149, %c8_i32_150 : i32
    %508 = tpu.assume_multiple %507, 8 : i32
    %509 = arith.index_cast %508 : i32 to index
    %c0_151 = arith.constant 0 : index
    %510 = vector.load %arg10[%509, %c0_151] : memref<72x512xf32, #tpu.memory_space<vmem>>, vector<8x512xf32>
    %511 = arith.truncf %504 : vector<8x128xf32> to vector<8x128xbf16>
    %c0_152 = arith.constant 0 : index
    %c0_153 = arith.constant 0 : index
    %512 = vector.load %arg6[%c0_152, %c0_153] : memref<128x512xbf16, #tpu.memory_space<vmem>>, vector<128x512xbf16>
    %cst_154 = arith.constant dense<0.000000e+00> : vector<8x512xf32>
    %513 = tpu.matmul %511, %512, %cst_154 {dimension_numbers = #tpu.dot_dimension_numbers<[1], [0], [0], [1], [0, 0, 1, 1], [], []>} : vector<8x128xbf16>, vector<128x512xbf16>, vector<8x512xf32> -> vector<8x512xf32>
    %514 = arith.addf %510, %513 : vector<8x512xf32>
    %515 = vector.extract_strided_slice %514 {offsets = [0, 0], sizes = [8, 128], strides = [1, 1]} : vector<8x512xf32> to vector<8x128xf32>
    %516 = arith.negf %515 : vector<8x128xf32>
    %517 = math.exp %516 : vector<8x128xf32>
    %cst_155 = arith.constant 1.000000e+00 : f32
    %518 = vector.broadcast %cst_155 : f32 to vector<8x128xf32>
    %519 = arith.addf %518, %517 : vector<8x128xf32>
    %520 = arith.divf %518, %519 : vector<8x128xf32>
    %521 = vector.extract_strided_slice %514 {offsets = [0, 128], sizes = [8, 128], strides = [1, 1]} : vector<8x512xf32> to vector<8x128xf32>
    %522 = arith.negf %521 : vector<8x128xf32>
    %523 = math.exp %522 : vector<8x128xf32>
    %cst_156 = arith.constant 1.000000e+00 : f32
    %524 = vector.broadcast %cst_156 : f32 to vector<8x128xf32>
    %525 = arith.addf %524, %523 : vector<8x128xf32>
    %526 = arith.divf %524, %525 : vector<8x128xf32>
    %527 = vector.extract_strided_slice %514 {offsets = [0, 256], sizes = [8, 128], strides = [1, 1]} : vector<8x512xf32> to vector<8x128xf32>
    %528 = math.tanh %527 : vector<8x128xf32>
    %529 = vector.extract_strided_slice %514 {offsets = [0, 384], sizes = [8, 128], strides = [1, 1]} : vector<8x512xf32> to vector<8x128xf32>
    %530 = arith.negf %529 : vector<8x128xf32>
    %531 = math.exp %530 : vector<8x128xf32>
    %cst_157 = arith.constant 1.000000e+00 : f32
    %532 = vector.broadcast %cst_157 : f32 to vector<8x128xf32>
    %533 = arith.addf %532, %531 : vector<8x128xf32>
    %534 = arith.divf %532, %533 : vector<8x128xf32>
    %535 = arith.mulf %526, %502 : vector<8x128xf32>
    %536 = arith.mulf %520, %528 : vector<8x128xf32>
    %537 = arith.addf %535, %536 : vector<8x128xf32>
    %538 = math.tanh %537 : vector<8x128xf32>
    %539 = arith.mulf %534, %538 : vector<8x128xf32>
    %540 = arith.index_cast %508 : i32 to index
    %c0_158 = arith.constant 0 : index
    %541 = vector.load %arg8[%540, %c0_158] : memref<72x128xf32, #tpu.memory_space<vmem>>, vector<8x128xf32>
    tpu.vector_store %arg8[%540, %c0_158], %539 {strides = array<i32>} : memref<72x128xf32, #tpu.memory_space<vmem>>, vector<8x128xf32>,
    %c6_i32_159 = arith.constant 6 : i32
    %c8_i32_160 = arith.constant 8 : i32
    %542 = arith.muli %c6_i32_159, %c8_i32_160 : i32
    %543 = tpu.assume_multiple %542, 8 : i32
    %544 = arith.index_cast %543 : i32 to index
    %c0_161 = arith.constant 0 : index
    %545 = vector.load %arg10[%544, %c0_161] : memref<72x512xf32, #tpu.memory_space<vmem>>, vector<8x512xf32>
    %546 = arith.truncf %539 : vector<8x128xf32> to vector<8x128xbf16>
    %c0_162 = arith.constant 0 : index
    %c0_163 = arith.constant 0 : index
    %547 = vector.load %arg6[%c0_162, %c0_163] : memref<128x512xbf16, #tpu.memory_space<vmem>>, vector<128x512xbf16>
    %cst_164 = arith.constant dense<0.000000e+00> : vector<8x512xf32>
    %548 = tpu.matmul %546, %547, %cst_164 {dimension_numbers = #tpu.dot_dimension_numbers<[1], [0], [0], [1], [0, 0, 1, 1], [], []>} : vector<8x128xbf16>, vector<128x512xbf16>, vector<8x512xf32> -> vector<8x512xf32>
    %549 = arith.addf %545, %548 : vector<8x512xf32>
    %550 = vector.extract_strided_slice %549 {offsets = [0, 0], sizes = [8, 128], strides = [1, 1]} : vector<8x512xf32> to vector<8x128xf32>
    %551 = arith.negf %550 : vector<8x128xf32>
    %552 = math.exp %551 : vector<8x128xf32>
    %cst_165 = arith.constant 1.000000e+00 : f32
    %553 = vector.broadcast %cst_165 : f32 to vector<8x128xf32>
    %554 = arith.addf %553, %552 : vector<8x128xf32>
    %555 = arith.divf %553, %554 : vector<8x128xf32>
    %556 = vector.extract_strided_slice %549 {offsets = [0, 128], sizes = [8, 128], strides = [1, 1]} : vector<8x512xf32> to vector<8x128xf32>
    %557 = arith.negf %556 : vector<8x128xf32>
    %558 = math.exp %557 : vector<8x128xf32>
    %cst_166 = arith.constant 1.000000e+00 : f32
    %559 = vector.broadcast %cst_166 : f32 to vector<8x128xf32>
    %560 = arith.addf %559, %558 : vector<8x128xf32>
    %561 = arith.divf %559, %560 : vector<8x128xf32>
    %562 = vector.extract_strided_slice %549 {offsets = [0, 256], sizes = [8, 128], strides = [1, 1]} : vector<8x512xf32> to vector<8x128xf32>
    %563 = math.tanh %562 : vector<8x128xf32>
    %564 = vector.extract_strided_slice %549 {offsets = [0, 384], sizes = [8, 128], strides = [1, 1]} : vector<8x512xf32> to vector<8x128xf32>
    %565 = arith.negf %564 : vector<8x128xf32>
    %566 = math.exp %565 : vector<8x128xf32>
    %cst_167 = arith.constant 1.000000e+00 : f32
    %567 = vector.broadcast %cst_167 : f32 to vector<8x128xf32>
    %568 = arith.addf %567, %566 : vector<8x128xf32>
    %569 = arith.divf %567, %568 : vector<8x128xf32>
    %570 = arith.mulf %561, %537 : vector<8x128xf32>
    %571 = arith.mulf %555, %563 : vector<8x128xf32>
    %572 = arith.addf %570, %571 : vector<8x128xf32>
    %573 = math.tanh %572 : vector<8x128xf32>
    %574 = arith.mulf %569, %573 : vector<8x128xf32>
    %575 = arith.index_cast %543 : i32 to index
    %c0_168 = arith.constant 0 : index
    %576 = vector.load %arg8[%575, %c0_168] : memref<72x128xf32, #tpu.memory_space<vmem>>, vector<8x128xf32>
    tpu.vector_store %arg8[%575, %c0_168], %574 {strides = array<i32>} : memref<72x128xf32, #tpu.memory_space<vmem>>, vector<8x128xf32>,
    %c7_i32_169 = arith.constant 7 : i32
    %c8_i32_170 = arith.constant 8 : i32
    %577 = arith.muli %c7_i32_169, %c8_i32_170 : i32
    %578 = tpu.assume_multiple %577, 8 : i32
    %579 = arith.index_cast %578 : i32 to index
    %c0_171 = arith.constant 0 : index
    %580 = vector.load %arg10[%579, %c0_171] : memref<72x512xf32, #tpu.memory_space<vmem>>, vector<8x512xf32>
    %581 = arith.truncf %574 : vector<8x128xf32> to vector<8x128xbf16>
    %c0_172 = arith.constant 0 : index
    %c0_173 = arith.constant 0 : index
    %582 = vector.load %arg6[%c0_172, %c0_173] : memref<128x512xbf16, #tpu.memory_space<vmem>>, vector<128x512xbf16>
    %cst_174 = arith.constant dense<0.000000e+00> : vector<8x512xf32>
    %583 = tpu.matmul %581, %582, %cst_174 {dimension_numbers = #tpu.dot_dimension_numbers<[1], [0], [0], [1], [0, 0, 1, 1], [], []>} : vector<8x128xbf16>, vector<128x512xbf16>, vector<8x512xf32> -> vector<8x512xf32>
    %584 = arith.addf %580, %583 : vector<8x512xf32>
    %585 = vector.extract_strided_slice %584 {offsets = [0, 0], sizes = [8, 128], strides = [1, 1]} : vector<8x512xf32> to vector<8x128xf32>
    %586 = arith.negf %585 : vector<8x128xf32>
    %587 = math.exp %586 : vector<8x128xf32>
    %cst_175 = arith.constant 1.000000e+00 : f32
    %588 = vector.broadcast %cst_175 : f32 to vector<8x128xf32>
    %589 = arith.addf %588, %587 : vector<8x128xf32>
    %590 = arith.divf %588, %589 : vector<8x128xf32>
    %591 = vector.extract_strided_slice %584 {offsets = [0, 128], sizes = [8, 128], strides = [1, 1]} : vector<8x512xf32> to vector<8x128xf32>
    %592 = arith.negf %591 : vector<8x128xf32>
    %593 = math.exp %592 : vector<8x128xf32>
    %cst_176 = arith.constant 1.000000e+00 : f32
    %594 = vector.broadcast %cst_176 : f32 to vector<8x128xf32>
    %595 = arith.addf %594, %593 : vector<8x128xf32>
    %596 = arith.divf %594, %595 : vector<8x128xf32>
    %597 = vector.extract_strided_slice %584 {offsets = [0, 256], sizes = [8, 128], strides = [1, 1]} : vector<8x512xf32> to vector<8x128xf32>
    %598 = math.tanh %597 : vector<8x128xf32>
    %599 = vector.extract_strided_slice %584 {offsets = [0, 384], sizes = [8, 128], strides = [1, 1]} : vector<8x512xf32> to vector<8x128xf32>
    %600 = arith.negf %599 : vector<8x128xf32>
    %601 = math.exp %600 : vector<8x128xf32>
    %cst_177 = arith.constant 1.000000e+00 : f32
    %602 = vector.broadcast %cst_177 : f32 to vector<8x128xf32>
    %603 = arith.addf %602, %601 : vector<8x128xf32>
    %604 = arith.divf %602, %603 : vector<8x128xf32>
    %605 = arith.mulf %596, %572 : vector<8x128xf32>
    %606 = arith.mulf %590, %598 : vector<8x128xf32>
    %607 = arith.addf %605, %606 : vector<8x128xf32>
    %608 = math.tanh %607 : vector<8x128xf32>
    %609 = arith.mulf %604, %608 : vector<8x128xf32>
    %610 = arith.index_cast %578 : i32 to index
    %c0_178 = arith.constant 0 : index
    %611 = vector.load %arg8[%610, %c0_178] : memref<72x128xf32, #tpu.memory_space<vmem>>, vector<8x128xf32>
    tpu.vector_store %arg8[%610, %c0_178], %609 {strides = array<i32>} : memref<72x128xf32, #tpu.memory_space<vmem>>, vector<8x128xf32>,
    %c8_i32_179 = arith.constant 8 : i32
    %c8_i32_180 = arith.constant 8 : i32
    %612 = arith.muli %c8_i32_179, %c8_i32_180 : i32
    %613 = tpu.assume_multiple %612, 8 : i32
    %614 = arith.index_cast %613 : i32 to index
    %c0_181 = arith.constant 0 : index
    %615 = vector.load %arg10[%614, %c0_181] : memref<72x512xf32, #tpu.memory_space<vmem>>, vector<8x512xf32>
    %616 = arith.truncf %609 : vector<8x128xf32> to vector<8x128xbf16>
    %c0_182 = arith.constant 0 : index
    %c0_183 = arith.constant 0 : index
    %617 = vector.load %arg6[%c0_182, %c0_183] : memref<128x512xbf16, #tpu.memory_space<vmem>>, vector<128x512xbf16>
    %cst_184 = arith.constant dense<0.000000e+00> : vector<8x512xf32>
    %618 = tpu.matmul %616, %617, %cst_184 {dimension_numbers = #tpu.dot_dimension_numbers<[1], [0], [0], [1], [0, 0, 1, 1], [], []>} : vector<8x128xbf16>, vector<128x512xbf16>, vector<8x512xf32> -> vector<8x512xf32>
    %619 = arith.addf %615, %618 : vector<8x512xf32>
    %620 = vector.extract_strided_slice %619 {offsets = [0, 0], sizes = [8, 128], strides = [1, 1]} : vector<8x512xf32> to vector<8x128xf32>
    %621 = arith.negf %620 : vector<8x128xf32>
    %622 = math.exp %621 : vector<8x128xf32>
    %cst_185 = arith.constant 1.000000e+00 : f32
    %623 = vector.broadcast %cst_185 : f32 to vector<8x128xf32>
    %624 = arith.addf %623, %622 : vector<8x128xf32>
    %625 = arith.divf %623, %624 : vector<8x128xf32>
    %626 = vector.extract_strided_slice %619 {offsets = [0, 128], sizes = [8, 128], strides = [1, 1]} : vector<8x512xf32> to vector<8x128xf32>
    %627 = arith.negf %626 : vector<8x128xf32>
    %628 = math.exp %627 : vector<8x128xf32>
    %cst_186 = arith.constant 1.000000e+00 : f32
    %629 = vector.broadcast %cst_186 : f32 to vector<8x128xf32>
    %630 = arith.addf %629, %628 : vector<8x128xf32>
    %631 = arith.divf %629, %630 : vector<8x128xf32>
    %632 = vector.extract_strided_slice %619 {offsets = [0, 256], sizes = [8, 128], strides = [1, 1]} : vector<8x512xf32> to vector<8x128xf32>
    %633 = math.tanh %632 : vector<8x128xf32>
    %634 = vector.extract_strided_slice %619 {offsets = [0, 384], sizes = [8, 128], strides = [1, 1]} : vector<8x512xf32> to vector<8x128xf32>
    %635 = arith.negf %634 : vector<8x128xf32>
    %636 = math.exp %635 : vector<8x128xf32>
    %cst_187 = arith.constant 1.000000e+00 : f32
    %637 = vector.broadcast %cst_187 : f32 to vector<8x128xf32>
    %638 = arith.addf %637, %636 : vector<8x128xf32>
    %639 = arith.divf %637, %638 : vector<8x128xf32>
    %640 = arith.mulf %631, %607 : vector<8x128xf32>
    %641 = arith.mulf %625, %633 : vector<8x128xf32>
    %642 = arith.addf %640, %641 : vector<8x128xf32>
    %643 = math.tanh %642 : vector<8x128xf32>
    %644 = arith.mulf %639, %643 : vector<8x128xf32>
    %645 = arith.index_cast %613 : i32 to index
    %c0_188 = arith.constant 0 : index
    %646 = vector.load %arg8[%645, %c0_188] : memref<72x128xf32, #tpu.memory_space<vmem>>, vector<8x128xf32>
    tpu.vector_store %arg8[%645, %c0_188], %644 {strides = array<i32>} : memref<72x128xf32, #tpu.memory_space<vmem>>, vector<8x128xf32>,
    %c9_i32_189 = arith.constant 9 : i32
    return
  }
  func.func @transform_0(%arg0: i32) -> (i32, i32) {
    %c0_i32 = arith.constant 0 : i32
    %c0_i32_0 = arith.constant 0 : i32
    %c0_i32_1 = arith.constant 0 : i32
    return %c0_i32, %c0_i32_0 : i32, i32
  }
  func.func @transform_1(%arg0: i32) -> (i32, i32) {
    %c0_i32 = arith.constant 0 : i32
    %c0_i32_0 = arith.constant 0 : i32
    %c0_i32_1 = arith.constant 0 : i32
    return %c0_i32, %c0_i32_0 : i32, i32
  }
  func.func @transform_2(%arg0: i32) -> (i32, i32) {
    %c0_i32 = arith.constant 0 : i32
    %c0_i32_0 = arith.constant 0 : i32
    %c0_i32_1 = arith.constant 0 : i32
    return %c0_i32, %c0_i32_0 : i32, i32
  }
  func.func @transform_3(%arg0: i32) -> (i32, i32) {
    %c0_i32 = arith.constant 0 : i32
    %c0_i32_0 = arith.constant 0 : i32
    %c0_i32_1 = arith.constant 0 : i32
    return %c0_i32, %c0_i32_0 : i32, i32
  }
  func.func @transform_4(%arg0: i32) -> (i32, i32) {
    %c0_i32 = arith.constant 0 : i32
    %c0_i32_0 = arith.constant 0 : i32
    %c0_i32_1 = arith.constant 0 : i32
    return %c0_i32, %c0_i32_0 : i32, i32
  }
  func.func @transform_5(%arg0: i32) -> (i32, i32) {
    %c0_i32 = arith.constant 0 : i32
    %c0_i32_0 = arith.constant 0 : i32
    %c0_i32_1 = arith.constant 0 : i32
    return %c0_i32, %c0_i32_0 : i32, i32
  }
  func.func @transform_6(%arg0: i32) -> (i32, i32) {
    %c0_i32 = arith.constant 0 : i32
    %c0_i32_0 = arith.constant 0 : i32
    %c0_i32_1 = arith.constant 0 : i32
    return %c0_i32, %c0_i32_0 : i32, i32
  }
  func.func @transform_7(%arg0: i32) -> (i32, i32) {
    %c0_i32 = arith.constant 0 : i32
    %c0_i32_0 = arith.constant 0 : i32
    %c0_i32_1 = arith.constant 0 : i32
    return %c0_i32, %c0_i32_0 : i32, i32
  }
}

</mosaic_0001>

<llo_original>
// kernel: tpu_custom_call.1
$region0: #{tpu_custom_call.1}
  #allocation0 [shape = 'u32[]', space=smem, size = 0x4, offset = 0x4, fixed_abs, tag = 'smem constant byte address 0x4 - core index']
  #allocation1 [shape = 'u32[72,128]{1,0:T(1,128)}', space=vmem, size = 0x9000, scoped, tag = 'internal scratch']
  #allocation2 [shape = 'f32[72,128]{1,0:T(8,128)}', space=vmem, size = 0x9000, scoped, tag = 'scratch operand']
  #allocation3 [shape = 'f32[72,512]{1,0:T(8,128)}', space=vmem, size = 0x24000, scoped, tag = 'scratch operand']
  %s0 = inlined_call_operand.hbm [shape: bf16[72,128], index: 0, kind: input, shape index: {}]
  %s1 = inlined_call_operand.hbm [shape: bf16[128,512], index: 1, kind: input, shape index: {}]
  %s2 = inlined_call_operand.hbm [shape: bf16[128,512], index: 2, kind: input, shape index: {}]
  %s3 = inlined_call_operand.hbm [shape: f32[1,512], index: 3, kind: input, shape index: {}]
  %s4 = inlined_call_operand.hbm [shape: bf16[128,512], index: 4, kind: input, shape index: {}]
  %s5 = inlined_call_operand.hbm [shape: bf16[128,512], index: 5, kind: input, shape index: {}]
  %s6 = inlined_call_operand.vmem [shape: f32[1,512], index: 6, kind: input, shape index: {}]
  %s7 = inlined_call_operand.hbm [shape: f32[72,128], index: 7, kind: output, shape index: {}]
  %s8 = sld [smem:[#allocation0]]
  $region62: #{tpu_custom_call.1} parent=0
    _
  %s10 = ssub.s32 1, %s8
  %s11 = scalar_select 0, %s10, %s8
  $region1: #{tpu_custom_call.1} parent=0
    #allocation4 [shape = 'u8[18432]{0}', space=vmem, size = 0x4800, scoped, tag = 'input window, operand 0, single buffered']
    #allocation5 [shape = 's32[1]{0}', space=sflag, size = 0x4, scoped, tag = 'scoped memory for tpu_custom_call.1']
    #allocation6 [shape = 's32[1]{0}', space=sflag, size = 0x4, scoped, tag = 'scoped memory for tpu_custom_call.1']
    #allocation7 [shape = 'u8[131072]{0}', space=vmem, size = 0x20000, scoped, tag = 'input window, operand 1, single buffered']
    #allocation8 [shape = 's32[1]{0}', space=sflag, size = 0x4, scoped, tag = 'scoped memory for tpu_custom_call.1']
    #allocation9 [shape = 'u8[131072]{0}', space=vmem, size = 0x20000, scoped, tag = 'input window, operand 2, single buffered']
    #allocation10 [shape = 'u8[2048]{0}', space=vmem, size = 0x800, scoped, tag = 'input window, operand 3, single buffered']
    #allocation11 [shape = 's32[1]{0}', space=sflag, size = 0x4, scoped, tag = 'scoped memory for tpu_custom_call.1']
    #allocation12 [shape = 'u8[131072]{0}', space=vmem, size = 0x20000, scoped, tag = 'input window, operand 4, single buffered']
    #allocation13 [shape = 'u8[131072]{0}', space=vmem, size = 0x20000, scoped, tag = 'input window, operand 5, single buffered']
    #allocation14 [shape = 's32[1]{0}', space=sflag, size = 0x4, scoped, tag = 'scoped memory for tpu_custom_call.1']
    #allocation15 [shape = 'u8[36864]{0}', space=vmem, size = 0x9000, scoped, tag = 'output window, operand 0, single buffered']
    %12 = vsyncpa [#allocation5], 0
    %13 = vsyncpa [#allocation8], 0
    %14 = vsyncpa [#allocation11], 0
    %15 = vsyncpa [#allocation14], 0
    %16 = vsyncpa [#allocation6], 0
    // Predicated region
    $region2: #{tpu_custom_call.1} parent=1 // pred_check
      _
    $region3: #{tpu_custom_call.1} parent=1 // pred_check_branch
      %18 = sbr.rel (0) target = $region5
    $region4: #{tpu_custom_call.1} parent=1 // pred_region
      %20 = vsyncadd [#allocation5], 0
      %s21 = sshll.u32 %s0, 4
      %s22 = int_to_ptr.hbm [resolvable:$true] %s21
      %s23 = sshll.u32 [#allocation4], 4
      %s24 = int_to_ptr.vmem [resolvable:$true] %s23
      %29 = dma.hbm_to_vmem [thread:$0]  %s22, 576, %s24, [#allocation5], 64, 64, 4
    $region5: #{tpu_custom_call.1} parent=1 // pred_fallthru
      _
    // Predicated region
    $region6: #{tpu_custom_call.1} parent=1 // pred_check
      _
    $region7: #{tpu_custom_call.1} parent=1 // pred_check_branch
      %31 = sbr.rel (0) target = $region9
    $region8: #{tpu_custom_call.1} parent=1 // pred_region
      %33 = vsyncadd [#allocation8], 0
      %s34 = sshll.u32 %s1, 4
      %s35 = int_to_ptr.hbm [resolvable:$true] %s34
      %s36 = sshll.u32 [#allocation7], 4
      %s37 = int_to_ptr.vmem [resolvable:$true] %s36
      %42 = dma.hbm_to_vmem [thread:$0]  %s35, 4096, %s37, [#allocation8], 256, 256, 16
    $region9: #{tpu_custom_call.1} parent=1 // pred_fallthru
      _
    // Predicated region
    $region10: #{tpu_custom_call.1} parent=1 // pred_check
      _
    $region11: #{tpu_custom_call.1} parent=1 // pred_check_branch
      %44 = sbr.rel (0) target = $region13
    $region12: #{tpu_custom_call.1} parent=1 // pred_region
      %46 = vsyncadd [#allocation8], 0
      %s47 = sshll.u32 %s2, 4
      %s48 = int_to_ptr.hbm [resolvable:$true] %s47
      %s49 = sshll.u32 [#allocation9], 4
      %s50 = int_to_ptr.vmem [resolvable:$true] %s49
      %55 = dma.hbm_to_vmem [thread:$0]  %s48, 4096, %s50, [#allocation8], 256, 256, 16
    $region13: #{tpu_custom_call.1} parent=1 // pred_fallthru
      _
    // Predicated region
    $region14: #{tpu_custom_call.1} parent=1 // pred_check
      _
    $region15: #{tpu_custom_call.1} parent=1 // pred_check_branch
      %57 = sbr.rel (0) target = $region17
    $region16: #{tpu_custom_call.1} parent=1 // pred_region
      %59 = vsyncadd [#allocation11], 0
      %s61 = sshll.u32 %s3, 4
      %s62 = int_to_ptr.hbm [resolvable:$true] %s61
      %s63 = sshll.u32 [#allocation10], 4
      %s64 = int_to_ptr.vmem [resolvable:$true] %s63
      %66 = dma.hbm_to_vmem [thread:$0]  %s62, 64, %s64, [#allocation11]
    $region17: #{tpu_custom_call.1} parent=1 // pred_fallthru
      _
    // Predicated region
    $region18: #{tpu_custom_call.1} parent=1 // pred_check
      _
    $region19: #{tpu_custom_call.1} parent=1 // pred_check_branch
      %68 = sbr.rel (0) target = $region21
    $region20: #{tpu_custom_call.1} parent=1 // pred_region
      %70 = vsyncadd [#allocation11], 0
      %s71 = sshll.u32 %s4, 4
      %s72 = int_to_ptr.hbm [resolvable:$true] %s71
      %s73 = sshll.u32 [#allocation12], 4
      %s74 = int_to_ptr.vmem [resolvable:$true] %s73
      %79 = dma.hbm_to_vmem [thread:$0]  %s72, 4096, %s74, [#allocation11], 256, 256, 16
    $region21: #{tpu_custom_call.1} parent=1 // pred_fallthru
      _
    // Predicated region
    $region22: #{tpu_custom_call.1} parent=1 // pred_check
      _
    $region23: #{tpu_custom_call.1} parent=1 // pred_check_branch
      %81 = sbr.rel (0) target = $region25
    $region24: #{tpu_custom_call.1} parent=1 // pred_region
      %83 = vsyncadd [#allocation14], 0
      %s84 = sshll.u32 %s5, 4
      %s85 = int_to_ptr.hbm [resolvable:$true] %s84
      %s86 = sshll.u32 [#allocation13], 4
      %s87 = int_to_ptr.vmem [resolvable:$true] %s86
      %92 = dma.hbm_to_vmem [thread:$0]  %s85, 4096, %s87, [#allocation14], 256, 256, 16
    $region25: #{tpu_custom_call.1} parent=1 // pred_fallthru
      _
    // Predicated region
    $region26: #{tpu_custom_call.1} parent=1 // pred_check
      _
    $region27: #{tpu_custom_call.1} parent=1 // pred_check_branch
      %94 = sbr.rel (0) target = $region29
    $region28: #{tpu_custom_call.1} parent=1 // pred_region
      _
    $region29: #{tpu_custom_call.1} parent=1 // pred_fallthru
      _
    // Predicated region
    $region30: #{tpu_custom_call.1} parent=1 // pred_check
      _
    $region31: #{tpu_custom_call.1} parent=1 // pred_check_branch
      %96 = sbr.rel (0) target = $region33
    $region32: #{tpu_custom_call.1} parent=1 // pred_region
      %98 = dma.done [#allocation5], 576
    $region33: #{tpu_custom_call.1} parent=1 // pred_fallthru
      _
    // Predicated region
    $region34: #{tpu_custom_call.1} parent=1 // pred_check
      _
    $region35: #{tpu_custom_call.1} parent=1 // pred_check_branch
      %100 = sbr.rel (0) target = $region37
    $region36: #{tpu_custom_call.1} parent=1 // pred_region
      %102 = dma.done [#allocation8], 4096
    $region37: #{tpu_custom_call.1} parent=1 // pred_fallthru
      _
    // Predicated region
    $region38: #{tpu_custom_call.1} parent=1 // pred_check
      _
    $region39: #{tpu_custom_call.1} parent=1 // pred_check_branch
      %104 = sbr.rel (0) target = $region41
    $region40: #{tpu_custom_call.1} parent=1 // pred_region
      %106 = dma.done [#allocation8], 4096
    $region41: #{tpu_custom_call.1} parent=1 // pred_fallthru
      _
    // Predicated region
    $region42: #{tpu_custom_call.1} parent=1 // pred_check
      _
    $region43: #{tpu_custom_call.1} parent=1 // pred_check_branch
      %108 = sbr.rel (0) target = $region45
    $region44: #{tpu_custom_call.1} parent=1 // pred_region
      %110 = dma.done [#allocation11], 64
    $region45: #{tpu_custom_call.1} parent=1 // pred_fallthru
      _
    // Predicated region
    $region46: #{tpu_custom_call.1} parent=1 // pred_check
      _
    $region47: #{tpu_custom_call.1} parent=1 // pred_check_branch
      %112 = sbr.rel (0) target = $region49
    $region48: #{tpu_custom_call.1} parent=1 // pred_region
      %114 = dma.done [#allocation11], 4096
    $region49: #{tpu_custom_call.1} parent=1 // pred_fallthru
      _
    // Predicated region
    $region50: #{tpu_custom_call.1} parent=1 // pred_check
      _
    $region51: #{tpu_custom_call.1} parent=1 // pred_check_branch
      %116 = sbr.rel (0) target = $region53
    $region52: #{tpu_custom_call.1} parent=1 // pred_region
      %118 = dma.done [#allocation14], 4096
    $region53: #{tpu_custom_call.1} parent=1 // pred_fallthru
      _
    %v120 = vld [vmem:[#allocation4] sm:$0xf]
    %v121 = vld [vmem:[#allocation4 + $0x4] sm:$0xf]
    %v122 = vld [vmem:[#allocation4 + $0x8] sm:$0xf]
    %v123 = vld [vmem:[#allocation4 + $0xc] sm:$0xf]
    %v124 = vld [vmem:[#allocation4 + $0x10] sm:$0xf]
    %v125 = vld [vmem:[#allocation4 + $0x14] sm:$0xf]
    %v126 = vld [vmem:[#allocation4 + $0x18] sm:$0xf]
    %v127 = vld [vmem:[#allocation4 + $0x1c] sm:$0xf]
    %v128 = vld [vmem:[#allocation4 + $0x20] sm:$0xf]
    %v129 = vld [vmem:[#allocation7] sm:$0xff]
    %v130 = vld [vmem:[#allocation7 + $0x8] sm:$0xff]
    %v131 = vld [vmem:[#allocation7 + $0x10] sm:$0xff]
    %v132 = vld [vmem:[#allocation7 + $0x18] sm:$0xff]
    %v133 = vld [vmem:[#allocation7 + $0x20] sm:$0xff]
    %v134 = vld [vmem:[#allocation7 + $0x28] sm:$0xff]
    %v135 = vld [vmem:[#allocation7 + $0x30] sm:$0xff]
    %v136 = vld [vmem:[#allocation7 + $0x38] sm:$0xff]
    %v137 = vld [vmem:[#allocation7 + $0x40] sm:$0xff]
    %v138 = vld [vmem:[#allocation7 + $0x48] sm:$0xff]
    %v139 = vld [vmem:[#allocation7 + $0x50] sm:$0xff]
    %v140 = vld [vmem:[#allocation7 + $0x58] sm:$0xff]
    %v141 = vld [vmem:[#allocation7 + $0x60] sm:$0xff]
    %v142 = vld [vmem:[#allocation7 + $0x68] sm:$0xff]
    %v143 = vld [vmem:[#allocation7 + $0x70] sm:$0xff]
    %v144 = vld [vmem:[#allocation7 + $0x78] sm:$0xff]
    %v145 = vld [vmem:[#allocation7 + $0x80] sm:$0xff]
    %v146 = vld [vmem:[#allocation7 + $0x88] sm:$0xff]
    %v147 = vld [vmem:[#allocation7 + $0x90] sm:$0xff]
    %v148 = vld [vmem:[#allocation7 + $0x98] sm:$0xff]
    %v149 = vld [vmem:[#allocation7 + $0xa0] sm:$0xff]
    %v150 = vld [vmem:[#allocation7 + $0xa8] sm:$0xff]
    %v151 = vld [vmem:[#allocation7 + $0xb0] sm:$0xff]
    %v152 = vld [vmem:[#allocation7 + $0xb8] sm:$0xff]
    %v153 = vld [vmem:[#allocation7 + $0xc0] sm:$0xff]
    %v154 = vld [vmem:[#allocation7 + $0xc8] sm:$0xff]
    %v155 = vld [vmem:[#allocation7 + $0xd0] sm:$0xff]
    %v156 = vld [vmem:[#allocation7 + $0xd8] sm:$0xff]
    %v157 = vld [vmem:[#allocation7 + $0xe0] sm:$0xff]
    %v158 = vld [vmem:[#allocation7 + $0xe8] sm:$0xff]
    %v159 = vld [vmem:[#allocation7 + $0xf0] sm:$0xff]
    %v160 = vld [vmem:[#allocation7 + $0xf8] sm:$0xff]
    %v161 = vld [vmem:[#allocation10] sm:$0xf]
    %v163 = vperm.slane %v161, 0
    %v164 = vperm.slane %v161, 1
    %v165 = vperm.slane %v161, 2
    %v166 = vperm.slane %v161, 3
    %v180 = vunpack.c.l.b16 %v120
    %v181 = vunpack.c.l.b16 %v121
    %v182 = vunpack.c.l.b16 %v122
    %v183 = vunpack.c.l.b16 %v123
    %v184 = vunpack.c.l.b16 %v124
    %v185 = vunpack.c.l.b16 %v125
    %v186 = vunpack.c.l.b16 %v126
    %v187 = vunpack.c.l.b16 %v127
    %v188 = vunpack.c.l.b16 %v128
    %v189 = vpack.c.b16 %v181, %v180
    %v190 = vpack.c.b16 %v183, %v182
    %v191 = vpack.c.b16 %v185, %v184
    %v192 = vpack.c.b16 %v187, %v186
    %v193 = vpack.c.b16 %v188, %v188
    %v231 = vunpack.c.l.b16 %v129
    %v232 = vunpack.c.h.b16 %v129
    %v233 = vunpack.c.l.b16 %v130
    %v234 = vunpack.c.h.b16 %v130
    %v235 = vunpack.c.l.b16 %v131
    %v236 = vunpack.c.h.b16 %v131
    %v237 = vunpack.c.l.b16 %v132
    %v238 = vunpack.c.h.b16 %v132
    %v239 = vunpack.c.l.b16 %v133
    %v240 = vunpack.c.h.b16 %v133
    %v241 = vunpack.c.l.b16 %v134
    %v242 = vunpack.c.h.b16 %v134
    %v243 = vunpack.c.l.b16 %v135
    %v244 = vunpack.c.h.b16 %v135
    %v245 = vunpack.c.l.b16 %v136
    %v246 = vunpack.c.h.b16 %v136
    %v247 = vunpack.c.l.b16 %v137
    %v248 = vunpack.c.h.b16 %v137
    %v249 = vunpack.c.l.b16 %v138
    %v250 = vunpack.c.h.b16 %v138
    %v251 = vunpack.c.l.b16 %v139
    %v252 = vunpack.c.h.b16 %v139
    %v253 = vunpack.c.l.b16 %v140
    %v254 = vunpack.c.h.b16 %v140
    %v255 = vunpack.c.l.b16 %v141
    %v256 = vunpack.c.h.b16 %v141
    %v257 = vunpack.c.l.b16 %v142
    %v258 = vunpack.c.h.b16 %v142
    %v259 = vunpack.c.l.b16 %v143
    %v260 = vunpack.c.h.b16 %v143
    %v261 = vunpack.c.l.b16 %v144
    %v262 = vunpack.c.h.b16 %v144
    %v263 = vunpack.c.l.b16 %v145
    %v264 = vunpack.c.h.b16 %v145
    %v265 = vunpack.c.l.b16 %v146
    %v266 = vunpack.c.h.b16 %v146
    %v267 = vunpack.c.l.b16 %v147
    %v268 = vunpack.c.h.b16 %v147
    %v269 = vunpack.c.l.b16 %v148
    %v270 = vunpack.c.h.b16 %v148
    %v271 = vunpack.c.l.b16 %v149
    %v272 = vunpack.c.h.b16 %v149
    %v273 = vunpack.c.l.b16 %v150
    %v274 = vunpack.c.h.b16 %v150
    %v275 = vunpack.c.l.b16 %v151
    %v276 = vunpack.c.h.b16 %v151
    %v277 = vunpack.c.l.b16 %v152
    %v278 = vunpack.c.h.b16 %v152
    %v279 = vunpack.c.l.b16 %v153
    %v280 = vunpack.c.h.b16 %v153
    %v281 = vunpack.c.l.b16 %v154
    %v282 = vunpack.c.h.b16 %v154
    %v283 = vunpack.c.l.b16 %v155
    %v284 = vunpack.c.h.b16 %v155
    %v285 = vunpack.c.l.b16 %v156
    %v286 = vunpack.c.h.b16 %v156
    %v287 = vunpack.c.l.b16 %v157
    %v288 = vunpack.c.h.b16 %v157
    %v289 = vunpack.c.l.b16 %v158
    %v290 = vunpack.c.h.b16 %v158
    %v291 = vunpack.c.l.b16 %v159
    %v292 = vunpack.c.h.b16 %v159
    %v293 = vunpack.c.l.b16 %v160
    %v294 = vunpack.c.h.b16 %v160
    %v295 = vpack.c.b16 %v235, %v231
    %v296 = vpack.c.b16 %v236, %v232
    %v297 = vpack.c.b16 %v237, %v233
    %v298 = vpack.c.b16 %v238, %v234
    %v299 = vpack.c.b16 %v243, %v239
    %v300 = vpack.c.b16 %v244, %v240
    %v301 = vpack.c.b16 %v245, %v241
    %v302 = vpack.c.b16 %v246, %v242
    %v303 = vpack.c.b16 %v251, %v247
    %v304 = vpack.c.b16 %v252, %v248
    %v305 = vpack.c.b16 %v253, %v249
    %v306 = vpack.c.b16 %v254, %v250
    %v307 = vpack.c.b16 %v259, %v255
    %v308 = vpack.c.b16 %v260, %v256
    %v309 = vpack.c.b16 %v261, %v257
    %v310 = vpack.c.b16 %v262, %v258
    %v311 = vpack.c.b16 %v267, %v263
    %v312 = vpack.c.b16 %v268, %v264
    %v313 = vpack.c.b16 %v269, %v265
    %v314 = vpack.c.b16 %v270, %v266
    %v315 = vpack.c.b16 %v275, %v271
    %v316 = vpack.c.b16 %v276, %v272
    %v317 = vpack.c.b16 %v277, %v273
    %v318 = vpack.c.b16 %v278, %v274
    %v319 = vpack.c.b16 %v283, %v279
    %v320 = vpack.c.b16 %v284, %v280
    %v321 = vpack.c.b16 %v285, %v281
    %v322 = vpack.c.b16 %v286, %v282
    %v323 = vpack.c.b16 %v291, %v287
    %v324 = vpack.c.b16 %v292, %v288
    %v325 = vpack.c.b16 %v293, %v289
    %v326 = vpack.c.b16 %v294, %v290
    %359 = vmatpush.bf16.msra.mxu0 %v323
    %360 = vmatpush.bf16.msra.mxu0 %v319
    %361 = vmatpush.bf16.msra.mxu0 %v315
    %362 = vmatpush.bf16.msra.mxu0 %v311
    %363 = vmatpush.bf16.msra.mxu0 %v307
    %364 = vmatpush.bf16.msra.mxu0 %v303
    %365 = vmatpush.bf16.msra.mxu0 %v299
    %366 = vmatpush.bf16.msra.mxu0 %v295
    %367 = vmatmul.bf16.gmra.mxu0 %v189
    %v368 = vpop.f32.mrf.mxu0
    %v369 = vadd.f32 %v163, %v368
    %v370 = vpop.f32.mrf.mxu0
    %v371 = vadd.f32 %v163, %v370
    %372 = vmatmul.bf16.gmra.mxu0 %v190
    %v373 = vpop.f32.mrf.mxu0
    %v374 = vadd.f32 %v163, %v373
    %v375 = vpop.f32.mrf.mxu0
    %v376 = vadd.f32 %v163, %v375
    %377 = vmatmul.bf16.gmra.mxu0 %v191
    %v378 = vpop.f32.mrf.mxu0
    %v379 = vadd.f32 %v163, %v378
    %v380 = vpop.f32.mrf.mxu0
    %v381 = vadd.f32 %v163, %v380
    %382 = vmatmul.bf16.gmra.mxu0 %v192
    %v383 = vpop.f32.mrf.mxu0
    %v384 = vadd.f32 %v163, %v383
    %v385 = vpop.f32.mrf.mxu0
    %v386 = vadd.f32 %v163, %v385
    %387 = vmatmul.bf16.gmra.mxu0 %v193
    %v388 = vpop.f32.mrf.mxu0
    %v389 = vadd.f32 %v163, %v388
    %v390 = vpop.f32.mrf.mxu0
    %391 = vdwg.mxu0
    %392 = vmatpush.bf16.msra.mxu0 %v324
    %393 = vmatpush.bf16.msra.mxu0 %v320
    %394 = vmatpush.bf16.msra.mxu0 %v316
    %395 = vmatpush.bf16.msra.mxu0 %v312
    %396 = vmatpush.bf16.msra.mxu0 %v308
    %397 = vmatpush.bf16.msra.mxu0 %v304
    %398 = vmatpush.bf16.msra.mxu0 %v300
    %399 = vmatpush.bf16.msra.mxu0 %v296
    %400 = vmatmul.bf16.gmra.mxu0 %v189
    %v401 = vpop.f32.mrf.mxu0
    %v402 = vadd.f32 %v164, %v401
    %v403 = vpop.f32.mrf.mxu0
    %v404 = vadd.f32 %v164, %v403
    %405 = vmatmul.bf16.gmra.mxu0 %v190
    %v406 = vpop.f32.mrf.mxu0
    %v407 = vadd.f32 %v164, %v406
    %v408 = vpop.f32.mrf.mxu0
    %v409 = vadd.f32 %v164, %v408
    %410 = vmatmul.bf16.gmra.mxu0 %v191
    %v411 = vpop.f32.mrf.mxu0
    %v412 = vadd.f32 %v164, %v411
    %v413 = vpop.f32.mrf.mxu0
    %v414 = vadd.f32 %v164, %v413
    %415 = vmatmul.bf16.gmra.mxu0 %v192
    %v416 = vpop.f32.mrf.mxu0
    %v417 = vadd.f32 %v164, %v416
    %v418 = vpop.f32.mrf.mxu0
    %v419 = vadd.f32 %v164, %v418
    %420 = vmatmul.bf16.gmra.mxu0 %v193
    %v421 = vpop.f32.mrf.mxu0
    %v422 = vadd.f32 %v164, %v421
    %v423 = vpop.f32.mrf.mxu0
    %424 = vdwg.mxu0
    %425 = vmatpush.bf16.msra.mxu0 %v325
    %426 = vmatpush.bf16.msra.mxu0 %v321
    %427 = vmatpush.bf16.msra.mxu0 %v317
    %428 = vmatpush.bf16.msra.mxu0 %v313
    %429 = vmatpush.bf16.msra.mxu0 %v309
    %430 = vmatpush.bf16.msra.mxu0 %v305
    %431 = vmatpush.bf16.msra.mxu0 %v301
    %432 = vmatpush.bf16.msra.mxu0 %v297
    %433 = vmatmul.bf16.gmra.mxu0 %v189
    %v434 = vpop.f32.mrf.mxu0
    %v435 = vadd.f32 %v165, %v434
    %v436 = vpop.f32.mrf.mxu0
    %v437 = vadd.f32 %v165, %v436
    %438 = vmatmul.bf16.gmra.mxu0 %v190
    %v439 = vpop.f32.mrf.mxu0
    %v440 = vadd.f32 %v165, %v439
    %v441 = vpop.f32.mrf.mxu0
    %v442 = vadd.f32 %v165, %v441
    %443 = vmatmul.bf16.gmra.mxu0 %v191
    %v444 = vpop.f32.mrf.mxu0
    %v445 = vadd.f32 %v165, %v444
    %v446 = vpop.f32.mrf.mxu0
    %v447 = vadd.f32 %v165, %v446
    %448 = vmatmul.bf16.gmra.mxu0 %v192
    %v449 = vpop.f32.mrf.mxu0
    %v450 = vadd.f32 %v165, %v449
    %v451 = vpop.f32.mrf.mxu0
    %v452 = vadd.f32 %v165, %v451
    %453 = vmatmul.bf16.gmra.mxu0 %v193
    %v454 = vpop.f32.mrf.mxu0
    %v455 = vadd.f32 %v165, %v454
    %v456 = vpop.f32.mrf.mxu0
    %457 = vdwg.mxu0
    %458 = vmatpush.bf16.msra.mxu0 %v326
    %459 = vmatpush.bf16.msra.mxu0 %v322
    %460 = vmatpush.bf16.msra.mxu0 %v318
    %461 = vmatpush.bf16.msra.mxu0 %v314
    %462 = vmatpush.bf16.msra.mxu0 %v310
    %463 = vmatpush.bf16.msra.mxu0 %v306
    %464 = vmatpush.bf16.msra.mxu0 %v302
    %465 = vmatpush.bf16.msra.mxu0 %v298
    %466 = vmatmul.bf16.gmra.mxu0 %v189
    %v467 = vpop.f32.mrf.mxu0
    %v468 = vadd.f32 %v166, %v467
    %v469 = vpop.f32.mrf.mxu0
    %v470 = vadd.f32 %v166, %v469
    %471 = vmatmul.bf16.gmra.mxu0 %v190
    %v472 = vpop.f32.mrf.mxu0
    %v473 = vadd.f32 %v166, %v472
    %v474 = vpop.f32.mrf.mxu0
    %v475 = vadd.f32 %v166, %v474
    %476 = vmatmul.bf16.gmra.mxu0 %v191
    %v477 = vpop.f32.mrf.mxu0
    %v478 = vadd.f32 %v166, %v477
    %v479 = vpop.f32.mrf.mxu0
    %v480 = vadd.f32 %v166, %v479
    %481 = vmatmul.bf16.gmra.mxu0 %v192
    %v482 = vpop.f32.mrf.mxu0
    %v483 = vadd.f32 %v166, %v482
    %v484 = vpop.f32.mrf.mxu0
    %v485 = vadd.f32 %v166, %v484
    %486 = vmatmul.bf16.gmra.mxu0 %v193
    %v487 = vpop.f32.mrf.mxu0
    %v488 = vadd.f32 %v166, %v487
    %v489 = vpop.f32.mrf.mxu0
    %490 = vdwg.mxu0
    %491 = vst [vmem:[#allocation3] sm:$0xff] %v369
    %492 = vst [vmem:[#allocation3 + $0x8] sm:$0xff] %v402
    %493 = vst [vmem:[#allocation3 + $0x10] sm:$0xff] %v435
    %494 = vst [vmem:[#allocation3 + $0x18] sm:$0xff] %v468
    %495 = vst [vmem:[#allocation3 + $0x20] sm:$0xff] %v371
    %496 = vst [vmem:[#allocation3 + $0x28] sm:$0xff] %v404
    %497 = vst [vmem:[#allocation3 + $0x30] sm:$0xff] %v437
    %498 = vst [vmem:[#allocation3 + $0x38] sm:$0xff] %v470
    %499 = vst [vmem:[#allocation3 + $0x40] sm:$0xff] %v374
    %500 = vst [vmem:[#allocation3 + $0x48] sm:$0xff] %v407
    %501 = vst [vmem:[#allocation3 + $0x50] sm:$0xff] %v440
    %502 = vst [vmem:[#allocation3 + $0x58] sm:$0xff] %v473
    %503 = vst [vmem:[#allocation3 + $0x60] sm:$0xff] %v376
    %504 = vst [vmem:[#allocation3 + $0x68] sm:$0xff] %v409
    %505 = vst [vmem:[#allocation3 + $0x70] sm:$0xff] %v442
    %506 = vst [vmem:[#allocation3 + $0x78] sm:$0xff] %v475
    %507 = vst [vmem:[#allocation3 + $0x80] sm:$0xff] %v379
    %508 = vst [vmem:[#allocation3 + $0x88] sm:$0xff] %v412
    %509 = vst [vmem:[#allocation3 + $0x90] sm:$0xff] %v445
    %510 = vst [vmem:[#allocation3 + $0x98] sm:$0xff] %v478
    %511 = vst [vmem:[#allocation3 + $0xa0] sm:$0xff] %v381
    %512 = vst [vmem:[#allocation3 + $0xa8] sm:$0xff] %v414
    %513 = vst [vmem:[#allocation3 + $0xb0] sm:$0xff] %v447
    %514 = vst [vmem:[#allocation3 + $0xb8] sm:$0xff] %v480
    %515 = vst [vmem:[#allocation3 + $0xc0] sm:$0xff] %v384
    %516 = vst [vmem:[#allocation3 + $0xc8] sm:$0xff] %v417
    %517 = vst [vmem:[#allocation3 + $0xd0] sm:$0xff] %v450
    %518 = vst [vmem:[#allocation3 + $0xd8] sm:$0xff] %v483
    %519 = vst [vmem:[#allocation3 + $0xe0] sm:$0xff] %v386
    %520 = vst [vmem:[#allocation3 + $0xe8] sm:$0xff] %v419
    %521 = vst [vmem:[#allocation3 + $0xf0] sm:$0xff] %v452
    %522 = vst [vmem:[#allocation3 + $0xf8] sm:$0xff] %v485
    %523 = vst [vmem:[#allocation3 + $0x100] sm:$0xff] %v389
    %524 = vst [vmem:[#allocation3 + $0x108] sm:$0xff] %v422
    %525 = vst [vmem:[#allocation3 + $0x110] sm:$0xff] %v455
    %526 = vst [vmem:[#allocation3 + $0x118] sm:$0xff] %v488
    %s527 = smul.u32 0, 4
    %s528 = smul.addr %s527, 8
    %s529 = scalar_lea.vmem [#allocation3], %s528
    %v530 = vld [vmem:[%s529] sm:$0xff]
    %v531 = vld [vmem:[%s529 + $0x8] sm:$0xff]
    %v532 = vld [vmem:[%s529 + $0x10] sm:$0xff]
    %v533 = vld [vmem:[%s529 + $0x18] sm:$0xff]
    %v534 = vld [vmem:[#allocation9] sm:$0xff]
    %v535 = vld [vmem:[#allocation9 + $0x8] sm:$0xff]
    %v536 = vld [vmem:[#allocation9 + $0x10] sm:$0xff]
    %v537 = vld [vmem:[#allocation9 + $0x18] sm:$0xff]
    %v538 = vld [vmem:[#allocation9 + $0x20] sm:$0xff]
    %v539 = vld [vmem:[#allocation9 + $0x28] sm:$0xff]
    %v540 = vld [vmem:[#allocation9 + $0x30] sm:$0xff]
    %v541 = vld [vmem:[#allocation9 + $0x38] sm:$0xff]
    %v542 = vld [vmem:[#allocation9 + $0x40] sm:$0xff]
    %v543 = vld [vmem:[#allocation9 + $0x48] sm:$0xff]
    %v544 = vld [vmem:[#allocation9 + $0x50] sm:$0xff]
    %v545 = vld [vmem:[#allocation9 + $0x58] sm:$0xff]
    %v546 = vld [vmem:[#allocation9 + $0x60] sm:$0xff]
    %v547 = vld [vmem:[#allocation9 + $0x68] sm:$0xff]
    %v548 = vld [vmem:[#allocation9 + $0x70] sm:$0xff]
    %v549 = vld [vmem:[#allocation9 + $0x78] sm:$0xff]
    %v550 = vld [vmem:[#allocation9 + $0x80] sm:$0xff]
    %v551 = vld [vmem:[#allocation9 + $0x88] sm:$0xff]
    %v552 = vld [vmem:[#allocation9 + $0x90] sm:$0xff]
    %v553 = vld [vmem:[#allocation9 + $0x98] sm:$0xff]
    %v554 = vld [vmem:[#allocation9 + $0xa0] sm:$0xff]
    %v555 = vld [vmem:[#allocation9 + $0xa8] sm:$0xff]
    %v556 = vld [vmem:[#allocation9 + $0xb0] sm:$0xff]
    %v557 = vld [vmem:[#allocation9 + $0xb8] sm:$0xff]
    %v558 = vld [vmem:[#allocation9 + $0xc0] sm:$0xff]
    %v559 = vld [vmem:[#allocation9 + $0xc8] sm:$0xff]
    %v560 = vld [vmem:[#allocation9 + $0xd0] sm:$0xff]
    %v561 = vld [vmem:[#allocation9 + $0xd8] sm:$0xff]
    %v562 = vld [vmem:[#allocation9 + $0xe0] sm:$0xff]
    %v563 = vld [vmem:[#allocation9 + $0xe8] sm:$0xff]
    %v564 = vld [vmem:[#allocation9 + $0xf0] sm:$0xff]
    %v565 = vld [vmem:[#allocation9 + $0xf8] sm:$0xff]
    %v598 = vunpack.c.l.b16 %v534
    %v599 = vunpack.c.h.b16 %v534
    %v600 = vunpack.c.l.b16 %v535
    %v601 = vunpack.c.h.b16 %v535
    %v602 = vunpack.c.l.b16 %v536
    %v603 = vunpack.c.h.b16 %v536
    %v604 = vunpack.c.l.b16 %v537
    %v605 = vunpack.c.h.b16 %v537
    %v606 = vunpack.c.l.b16 %v538
    %v607 = vunpack.c.h.b16 %v538
    %v608 = vunpack.c.l.b16 %v539
    %v609 = vunpack.c.h.b16 %v539
    %v610 = vunpack.c.l.b16 %v540
    %v611 = vunpack.c.h.b16 %v540
    %v612 = vunpack.c.l.b16 %v541
    %v613 = vunpack.c.h.b16 %v541
    %v614 = vunpack.c.l.b16 %v542
    %v615 = vunpack.c.h.b16 %v542
    %v616 = vunpack.c.l.b16 %v543
    %v617 = vunpack.c.h.b16 %v543
    %v618 = vunpack.c.l.b16 %v544
    %v619 = vunpack.c.h.b16 %v544
    %v620 = vunpack.c.l.b16 %v545
    %v621 = vunpack.c.h.b16 %v545
    %v622 = vunpack.c.l.b16 %v546
    %v623 = vunpack.c.h.b16 %v546
    %v624 = vunpack.c.l.b16 %v547
    %v625 = vunpack.c.h.b16 %v547
    %v626 = vunpack.c.l.b16 %v548
    %v627 = vunpack.c.h.b16 %v548
    %v628 = vunpack.c.l.b16 %v549
    %v629 = vunpack.c.h.b16 %v549
    %v630 = vunpack.c.l.b16 %v550
    %v631 = vunpack.c.h.b16 %v550
    %v632 = vunpack.c.l.b16 %v551
    %v633 = vunpack.c.h.b16 %v551
    %v634 = vunpack.c.l.b16 %v552
    %v635 = vunpack.c.h.b16 %v552
    %v636 = vunpack.c.l.b16 %v553
    %v637 = vunpack.c.h.b16 %v553
    %v638 = vunpack.c.l.b16 %v554
    %v639 = vunpack.c.h.b16 %v554
    %v640 = vunpack.c.l.b16 %v555
    %v641 = vunpack.c.h.b16 %v555
    %v642 = vunpack.c.l.b16 %v556
    %v643 = vunpack.c.h.b16 %v556
    %v644 = vunpack.c.l.b16 %v557
    %v645 = vunpack.c.h.b16 %v557
    %v646 = vunpack.c.l.b16 %v558
    %v647 = vunpack.c.h.b16 %v558
    %v648 = vunpack.c.l.b16 %v559
    %v649 = vunpack.c.h.b16 %v559
    %v650 = vunpack.c.l.b16 %v560
    %v651 = vunpack.c.h.b16 %v560
    %v652 = vunpack.c.l.b16 %v561
    %v653 = vunpack.c.h.b16 %v561
    %v654 = vunpack.c.l.b16 %v562
    %v655 = vunpack.c.h.b16 %v562
    %v656 = vunpack.c.l.b16 %v563
    %v657 = vunpack.c.h.b16 %v563
    %v658 = vunpack.c.l.b16 %v564
    %v659 = vunpack.c.h.b16 %v564
    %v660 = vunpack.c.l.b16 %v565
    %v661 = vunpack.c.h.b16 %v565
    %v662 = vpack.c.b16 %v602, %v598
    %v663 = vpack.c.b16 %v603, %v599
    %v664 = vpack.c.b16 %v604, %v600
    %v665 = vpack.c.b16 %v605, %v601
    %v666 = vpack.c.b16 %v610, %v606
    %v667 = vpack.c.b16 %v611, %v607
    %v668 = vpack.c.b16 %v612, %v608
    %v669 = vpack.c.b16 %v613, %v609
    %v670 = vpack.c.b16 %v618, %v614
    %v671 = vpack.c.b16 %v619, %v615
    %v672 = vpack.c.b16 %v620, %v616
    %v673 = vpack.c.b16 %v621, %v617
    %v674 = vpack.c.b16 %v626, %v622
    %v675 = vpack.c.b16 %v627, %v623
    %v676 = vpack.c.b16 %v628, %v624
    %v677 = vpack.c.b16 %v629, %v625
    %v678 = vpack.c.b16 %v634, %v630
    %v679 = vpack.c.b16 %v635, %v631
    %v680 = vpack.c.b16 %v636, %v632
    %v681 = vpack.c.b16 %v637, %v633
    %v682 = vpack.c.b16 %v642, %v638
    %v683 = vpack.c.b16 %v643, %v639
    %v684 = vpack.c.b16 %v644, %v640
    %v685 = vpack.c.b16 %v645, %v641
    %v686 = vpack.c.b16 %v650, %v646
    %v687 = vpack.c.b16 %v651, %v647
    %v688 = vpack.c.b16 %v652, %v648
    %v689 = vpack.c.b16 %v653, %v649
    %v690 = vpack.c.b16 %v658, %v654
    %v691 = vpack.c.b16 %v659, %v655
    %v692 = vpack.c.b16 %v660, %v656
    %v693 = vpack.c.b16 %v661, %v657
    %726 = vmatpush.bf16.msra.mxu0 %v690
    %727 = vmatpush.bf16.msra.mxu0 %v686
    %728 = vmatpush.bf16.msra.mxu0 %v682
    %729 = vmatpush.bf16.msra.mxu0 %v678
    %730 = vmatpush.bf16.msra.mxu0 %v674
    %731 = vmatpush.bf16.msra.mxu0 %v670
    %732 = vmatpush.bf16.msra.mxu0 %v666
    %733 = vmatpush.bf16.msra.mxu0 %v662
    %734 = vmatmul.bf16.gmra.mxu0 0
    %v735 = vpop.f32.mrf.mxu0
    %v736 = vadd.f32 0.0, %v735
    %v737 = vpop.f32.mrf.mxu0
    %738 = vdwg.mxu0
    %739 = vmatpush.bf16.msra.mxu0 %v691
    %740 = vmatpush.bf16.msra.mxu0 %v687
    %741 = vmatpush.bf16.msra.mxu0 %v683
    %742 = vmatpush.bf16.msra.mxu0 %v679
    %743 = vmatpush.bf16.msra.mxu0 %v675
    %744 = vmatpush.bf16.msra.mxu0 %v671
    %745 = vmatpush.bf16.msra.mxu0 %v667
    %746 = vmatpush.bf16.msra.mxu0 %v663
    %747 = vmatmul.bf16.gmra.mxu0 0
    %v748 = vpop.f32.mrf.mxu0
    %v749 = vadd.f32 0.0, %v748
    %v750 = vpop.f32.mrf.mxu0
    %751 = vdwg.mxu0
    %752 = vmatpush.bf16.msra.mxu0 %v692
    %753 = vmatpush.bf16.msra.mxu0 %v688
    %754 = vmatpush.bf16.msra.mxu0 %v684
    %755 = vmatpush.bf16.msra.mxu0 %v680
    %756 = vmatpush.bf16.msra.mxu0 %v676
    %757 = vmatpush.bf16.msra.mxu0 %v672
    %758 = vmatpush.bf16.msra.mxu0 %v668
    %759 = vmatpush.bf16.msra.mxu0 %v664
    %760 = vmatmul.bf16.gmra.mxu0 0
    %v761 = vpop.f32.mrf.mxu0
    %v762 = vadd.f32 0.0, %v761
    %v763 = vpop.f32.mrf.mxu0
    %764 = vdwg.mxu0
    %765 = vmatpush.bf16.msra.mxu0 %v693
    %766 = vmatpush.bf16.msra.mxu0 %v689
    %767 = vmatpush.bf16.msra.mxu0 %v685
    %768 = vmatpush.bf16.msra.mxu0 %v681
    %769 = vmatpush.bf16.msra.mxu0 %v677
    %770 = vmatpush.bf16.msra.mxu0 %v673
    %771 = vmatpush.bf16.msra.mxu0 %v669
    %772 = vmatpush.bf16.msra.mxu0 %v665
    %773 = vmatmul.bf16.gmra.mxu0 0
    %v774 = vpop.f32.mrf.mxu0
    %v775 = vadd.f32 0.0, %v774
    %v776 = vpop.f32.mrf.mxu0
    %777 = vdwg.mxu0
    %v778 = vadd.f32 %v530, %v736
    %v779 = vadd.f32 %v531, %v749
    %v780 = vadd.f32 %v532, %v762
    %v781 = vadd.f32 %v533, %v775
    %v782 = vxor.u32 %v778, 2147483648
    %v783 = vmul.f32 %v782, 1.442695
    %v784 = vpow.pop %v783
    %v785 = vadd.f32 %v784, 1.0
    %v786 = vrcp.pop %v785
    %v787 = vmul.f32 %v785, %v786
    %v788 = vsub.f32 1.0, %v787
    %v789 = vmul.f32 %v786, %v788
    %v790 = vadd.f32 %v786, %v789
    %vm791 = vweird.f32 %v785
    %vm792 = vweird.f32 %v786
    %vm793 = vmor %vm791, %vm792
    %v794 = vsel %vm793, %v786, %v790
    %v795 = vand.u32 2147483647, %v785
    %vm796 = vcmp.eq.f32.partialorder %v795, 8.507059e+37
    %v797 = vand.u32 %v785, 2147483648
    %v798 = vor.u32 1.1754944e-38, %v797
    %v799 = vsel %vm796, %v798, %v794
    %v800 = vmul.f32 1.0, %v799
    %v801 = vxor.u32 %v779, 2147483648
    %v802 = vmul.f32 %v801, 1.442695
    %v803 = vpow.pop %v802
    %v804 = vadd.f32 %v803, 1.0
    %v805 = vrcp.pop %v804
    %v806 = vmul.f32 %v804, %v805
    %v807 = vsub.f32 1.0, %v806
    %v808 = vmul.f32 %v805, %v807
    %v809 = vadd.f32 %v805, %v808
    %vm810 = vweird.f32 %v804
    %vm811 = vweird.f32 %v805
    %vm812 = vmor %vm810, %vm811
    %v813 = vsel %vm812, %v805, %v809
    %v814 = vand.u32 2147483647, %v804
    %vm815 = vcmp.eq.f32.partialorder %v814, 8.507059e+37
    %v816 = vand.u32 %v804, 2147483648
    %v817 = vor.u32 1.1754944e-38, %v816
    %v818 = vsel %vm815, %v817, %v813
    %v819 = vmul.f32 1.0, %v818
    %v820 = vtanh.pop %v780
    %v821 = vxor.u32 %v781, 2147483648
    %v822 = vmul.f32 %v821, 1.442695
    %v823 = vpow.pop %v822
    %v824 = vadd.f32 %v823, 1.0
    %v825 = vrcp.pop %v824
    %v826 = vmul.f32 %v824, %v825
    %v827 = vsub.f32 1.0, %v826
    %v828 = vmul.f32 %v825, %v827
    %v829 = vadd.f32 %v825, %v828
    %vm830 = vweird.f32 %v824
    %vm831 = vweird.f32 %v825
    %vm832 = vmor %vm830, %vm831
    %v833 = vsel %vm832, %v825, %v829
    %v834 = vand.u32 2147483647, %v824
    %vm835 = vcmp.eq.f32.partialorder %v834, 8.507059e+37
    %v836 = vand.u32 %v824, 2147483648
    %v837 = vor.u32 1.1754944e-38, %v836
    %v838 = vsel %vm835, %v837, %v833
    %v839 = vmul.f32 1.0, %v838
    %v840 = vmul.f32 %v819, 0.0
    %v841 = vmul.f32 %v800, %v820
    %v842 = vadd.f32 %v840, %v841
    %v843 = vtanh.pop %v842
    %v844 = vmul.f32 %v839, %v843
    %845 = vst [vmem:[#allocation2] sm:$0xff] %v844
    %s846 = smul.u32 1, 4
    %s847 = smul.addr %s846, 8
    %s848 = scalar_lea.vmem [#allocation3], %s847
    %v849 = vld [vmem:[%s848] sm:$0xff]
    %v850 = vld [vmem:[%s848 + $0x8] sm:$0xff]
    %v851 = vld [vmem:[%s848 + $0x10] sm:$0xff]
    %v852 = vld [vmem:[%s848 + $0x18] sm:$0xff]
    %v853 = vpack.c.bf16 %v844, %v844
    %v854 = vld [vmem:[#allocation9] sm:$0xff]
    %v855 = vld [vmem:[#allocation9 + $0x8] sm:$0xff]
    %v856 = vld [vmem:[#allocation9 + $0x10] sm:$0xff]
    %v857 = vld [vmem:[#allocation9 + $0x18] sm:$0xff]
    %v858 = vld [vmem:[#allocation9 + $0x20] sm:$0xff]
    %v859 = vld [vmem:[#allocation9 + $0x28] sm:$0xff]
    %v860 = vld [vmem:[#allocation9 + $0x30] sm:$0xff]
    %v861 = vld [vmem:[#allocation9 + $0x38] sm:$0xff]
    %v862 = vld [vmem:[#allocation9 + $0x40] sm:$0xff]
    %v863 = vld [vmem:[#allocation9 + $0x48] sm:$0xff]
    %v864 = vld [vmem:[#allocation9 + $0x50] sm:$0xff]
    %v865 = vld [vmem:[#allocation9 + $0x58] sm:$0xff]
    %v866 = vld [vmem:[#allocation9 + $0x60] sm:$0xff]
    %v867 = vld [vmem:[#allocation9 + $0x68] sm:$0xff]
    %v868 = vld [vmem:[#allocation9 + $0x70] sm:$0xff]
    %v869 = vld [vmem:[#allocation9 + $0x78] sm:$0xff]
    %v870 = vld [vmem:[#allocation9 + $0x80] sm:$0xff]
    %v871 = vld [vmem:[#allocation9 + $0x88] sm:$0xff]
    %v872 = vld [vmem:[#allocation9 + $0x90] sm:$0xff]
    %v873 = vld [vmem:[#allocation9 + $0x98] sm:$0xff]
    %v874 = vld [vmem:[#allocation9 + $0xa0] sm:$0xff]
    %v875 = vld [vmem:[#allocation9 + $0xa8] sm:$0xff]
    %v876 = vld [vmem:[#allocation9 + $0xb0] sm:$0xff]
    %v877 = vld [vmem:[#allocation9 + $0xb8] sm:$0xff]
    %v878 = vld [vmem:[#allocation9 + $0xc0] sm:$0xff]
    %v879 = vld [vmem:[#allocation9 + $0xc8] sm:$0xff]
    %v880 = vld [vmem:[#allocation9 + $0xd0] sm:$0xff]
    %v881 = vld [vmem:[#allocation9 + $0xd8] sm:$0xff]
    %v882 = vld [vmem:[#allocation9 + $0xe0] sm:$0xff]
    %v883 = vld [vmem:[#allocation9 + $0xe8] sm:$0xff]
    %v884 = vld [vmem:[#allocation9 + $0xf0] sm:$0xff]
    %v885 = vld [vmem:[#allocation9 + $0xf8] sm:$0xff]
    %v918 = vunpack.c.l.b16 %v854
    %v919 = vunpack.c.h.b16 %v854
    %v920 = vunpack.c.l.b16 %v855
    %v921 = vunpack.c.h.b16 %v855
    %v922 = vunpack.c.l.b16 %v856
    %v923 = vunpack.c.h.b16 %v856
    %v924 = vunpack.c.l.b16 %v857
    %v925 = vunpack.c.h.b16 %v857
    %v926 = vunpack.c.l.b16 %v858
    %v927 = vunpack.c.h.b16 %v858
    %v928 = vunpack.c.l.b16 %v859
    %v929 = vunpack.c.h.b16 %v859
    %v930 = vunpack.c.l.b16 %v860
    %v931 = vunpack.c.h.b16 %v860
    %v932 = vunpack.c.l.b16 %v861
    %v933 = vunpack.c.h.b16 %v861
    %v934 = vunpack.c.l.b16 %v862
    %v935 = vunpack.c.h.b16 %v862
    %v936 = vunpack.c.l.b16 %v863
    %v937 = vunpack.c.h.b16 %v863
    %v938 = vunpack.c.l.b16 %v864
    %v939 = vunpack.c.h.b16 %v864
    %v940 = vunpack.c.l.b16 %v865
    %v941 = vunpack.c.h.b16 %v865
    %v942 = vunpack.c.l.b16 %v866
    %v943 = vunpack.c.h.b16 %v866
    %v944 = vunpack.c.l.b16 %v867
    %v945 = vunpack.c.h.b16 %v867
    %v946 = vunpack.c.l.b16 %v868
    %v947 = vunpack.c.h.b16 %v868
    %v948 = vunpack.c.l.b16 %v869
    %v949 = vunpack.c.h.b16 %v869
    %v950 = vunpack.c.l.b16 %v870
    %v951 = vunpack.c.h.b16 %v870
    %v952 = vunpack.c.l.b16 %v871
    %v953 = vunpack.c.h.b16 %v871
    %v954 = vunpack.c.l.b16 %v872
    %v955 = vunpack.c.h.b16 %v872
    %v956 = vunpack.c.l.b16 %v873
    %v957 = vunpack.c.h.b16 %v873
    %v958 = vunpack.c.l.b16 %v874
    %v959 = vunpack.c.h.b16 %v874
    %v960 = vunpack.c.l.b16 %v875
    %v961 = vunpack.c.h.b16 %v875
    %v962 = vunpack.c.l.b16 %v876
    %v963 = vunpack.c.h.b16 %v876
    %v964 = vunpack.c.l.b16 %v877
    %v965 = vunpack.c.h.b16 %v877
    %v966 = vunpack.c.l.b16 %v878
    %v967 = vunpack.c.h.b16 %v878
    %v968 = vunpack.c.l.b16 %v879
    %v969 = vunpack.c.h.b16 %v879
    %v970 = vunpack.c.l.b16 %v880
    %v971 = vunpack.c.h.b16 %v880
    %v972 = vunpack.c.l.b16 %v881
    %v973 = vunpack.c.h.b16 %v881
    %v974 = vunpack.c.l.b16 %v882
    %v975 = vunpack.c.h.b16 %v882
    %v976 = vunpack.c.l.b16 %v883
    %v977 = vunpack.c.h.b16 %v883
    %v978 = vunpack.c.l.b16 %v884
    %v979 = vunpack.c.h.b16 %v884
    %v980 = vunpack.c.l.b16 %v885
    %v981 = vunpack.c.h.b16 %v885
    %v982 = vpack.c.b16 %v922, %v918
    %v983 = vpack.c.b16 %v923, %v919
    %v984 = vpack.c.b16 %v924, %v920
    %v985 = vpack.c.b16 %v925, %v921
    %v986 = vpack.c.b16 %v930, %v926
    %v987 = vpack.c.b16 %v931, %v927
    %v988 = vpack.c.b16 %v932, %v928
    %v989 = vpack.c.b16 %v933, %v929
    %v990 = vpack.c.b16 %v938, %v934
    %v991 = vpack.c.b16 %v939, %v935
    %v992 = vpack.c.b16 %v940, %v936
    %v993 = vpack.c.b16 %v941, %v937
    %v994 = vpack.c.b16 %v946, %v942
    %v995 = vpack.c.b16 %v947, %v943
    %v996 = vpack.c.b16 %v948, %v944
    %v997 = vpack.c.b16 %v949, %v945
    %v998 = vpack.c.b16 %v954, %v950
    %v999 = vpack.c.b16 %v955, %v951
    %v1000 = vpack.c.b16 %v956, %v952
    %v1001 = vpack.c.b16 %v957, %v953
    %v1002 = vpack.c.b16 %v962, %v958
    %v1003 = vpack.c.b16 %v963, %v959
    %v1004 = vpack.c.b16 %v964, %v960
    %v1005 = vpack.c.b16 %v965, %v961
    %v1006 = vpack.c.b16 %v970, %v966
    %v1007 = vpack.c.b16 %v971, %v967
    %v1008 = vpack.c.b16 %v972, %v968
    %v1009 = vpack.c.b16 %v973, %v969
    %v1010 = vpack.c.b16 %v978, %v974
    %v1011 = vpack.c.b16 %v979, %v975
    %v1012 = vpack.c.b16 %v980, %v976
    %v1013 = vpack.c.b16 %v981, %v977
    %1046 = vmatpush.bf16.msra.mxu0 %v1010
    %1047 = vmatpush.bf16.msra.mxu0 %v1006
    %1048 = vmatpush.bf16.msra.mxu0 %v1002
    %1049 = vmatpush.bf16.msra.mxu0 %v998
    %1050 = vmatpush.bf16.msra.mxu0 %v994
    %1051 = vmatpush.bf16.msra.mxu0 %v990
    %1052 = vmatpush.bf16.msra.mxu0 %v986
    %1053 = vmatpush.bf16.msra.mxu0 %v982
    %1054 = vmatmul.bf16.gmra.mxu0 %v853
    %v1055 = vpop.f32.mrf.mxu0
    %v1056 = vadd.f32 0.0, %v1055
    %v1057 = vpop.f32.mrf.mxu0
    %1058 = vdwg.mxu0
    %1059 = vmatpush.bf16.msra.mxu0 %v1011
    %1060 = vmatpush.bf16.msra.mxu0 %v1007
    %1061 = vmatpush.bf16.msra.mxu0 %v1003
    %1062 = vmatpush.bf16.msra.mxu0 %v999
    %1063 = vmatpush.bf16.msra.mxu0 %v995
    %1064 = vmatpush.bf16.msra.mxu0 %v991
    %1065 = vmatpush.bf16.msra.mxu0 %v987
    %1066 = vmatpush.bf16.msra.mxu0 %v983
    %1067 = vmatmul.bf16.gmra.mxu0 %v853
    %v1068 = vpop.f32.mrf.mxu0
    %v1069 = vadd.f32 0.0, %v1068
    %v1070 = vpop.f32.mrf.mxu0
    %1071 = vdwg.mxu0
    %1072 = vmatpush.bf16.msra.mxu0 %v1012
    %1073 = vmatpush.bf16.msra.mxu0 %v1008
    %1074 = vmatpush.bf16.msra.mxu0 %v1004
    %1075 = vmatpush.bf16.msra.mxu0 %v1000
    %1076 = vmatpush.bf16.msra.mxu0 %v996
    %1077 = vmatpush.bf16.msra.mxu0 %v992
    %1078 = vmatpush.bf16.msra.mxu0 %v988
    %1079 = vmatpush.bf16.msra.mxu0 %v984
    %1080 = vmatmul.bf16.gmra.mxu0 %v853
    %v1081 = vpop.f32.mrf.mxu0
    %v1082 = vadd.f32 0.0, %v1081
    %v1083 = vpop.f32.mrf.mxu0
    %1084 = vdwg.mxu0
    %1085 = vmatpush.bf16.msra.mxu0 %v1013
    %1086 = vmatpush.bf16.msra.mxu0 %v1009
    %1087 = vmatpush.bf16.msra.mxu0 %v1005
    %1088 = vmatpush.bf16.msra.mxu0 %v1001
    %1089 = vmatpush.bf16.msra.mxu0 %v997
    %1090 = vmatpush.bf16.msra.mxu0 %v993
    %1091 = vmatpush.bf16.msra.mxu0 %v989
    %1092 = vmatpush.bf16.msra.mxu0 %v985
    %1093 = vmatmul.bf16.gmra.mxu0 %v853
    %v1094 = vpop.f32.mrf.mxu0
    %v1095 = vadd.f32 0.0, %v1094
    %v1096 = vpop.f32.mrf.mxu0
    %1097 = vdwg.mxu0
    %v1098 = vadd.f32 %v849, %v1056
    %v1099 = vadd.f32 %v850, %v1069
    %v1100 = vadd.f32 %v851, %v1082
    %v1101 = vadd.f32 %v852, %v1095
    %v1102 = vxor.u32 %v1098, 2147483648
    %v1103 = vmul.f32 %v1102, 1.442695
    %v1104 = vpow.pop %v1103
    %v1105 = vadd.f32 %v1104, 1.0
    %v1106 = vrcp.pop %v1105
    %v1107 = vmul.f32 %v1105, %v1106
    %v1108 = vsub.f32 1.0, %v1107
    %v1109 = vmul.f32 %v1106, %v1108
    %v1110 = vadd.f32 %v1106, %v1109
    %vm1111 = vweird.f32 %v1105
    %vm1112 = vweird.f32 %v1106
    %vm1113 = vmor %vm1111, %vm1112
    %v1114 = vsel %vm1113, %v1106, %v1110
    %v1115 = vand.u32 2147483647, %v1105
    %vm1116 = vcmp.eq.f32.partialorder %v1115, 8.507059e+37
    %v1117 = vand.u32 %v1105, 2147483648
    %v1118 = vor.u32 1.1754944e-38, %v1117
    %v1119 = vsel %vm1116, %v1118, %v1114
    %v1120 = vmul.f32 1.0, %v1119
    %v1121 = vxor.u32 %v1099, 2147483648
    %v1122 = vmul.f32 %v1121, 1.442695
    %v1123 = vpow.pop %v1122
    %v1124 = vadd.f32 %v1123, 1.0
    %v1125 = vrcp.pop %v1124
    %v1126 = vmul.f32 %v1124, %v1125
    %v1127 = vsub.f32 1.0, %v1126
    %v1128 = vmul.f32 %v1125, %v1127
    %v1129 = vadd.f32 %v1125, %v1128
    %vm1130 = vweird.f32 %v1124
    %vm1131 = vweird.f32 %v1125
    %vm1132 = vmor %vm1130, %vm1131
    %v1133 = vsel %vm1132, %v1125, %v1129
    %v1134 = vand.u32 2147483647, %v1124
    %vm1135 = vcmp.eq.f32.partialorder %v1134, 8.507059e+37
    %v1136 = vand.u32 %v1124, 2147483648
    %v1137 = vor.u32 1.1754944e-38, %v1136
    %v1138 = vsel %vm1135, %v1137, %v1133
    %v1139 = vmul.f32 1.0, %v1138
    %v1140 = vtanh.pop %v1100
    %v1141 = vxor.u32 %v1101, 2147483648
    %v1142 = vmul.f32 %v1141, 1.442695
    %v1143 = vpow.pop %v1142
    %v1144 = vadd.f32 %v1143, 1.0
    %v1145 = vrcp.pop %v1144
    %v1146 = vmul.f32 %v1144, %v1145
    %v1147 = vsub.f32 1.0, %v1146
    %v1148 = vmul.f32 %v1145, %v1147
    %v1149 = vadd.f32 %v1145, %v1148
    %vm1150 = vweird.f32 %v1144
    %vm1151 = vweird.f32 %v1145
    %vm1152 = vmor %vm1150, %vm1151
    %v1153 = vsel %vm1152, %v1145, %v1149
    %v1154 = vand.u32 2147483647, %v1144
    %vm1155 = vcmp.eq.f32.partialorder %v1154, 8.507059e+37
    %v1156 = vand.u32 %v1144, 2147483648
    %v1157 = vor.u32 1.1754944e-38, %v1156
    %v1158 = vsel %vm1155, %v1157, %v1153
    %v1159 = vmul.f32 1.0, %v1158
    %v1160 = vmul.f32 %v1139, %v842
    %v1161 = vmul.f32 %v1120, %v1140
    %v1162 = vadd.f32 %v1160, %v1161
    %v1163 = vtanh.pop %v1162
    %v1164 = vmul.f32 %v1159, %v1163
    %s1165 = scalar_lea.vmem [#allocation2], 8
    %1166 = vst [vmem:[%s1165] sm:$0xff] %v1164
    %s1167 = smul.u32 2, 4
    %s1168 = smul.addr %s1167, 8
    %s1169 = scalar_lea.vmem [#allocation3], %s1168
    %v1170 = vld [vmem:[%s1169] sm:$0xff]
    %v1171 = vld [vmem:[%s1169 + $0x8] sm:$0xff]
    %v1172 = vld [vmem:[%s1169 + $0x10] sm:$0xff]
    %v1173 = vld [vmem:[%s1169 + $0x18] sm:$0xff]
    %v1174 = vpack.c.bf16 %v1164, %v1164
    %v1175 = vld [vmem:[#allocation9] sm:$0xff]
    %v1176 = vld [vmem:[#allocation9 + $0x8] sm:$0xff]
    %v1177 = vld [vmem:[#allocation9 + $0x10] sm:$0xff]
    %v1178 = vld [vmem:[#allocation9 + $0x18] sm:$0xff]
    %v1179 = vld [vmem:[#allocation9 + $0x20] sm:$0xff]
    %v1180 = vld [vmem:[#allocation9 + $0x28] sm:$0xff]
    %v1181 = vld [vmem:[#allocation9 + $0x30] sm:$0xff]
    %v1182 = vld [vmem:[#allocation9 + $0x38] sm:$0xff]
    %v1183 = vld [vmem:[#allocation9 + $0x40] sm:$0xff]
    %v1184 = vld [vmem:[#allocation9 + $0x48] sm:$0xff]
    %v1185 = vld [vmem:[#allocation9 + $0x50] sm:$0xff]
    %v1186 = vld [vmem:[#allocation9 + $0x58] sm:$0xff]
    %v1187 = vld [vmem:[#allocation9 + $0x60] sm:$0xff]
    %v1188 = vld [vmem:[#allocation9 + $0x68] sm:$0xff]
    %v1189 = vld [vmem:[#allocation9 + $0x70] sm:$0xff]
    %v1190 = vld [vmem:[#allocation9 + $0x78] sm:$0xff]
    %v1191 = vld [vmem:[#allocation9 + $0x80] sm:$0xff]
    %v1192 = vld [vmem:[#allocation9 + $0x88] sm:$0xff]
    %v1193 = vld [vmem:[#allocation9 + $0x90] sm:$0xff]
    %v1194 = vld [vmem:[#allocation9 + $0x98] sm:$0xff]
    %v1195 = vld [vmem:[#allocation9 + $0xa0] sm:$0xff]
    %v1196 = vld [vmem:[#allocation9 + $0xa8] sm:$0xff]
    %v1197 = vld [vmem:[#allocation9 + $0xb0] sm:$0xff]
    %v1198 = vld [vmem:[#allocation9 + $0xb8] sm:$0xff]
    %v1199 = vld [vmem:[#allocation9 + $0xc0] sm:$0xff]
    %v1200 = vld [vmem:[#allocation9 + $0xc8] sm:$0xff]
    %v1201 = vld [vmem:[#allocation9 + $0xd0] sm:$0xff]
    %v1202 = vld [vmem:[#allocation9 + $0xd8] sm:$0xff]
    %v1203 = vld [vmem:[#allocation9 + $0xe0] sm:$0xff]
    %v1204 = vld [vmem:[#allocation9 + $0xe8] sm:$0xff]
    %v1205 = vld [vmem:[#allocation9 + $0xf0] sm:$0xff]
    %v1206 = vld [vmem:[#allocation9 + $0xf8] sm:$0xff]
    %v1239 = vunpack.c.l.b16 %v1175
    %v1240 = vunpack.c.h.b16 %v1175
    %v1241 = vunpack.c.l.b16 %v1176
    %v1242 = vunpack.c.h.b16 %v1176
    %v1243 = vunpack.c.l.b16 %v1177
    %v1244 = vunpack.c.h.b16 %v1177
    %v1245 = vunpack.c.l.b16 %v1178
    %v1246 = vunpack.c.h.b16 %v1178
    %v1247 = vunpack.c.l.b16 %v1179
    %v1248 = vunpack.c.h.b16 %v1179
    %v1249 = vunpack.c.l.b16 %v1180
    %v1250 = vunpack.c.h.b16 %v1180
    %v1251 = vunpack.c.l.b16 %v1181
    %v1252 = vunpack.c.h.b16 %v1181
    %v1253 = vunpack.c.l.b16 %v1182
    %v1254 = vunpack.c.h.b16 %v1182
    %v1255 = vunpack.c.l.b16 %v1183
    %v1256 = vunpack.c.h.b16 %v1183
    %v1257 = vunpack.c.l.b16 %v1184
    %v1258 = vunpack.c.h.b16 %v1184
    %v1259 = vunpack.c.l.b16 %v1185
    %v1260 = vunpack.c.h.b16 %v1185
    %v1261 = vunpack.c.l.b16 %v1186
    %v1262 = vunpack.c.h.b16 %v1186
    %v1263 = vunpack.c.l.b16 %v1187
    %v1264 = vunpack.c.h.b16 %v1187
    %v1265 = vunpack.c.l.b16 %v1188
    %v1266 = vunpack.c.h.b16 %v1188
    %v1267 = vunpack.c.l.b16 %v1189
    %v1268 = vunpack.c.h.b16 %v1189
    %v1269 = vunpack.c.l.b16 %v1190
    %v1270 = vunpack.c.h.b16 %v1190
    %v1271 = vunpack.c.l.b16 %v1191
    %v1272 = vunpack.c.h.b16 %v1191
    %v1273 = vunpack.c.l.b16 %v1192
    %v1274 = vunpack.c.h.b16 %v1192
    %v1275 = vunpack.c.l.b16 %v1193
    %v1276 = vunpack.c.h.b16 %v1193
    %v1277 = vunpack.c.l.b16 %v1194
    %v1278 = vunpack.c.h.b16 %v1194
    %v1279 = vunpack.c.l.b16 %v1195
    %v1280 = vunpack.c.h.b16 %v1195
    %v1281 = vunpack.c.l.b16 %v1196
    %v1282 = vunpack.c.h.b16 %v1196
    %v1283 = vunpack.c.l.b16 %v1197
    %v1284 = vunpack.c.h.b16 %v1197
    %v1285 = vunpack.c.l.b16 %v1198
    %v1286 = vunpack.c.h.b16 %v1198
    %v1287 = vunpack.c.l.b16 %v1199
    %v1288 = vunpack.c.h.b16 %v1199
    %v1289 = vunpack.c.l.b16 %v1200
    %v1290 = vunpack.c.h.b16 %v1200
    %v1291 = vunpack.c.l.b16 %v1201
    %v1292 = vunpack.c.h.b16 %v1201
    %v1293 = vunpack.c.l.b16 %v1202
    %v1294 = vunpack.c.h.b16 %v1202
    %v1295 = vunpack.c.l.b16 %v1203
    %v1296 = vunpack.c.h.b16 %v1203
    %v1297 = vunpack.c.l.b16 %v1204
    %v1298 = vunpack.c.h.b16 %v1204
    %v1299 = vunpack.c.l.b16 %v1205
    %v1300 = vunpack.c.h.b16 %v1205
    %v1301 = vunpack.c.l.b16 %v1206
    %v1302 = vunpack.c.h.b16 %v1206
    %v1303 = vpack.c.b16 %v1243, %v1239
    %v1304 = vpack.c.b16 %v1244, %v1240
    %v1305 = vpack.c.b16 %v1245, %v1241
    %v1306 = vpack.c.b16 %v1246, %v1242
    %v1307 = vpack.c.b16 %v1251, %v1247
    %v1308 = vpack.c.b16 %v1252, %v1248
    %v1309 = vpack.c.b16 %v1253, %v1249
    %v1310 = vpack.c.b16 %v1254, %v1250
    %v1311 = vpack.c.b16 %v1259, %v1255
    %v1312 = vpack.c.b16 %v1260, %v1256
    %v1313 = vpack.c.b16 %v1261, %v1257
    %v1314 = vpack.c.b16 %v1262, %v1258
    %v1315 = vpack.c.b16 %v1267, %v1263
    %v1316 = vpack.c.b16 %v1268, %v1264
    %v1317 = vpack.c.b16 %v1269, %v1265
    %v1318 = vpack.c.b16 %v1270, %v1266
    %v1319 = vpack.c.b16 %v1275, %v1271
    %v1320 = vpack.c.b16 %v1276, %v1272
    %v1321 = vpack.c.b16 %v1277, %v1273
    %v1322 = vpack.c.b16 %v1278, %v1274
    %v1323 = vpack.c.b16 %v1283, %v1279
    %v1324 = vpack.c.b16 %v1284, %v1280
    %v1325 = vpack.c.b16 %v1285, %v1281
    %v1326 = vpack.c.b16 %v1286, %v1282
    %v1327 = vpack.c.b16 %v1291, %v1287
    %v1328 = vpack.c.b16 %v1292, %v1288
    %v1329 = vpack.c.b16 %v1293, %v1289
    %v1330 = vpack.c.b16 %v1294, %v1290
    %v1331 = vpack.c.b16 %v1299, %v1295
    %v1332 = vpack.c.b16 %v1300, %v1296
    %v1333 = vpack.c.b16 %v1301, %v1297
    %v1334 = vpack.c.b16 %v1302, %v1298
    %1367 = vmatpush.bf16.msra.mxu0 %v1331
    %1368 = vmatpush.bf16.msra.mxu0 %v1327
    %1369 = vmatpush.bf16.msra.mxu0 %v1323
    %1370 = vmatpush.bf16.msra.mxu0 %v1319
    %1371 = vmatpush.bf16.msra.mxu0 %v1315
    %1372 = vmatpush.bf16.msra.mxu0 %v1311
    %1373 = vmatpush.bf16.msra.mxu0 %v1307
    %1374 = vmatpush.bf16.msra.mxu0 %v1303
    %1375 = vmatmul.bf16.gmra.mxu0 %v1174
    %v1376 = vpop.f32.mrf.mxu0
    %v1377 = vadd.f32 0.0, %v1376
    %v1378 = vpop.f32.mrf.mxu0
    %1379 = vdwg.mxu0
    %1380 = vmatpush.bf16.msra.mxu0 %v1332
    %1381 = vmatpush.bf16.msra.mxu0 %v1328
    %1382 = vmatpush.bf16.msra.mxu0 %v1324
    %1383 = vmatpush.bf16.msra.mxu0 %v1320
    %1384 = vmatpush.bf16.msra.mxu0 %v1316
    %1385 = vmatpush.bf16.msra.mxu0 %v1312
    %1386 = vmatpush.bf16.msra.mxu0 %v1308
    %1387 = vmatpush.bf16.msra.mxu0 %v1304
    %1388 = vmatmul.bf16.gmra.mxu0 %v1174
    %v1389 = vpop.f32.mrf.mxu0
    %v1390 = vadd.f32 0.0, %v1389
    %v1391 = vpop.f32.mrf.mxu0
    %1392 = vdwg.mxu0
    %1393 = vmatpush.bf16.msra.mxu0 %v1333
    %1394 = vmatpush.bf16.msra.mxu0 %v1329
    %1395 = vmatpush.bf16.msra.mxu0 %v1325
    %1396 = vmatpush.bf16.msra.mxu0 %v1321
    %1397 = vmatpush.bf16.msra.mxu0 %v1317
    %1398 = vmatpush.bf16.msra.mxu0 %v1313
    %1399 = vmatpush.bf16.msra.mxu0 %v1309
    %1400 = vmatpush.bf16.msra.mxu0 %v1305
    %1401 = vmatmul.bf16.gmra.mxu0 %v1174
    %v1402 = vpop.f32.mrf.mxu0
    %v1403 = vadd.f32 0.0, %v1402
    %v1404 = vpop.f32.mrf.mxu0
    %1405 = vdwg.mxu0
    %1406 = vmatpush.bf16.msra.mxu0 %v1334
    %1407 = vmatpush.bf16.msra.mxu0 %v1330
    %1408 = vmatpush.bf16.msra.mxu0 %v1326
    %1409 = vmatpush.bf16.msra.mxu0 %v1322
    %1410 = vmatpush.bf16.msra.mxu0 %v1318
    %1411 = vmatpush.bf16.msra.mxu0 %v1314
    %1412 = vmatpush.bf16.msra.mxu0 %v1310
    %1413 = vmatpush.bf16.msra.mxu0 %v1306
    %1414 = vmatmul.bf16.gmra.mxu0 %v1174
    %v1415 = vpop.f32.mrf.mxu0
    %v1416 = vadd.f32 0.0, %v1415
    %v1417 = vpop.f32.mrf.mxu0
    %1418 = vdwg.mxu0
    %v1419 = vadd.f32 %v1170, %v1377
    %v1420 = vadd.f32 %v1171, %v1390
    %v1421 = vadd.f32 %v1172, %v1403
    %v1422 = vadd.f32 %v1173, %v1416
    %v1423 = vxor.u32 %v1419, 2147483648
    %v1424 = vmul.f32 %v1423, 1.442695
    %v1425 = vpow.pop %v1424
    %v1426 = vadd.f32 %v1425, 1.0
    %v1427 = vrcp.pop %v1426
    %v1428 = vmul.f32 %v1426, %v1427
    %v1429 = vsub.f32 1.0, %v1428
    %v1430 = vmul.f32 %v1427, %v1429
    %v1431 = vadd.f32 %v1427, %v1430
    %vm1432 = vweird.f32 %v1426
    %vm1433 = vweird.f32 %v1427
    %vm1434 = vmor %vm1432, %vm1433
    %v1435 = vsel %vm1434, %v1427, %v1431
    %v1436 = vand.u32 2147483647, %v1426
    %vm1437 = vcmp.eq.f32.partialorder %v1436, 8.507059e+37
    %v1438 = vand.u32 %v1426, 2147483648
    %v1439 = vor.u32 1.1754944e-38, %v1438
    %v1440 = vsel %vm1437, %v1439, %v1435
    %v1441 = vmul.f32 1.0, %v1440
    %v1442 = vxor.u32 %v1420, 2147483648
    %v1443 = vmul.f32 %v1442, 1.442695
    %v1444 = vpow.pop %v1443
    %v1445 = vadd.f32 %v1444, 1.0
    %v1446 = vrcp.pop %v1445
    %v1447 = vmul.f32 %v1445, %v1446
    %v1448 = vsub.f32 1.0, %v1447
    %v1449 = vmul.f32 %v1446, %v1448
    %v1450 = vadd.f32 %v1446, %v1449
    %vm1451 = vweird.f32 %v1445
    %vm1452 = vweird.f32 %v1446
    %vm1453 = vmor %vm1451, %vm1452
    %v1454 = vsel %vm1453, %v1446, %v1450
    %v1455 = vand.u32 2147483647, %v1445
    %vm1456 = vcmp.eq.f32.partialorder %v1455, 8.507059e+37
    %v1457 = vand.u32 %v1445, 2147483648
    %v1458 = vor.u32 1.1754944e-38, %v1457
    %v1459 = vsel %vm1456, %v1458, %v1454
    %v1460 = vmul.f32 1.0, %v1459
    %v1461 = vtanh.pop %v1421
    %v1462 = vxor.u32 %v1422, 2147483648
    %v1463 = vmul.f32 %v1462, 1.442695
    %v1464 = vpow.pop %v1463
    %v1465 = vadd.f32 %v1464, 1.0
    %v1466 = vrcp.pop %v1465
    %v1467 = vmul.f32 %v1465, %v1466
    %v1468 = vsub.f32 1.0, %v1467
    %v1469 = vmul.f32 %v1466, %v1468
    %v1470 = vadd.f32 %v1466, %v1469
    %vm1471 = vweird.f32 %v1465
    %vm1472 = vweird.f32 %v1466
    %vm1473 = vmor %vm1471, %vm1472
    %v1474 = vsel %vm1473, %v1466, %v1470
    %v1475 = vand.u32 2147483647, %v1465
    %vm1476 = vcmp.eq.f32.partialorder %v1475, 8.507059e+37
    %v1477 = vand.u32 %v1465, 2147483648
    %v1478 = vor.u32 1.1754944e-38, %v1477
    %v1479 = vsel %vm1476, %v1478, %v1474
    %v1480 = vmul.f32 1.0, %v1479
    %v1481 = vmul.f32 %v1460, %v1162
    %v1482 = vmul.f32 %v1441, %v1461
    %v1483 = vadd.f32 %v1481, %v1482
    %v1484 = vtanh.pop %v1483
    %v1485 = vmul.f32 %v1480, %v1484
    %s1486 = scalar_lea.vmem [#allocation2], 16
    %1487 = vst [vmem:[%s1486] sm:$0xff] %v1485
    %s1488 = smul.u32 3, 4
    %s1489 = smul.addr %s1488, 8
    %s1490 = scalar_lea.vmem [#allocation3], %s1489
    %v1491 = vld [vmem:[%s1490] sm:$0xff]
    %v1492 = vld [vmem:[%s1490 + $0x8] sm:$0xff]
    %v1493 = vld [vmem:[%s1490 + $0x10] sm:$0xff]
    %v1494 = vld [vmem:[%s1490 + $0x18] sm:$0xff]
    %v1495 = vpack.c.bf16 %v1485, %v1485
    %v1496 = vld [vmem:[#allocation9] sm:$0xff]
    %v1497 = vld [vmem:[#allocation9 + $0x8] sm:$0xff]
    %v1498 = vld [vmem:[#allocation9 + $0x10] sm:$0xff]
    %v1499 = vld [vmem:[#allocation9 + $0x18] sm:$0xff]
    %v1500 = vld [vmem:[#allocation9 + $0x20] sm:$0xff]
    %v1501 = vld [vmem:[#allocation9 + $0x28] sm:$0xff]
    %v1502 = vld [vmem:[#allocation9 + $0x30] sm:$0xff]
    %v1503 = vld [vmem:[#allocation9 + $0x38] sm:$0xff]
    %v1504 = vld [vmem:[#allocation9 + $0x40] sm:$0xff]
    %v1505 = vld [vmem:[#allocation9 + $0x48] sm:$0xff]
    %v1506 = vld [vmem:[#allocation9 + $0x50] sm:$0xff]
    %v1507 = vld [vmem:[#allocation9 + $0x58] sm:$0xff]
    %v1508 = vld [vmem:[#allocation9 + $0x60] sm:$0xff]
    %v1509 = vld [vmem:[#allocation9 + $0x68] sm:$0xff]
    %v1510 = vld [vmem:[#allocation9 + $0x70] sm:$0xff]
    %v1511 = vld [vmem:[#allocation9 + $0x78] sm:$0xff]
    %v1512 = vld [vmem:[#allocation9 + $0x80] sm:$0xff]
    %v1513 = vld [vmem:[#allocation9 + $0x88] sm:$0xff]
    %v1514 = vld [vmem:[#allocation9 + $0x90] sm:$0xff]
    %v1515 = vld [vmem:[#allocation9 + $0x98] sm:$0xff]
    %v1516 = vld [vmem:[#allocation9 + $0xa0] sm:$0xff]
    %v1517 = vld [vmem:[#allocation9 + $0xa8] sm:$0xff]
    %v1518 = vld [vmem:[#allocation9 + $0xb0] sm:$0xff]
    %v1519 = vld [vmem:[#allocation9 + $0xb8] sm:$0xff]
    %v1520 = vld [vmem:[#allocation9 + $0xc0] sm:$0xff]
    %v1521 = vld [vmem:[#allocation9 + $0xc8] sm:$0xff]
    %v1522 = vld [vmem:[#allocation9 + $0xd0] sm:$0xff]
    %v1523 = vld [vmem:[#allocation9 + $0xd8] sm:$0xff]
    %v1524 = vld [vmem:[#allocation9 + $0xe0] sm:$0xff]
    %v1525 = vld [vmem:[#allocation9 + $0xe8] sm:$0xff]
    %v1526 = vld [vmem:[#allocation9 + $0xf0] sm:$0xff]
    %v1527 = vld [vmem:[#allocation9 + $0xf8] sm:$0xff]
    %v1560 = vunpack.c.l.b16 %v1496
    %v1561 = vunpack.c.h.b16 %v1496
    %v1562 = vunpack.c.l.b16 %v1497
    %v1563 = vunpack.c.h.b16 %v1497
    %v1564 = vunpack.c.l.b16 %v1498
    %v1565 = vunpack.c.h.b16 %v1498
    %v1566 = vunpack.c.l.b16 %v1499
    %v1567 = vunpack.c.h.b16 %v1499
    %v1568 = vunpack.c.l.b16 %v1500
    %v1569 = vunpack.c.h.b16 %v1500
    %v1570 = vunpack.c.l.b16 %v1501
    %v1571 = vunpack.c.h.b16 %v1501
    %v1572 = vunpack.c.l.b16 %v1502
    %v1573 = vunpack.c.h.b16 %v1502
    %v1574 = vunpack.c.l.b16 %v1503
    %v1575 = vunpack.c.h.b16 %v1503
    %v1576 = vunpack.c.l.b16 %v1504
    %v1577 = vunpack.c.h.b16 %v1504
    %v1578 = vunpack.c.l.b16 %v1505
    %v1579 = vunpack.c.h.b16 %v1505
    %v1580 = vunpack.c.l.b16 %v1506
    %v1581 = vunpack.c.h.b16 %v1506
    %v1582 = vunpack.c.l.b16 %v1507
    %v1583 = vunpack.c.h.b16 %v1507
    %v1584 = vunpack.c.l.b16 %v1508
    %v1585 = vunpack.c.h.b16 %v1508
    %v1586 = vunpack.c.l.b16 %v1509
    %v1587 = vunpack.c.h.b16 %v1509
    %v1588 = vunpack.c.l.b16 %v1510
    %v1589 = vunpack.c.h.b16 %v1510
    %v1590 = vunpack.c.l.b16 %v1511
    %v1591 = vunpack.c.h.b16 %v1511
    %v1592 = vunpack.c.l.b16 %v1512
    %v1593 = vunpack.c.h.b16 %v1512
    %v1594 = vunpack.c.l.b16 %v1513
    %v1595 = vunpack.c.h.b16 %v1513
    %v1596 = vunpack.c.l.b16 %v1514
    %v1597 = vunpack.c.h.b16 %v1514
    %v1598 = vunpack.c.l.b16 %v1515
    %v1599 = vunpack.c.h.b16 %v1515
    %v1600 = vunpack.c.l.b16 %v1516
    %v1601 = vunpack.c.h.b16 %v1516
    %v1602 = vunpack.c.l.b16 %v1517
    %v1603 = vunpack.c.h.b16 %v1517
    %v1604 = vunpack.c.l.b16 %v1518
    %v1605 = vunpack.c.h.b16 %v1518
    %v1606 = vunpack.c.l.b16 %v1519
    %v1607 = vunpack.c.h.b16 %v1519
    %v1608 = vunpack.c.l.b16 %v1520
    %v1609 = vunpack.c.h.b16 %v1520
    %v1610 = vunpack.c.l.b16 %v1521
    %v1611 = vunpack.c.h.b16 %v1521
    %v1612 = vunpack.c.l.b16 %v1522
    %v1613 = vunpack.c.h.b16 %v1522
    %v1614 = vunpack.c.l.b16 %v1523
    %v1615 = vunpack.c.h.b16 %v1523
    %v1616 = vunpack.c.l.b16 %v1524
    %v1617 = vunpack.c.h.b16 %v1524
    %v1618 = vunpack.c.l.b16 %v1525
    %v1619 = vunpack.c.h.b16 %v1525
    %v1620 = vunpack.c.l.b16 %v1526
    %v1621 = vunpack.c.h.b16 %v1526
    %v1622 = vunpack.c.l.b16 %v1527
    %v1623 = vunpack.c.h.b16 %v1527
    %v1624 = vpack.c.b16 %v1564, %v1560
    %v1625 = vpack.c.b16 %v1565, %v1561
    %v1626 = vpack.c.b16 %v1566, %v1562
    %v1627 = vpack.c.b16 %v1567, %v1563
    %v1628 = vpack.c.b16 %v1572, %v1568
    %v1629 = vpack.c.b16 %v1573, %v1569
    %v1630 = vpack.c.b16 %v1574, %v1570
    %v1631 = vpack.c.b16 %v1575, %v1571
    %v1632 = vpack.c.b16 %v1580, %v1576
    %v1633 = vpack.c.b16 %v1581, %v1577
    %v1634 = vpack.c.b16 %v1582, %v1578
    %v1635 = vpack.c.b16 %v1583, %v1579
    %v1636 = vpack.c.b16 %v1588, %v1584
    %v1637 = vpack.c.b16 %v1589, %v1585
    %v1638 = vpack.c.b16 %v1590, %v1586
    %v1639 = vpack.c.b16 %v1591, %v1587
    %v1640 = vpack.c.b16 %v1596, %v1592
    %v1641 = vpack.c.b16 %v1597, %v1593
    %v1642 = vpack.c.b16 %v1598, %v1594
    %v1643 = vpack.c.b16 %v1599, %v1595
    %v1644 = vpack.c.b16 %v1604, %v1600
    %v1645 = vpack.c.b16 %v1605, %v1601
    %v1646 = vpack.c.b16 %v1606, %v1602
    %v1647 = vpack.c.b16 %v1607, %v1603
    %v1648 = vpack.c.b16 %v1612, %v1608
    %v1649 = vpack.c.b16 %v1613, %v1609
    %v1650 = vpack.c.b16 %v1614, %v1610
    %v1651 = vpack.c.b16 %v1615, %v1611
    %v1652 = vpack.c.b16 %v1620, %v1616
    %v1653 = vpack.c.b16 %v1621, %v1617
    %v1654 = vpack.c.b16 %v1622, %v1618
    %v1655 = vpack.c.b16 %v1623, %v1619
    %1688 = vmatpush.bf16.msra.mxu0 %v1652
    %1689 = vmatpush.bf16.msra.mxu0 %v1648
    %1690 = vmatpush.bf16.msra.mxu0 %v1644
    %1691 = vmatpush.bf16.msra.mxu0 %v1640
    %1692 = vmatpush.bf16.msra.mxu0 %v1636
    %1693 = vmatpush.bf16.msra.mxu0 %v1632
    %1694 = vmatpush.bf16.msra.mxu0 %v1628
    %1695 = vmatpush.bf16.msra.mxu0 %v1624
    %1696 = vmatmul.bf16.gmra.mxu0 %v1495
    %v1697 = vpop.f32.mrf.mxu0
    %v1698 = vadd.f32 0.0, %v1697
    %v1699 = vpop.f32.mrf.mxu0
    %1700 = vdwg.mxu0
    %1701 = vmatpush.bf16.msra.mxu0 %v1653
    %1702 = vmatpush.bf16.msra.mxu0 %v1649
    %1703 = vmatpush.bf16.msra.mxu0 %v1645
    %1704 = vmatpush.bf16.msra.mxu0 %v1641
    %1705 = vmatpush.bf16.msra.mxu0 %v1637
    %1706 = vmatpush.bf16.msra.mxu0 %v1633
    %1707 = vmatpush.bf16.msra.mxu0 %v1629
    %1708 = vmatpush.bf16.msra.mxu0 %v1625
    %1709 = vmatmul.bf16.gmra.mxu0 %v1495
    %v1710 = vpop.f32.mrf.mxu0
    %v1711 = vadd.f32 0.0, %v1710
    %v1712 = vpop.f32.mrf.mxu0
    %1713 = vdwg.mxu0
    %1714 = vmatpush.bf16.msra.mxu0 %v1654
    %1715 = vmatpush.bf16.msra.mxu0 %v1650
    %1716 = vmatpush.bf16.msra.mxu0 %v1646
    %1717 = vmatpush.bf16.msra.mxu0 %v1642
    %1718 = vmatpush.bf16.msra.mxu0 %v1638
    %1719 = vmatpush.bf16.msra.mxu0 %v1634
    %1720 = vmatpush.bf16.msra.mxu0 %v1630
    %1721 = vmatpush.bf16.msra.mxu0 %v1626
    %1722 = vmatmul.bf16.gmra.mxu0 %v1495
    %v1723 = vpop.f32.mrf.mxu0
    %v1724 = vadd.f32 0.0, %v1723
    %v1725 = vpop.f32.mrf.mxu0
    %1726 = vdwg.mxu0
    %1727 = vmatpush.bf16.msra.mxu0 %v1655
    %1728 = vmatpush.bf16.msra.mxu0 %v1651
    %1729 = vmatpush.bf16.msra.mxu0 %v1647
    %1730 = vmatpush.bf16.msra.mxu0 %v1643
    %1731 = vmatpush.bf16.msra.mxu0 %v1639
    %1732 = vmatpush.bf16.msra.mxu0 %v1635
    %1733 = vmatpush.bf16.msra.mxu0 %v1631
    %1734 = vmatpush.bf16.msra.mxu0 %v1627
    %1735 = vmatmul.bf16.gmra.mxu0 %v1495
    %v1736 = vpop.f32.mrf.mxu0
    %v1737 = vadd.f32 0.0, %v1736
    %v1738 = vpop.f32.mrf.mxu0
    %1739 = vdwg.mxu0
    %v1740 = vadd.f32 %v1491, %v1698
    %v1741 = vadd.f32 %v1492, %v1711
    %v1742 = vadd.f32 %v1493, %v1724
    %v1743 = vadd.f32 %v1494, %v1737
    %v1744 = vxor.u32 %v1740, 2147483648
    %v1745 = vmul.f32 %v1744, 1.442695
    %v1746 = vpow.pop %v1745
    %v1747 = vadd.f32 %v1746, 1.0
    %v1748 = vrcp.pop %v1747
    %v1749 = vmul.f32 %v1747, %v1748
    %v1750 = vsub.f32 1.0, %v1749
    %v1751 = vmul.f32 %v1748, %v1750
    %v1752 = vadd.f32 %v1748, %v1751
    %vm1753 = vweird.f32 %v1747
    %vm1754 = vweird.f32 %v1748
    %vm1755 = vmor %vm1753, %vm1754
    %v1756 = vsel %vm1755, %v1748, %v1752
    %v1757 = vand.u32 2147483647, %v1747
    %vm1758 = vcmp.eq.f32.partialorder %v1757, 8.507059e+37
    %v1759 = vand.u32 %v1747, 2147483648
    %v1760 = vor.u32 1.1754944e-38, %v1759
    %v1761 = vsel %vm1758, %v1760, %v1756
    %v1762 = vmul.f32 1.0, %v1761
    %v1763 = vxor.u32 %v1741, 2147483648
    %v1764 = vmul.f32 %v1763, 1.442695
    %v1765 = vpow.pop %v1764
    %v1766 = vadd.f32 %v1765, 1.0
    %v1767 = vrcp.pop %v1766
    %v1768 = vmul.f32 %v1766, %v1767
    %v1769 = vsub.f32 1.0, %v1768
    %v1770 = vmul.f32 %v1767, %v1769
    %v1771 = vadd.f32 %v1767, %v1770
    %vm1772 = vweird.f32 %v1766
    %vm1773 = vweird.f32 %v1767
    %vm1774 = vmor %vm1772, %vm1773
    %v1775 = vsel %vm1774, %v1767, %v1771
    %v1776 = vand.u32 2147483647, %v1766
    %vm1777 = vcmp.eq.f32.partialorder %v1776, 8.507059e+37
    %v1778 = vand.u32 %v1766, 2147483648
    %v1779 = vor.u32 1.1754944e-38, %v1778
    %v1780 = vsel %vm1777, %v1779, %v1775
    %v1781 = vmul.f32 1.0, %v1780
    %v1782 = vtanh.pop %v1742
    %v1783 = vxor.u32 %v1743, 2147483648
    %v1784 = vmul.f32 %v1783, 1.442695
    %v1785 = vpow.pop %v1784
    %v1786 = vadd.f32 %v1785, 1.0
    %v1787 = vrcp.pop %v1786
    %v1788 = vmul.f32 %v1786, %v1787
    %v1789 = vsub.f32 1.0, %v1788
    %v1790 = vmul.f32 %v1787, %v1789
    %v1791 = vadd.f32 %v1787, %v1790
    %vm1792 = vweird.f32 %v1786
    %vm1793 = vweird.f32 %v1787
    %vm1794 = vmor %vm1792, %vm1793
    %v1795 = vsel %vm1794, %v1787, %v1791
    %v1796 = vand.u32 2147483647, %v1786
    %vm1797 = vcmp.eq.f32.partialorder %v1796, 8.507059e+37
    %v1798 = vand.u32 %v1786, 2147483648
    %v1799 = vor.u32 1.1754944e-38, %v1798
    %v1800 = vsel %vm1797, %v1799, %v1795
    %v1801 = vmul.f32 1.0, %v1800
    %v1802 = vmul.f32 %v1781, %v1483
    %v1803 = vmul.f32 %v1762, %v1782
    %v1804 = vadd.f32 %v1802, %v1803
    %v1805 = vtanh.pop %v1804
    %v1806 = vmul.f32 %v1801, %v1805
    %s1807 = scalar_lea.vmem [#allocation2], 24
    %1808 = vst [vmem:[%s1807] sm:$0xff] %v1806
    %s1809 = smul.u32 4, 4
    %s1810 = smul.addr %s1809, 8
    %s1811 = scalar_lea.vmem [#allocation3], %s1810
    %v1812 = vld [vmem:[%s1811] sm:$0xff]
    %v1813 = vld [vmem:[%s1811 + $0x8] sm:$0xff]
    %v1814 = vld [vmem:[%s1811 + $0x10] sm:$0xff]
    %v1815 = vld [vmem:[%s1811 + $0x18] sm:$0xff]
    %v1816 = vpack.c.bf16 %v1806, %v1806
    %v1817 = vld [vmem:[#allocation9] sm:$0xff]
    %v1818 = vld [vmem:[#allocation9 + $0x8] sm:$0xff]
    %v1819 = vld [vmem:[#allocation9 + $0x10] sm:$0xff]
    %v1820 = vld [vmem:[#allocation9 + $0x18] sm:$0xff]
    %v1821 = vld [vmem:[#allocation9 + $0x20] sm:$0xff]
    %v1822 = vld [vmem:[#allocation9 + $0x28] sm:$0xff]
    %v1823 = vld [vmem:[#allocation9 + $0x30] sm:$0xff]
    %v1824 = vld [vmem:[#allocation9 + $0x38] sm:$0xff]
    %v1825 = vld [vmem:[#allocation9 + $0x40] sm:$0xff]
    %v1826 = vld [vmem:[#allocation9 + $0x48] sm:$0xff]
    %v1827 = vld [vmem:[#allocation9 + $0x50] sm:$0xff]
    %v1828 = vld [vmem:[#allocation9 + $0x58] sm:$0xff]
    %v1829 = vld [vmem:[#allocation9 + $0x60] sm:$0xff]
    %v1830 = vld [vmem:[#allocation9 + $0x68] sm:$0xff]
    %v1831 = vld [vmem:[#allocation9 + $0x70] sm:$0xff]
    %v1832 = vld [vmem:[#allocation9 + $0x78] sm:$0xff]
    %v1833 = vld [vmem:[#allocation9 + $0x80] sm:$0xff]
    %v1834 = vld [vmem:[#allocation9 + $0x88] sm:$0xff]
    %v1835 = vld [vmem:[#allocation9 + $0x90] sm:$0xff]
    %v1836 = vld [vmem:[#allocation9 + $0x98] sm:$0xff]
    %v1837 = vld [vmem:[#allocation9 + $0xa0] sm:$0xff]
    %v1838 = vld [vmem:[#allocation9 + $0xa8] sm:$0xff]
    %v1839 = vld [vmem:[#allocation9 + $0xb0] sm:$0xff]
    %v1840 = vld [vmem:[#allocation9 + $0xb8] sm:$0xff]
    %v1841 = vld [vmem:[#allocation9 + $0xc0] sm:$0xff]
    %v1842 = vld [vmem:[#allocation9 + $0xc8] sm:$0xff]
    %v1843 = vld [vmem:[#allocation9 + $0xd0] sm:$0xff]
    %v1844 = vld [vmem:[#allocation9 + $0xd8] sm:$0xff]
    %v1845 = vld [vmem:[#allocation9 + $0xe0] sm:$0xff]
    %v1846 = vld [vmem:[#allocation9 + $0xe8] sm:$0xff]
    %v1847 = vld [vmem:[#allocation9 + $0xf0] sm:$0xff]
    %v1848 = vld [vmem:[#allocation9 + $0xf8] sm:$0xff]
    %v1881 = vunpack.c.l.b16 %v1817
    %v1882 = vunpack.c.h.b16 %v1817
    %v1883 = vunpack.c.l.b16 %v1818
    %v1884 = vunpack.c.h.b16 %v1818
    %v1885 = vunpack.c.l.b16 %v1819
    %v1886 = vunpack.c.h.b16 %v1819
    %v1887 = vunpack.c.l.b16 %v1820
    %v1888 = vunpack.c.h.b16 %v1820
    %v1889 = vunpack.c.l.b16 %v1821
    %v1890 = vunpack.c.h.b16 %v1821
    %v1891 = vunpack.c.l.b16 %v1822
    %v1892 = vunpack.c.h.b16 %v1822
    %v1893 = vunpack.c.l.b16 %v1823
    %v1894 = vunpack.c.h.b16 %v1823
    %v1895 = vunpack.c.l.b16 %v1824
    %v1896 = vunpack.c.h.b16 %v1824
    %v1897 = vunpack.c.l.b16 %v1825
    %v1898 = vunpack.c.h.b16 %v1825
    %v1899 = vunpack.c.l.b16 %v1826
    %v1900 = vunpack.c.h.b16 %v1826
    %v1901 = vunpack.c.l.b16 %v1827
    %v1902 = vunpack.c.h.b16 %v1827
    %v1903 = vunpack.c.l.b16 %v1828
    %v1904 = vunpack.c.h.b16 %v1828
    %v1905 = vunpack.c.l.b16 %v1829
    %v1906 = vunpack.c.h.b16 %v1829
    %v1907 = vunpack.c.l.b16 %v1830
    %v1908 = vunpack.c.h.b16 %v1830
    %v1909 = vunpack.c.l.b16 %v1831
    %v1910 = vunpack.c.h.b16 %v1831
    %v1911 = vunpack.c.l.b16 %v1832
    %v1912 = vunpack.c.h.b16 %v1832
    %v1913 = vunpack.c.l.b16 %v1833
    %v1914 = vunpack.c.h.b16 %v1833
    %v1915 = vunpack.c.l.b16 %v1834
    %v1916 = vunpack.c.h.b16 %v1834
    %v1917 = vunpack.c.l.b16 %v1835
    %v1918 = vunpack.c.h.b16 %v1835
    %v1919 = vunpack.c.l.b16 %v1836
    %v1920 = vunpack.c.h.b16 %v1836
    %v1921 = vunpack.c.l.b16 %v1837
    %v1922 = vunpack.c.h.b16 %v1837
    %v1923 = vunpack.c.l.b16 %v1838
    %v1924 = vunpack.c.h.b16 %v1838
    %v1925 = vunpack.c.l.b16 %v1839
    %v1926 = vunpack.c.h.b16 %v1839
    %v1927 = vunpack.c.l.b16 %v1840
    %v1928 = vunpack.c.h.b16 %v1840
    %v1929 = vunpack.c.l.b16 %v1841
    %v1930 = vunpack.c.h.b16 %v1841
    %v1931 = vunpack.c.l.b16 %v1842
    %v1932 = vunpack.c.h.b16 %v1842
    %v1933 = vunpack.c.l.b16 %v1843
    %v1934 = vunpack.c.h.b16 %v1843
    %v1935 = vunpack.c.l.b16 %v1844
    %v1936 = vunpack.c.h.b16 %v1844
    %v1937 = vunpack.c.l.b16 %v1845
    %v1938 = vunpack.c.h.b16 %v1845
    %v1939 = vunpack.c.l.b16 %v1846
    %v1940 = vunpack.c.h.b16 %v1846
    %v1941 = vunpack.c.l.b16 %v1847
    %v1942 = vunpack.c.h.b16 %v1847
    %v1943 = vunpack.c.l.b16 %v1848
    %v1944 = vunpack.c.h.b16 %v1848
    %v1945 = vpack.c.b16 %v1885, %v1881
    %v1946 = vpack.c.b16 %v1886, %v1882
    %v1947 = vpack.c.b16 %v1887, %v1883
    %v1948 = vpack.c.b16 %v1888, %v1884
    %v1949 = vpack.c.b16 %v1893, %v1889
    %v1950 = vpack.c.b16 %v1894, %v1890
    %v1951 = vpack.c.b16 %v1895, %v1891
    %v1952 = vpack.c.b16 %v1896, %v1892
    %v1953 = vpack.c.b16 %v1901, %v1897
    %v1954 = vpack.c.b16 %v1902, %v1898
    %v1955 = vpack.c.b16 %v1903, %v1899
    %v1956 = vpack.c.b16 %v1904, %v1900
    %v1957 = vpack.c.b16 %v1909, %v1905
    %v1958 = vpack.c.b16 %v1910, %v1906
    %v1959 = vpack.c.b16 %v1911, %v1907
    %v1960 = vpack.c.b16 %v1912, %v1908
    %v1961 = vpack.c.b16 %v1917, %v1913
    %v1962 = vpack.c.b16 %v1918, %v1914
    %v1963 = vpack.c.b16 %v1919, %v1915
    %v1964 = vpack.c.b16 %v1920, %v1916
    %v1965 = vpack.c.b16 %v1925, %v1921
    %v1966 = vpack.c.b16 %v1926, %v1922
    %v1967 = vpack.c.b16 %v1927, %v1923
    %v1968 = vpack.c.b16 %v1928, %v1924
    %v1969 = vpack.c.b16 %v1933, %v1929
    %v1970 = vpack.c.b16 %v1934, %v1930
    %v1971 = vpack.c.b16 %v1935, %v1931
    %v1972 = vpack.c.b16 %v1936, %v1932
    %v1973 = vpack.c.b16 %v1941, %v1937
    %v1974 = vpack.c.b16 %v1942, %v1938
    %v1975 = vpack.c.b16 %v1943, %v1939
    %v1976 = vpack.c.b16 %v1944, %v1940
    %2009 = vmatpush.bf16.msra.mxu0 %v1973
    %2010 = vmatpush.bf16.msra.mxu0 %v1969
    %2011 = vmatpush.bf16.msra.mxu0 %v1965
    %2012 = vmatpush.bf16.msra.mxu0 %v1961
    %2013 = vmatpush.bf16.msra.mxu0 %v1957
    %2014 = vmatpush.bf16.msra.mxu0 %v1953
    %2015 = vmatpush.bf16.msra.mxu0 %v1949
    %2016 = vmatpush.bf16.msra.mxu0 %v1945
    %2017 = vmatmul.bf16.gmra.mxu0 %v1816
    %v2018 = vpop.f32.mrf.mxu0
    %v2019 = vadd.f32 0.0, %v2018
    %v2020 = vpop.f32.mrf.mxu0
    %2021 = vdwg.mxu0
    %2022 = vmatpush.bf16.msra.mxu0 %v1974
    %2023 = vmatpush.bf16.msra.mxu0 %v1970
    %2024 = vmatpush.bf16.msra.mxu0 %v1966
    %2025 = vmatpush.bf16.msra.mxu0 %v1962
    %2026 = vmatpush.bf16.msra.mxu0 %v1958
    %2027 = vmatpush.bf16.msra.mxu0 %v1954
    %2028 = vmatpush.bf16.msra.mxu0 %v1950
    %2029 = vmatpush.bf16.msra.mxu0 %v1946
    %2030 = vmatmul.bf16.gmra.mxu0 %v1816
    %v2031 = vpop.f32.mrf.mxu0
    %v2032 = vadd.f32 0.0, %v2031
    %v2033 = vpop.f32.mrf.mxu0
    %2034 = vdwg.mxu0
    %2035 = vmatpush.bf16.msra.mxu0 %v1975
    %2036 = vmatpush.bf16.msra.mxu0 %v1971
    %2037 = vmatpush.bf16.msra.mxu0 %v1967
    %2038 = vmatpush.bf16.msra.mxu0 %v1963
    %2039 = vmatpush.bf16.msra.mxu0 %v1959
    %2040 = vmatpush.bf16.msra.mxu0 %v1955
    %2041 = vmatpush.bf16.msra.mxu0 %v1951
    %2042 = vmatpush.bf16.msra.mxu0 %v1947
    %2043 = vmatmul.bf16.gmra.mxu0 %v1816
    %v2044 = vpop.f32.mrf.mxu0
    %v2045 = vadd.f32 0.0, %v2044
    %v2046 = vpop.f32.mrf.mxu0
    %2047 = vdwg.mxu0
    %2048 = vmatpush.bf16.msra.mxu0 %v1976
    %2049 = vmatpush.bf16.msra.mxu0 %v1972
    %2050 = vmatpush.bf16.msra.mxu0 %v1968
    %2051 = vmatpush.bf16.msra.mxu0 %v1964
    %2052 = vmatpush.bf16.msra.mxu0 %v1960
    %2053 = vmatpush.bf16.msra.mxu0 %v1956
    %2054 = vmatpush.bf16.msra.mxu0 %v1952
    %2055 = vmatpush.bf16.msra.mxu0 %v1948
    %2056 = vmatmul.bf16.gmra.mxu0 %v1816
    %v2057 = vpop.f32.mrf.mxu0
    %v2058 = vadd.f32 0.0, %v2057
    %v2059 = vpop.f32.mrf.mxu0
    %2060 = vdwg.mxu0
    %v2061 = vadd.f32 %v1812, %v2019
    %v2062 = vadd.f32 %v1813, %v2032
    %v2063 = vadd.f32 %v1814, %v2045
    %v2064 = vadd.f32 %v1815, %v2058
    %v2065 = vxor.u32 %v2061, 2147483648
    %v2066 = vmul.f32 %v2065, 1.442695
    %v2067 = vpow.pop %v2066
    %v2068 = vadd.f32 %v2067, 1.0
    %v2069 = vrcp.pop %v2068
    %v2070 = vmul.f32 %v2068, %v2069
    %v2071 = vsub.f32 1.0, %v2070
    %v2072 = vmul.f32 %v2069, %v2071
    %v2073 = vadd.f32 %v2069, %v2072
    %vm2074 = vweird.f32 %v2068
    %vm2075 = vweird.f32 %v2069
    %vm2076 = vmor %vm2074, %vm2075
    %v2077 = vsel %vm2076, %v2069, %v2073
    %v2078 = vand.u32 2147483647, %v2068
    %vm2079 = vcmp.eq.f32.partialorder %v2078, 8.507059e+37
    %v2080 = vand.u32 %v2068, 2147483648
    %v2081 = vor.u32 1.1754944e-38, %v2080
    %v2082 = vsel %vm2079, %v2081, %v2077
    %v2083 = vmul.f32 1.0, %v2082
    %v2084 = vxor.u32 %v2062, 2147483648
    %v2085 = vmul.f32 %v2084, 1.442695
    %v2086 = vpow.pop %v2085
    %v2087 = vadd.f32 %v2086, 1.0
    %v2088 = vrcp.pop %v2087
    %v2089 = vmul.f32 %v2087, %v2088
    %v2090 = vsub.f32 1.0, %v2089
    %v2091 = vmul.f32 %v2088, %v2090
    %v2092 = vadd.f32 %v2088, %v2091
    %vm2093 = vweird.f32 %v2087
    %vm2094 = vweird.f32 %v2088
    %vm2095 = vmor %vm2093, %vm2094
    %v2096 = vsel %vm2095, %v2088, %v2092
    %v2097 = vand.u32 2147483647, %v2087
    %vm2098 = vcmp.eq.f32.partialorder %v2097, 8.507059e+37
    %v2099 = vand.u32 %v2087, 2147483648
    %v2100 = vor.u32 1.1754944e-38, %v2099
    %v2101 = vsel %vm2098, %v2100, %v2096
    %v2102 = vmul.f32 1.0, %v2101
    %v2103 = vtanh.pop %v2063
    %v2104 = vxor.u32 %v2064, 2147483648
    %v2105 = vmul.f32 %v2104, 1.442695
    %v2106 = vpow.pop %v2105
    %v2107 = vadd.f32 %v2106, 1.0
    %v2108 = vrcp.pop %v2107
    %v2109 = vmul.f32 %v2107, %v2108
    %v2110 = vsub.f32 1.0, %v2109
    %v2111 = vmul.f32 %v2108, %v2110
    %v2112 = vadd.f32 %v2108, %v2111
    %vm2113 = vweird.f32 %v2107
    %vm2114 = vweird.f32 %v2108
    %vm2115 = vmor %vm2113, %vm2114
    %v2116 = vsel %vm2115, %v2108, %v2112
    %v2117 = vand.u32 2147483647, %v2107
    %vm2118 = vcmp.eq.f32.partialorder %v2117, 8.507059e+37
    %v2119 = vand.u32 %v2107, 2147483648
    %v2120 = vor.u32 1.1754944e-38, %v2119
    %v2121 = vsel %vm2118, %v2120, %v2116
    %v2122 = vmul.f32 1.0, %v2121
    %v2123 = vmul.f32 %v2102, %v1804
    %v2124 = vmul.f32 %v2083, %v2103
    %v2125 = vadd.f32 %v2123, %v2124
    %v2126 = vtanh.pop %v2125
    %v2127 = vmul.f32 %v2122, %v2126
    %s2128 = scalar_lea.vmem [#allocation2], 32
    %2129 = vst [vmem:[%s2128] sm:$0xff] %v2127
    %s2130 = smul.u32 5, 4
    %s2131 = smul.addr %s2130, 8
    %s2132 = scalar_lea.vmem [#allocation3], %s2131
    %v2133 = vld [vmem:[%s2132] sm:$0xff]
    %v2134 = vld [vmem:[%s2132 + $0x8] sm:$0xff]
    %v2135 = vld [vmem:[%s2132 + $0x10] sm:$0xff]
    %v2136 = vld [vmem:[%s2132 + $0x18] sm:$0xff]
    %v2137 = vpack.c.bf16 %v2127, %v2127
    %v2138 = vld [vmem:[#allocation9] sm:$0xff]
    %v2139 = vld [vmem:[#allocation9 + $0x8] sm:$0xff]
    %v2140 = vld [vmem:[#allocation9 + $0x10] sm:$0xff]
    %v2141 = vld [vmem:[#allocation9 + $0x18] sm:$0xff]
    %v2142 = vld [vmem:[#allocation9 + $0x20] sm:$0xff]
    %v2143 = vld [vmem:[#allocation9 + $0x28] sm:$0xff]
    %v2144 = vld [vmem:[#allocation9 + $0x30] sm:$0xff]
    %v2145 = vld [vmem:[#allocation9 + $0x38] sm:$0xff]
    %v2146 = vld [vmem:[#allocation9 + $0x40] sm:$0xff]
    %v2147 = vld [vmem:[#allocation9 + $0x48] sm:$0xff]
    %v2148 = vld [vmem:[#allocation9 + $0x50] sm:$0xff]
    %v2149 = vld [vmem:[#allocation9 + $0x58] sm:$0xff]
    %v2150 = vld [vmem:[#allocation9 + $0x60] sm:$0xff]
    %v2151 = vld [vmem:[#allocation9 + $0x68] sm:$0xff]
    %v2152 = vld [vmem:[#allocation9 + $0x70] sm:$0xff]
    %v2153 = vld [vmem:[#allocation9 + $0x78] sm:$0xff]
    %v2154 = vld [vmem:[#allocation9 + $0x80] sm:$0xff]
    %v2155 = vld [vmem:[#allocation9 + $0x88] sm:$0xff]
    %v2156 = vld [vmem:[#allocation9 + $0x90] sm:$0xff]
    %v2157 = vld [vmem:[#allocation9 + $0x98] sm:$0xff]
    %v2158 = vld [vmem:[#allocation9 + $0xa0] sm:$0xff]
    %v2159 = vld [vmem:[#allocation9 + $0xa8] sm:$0xff]
    %v2160 = vld [vmem:[#allocation9 + $0xb0] sm:$0xff]
    %v2161 = vld [vmem:[#allocation9 + $0xb8] sm:$0xff]
    %v2162 = vld [vmem:[#allocation9 + $0xc0] sm:$0xff]
    %v2163 = vld [vmem:[#allocation9 + $0xc8] sm:$0xff]
    %v2164 = vld [vmem:[#allocation9 + $0xd0] sm:$0xff]
    %v2165 = vld [vmem:[#allocation9 + $0xd8] sm:$0xff]
    %v2166 = vld [vmem:[#allocation9 + $0xe0] sm:$0xff]
    %v2167 = vld [vmem:[#allocation9 + $0xe8] sm:$0xff]
    %v2168 = vld [vmem:[#allocation9 + $0xf0] sm:$0xff]
    %v2169 = vld [vmem:[#allocation9 + $0xf8] sm:$0xff]
    %v2202 = vunpack.c.l.b16 %v2138
    %v2203 = vunpack.c.h.b16 %v2138
    %v2204 = vunpack.c.l.b16 %v2139
    %v2205 = vunpack.c.h.b16 %v2139
    %v2206 = vunpack.c.l.b16 %v2140
    %v2207 = vunpack.c.h.b16 %v2140
    %v2208 = vunpack.c.l.b16 %v2141
    %v2209 = vunpack.c.h.b16 %v2141
    %v2210 = vunpack.c.l.b16 %v2142
    %v2211 = vunpack.c.h.b16 %v2142
    %v2212 = vunpack.c.l.b16 %v2143
    %v2213 = vunpack.c.h.b16 %v2143
    %v2214 = vunpack.c.l.b16 %v2144
    %v2215 = vunpack.c.h.b16 %v2144
    %v2216 = vunpack.c.l.b16 %v2145
    %v2217 = vunpack.c.h.b16 %v2145
    %v2218 = vunpack.c.l.b16 %v2146
    %v2219 = vunpack.c.h.b16 %v2146
    %v2220 = vunpack.c.l.b16 %v2147
    %v2221 = vunpack.c.h.b16 %v2147
    %v2222 = vunpack.c.l.b16 %v2148
    %v2223 = vunpack.c.h.b16 %v2148
    %v2224 = vunpack.c.l.b16 %v2149
    %v2225 = vunpack.c.h.b16 %v2149
    %v2226 = vunpack.c.l.b16 %v2150
    %v2227 = vunpack.c.h.b16 %v2150
    %v2228 = vunpack.c.l.b16 %v2151
    %v2229 = vunpack.c.h.b16 %v2151
    %v2230 = vunpack.c.l.b16 %v2152
    %v2231 = vunpack.c.h.b16 %v2152
    %v2232 = vunpack.c.l.b16 %v2153
    %v2233 = vunpack.c.h.b16 %v2153
    %v2234 = vunpack.c.l.b16 %v2154
    %v2235 = vunpack.c.h.b16 %v2154
    %v2236 = vunpack.c.l.b16 %v2155
    %v2237 = vunpack.c.h.b16 %v2155
    %v2238 = vunpack.c.l.b16 %v2156
    %v2239 = vunpack.c.h.b16 %v2156
    %v2240 = vunpack.c.l.b16 %v2157
    %v2241 = vunpack.c.h.b16 %v2157
    %v2242 = vunpack.c.l.b16 %v2158
    %v2243 = vunpack.c.h.b16 %v2158
    %v2244 = vunpack.c.l.b16 %v2159
    %v2245 = vunpack.c.h.b16 %v2159
    %v2246 = vunpack.c.l.b16 %v2160
    %v2247 = vunpack.c.h.b16 %v2160
    %v2248 = vunpack.c.l.b16 %v2161
    %v2249 = vunpack.c.h.b16 %v2161
    %v2250 = vunpack.c.l.b16 %v2162
    %v2251 = vunpack.c.h.b16 %v2162
    %v2252 = vunpack.c.l.b16 %v2163
    %v2253 = vunpack.c.h.b16 %v2163
    %v2254 = vunpack.c.l.b16 %v2164
    %v2255 = vunpack.c.h.b16 %v2164
    %v2256 = vunpack.c.l.b16 %v2165
    %v2257 = vunpack.c.h.b16 %v2165
    %v2258 = vunpack.c.l.b16 %v2166
    %v2259 = vunpack.c.h.b16 %v2166
    %v2260 = vunpack.c.l.b16 %v2167
    %v2261 = vunpack.c.h.b16 %v2167
    %v2262 = vunpack.c.l.b16 %v2168
    %v2263 = vunpack.c.h.b16 %v2168
    %v2264 = vunpack.c.l.b16 %v2169
    %v2265 = vunpack.c.h.b16 %v2169
    %v2266 = vpack.c.b16 %v2206, %v2202
    %v2267 = vpack.c.b16 %v2207, %v2203
    %v2268 = vpack.c.b16 %v2208, %v2204
    %v2269 = vpack.c.b16 %v2209, %v2205
    %v2270 = vpack.c.b16 %v2214, %v2210
    %v2271 = vpack.c.b16 %v2215, %v2211
    %v2272 = vpack.c.b16 %v2216, %v2212
    %v2273 = vpack.c.b16 %v2217, %v2213
    %v2274 = vpack.c.b16 %v2222, %v2218
    %v2275 = vpack.c.b16 %v2223, %v2219
    %v2276 = vpack.c.b16 %v2224, %v2220
    %v2277 = vpack.c.b16 %v2225, %v2221
    %v2278 = vpack.c.b16 %v2230, %v2226
    %v2279 = vpack.c.b16 %v2231, %v2227
    %v2280 = vpack.c.b16 %v2232, %v2228
    %v2281 = vpack.c.b16 %v2233, %v2229
    %v2282 = vpack.c.b16 %v2238, %v2234
    %v2283 = vpack.c.b16 %v2239, %v2235
    %v2284 = vpack.c.b16 %v2240, %v2236
    %v2285 = vpack.c.b16 %v2241, %v2237
    %v2286 = vpack.c.b16 %v2246, %v2242
    %v2287 = vpack.c.b16 %v2247, %v2243
    %v2288 = vpack.c.b16 %v2248, %v2244
    %v2289 = vpack.c.b16 %v2249, %v2245
    %v2290 = vpack.c.b16 %v2254, %v2250
    %v2291 = vpack.c.b16 %v2255, %v2251
    %v2292 = vpack.c.b16 %v2256, %v2252
    %v2293 = vpack.c.b16 %v2257, %v2253
    %v2294 = vpack.c.b16 %v2262, %v2258
    %v2295 = vpack.c.b16 %v2263, %v2259
    %v2296 = vpack.c.b16 %v2264, %v2260
    %v2297 = vpack.c.b16 %v2265, %v2261
    %2330 = vmatpush.bf16.msra.mxu0 %v2294
    %2331 = vmatpush.bf16.msra.mxu0 %v2290
    %2332 = vmatpush.bf16.msra.mxu0 %v2286
    %2333 = vmatpush.bf16.msra.mxu0 %v2282
    %2334 = vmatpush.bf16.msra.mxu0 %v2278
    %2335 = vmatpush.bf16.msra.mxu0 %v2274
    %2336 = vmatpush.bf16.msra.mxu0 %v2270
    %2337 = vmatpush.bf16.msra.mxu0 %v2266
    %2338 = vmatmul.bf16.gmra.mxu0 %v2137
    %v2339 = vpop.f32.mrf.mxu0
    %v2340 = vadd.f32 0.0, %v2339
    %v2341 = vpop.f32.mrf.mxu0
    %2342 = vdwg.mxu0
    %2343 = vmatpush.bf16.msra.mxu0 %v2295
    %2344 = vmatpush.bf16.msra.mxu0 %v2291
    %2345 = vmatpush.bf16.msra.mxu0 %v2287
    %2346 = vmatpush.bf16.msra.mxu0 %v2283
    %2347 = vmatpush.bf16.msra.mxu0 %v2279
    %2348 = vmatpush.bf16.msra.mxu0 %v2275
    %2349 = vmatpush.bf16.msra.mxu0 %v2271
    %2350 = vmatpush.bf16.msra.mxu0 %v2267
    %2351 = vmatmul.bf16.gmra.mxu0 %v2137
    %v2352 = vpop.f32.mrf.mxu0
    %v2353 = vadd.f32 0.0, %v2352
    %v2354 = vpop.f32.mrf.mxu0
    %2355 = vdwg.mxu0
    %2356 = vmatpush.bf16.msra.mxu0 %v2296
    %2357 = vmatpush.bf16.msra.mxu0 %v2292
    %2358 = vmatpush.bf16.msra.mxu0 %v2288
    %2359 = vmatpush.bf16.msra.mxu0 %v2284
    %2360 = vmatpush.bf16.msra.mxu0 %v2280
    %2361 = vmatpush.bf16.msra.mxu0 %v2276
    %2362 = vmatpush.bf16.msra.mxu0 %v2272
    %2363 = vmatpush.bf16.msra.mxu0 %v2268
    %2364 = vmatmul.bf16.gmra.mxu0 %v2137
    %v2365 = vpop.f32.mrf.mxu0
    %v2366 = vadd.f32 0.0, %v2365
    %v2367 = vpop.f32.mrf.mxu0
    %2368 = vdwg.mxu0
    %2369 = vmatpush.bf16.msra.mxu0 %v2297
    %2370 = vmatpush.bf16.msra.mxu0 %v2293
    %2371 = vmatpush.bf16.msra.mxu0 %v2289
    %2372 = vmatpush.bf16.msra.mxu0 %v2285
    %2373 = vmatpush.bf16.msra.mxu0 %v2281
    %2374 = vmatpush.bf16.msra.mxu0 %v2277
    %2375 = vmatpush.bf16.msra.mxu0 %v2273
    %2376 = vmatpush.bf16.msra.mxu0 %v2269
    %2377 = vmatmul.bf16.gmra.mxu0 %v2137
    %v2378 = vpop.f32.mrf.mxu0
    %v2379 = vadd.f32 0.0, %v2378
    %v2380 = vpop.f32.mrf.mxu0
    %2381 = vdwg.mxu0
    %v2382 = vadd.f32 %v2133, %v2340
    %v2383 = vadd.f32 %v2134, %v2353
    %v2384 = vadd.f32 %v2135, %v2366
    %v2385 = vadd.f32 %v2136, %v2379
    %v2386 = vxor.u32 %v2382, 2147483648
    %v2387 = vmul.f32 %v2386, 1.442695
    %v2388 = vpow.pop %v2387
    %v2389 = vadd.f32 %v2388, 1.0
    %v2390 = vrcp.pop %v2389
    %v2391 = vmul.f32 %v2389, %v2390
    %v2392 = vsub.f32 1.0, %v2391
    %v2393 = vmul.f32 %v2390, %v2392
    %v2394 = vadd.f32 %v2390, %v2393
    %vm2395 = vweird.f32 %v2389
    %vm2396 = vweird.f32 %v2390
    %vm2397 = vmor %vm2395, %vm2396
    %v2398 = vsel %vm2397, %v2390, %v2394
    %v2399 = vand.u32 2147483647, %v2389
    %vm2400 = vcmp.eq.f32.partialorder %v2399, 8.507059e+37
    %v2401 = vand.u32 %v2389, 2147483648
    %v2402 = vor.u32 1.1754944e-38, %v2401
    %v2403 = vsel %vm2400, %v2402, %v2398
    %v2404 = vmul.f32 1.0, %v2403
    %v2405 = vxor.u32 %v2383, 2147483648
    %v2406 = vmul.f32 %v2405, 1.442695
    %v2407 = vpow.pop %v2406
    %v2408 = vadd.f32 %v2407, 1.0
    %v2409 = vrcp.pop %v2408
    %v2410 = vmul.f32 %v2408, %v2409
    %v2411 = vsub.f32 1.0, %v2410
    %v2412 = vmul.f32 %v2409, %v2411
    %v2413 = vadd.f32 %v2409, %v2412
    %vm2414 = vweird.f32 %v2408
    %vm2415 = vweird.f32 %v2409
    %vm2416 = vmor %vm2414, %vm2415
    %v2417 = vsel %vm2416, %v2409, %v2413
    %v2418 = vand.u32 2147483647, %v2408
    %vm2419 = vcmp.eq.f32.partialorder %v2418, 8.507059e+37
    %v2420 = vand.u32 %v2408, 2147483648
    %v2421 = vor.u32 1.1754944e-38, %v2420
    %v2422 = vsel %vm2419, %v2421, %v2417
    %v2423 = vmul.f32 1.0, %v2422
    %v2424 = vtanh.pop %v2384
    %v2425 = vxor.u32 %v2385, 2147483648
    %v2426 = vmul.f32 %v2425, 1.442695
    %v2427 = vpow.pop %v2426
    %v2428 = vadd.f32 %v2427, 1.0
    %v2429 = vrcp.pop %v2428
    %v2430 = vmul.f32 %v2428, %v2429
    %v2431 = vsub.f32 1.0, %v2430
    %v2432 = vmul.f32 %v2429, %v2431
    %v2433 = vadd.f32 %v2429, %v2432
    %vm2434 = vweird.f32 %v2428
    %vm2435 = vweird.f32 %v2429
    %vm2436 = vmor %vm2434, %vm2435
    %v2437 = vsel %vm2436, %v2429, %v2433
    %v2438 = vand.u32 2147483647, %v2428
    %vm2439 = vcmp.eq.f32.partialorder %v2438, 8.507059e+37
    %v2440 = vand.u32 %v2428, 2147483648
    %v2441 = vor.u32 1.1754944e-38, %v2440
    %v2442 = vsel %vm2439, %v2441, %v2437
    %v2443 = vmul.f32 1.0, %v2442
    %v2444 = vmul.f32 %v2423, %v2125
    %v2445 = vmul.f32 %v2404, %v2424
    %v2446 = vadd.f32 %v2444, %v2445
    %v2447 = vtanh.pop %v2446
    %v2448 = vmul.f32 %v2443, %v2447
    %s2449 = scalar_lea.vmem [#allocation2], 40
    %2450 = vst [vmem:[%s2449] sm:$0xff] %v2448
    %s2451 = smul.u32 6, 4
    %s2452 = smul.addr %s2451, 8
    %s2453 = scalar_lea.vmem [#allocation3], %s2452
    %v2454 = vld [vmem:[%s2453] sm:$0xff]
    %v2455 = vld [vmem:[%s2453 + $0x8] sm:$0xff]
    %v2456 = vld [vmem:[%s2453 + $0x10] sm:$0xff]
    %v2457 = vld [vmem:[%s2453 + $0x18] sm:$0xff]
    %v2458 = vpack.c.bf16 %v2448, %v2448
    %v2459 = vld [vmem:[#allocation9] sm:$0xff]
    %v2460 = vld [vmem:[#allocation9 + $0x8] sm:$0xff]
    %v2461 = vld [vmem:[#allocation9 + $0x10] sm:$0xff]
    %v2462 = vld [vmem:[#allocation9 + $0x18] sm:$0xff]
    %v2463 = vld [vmem:[#allocation9 + $0x20] sm:$0xff]
    %v2464 = vld [vmem:[#allocation9 + $0x28] sm:$0xff]
    %v2465 = vld [vmem:[#allocation9 + $0x30] sm:$0xff]
    %v2466 = vld [vmem:[#allocation9 + $0x38] sm:$0xff]
    %v2467 = vld [vmem:[#allocation9 + $0x40] sm:$0xff]
    %v2468 = vld [vmem:[#allocation9 + $0x48] sm:$0xff]
    %v2469 = vld [vmem:[#allocation9 + $0x50] sm:$0xff]
    %v2470 = vld [vmem:[#allocation9 + $0x58] sm:$0xff]
    %v2471 = vld [vmem:[#allocation9 + $0x60] sm:$0xff]
    %v2472 = vld [vmem:[#allocation9 + $0x68] sm:$0xff]
    %v2473 = vld [vmem:[#allocation9 + $0x70] sm:$0xff]
    %v2474 = vld [vmem:[#allocation9 + $0x78] sm:$0xff]
    %v2475 = vld [vmem:[#allocation9 + $0x80] sm:$0xff]
    %v2476 = vld [vmem:[#allocation9 + $0x88] sm:$0xff]
    %v2477 = vld [vmem:[#allocation9 + $0x90] sm:$0xff]
    %v2478 = vld [vmem:[#allocation9 + $0x98] sm:$0xff]
    %v2479 = vld [vmem:[#allocation9 + $0xa0] sm:$0xff]
    %v2480 = vld [vmem:[#allocation9 + $0xa8] sm:$0xff]
    %v2481 = vld [vmem:[#allocation9 + $0xb0] sm:$0xff]
    %v2482 = vld [vmem:[#allocation9 + $0xb8] sm:$0xff]
    %v2483 = vld [vmem:[#allocation9 + $0xc0] sm:$0xff]
    %v2484 = vld [vmem:[#allocation9 + $0xc8] sm:$0xff]
    %v2485 = vld [vmem:[#allocation9 + $0xd0] sm:$0xff]
    %v2486 = vld [vmem:[#allocation9 + $0xd8] sm:$0xff]
    %v2487 = vld [vmem:[#allocation9 + $0xe0] sm:$0xff]
    %v2488 = vld [vmem:[#allocation9 + $0xe8] sm:$0xff]
    %v2489 = vld [vmem:[#allocation9 + $0xf0] sm:$0xff]
    %v2490 = vld [vmem:[#allocation9 + $0xf8] sm:$0xff]
    %v2523 = vunpack.c.l.b16 %v2459
    %v2524 = vunpack.c.h.b16 %v2459
    %v2525 = vunpack.c.l.b16 %v2460
    %v2526 = vunpack.c.h.b16 %v2460
    %v2527 = vunpack.c.l.b16 %v2461
    %v2528 = vunpack.c.h.b16 %v2461
    %v2529 = vunpack.c.l.b16 %v2462
    %v2530 = vunpack.c.h.b16 %v2462
    %v2531 = vunpack.c.l.b16 %v2463
    %v2532 = vunpack.c.h.b16 %v2463
    %v2533 = vunpack.c.l.b16 %v2464
    %v2534 = vunpack.c.h.b16 %v2464
    %v2535 = vunpack.c.l.b16 %v2465
    %v2536 = vunpack.c.h.b16 %v2465
    %v2537 = vunpack.c.l.b16 %v2466
    %v2538 = vunpack.c.h.b16 %v2466
    %v2539 = vunpack.c.l.b16 %v2467
    %v2540 = vunpack.c.h.b16 %v2467
    %v2541 = vunpack.c.l.b16 %v2468
    %v2542 = vunpack.c.h.b16 %v2468
    %v2543 = vunpack.c.l.b16 %v2469
    %v2544 = vunpack.c.h.b16 %v2469
    %v2545 = vunpack.c.l.b16 %v2470
    %v2546 = vunpack.c.h.b16 %v2470
    %v2547 = vunpack.c.l.b16 %v2471
    %v2548 = vunpack.c.h.b16 %v2471
    %v2549 = vunpack.c.l.b16 %v2472
    %v2550 = vunpack.c.h.b16 %v2472
    %v2551 = vunpack.c.l.b16 %v2473
    %v2552 = vunpack.c.h.b16 %v2473
    %v2553 = vunpack.c.l.b16 %v2474
    %v2554 = vunpack.c.h.b16 %v2474
    %v2555 = vunpack.c.l.b16 %v2475
    %v2556 = vunpack.c.h.b16 %v2475
    %v2557 = vunpack.c.l.b16 %v2476
    %v2558 = vunpack.c.h.b16 %v2476
    %v2559 = vunpack.c.l.b16 %v2477
    %v2560 = vunpack.c.h.b16 %v2477
    %v2561 = vunpack.c.l.b16 %v2478
    %v2562 = vunpack.c.h.b16 %v2478
    %v2563 = vunpack.c.l.b16 %v2479
    %v2564 = vunpack.c.h.b16 %v2479
    %v2565 = vunpack.c.l.b16 %v2480
    %v2566 = vunpack.c.h.b16 %v2480
    %v2567 = vunpack.c.l.b16 %v2481
    %v2568 = vunpack.c.h.b16 %v2481
    %v2569 = vunpack.c.l.b16 %v2482
    %v2570 = vunpack.c.h.b16 %v2482
    %v2571 = vunpack.c.l.b16 %v2483
    %v2572 = vunpack.c.h.b16 %v2483
    %v2573 = vunpack.c.l.b16 %v2484
    %v2574 = vunpack.c.h.b16 %v2484
    %v2575 = vunpack.c.l.b16 %v2485
    %v2576 = vunpack.c.h.b16 %v2485
    %v2577 = vunpack.c.l.b16 %v2486
    %v2578 = vunpack.c.h.b16 %v2486
    %v2579 = vunpack.c.l.b16 %v2487
    %v2580 = vunpack.c.h.b16 %v2487
    %v2581 = vunpack.c.l.b16 %v2488
    %v2582 = vunpack.c.h.b16 %v2488
    %v2583 = vunpack.c.l.b16 %v2489
    %v2584 = vunpack.c.h.b16 %v2489
    %v2585 = vunpack.c.l.b16 %v2490
    %v2586 = vunpack.c.h.b16 %v2490
    %v2587 = vpack.c.b16 %v2527, %v2523
    %v2588 = vpack.c.b16 %v2528, %v2524
    %v2589 = vpack.c.b16 %v2529, %v2525
    %v2590 = vpack.c.b16 %v2530, %v2526
    %v2591 = vpack.c.b16 %v2535, %v2531
    %v2592 = vpack.c.b16 %v2536, %v2532
    %v2593 = vpack.c.b16 %v2537, %v2533
    %v2594 = vpack.c.b16 %v2538, %v2534
    %v2595 = vpack.c.b16 %v2543, %v2539
    %v2596 = vpack.c.b16 %v2544, %v2540
    %v2597 = vpack.c.b16 %v2545, %v2541
    %v2598 = vpack.c.b16 %v2546, %v2542
    %v2599 = vpack.c.b16 %v2551, %v2547
    %v2600 = vpack.c.b16 %v2552, %v2548
    %v2601 = vpack.c.b16 %v2553, %v2549
    %v2602 = vpack.c.b16 %v2554, %v2550
    %v2603 = vpack.c.b16 %v2559, %v2555
    %v2604 = vpack.c.b16 %v2560, %v2556
    %v2605 = vpack.c.b16 %v2561, %v2557
    %v2606 = vpack.c.b16 %v2562, %v2558
    %v2607 = vpack.c.b16 %v2567, %v2563
    %v2608 = vpack.c.b16 %v2568, %v2564
    %v2609 = vpack.c.b16 %v2569, %v2565
    %v2610 = vpack.c.b16 %v2570, %v2566
    %v2611 = vpack.c.b16 %v2575, %v2571
    %v2612 = vpack.c.b16 %v2576, %v2572
    %v2613 = vpack.c.b16 %v2577, %v2573
    %v2614 = vpack.c.b16 %v2578, %v2574
    %v2615 = vpack.c.b16 %v2583, %v2579
    %v2616 = vpack.c.b16 %v2584, %v2580
    %v2617 = vpack.c.b16 %v2585, %v2581
    %v2618 = vpack.c.b16 %v2586, %v2582
    %2651 = vmatpush.bf16.msra.mxu0 %v2615
    %2652 = vmatpush.bf16.msra.mxu0 %v2611
    %2653 = vmatpush.bf16.msra.mxu0 %v2607
    %2654 = vmatpush.bf16.msra.mxu0 %v2603
    %2655 = vmatpush.bf16.msra.mxu0 %v2599
    %2656 = vmatpush.bf16.msra.mxu0 %v2595
    %2657 = vmatpush.bf16.msra.mxu0 %v2591
    %2658 = vmatpush.bf16.msra.mxu0 %v2587
    %2659 = vmatmul.bf16.gmra.mxu0 %v2458
    %v2660 = vpop.f32.mrf.mxu0
    %v2661 = vadd.f32 0.0, %v2660
    %v2662 = vpop.f32.mrf.mxu0
    %2663 = vdwg.mxu0
    %2664 = vmatpush.bf16.msra.mxu0 %v2616
    %2665 = vmatpush.bf16.msra.mxu0 %v2612
    %2666 = vmatpush.bf16.msra.mxu0 %v2608
    %2667 = vmatpush.bf16.msra.mxu0 %v2604
    %2668 = vmatpush.bf16.msra.mxu0 %v2600
    %2669 = vmatpush.bf16.msra.mxu0 %v2596
    %2670 = vmatpush.bf16.msra.mxu0 %v2592
    %2671 = vmatpush.bf16.msra.mxu0 %v2588
    %2672 = vmatmul.bf16.gmra.mxu0 %v2458
    %v2673 = vpop.f32.mrf.mxu0
    %v2674 = vadd.f32 0.0, %v2673
    %v2675 = vpop.f32.mrf.mxu0
    %2676 = vdwg.mxu0
    %2677 = vmatpush.bf16.msra.mxu0 %v2617
    %2678 = vmatpush.bf16.msra.mxu0 %v2613
    %2679 = vmatpush.bf16.msra.mxu0 %v2609
    %2680 = vmatpush.bf16.msra.mxu0 %v2605
    %2681 = vmatpush.bf16.msra.mxu0 %v2601
    %2682 = vmatpush.bf16.msra.mxu0 %v2597
    %2683 = vmatpush.bf16.msra.mxu0 %v2593
    %2684 = vmatpush.bf16.msra.mxu0 %v2589
    %2685 = vmatmul.bf16.gmra.mxu0 %v2458
    %v2686 = vpop.f32.mrf.mxu0
    %v2687 = vadd.f32 0.0, %v2686
    %v2688 = vpop.f32.mrf.mxu0
    %2689 = vdwg.mxu0
    %2690 = vmatpush.bf16.msra.mxu0 %v2618
    %2691 = vmatpush.bf16.msra.mxu0 %v2614
    %2692 = vmatpush.bf16.msra.mxu0 %v2610
    %2693 = vmatpush.bf16.msra.mxu0 %v2606
    %2694 = vmatpush.bf16.msra.mxu0 %v2602
    %2695 = vmatpush.bf16.msra.mxu0 %v2598
    %2696 = vmatpush.bf16.msra.mxu0 %v2594
    %2697 = vmatpush.bf16.msra.mxu0 %v2590
    %2698 = vmatmul.bf16.gmra.mxu0 %v2458
    %v2699 = vpop.f32.mrf.mxu0
    %v2700 = vadd.f32 0.0, %v2699
    %v2701 = vpop.f32.mrf.mxu0
    %2702 = vdwg.mxu0
    %v2703 = vadd.f32 %v2454, %v2661
    %v2704 = vadd.f32 %v2455, %v2674
    %v2705 = vadd.f32 %v2456, %v2687
    %v2706 = vadd.f32 %v2457, %v2700
    %v2707 = vxor.u32 %v2703, 2147483648
    %v2708 = vmul.f32 %v2707, 1.442695
    %v2709 = vpow.pop %v2708
    %v2710 = vadd.f32 %v2709, 1.0
    %v2711 = vrcp.pop %v2710
    %v2712 = vmul.f32 %v2710, %v2711
    %v2713 = vsub.f32 1.0, %v2712
    %v2714 = vmul.f32 %v2711, %v2713
    %v2715 = vadd.f32 %v2711, %v2714
    %vm2716 = vweird.f32 %v2710
    %vm2717 = vweird.f32 %v2711
    %vm2718 = vmor %vm2716, %vm2717
    %v2719 = vsel %vm2718, %v2711, %v2715
    %v2720 = vand.u32 2147483647, %v2710
    %vm2721 = vcmp.eq.f32.partialorder %v2720, 8.507059e+37
    %v2722 = vand.u32 %v2710, 2147483648
    %v2723 = vor.u32 1.1754944e-38, %v2722
    %v2724 = vsel %vm2721, %v2723, %v2719
    %v2725 = vmul.f32 1.0, %v2724
    %v2726 = vxor.u32 %v2704, 2147483648
    %v2727 = vmul.f32 %v2726, 1.442695
    %v2728 = vpow.pop %v2727
    %v2729 = vadd.f32 %v2728, 1.0
    %v2730 = vrcp.pop %v2729
    %v2731 = vmul.f32 %v2729, %v2730
    %v2732 = vsub.f32 1.0, %v2731
    %v2733 = vmul.f32 %v2730, %v2732
    %v2734 = vadd.f32 %v2730, %v2733
    %vm2735 = vweird.f32 %v2729
    %vm2736 = vweird.f32 %v2730
    %vm2737 = vmor %vm2735, %vm2736
    %v2738 = vsel %vm2737, %v2730, %v2734
    %v2739 = vand.u32 2147483647, %v2729
    %vm2740 = vcmp.eq.f32.partialorder %v2739, 8.507059e+37
    %v2741 = vand.u32 %v2729, 2147483648
    %v2742 = vor.u32 1.1754944e-38, %v2741
    %v2743 = vsel %vm2740, %v2742, %v2738
    %v2744 = vmul.f32 1.0, %v2743
    %v2745 = vtanh.pop %v2705
    %v2746 = vxor.u32 %v2706, 2147483648
    %v2747 = vmul.f32 %v2746, 1.442695
    %v2748 = vpow.pop %v2747
    %v2749 = vadd.f32 %v2748, 1.0
    %v2750 = vrcp.pop %v2749
    %v2751 = vmul.f32 %v2749, %v2750
    %v2752 = vsub.f32 1.0, %v2751
    %v2753 = vmul.f32 %v2750, %v2752
    %v2754 = vadd.f32 %v2750, %v2753
    %vm2755 = vweird.f32 %v2749
    %vm2756 = vweird.f32 %v2750
    %vm2757 = vmor %vm2755, %vm2756
    %v2758 = vsel %vm2757, %v2750, %v2754
    %v2759 = vand.u32 2147483647, %v2749
    %vm2760 = vcmp.eq.f32.partialorder %v2759, 8.507059e+37
    %v2761 = vand.u32 %v2749, 2147483648
    %v2762 = vor.u32 1.1754944e-38, %v2761
    %v2763 = vsel %vm2760, %v2762, %v2758
    %v2764 = vmul.f32 1.0, %v2763
    %v2765 = vmul.f32 %v2744, %v2446
    %v2766 = vmul.f32 %v2725, %v2745
    %v2767 = vadd.f32 %v2765, %v2766
    %v2768 = vtanh.pop %v2767
    %v2769 = vmul.f32 %v2764, %v2768
    %s2770 = scalar_lea.vmem [#allocation2], 48
    %2771 = vst [vmem:[%s2770] sm:$0xff] %v2769
    %s2772 = smul.u32 7, 4
    %s2773 = smul.addr %s2772, 8
    %s2774 = scalar_lea.vmem [#allocation3], %s2773
    %v2775 = vld [vmem:[%s2774] sm:$0xff]
    %v2776 = vld [vmem:[%s2774 + $0x8] sm:$0xff]
    %v2777 = vld [vmem:[%s2774 + $0x10] sm:$0xff]
    %v2778 = vld [vmem:[%s2774 + $0x18] sm:$0xff]
    %v2779 = vpack.c.bf16 %v2769, %v2769
    %v2780 = vld [vmem:[#allocation9] sm:$0xff]
    %v2781 = vld [vmem:[#allocation9 + $0x8] sm:$0xff]
    %v2782 = vld [vmem:[#allocation9 + $0x10] sm:$0xff]
    %v2783 = vld [vmem:[#allocation9 + $0x18] sm:$0xff]
    %v2784 = vld [vmem:[#allocation9 + $0x20] sm:$0xff]
    %v2785 = vld [vmem:[#allocation9 + $0x28] sm:$0xff]
    %v2786 = vld [vmem:[#allocation9 + $0x30] sm:$0xff]
    %v2787 = vld [vmem:[#allocation9 + $0x38] sm:$0xff]
    %v2788 = vld [vmem:[#allocation9 + $0x40] sm:$0xff]
    %v2789 = vld [vmem:[#allocation9 + $0x48] sm:$0xff]
    %v2790 = vld [vmem:[#allocation9 + $0x50] sm:$0xff]
    %v2791 = vld [vmem:[#allocation9 + $0x58] sm:$0xff]
    %v2792 = vld [vmem:[#allocation9 + $0x60] sm:$0xff]
    %v2793 = vld [vmem:[#allocation9 + $0x68] sm:$0xff]
    %v2794 = vld [vmem:[#allocation9 + $0x70] sm:$0xff]
    %v2795 = vld [vmem:[#allocation9 + $0x78] sm:$0xff]
    %v2796 = vld [vmem:[#allocation9 + $0x80] sm:$0xff]
    %v2797 = vld [vmem:[#allocation9 + $0x88] sm:$0xff]
    %v2798 = vld [vmem:[#allocation9 + $0x90] sm:$0xff]
    %v2799 = vld [vmem:[#allocation9 + $0x98] sm:$0xff]
    %v2800 = vld [vmem:[#allocation9 + $0xa0] sm:$0xff]
    %v2801 = vld [vmem:[#allocation9 + $0xa8] sm:$0xff]
    %v2802 = vld [vmem:[#allocation9 + $0xb0] sm:$0xff]
    %v2803 = vld [vmem:[#allocation9 + $0xb8] sm:$0xff]
    %v2804 = vld [vmem:[#allocation9 + $0xc0] sm:$0xff]
    %v2805 = vld [vmem:[#allocation9 + $0xc8] sm:$0xff]
    %v2806 = vld [vmem:[#allocation9 + $0xd0] sm:$0xff]
    %v2807 = vld [vmem:[#allocation9 + $0xd8] sm:$0xff]
    %v2808 = vld [vmem:[#allocation9 + $0xe0] sm:$0xff]
    %v2809 = vld [vmem:[#allocation9 + $0xe8] sm:$0xff]
    %v2810 = vld [vmem:[#allocation9 + $0xf0] sm:$0xff]
    %v2811 = vld [vmem:[#allocation9 + $0xf8] sm:$0xff]
    %v2844 = vunpack.c.l.b16 %v2780
    %v2845 = vunpack.c.h.b16 %v2780
    %v2846 = vunpack.c.l.b16 %v2781
    %v2847 = vunpack.c.h.b16 %v2781
    %v2848 = vunpack.c.l.b16 %v2782
    %v2849 = vunpack.c.h.b16 %v2782
    %v2850 = vunpack.c.l.b16 %v2783
    %v2851 = vunpack.c.h.b16 %v2783
    %v2852 = vunpack.c.l.b16 %v2784
    %v2853 = vunpack.c.h.b16 %v2784
    %v2854 = vunpack.c.l.b16 %v2785
    %v2855 = vunpack.c.h.b16 %v2785
    %v2856 = vunpack.c.l.b16 %v2786
    %v2857 = vunpack.c.h.b16 %v2786
    %v2858 = vunpack.c.l.b16 %v2787
    %v2859 = vunpack.c.h.b16 %v2787
    %v2860 = vunpack.c.l.b16 %v2788
    %v2861 = vunpack.c.h.b16 %v2788
    %v2862 = vunpack.c.l.b16 %v2789
    %v2863 = vunpack.c.h.b16 %v2789
    %v2864 = vunpack.c.l.b16 %v2790
    %v2865 = vunpack.c.h.b16 %v2790
    %v2866 = vunpack.c.l.b16 %v2791
    %v2867 = vunpack.c.h.b16 %v2791
    %v2868 = vunpack.c.l.b16 %v2792
    %v2869 = vunpack.c.h.b16 %v2792
    %v2870 = vunpack.c.l.b16 %v2793
    %v2871 = vunpack.c.h.b16 %v2793
    %v2872 = vunpack.c.l.b16 %v2794
    %v2873 = vunpack.c.h.b16 %v2794
    %v2874 = vunpack.c.l.b16 %v2795
    %v2875 = vunpack.c.h.b16 %v2795
    %v2876 = vunpack.c.l.b16 %v2796
    %v2877 = vunpack.c.h.b16 %v2796
    %v2878 = vunpack.c.l.b16 %v2797
    %v2879 = vunpack.c.h.b16 %v2797
    %v2880 = vunpack.c.l.b16 %v2798
    %v2881 = vunpack.c.h.b16 %v2798
    %v2882 = vunpack.c.l.b16 %v2799
    %v2883 = vunpack.c.h.b16 %v2799
    %v2884 = vunpack.c.l.b16 %v2800
    %v2885 = vunpack.c.h.b16 %v2800
    %v2886 = vunpack.c.l.b16 %v2801
    %v2887 = vunpack.c.h.b16 %v2801
    %v2888 = vunpack.c.l.b16 %v2802
    %v2889 = vunpack.c.h.b16 %v2802
    %v2890 = vunpack.c.l.b16 %v2803
    %v2891 = vunpack.c.h.b16 %v2803
    %v2892 = vunpack.c.l.b16 %v2804
    %v2893 = vunpack.c.h.b16 %v2804
    %v2894 = vunpack.c.l.b16 %v2805
    %v2895 = vunpack.c.h.b16 %v2805
    %v2896 = vunpack.c.l.b16 %v2806
    %v2897 = vunpack.c.h.b16 %v2806
    %v2898 = vunpack.c.l.b16 %v2807
    %v2899 = vunpack.c.h.b16 %v2807
    %v2900 = vunpack.c.l.b16 %v2808
    %v2901 = vunpack.c.h.b16 %v2808
    %v2902 = vunpack.c.l.b16 %v2809
    %v2903 = vunpack.c.h.b16 %v2809
    %v2904 = vunpack.c.l.b16 %v2810
    %v2905 = vunpack.c.h.b16 %v2810
    %v2906 = vunpack.c.l.b16 %v2811
    %v2907 = vunpack.c.h.b16 %v2811
    %v2908 = vpack.c.b16 %v2848, %v2844
    %v2909 = vpack.c.b16 %v2849, %v2845
    %v2910 = vpack.c.b16 %v2850, %v2846
    %v2911 = vpack.c.b16 %v2851, %v2847
    %v2912 = vpack.c.b16 %v2856, %v2852
    %v2913 = vpack.c.b16 %v2857, %v2853
    %v2914 = vpack.c.b16 %v2858, %v2854
    %v2915 = vpack.c.b16 %v2859, %v2855
    %v2916 = vpack.c.b16 %v2864, %v2860
    %v2917 = vpack.c.b16 %v2865, %v2861
    %v2918 = vpack.c.b16 %v2866, %v2862
    %v2919 = vpack.c.b16 %v2867, %v2863
    %v2920 = vpack.c.b16 %v2872, %v2868
    %v2921 = vpack.c.b16 %v2873, %v2869
    %v2922 = vpack.c.b16 %v2874, %v2870
    %v2923 = vpack.c.b16 %v2875, %v2871
    %v2924 = vpack.c.b16 %v2880, %v2876
    %v2925 = vpack.c.b16 %v2881, %v2877
    %v2926 = vpack.c.b16 %v2882, %v2878
    %v2927 = vpack.c.b16 %v2883, %v2879
    %v2928 = vpack.c.b16 %v2888, %v2884
    %v2929 = vpack.c.b16 %v2889, %v2885
    %v2930 = vpack.c.b16 %v2890, %v2886
    %v2931 = vpack.c.b16 %v2891, %v2887
    %v2932 = vpack.c.b16 %v2896, %v2892
    %v2933 = vpack.c.b16 %v2897, %v2893
    %v2934 = vpack.c.b16 %v2898, %v2894
    %v2935 = vpack.c.b16 %v2899, %v2895
    %v2936 = vpack.c.b16 %v2904, %v2900
    %v2937 = vpack.c.b16 %v2905, %v2901
    %v2938 = vpack.c.b16 %v2906, %v2902
    %v2939 = vpack.c.b16 %v2907, %v2903
    %2972 = vmatpush.bf16.msra.mxu0 %v2936
    %2973 = vmatpush.bf16.msra.mxu0 %v2932
    %2974 = vmatpush.bf16.msra.mxu0 %v2928
    %2975 = vmatpush.bf16.msra.mxu0 %v2924
    %2976 = vmatpush.bf16.msra.mxu0 %v2920
    %2977 = vmatpush.bf16.msra.mxu0 %v2916
    %2978 = vmatpush.bf16.msra.mxu0 %v2912
    %2979 = vmatpush.bf16.msra.mxu0 %v2908
    %2980 = vmatmul.bf16.gmra.mxu0 %v2779
    %v2981 = vpop.f32.mrf.mxu0
    %v2982 = vadd.f32 0.0, %v2981
    %v2983 = vpop.f32.mrf.mxu0
    %2984 = vdwg.mxu0
    %2985 = vmatpush.bf16.msra.mxu0 %v2937
    %2986 = vmatpush.bf16.msra.mxu0 %v2933
    %2987 = vmatpush.bf16.msra.mxu0 %v2929
    %2988 = vmatpush.bf16.msra.mxu0 %v2925
    %2989 = vmatpush.bf16.msra.mxu0 %v2921
    %2990 = vmatpush.bf16.msra.mxu0 %v2917
    %2991 = vmatpush.bf16.msra.mxu0 %v2913
    %2992 = vmatpush.bf16.msra.mxu0 %v2909
    %2993 = vmatmul.bf16.gmra.mxu0 %v2779
    %v2994 = vpop.f32.mrf.mxu0
    %v2995 = vadd.f32 0.0, %v2994
    %v2996 = vpop.f32.mrf.mxu0
    %2997 = vdwg.mxu0
    %2998 = vmatpush.bf16.msra.mxu0 %v2938
    %2999 = vmatpush.bf16.msra.mxu0 %v2934
    %3000 = vmatpush.bf16.msra.mxu0 %v2930
    %3001 = vmatpush.bf16.msra.mxu0 %v2926
    %3002 = vmatpush.bf16.msra.mxu0 %v2922
    %3003 = vmatpush.bf16.msra.mxu0 %v2918
    %3004 = vmatpush.bf16.msra.mxu0 %v2914
    %3005 = vmatpush.bf16.msra.mxu0 %v2910
    %3006 = vmatmul.bf16.gmra.mxu0 %v2779
    %v3007 = vpop.f32.mrf.mxu0
    %v3008 = vadd.f32 0.0, %v3007
    %v3009 = vpop.f32.mrf.mxu0
    %3010 = vdwg.mxu0
    %3011 = vmatpush.bf16.msra.mxu0 %v2939
    %3012 = vmatpush.bf16.msra.mxu0 %v2935
    %3013 = vmatpush.bf16.msra.mxu0 %v2931
    %3014 = vmatpush.bf16.msra.mxu0 %v2927
    %3015 = vmatpush.bf16.msra.mxu0 %v2923
    %3016 = vmatpush.bf16.msra.mxu0 %v2919
    %3017 = vmatpush.bf16.msra.mxu0 %v2915
    %3018 = vmatpush.bf16.msra.mxu0 %v2911
    %3019 = vmatmul.bf16.gmra.mxu0 %v2779
    %v3020 = vpop.f32.mrf.mxu0
    %v3021 = vadd.f32 0.0, %v3020
    %v3022 = vpop.f32.mrf.mxu0
    %3023 = vdwg.mxu0
    %v3024 = vadd.f32 %v2775, %v2982
    %v3025 = vadd.f32 %v2776, %v2995
    %v3026 = vadd.f32 %v2777, %v3008
    %v3027 = vadd.f32 %v2778, %v3021
    %v3028 = vxor.u32 %v3024, 2147483648
    %v3029 = vmul.f32 %v3028, 1.442695
    %v3030 = vpow.pop %v3029
    %v3031 = vadd.f32 %v3030, 1.0
    %v3032 = vrcp.pop %v3031
    %v3033 = vmul.f32 %v3031, %v3032
    %v3034 = vsub.f32 1.0, %v3033
    %v3035 = vmul.f32 %v3032, %v3034
    %v3036 = vadd.f32 %v3032, %v3035
    %vm3037 = vweird.f32 %v3031
    %vm3038 = vweird.f32 %v3032
    %vm3039 = vmor %vm3037, %vm3038
    %v3040 = vsel %vm3039, %v3032, %v3036
    %v3041 = vand.u32 2147483647, %v3031
    %vm3042 = vcmp.eq.f32.partialorder %v3041, 8.507059e+37
    %v3043 = vand.u32 %v3031, 2147483648
    %v3044 = vor.u32 1.1754944e-38, %v3043
    %v3045 = vsel %vm3042, %v3044, %v3040
    %v3046 = vmul.f32 1.0, %v3045
    %v3047 = vxor.u32 %v3025, 2147483648
    %v3048 = vmul.f32 %v3047, 1.442695
    %v3049 = vpow.pop %v3048
    %v3050 = vadd.f32 %v3049, 1.0
    %v3051 = vrcp.pop %v3050
    %v3052 = vmul.f32 %v3050, %v3051
    %v3053 = vsub.f32 1.0, %v3052
    %v3054 = vmul.f32 %v3051, %v3053
    %v3055 = vadd.f32 %v3051, %v3054
    %vm3056 = vweird.f32 %v3050
    %vm3057 = vweird.f32 %v3051
    %vm3058 = vmor %vm3056, %vm3057
    %v3059 = vsel %vm3058, %v3051, %v3055
    %v3060 = vand.u32 2147483647, %v3050
    %vm3061 = vcmp.eq.f32.partialorder %v3060, 8.507059e+37
    %v3062 = vand.u32 %v3050, 2147483648
    %v3063 = vor.u32 1.1754944e-38, %v3062
    %v3064 = vsel %vm3061, %v3063, %v3059
    %v3065 = vmul.f32 1.0, %v3064
    %v3066 = vtanh.pop %v3026
    %v3067 = vxor.u32 %v3027, 2147483648
    %v3068 = vmul.f32 %v3067, 1.442695
    %v3069 = vpow.pop %v3068
    %v3070 = vadd.f32 %v3069, 1.0
    %v3071 = vrcp.pop %v3070
    %v3072 = vmul.f32 %v3070, %v3071
    %v3073 = vsub.f32 1.0, %v3072
    %v3074 = vmul.f32 %v3071, %v3073
    %v3075 = vadd.f32 %v3071, %v3074
    %vm3076 = vweird.f32 %v3070
    %vm3077 = vweird.f32 %v3071
    %vm3078 = vmor %vm3076, %vm3077
    %v3079 = vsel %vm3078, %v3071, %v3075
    %v3080 = vand.u32 2147483647, %v3070
    %vm3081 = vcmp.eq.f32.partialorder %v3080, 8.507059e+37
    %v3082 = vand.u32 %v3070, 2147483648
    %v3083 = vor.u32 1.1754944e-38, %v3082
    %v3084 = vsel %vm3081, %v3083, %v3079
    %v3085 = vmul.f32 1.0, %v3084
    %v3086 = vmul.f32 %v3065, %v2767
    %v3087 = vmul.f32 %v3046, %v3066
    %v3088 = vadd.f32 %v3086, %v3087
    %v3089 = vtanh.pop %v3088
    %v3090 = vmul.f32 %v3085, %v3089
    %s3091 = scalar_lea.vmem [#allocation2], 56
    %3092 = vst [vmem:[%s3091] sm:$0xff] %v3090
    %s3093 = smul.u32 8, 4
    %s3094 = smul.addr %s3093, 8
    %s3095 = scalar_lea.vmem [#allocation3], %s3094
    %v3096 = vld [vmem:[%s3095] sm:$0xff]
    %v3097 = vld [vmem:[%s3095 + $0x8] sm:$0xff]
    %v3098 = vld [vmem:[%s3095 + $0x10] sm:$0xff]
    %v3099 = vld [vmem:[%s3095 + $0x18] sm:$0xff]
    %v3100 = vpack.c.bf16 %v3090, %v3090
    %v3101 = vld [vmem:[#allocation9] sm:$0xff]
    %v3102 = vld [vmem:[#allocation9 + $0x8] sm:$0xff]
    %v3103 = vld [vmem:[#allocation9 + $0x10] sm:$0xff]
    %v3104 = vld [vmem:[#allocation9 + $0x18] sm:$0xff]
    %v3105 = vld [vmem:[#allocation9 + $0x20] sm:$0xff]
    %v3106 = vld [vmem:[#allocation9 + $0x28] sm:$0xff]
    %v3107 = vld [vmem:[#allocation9 + $0x30] sm:$0xff]
    %v3108 = vld [vmem:[#allocation9 + $0x38] sm:$0xff]
    %v3109 = vld [vmem:[#allocation9 + $0x40] sm:$0xff]
    %v3110 = vld [vmem:[#allocation9 + $0x48] sm:$0xff]
    %v3111 = vld [vmem:[#allocation9 + $0x50] sm:$0xff]
    %v3112 = vld [vmem:[#allocation9 + $0x58] sm:$0xff]
    %v3113 = vld [vmem:[#allocation9 + $0x60] sm:$0xff]
    %v3114 = vld [vmem:[#allocation9 + $0x68] sm:$0xff]
    %v3115 = vld [vmem:[#allocation9 + $0x70] sm:$0xff]
    %v3116 = vld [vmem:[#allocation9 + $0x78] sm:$0xff]
    %v3117 = vld [vmem:[#allocation9 + $0x80] sm:$0xff]
    %v3118 = vld [vmem:[#allocation9 + $0x88] sm:$0xff]
    %v3119 = vld [vmem:[#allocation9 + $0x90] sm:$0xff]
    %v3120 = vld [vmem:[#allocation9 + $0x98] sm:$0xff]
    %v3121 = vld [vmem:[#allocation9 + $0xa0] sm:$0xff]
    %v3122 = vld [vmem:[#allocation9 + $0xa8] sm:$0xff]
    %v3123 = vld [vmem:[#allocation9 + $0xb0] sm:$0xff]
    %v3124 = vld [vmem:[#allocation9 + $0xb8] sm:$0xff]
    %v3125 = vld [vmem:[#allocation9 + $0xc0] sm:$0xff]
    %v3126 = vld [vmem:[#allocation9 + $0xc8] sm:$0xff]
    %v3127 = vld [vmem:[#allocation9 + $0xd0] sm:$0xff]
    %v3128 = vld [vmem:[#allocation9 + $0xd8] sm:$0xff]
    %v3129 = vld [vmem:[#allocation9 + $0xe0] sm:$0xff]
    %v3130 = vld [vmem:[#allocation9 + $0xe8] sm:$0xff]
    %v3131 = vld [vmem:[#allocation9 + $0xf0] sm:$0xff]
    %v3132 = vld [vmem:[#allocation9 + $0xf8] sm:$0xff]
    %v3165 = vunpack.c.l.b16 %v3101
    %v3166 = vunpack.c.h.b16 %v3101
    %v3167 = vunpack.c.l.b16 %v3102
    %v3168 = vunpack.c.h.b16 %v3102
    %v3169 = vunpack.c.l.b16 %v3103
    %v3170 = vunpack.c.h.b16 %v3103
    %v3171 = vunpack.c.l.b16 %v3104
    %v3172 = vunpack.c.h.b16 %v3104
    %v3173 = vunpack.c.l.b16 %v3105
    %v3174 = vunpack.c.h.b16 %v3105
    %v3175 = vunpack.c.l.b16 %v3106
    %v3176 = vunpack.c.h.b16 %v3106
    %v3177 = vunpack.c.l.b16 %v3107
    %v3178 = vunpack.c.h.b16 %v3107
    %v3179 = vunpack.c.l.b16 %v3108
    %v3180 = vunpack.c.h.b16 %v3108
    %v3181 = vunpack.c.l.b16 %v3109
    %v3182 = vunpack.c.h.b16 %v3109
    %v3183 = vunpack.c.l.b16 %v3110
    %v3184 = vunpack.c.h.b16 %v3110
    %v3185 = vunpack.c.l.b16 %v3111
    %v3186 = vunpack.c.h.b16 %v3111
    %v3187 = vunpack.c.l.b16 %v3112
    %v3188 = vunpack.c.h.b16 %v3112
    %v3189 = vunpack.c.l.b16 %v3113
    %v3190 = vunpack.c.h.b16 %v3113
    %v3191 = vunpack.c.l.b16 %v3114
    %v3192 = vunpack.c.h.b16 %v3114
    %v3193 = vunpack.c.l.b16 %v3115
    %v3194 = vunpack.c.h.b16 %v3115
    %v3195 = vunpack.c.l.b16 %v3116
    %v3196 = vunpack.c.h.b16 %v3116
    %v3197 = vunpack.c.l.b16 %v3117
    %v3198 = vunpack.c.h.b16 %v3117
    %v3199 = vunpack.c.l.b16 %v3118
    %v3200 = vunpack.c.h.b16 %v3118
    %v3201 = vunpack.c.l.b16 %v3119
    %v3202 = vunpack.c.h.b16 %v3119
    %v3203 = vunpack.c.l.b16 %v3120
    %v3204 = vunpack.c.h.b16 %v3120
    %v3205 = vunpack.c.l.b16 %v3121
    %v3206 = vunpack.c.h.b16 %v3121
    %v3207 = vunpack.c.l.b16 %v3122
    %v3208 = vunpack.c.h.b16 %v3122
    %v3209 = vunpack.c.l.b16 %v3123
    %v3210 = vunpack.c.h.b16 %v3123
    %v3211 = vunpack.c.l.b16 %v3124
    %v3212 = vunpack.c.h.b16 %v3124
    %v3213 = vunpack.c.l.b16 %v3125
    %v3214 = vunpack.c.h.b16 %v3125
    %v3215 = vunpack.c.l.b16 %v3126
    %v3216 = vunpack.c.h.b16 %v3126
    %v3217 = vunpack.c.l.b16 %v3127
    %v3218 = vunpack.c.h.b16 %v3127
    %v3219 = vunpack.c.l.b16 %v3128
    %v3220 = vunpack.c.h.b16 %v3128
    %v3221 = vunpack.c.l.b16 %v3129
    %v3222 = vunpack.c.h.b16 %v3129
    %v3223 = vunpack.c.l.b16 %v3130
    %v3224 = vunpack.c.h.b16 %v3130
    %v3225 = vunpack.c.l.b16 %v3131
    %v3226 = vunpack.c.h.b16 %v3131
    %v3227 = vunpack.c.l.b16 %v3132
    %v3228 = vunpack.c.h.b16 %v3132
    %v3229 = vpack.c.b16 %v3169, %v3165
    %v3230 = vpack.c.b16 %v3170, %v3166
    %v3231 = vpack.c.b16 %v3171, %v3167
    %v3232 = vpack.c.b16 %v3172, %v3168
    %v3233 = vpack.c.b16 %v3177, %v3173
    %v3234 = vpack.c.b16 %v3178, %v3174
    %v3235 = vpack.c.b16 %v3179, %v3175
    %v3236 = vpack.c.b16 %v3180, %v3176
    %v3237 = vpack.c.b16 %v3185, %v3181
    %v3238 = vpack.c.b16 %v3186, %v3182
    %v3239 = vpack.c.b16 %v3187, %v3183
    %v3240 = vpack.c.b16 %v3188, %v3184
    %v3241 = vpack.c.b16 %v3193, %v3189
    %v3242 = vpack.c.b16 %v3194, %v3190
    %v3243 = vpack.c.b16 %v3195, %v3191
    %v3244 = vpack.c.b16 %v3196, %v3192
    %v3245 = vpack.c.b16 %v3201, %v3197
    %v3246 = vpack.c.b16 %v3202, %v3198
    %v3247 = vpack.c.b16 %v3203, %v3199
    %v3248 = vpack.c.b16 %v3204, %v3200
    %v3249 = vpack.c.b16 %v3209, %v3205
    %v3250 = vpack.c.b16 %v3210, %v3206
    %v3251 = vpack.c.b16 %v3211, %v3207
    %v3252 = vpack.c.b16 %v3212, %v3208
    %v3253 = vpack.c.b16 %v3217, %v3213
    %v3254 = vpack.c.b16 %v3218, %v3214
    %v3255 = vpack.c.b16 %v3219, %v3215
    %v3256 = vpack.c.b16 %v3220, %v3216
    %v3257 = vpack.c.b16 %v3225, %v3221
    %v3258 = vpack.c.b16 %v3226, %v3222
    %v3259 = vpack.c.b16 %v3227, %v3223
    %v3260 = vpack.c.b16 %v3228, %v3224
    %3293 = vmatpush.bf16.msra.mxu0 %v3257
    %3294 = vmatpush.bf16.msra.mxu0 %v3253
    %3295 = vmatpush.bf16.msra.mxu0 %v3249
    %3296 = vmatpush.bf16.msra.mxu0 %v3245
    %3297 = vmatpush.bf16.msra.mxu0 %v3241
    %3298 = vmatpush.bf16.msra.mxu0 %v3237
    %3299 = vmatpush.bf16.msra.mxu0 %v3233
    %3300 = vmatpush.bf16.msra.mxu0 %v3229
    %3301 = vmatmul.bf16.gmra.mxu0 %v3100
    %v3302 = vpop.f32.mrf.mxu0
    %v3303 = vadd.f32 0.0, %v3302
    %v3304 = vpop.f32.mrf.mxu0
    %3305 = vdwg.mxu0
    %3306 = vmatpush.bf16.msra.mxu0 %v3258
    %3307 = vmatpush.bf16.msra.mxu0 %v3254
    %3308 = vmatpush.bf16.msra.mxu0 %v3250
    %3309 = vmatpush.bf16.msra.mxu0 %v3246
    %3310 = vmatpush.bf16.msra.mxu0 %v3242
    %3311 = vmatpush.bf16.msra.mxu0 %v3238
    %3312 = vmatpush.bf16.msra.mxu0 %v3234
    %3313 = vmatpush.bf16.msra.mxu0 %v3230
    %3314 = vmatmul.bf16.gmra.mxu0 %v3100
    %v3315 = vpop.f32.mrf.mxu0
    %v3316 = vadd.f32 0.0, %v3315
    %v3317 = vpop.f32.mrf.mxu0
    %3318 = vdwg.mxu0
    %3319 = vmatpush.bf16.msra.mxu0 %v3259
    %3320 = vmatpush.bf16.msra.mxu0 %v3255
    %3321 = vmatpush.bf16.msra.mxu0 %v3251
    %3322 = vmatpush.bf16.msra.mxu0 %v3247
    %3323 = vmatpush.bf16.msra.mxu0 %v3243
    %3324 = vmatpush.bf16.msra.mxu0 %v3239
    %3325 = vmatpush.bf16.msra.mxu0 %v3235
    %3326 = vmatpush.bf16.msra.mxu0 %v3231
    %3327 = vmatmul.bf16.gmra.mxu0 %v3100
    %v3328 = vpop.f32.mrf.mxu0
    %v3329 = vadd.f32 0.0, %v3328
    %v3330 = vpop.f32.mrf.mxu0
    %3331 = vdwg.mxu0
    %3332 = vmatpush.bf16.msra.mxu0 %v3260
    %3333 = vmatpush.bf16.msra.mxu0 %v3256
    %3334 = vmatpush.bf16.msra.mxu0 %v3252
    %3335 = vmatpush.bf16.msra.mxu0 %v3248
    %3336 = vmatpush.bf16.msra.mxu0 %v3244
    %3337 = vmatpush.bf16.msra.mxu0 %v3240
    %3338 = vmatpush.bf16.msra.mxu0 %v3236
    %3339 = vmatpush.bf16.msra.mxu0 %v3232
    %3340 = vmatmul.bf16.gmra.mxu0 %v3100
    %v3341 = vpop.f32.mrf.mxu0
    %v3342 = vadd.f32 0.0, %v3341
    %v3343 = vpop.f32.mrf.mxu0
    %3344 = vdwg.mxu0
    %v3345 = vadd.f32 %v3096, %v3303
    %v3346 = vadd.f32 %v3097, %v3316
    %v3347 = vadd.f32 %v3098, %v3329
    %v3348 = vadd.f32 %v3099, %v3342
    %v3349 = vxor.u32 %v3345, 2147483648
    %v3350 = vmul.f32 %v3349, 1.442695
    %v3351 = vpow.pop %v3350
    %v3352 = vadd.f32 %v3351, 1.0
    %v3353 = vrcp.pop %v3352
    %v3354 = vmul.f32 %v3352, %v3353
    %v3355 = vsub.f32 1.0, %v3354
    %v3356 = vmul.f32 %v3353, %v3355
    %v3357 = vadd.f32 %v3353, %v3356
    %vm3358 = vweird.f32 %v3352
    %vm3359 = vweird.f32 %v3353
    %vm3360 = vmor %vm3358, %vm3359
    %v3361 = vsel %vm3360, %v3353, %v3357
    %v3362 = vand.u32 2147483647, %v3352
    %vm3363 = vcmp.eq.f32.partialorder %v3362, 8.507059e+37
    %v3364 = vand.u32 %v3352, 2147483648
    %v3365 = vor.u32 1.1754944e-38, %v3364
    %v3366 = vsel %vm3363, %v3365, %v3361
    %v3367 = vmul.f32 1.0, %v3366
    %v3368 = vxor.u32 %v3346, 2147483648
    %v3369 = vmul.f32 %v3368, 1.442695
    %v3370 = vpow.pop %v3369
    %v3371 = vadd.f32 %v3370, 1.0
    %v3372 = vrcp.pop %v3371
    %v3373 = vmul.f32 %v3371, %v3372
    %v3374 = vsub.f32 1.0, %v3373
    %v3375 = vmul.f32 %v3372, %v3374
    %v3376 = vadd.f32 %v3372, %v3375
    %vm3377 = vweird.f32 %v3371
    %vm3378 = vweird.f32 %v3372
    %vm3379 = vmor %vm3377, %vm3378
    %v3380 = vsel %vm3379, %v3372, %v3376
    %v3381 = vand.u32 2147483647, %v3371
    %vm3382 = vcmp.eq.f32.partialorder %v3381, 8.507059e+37
    %v3383 = vand.u32 %v3371, 2147483648
    %v3384 = vor.u32 1.1754944e-38, %v3383
    %v3385 = vsel %vm3382, %v3384, %v3380
    %v3386 = vmul.f32 1.0, %v3385
    %v3387 = vtanh.pop %v3347
    %v3388 = vxor.u32 %v3348, 2147483648
    %v3389 = vmul.f32 %v3388, 1.442695
    %v3390 = vpow.pop %v3389
    %v3391 = vadd.f32 %v3390, 1.0
    %v3392 = vrcp.pop %v3391
    %v3393 = vmul.f32 %v3391, %v3392
    %v3394 = vsub.f32 1.0, %v3393
    %v3395 = vmul.f32 %v3392, %v3394
    %v3396 = vadd.f32 %v3392, %v3395
    %vm3397 = vweird.f32 %v3391
    %vm3398 = vweird.f32 %v3392
    %vm3399 = vmor %vm3397, %vm3398
    %v3400 = vsel %vm3399, %v3392, %v3396
    %v3401 = vand.u32 2147483647, %v3391
    %vm3402 = vcmp.eq.f32.partialorder %v3401, 8.507059e+37
    %v3403 = vand.u32 %v3391, 2147483648
    %v3404 = vor.u32 1.1754944e-38, %v3403
    %v3405 = vsel %vm3402, %v3404, %v3400
    %v3406 = vmul.f32 1.0, %v3405
    %v3407 = vmul.f32 %v3386, %v3088
    %v3408 = vmul.f32 %v3367, %v3387
    %v3409 = vadd.f32 %v3407, %v3408
    %v3410 = vtanh.pop %v3409
    %v3411 = vmul.f32 %v3406, %v3410
    %s3412 = scalar_lea.vmem [#allocation2], 64
    %3413 = vst [vmem:[%s3412] sm:$0xff] %v3411
    %v3414 = vld [vmem:[#allocation2] sm:$0xff]
    %v3415 = vld [vmem:[#allocation2 + $0x8] sm:$0xff]
    %v3416 = vld [vmem:[#allocation2 + $0x10] sm:$0xff]
    %v3417 = vld [vmem:[#allocation2 + $0x18] sm:$0xff]
    %v3418 = vld [vmem:[#allocation2 + $0x20] sm:$0xff]
    %v3419 = vld [vmem:[#allocation2 + $0x28] sm:$0xff]
    %v3420 = vld [vmem:[#allocation2 + $0x30] sm:$0xff]
    %v3421 = vld [vmem:[#allocation2 + $0x38] sm:$0xff]
    %v3422 = vld [vmem:[#allocation2 + $0x40] sm:$0xff]
    %v3423 = vpack.c.bf16 %v3415, %v3414
    %v3424 = vpack.c.bf16 %v3417, %v3416
    %v3425 = vpack.c.bf16 %v3419, %v3418
    %v3426 = vpack.c.bf16 %v3421, %v3420
    %v3427 = vpack.c.bf16 %v3422, %v3422
    %v3428 = vld [vmem:[#allocation12] sm:$0xff]
    %v3429 = vld [vmem:[#allocation12 + $0x8] sm:$0xff]
    %v3430 = vld [vmem:[#allocation12 + $0x10] sm:$0xff]
    %v3431 = vld [vmem:[#allocation12 + $0x18] sm:$0xff]
    %v3432 = vld [vmem:[#allocation12 + $0x20] sm:$0xff]
    %v3433 = vld [vmem:[#allocation12 + $0x28] sm:$0xff]
    %v3434 = vld [vmem:[#allocation12 + $0x30] sm:$0xff]
    %v3435 = vld [vmem:[#allocation12 + $0x38] sm:$0xff]
    %v3436 = vld [vmem:[#allocation12 + $0x40] sm:$0xff]
    %v3437 = vld [vmem:[#allocation12 + $0x48] sm:$0xff]
    %v3438 = vld [vmem:[#allocation12 + $0x50] sm:$0xff]
    %v3439 = vld [vmem:[#allocation12 + $0x58] sm:$0xff]
    %v3440 = vld [vmem:[#allocation12 + $0x60] sm:$0xff]
    %v3441 = vld [vmem:[#allocation12 + $0x68] sm:$0xff]
    %v3442 = vld [vmem:[#allocation12 + $0x70] sm:$0xff]
    %v3443 = vld [vmem:[#allocation12 + $0x78] sm:$0xff]
    %v3444 = vld [vmem:[#allocation12 + $0x80] sm:$0xff]
    %v3445 = vld [vmem:[#allocation12 + $0x88] sm:$0xff]
    %v3446 = vld [vmem:[#allocation12 + $0x90] sm:$0xff]
    %v3447 = vld [vmem:[#allocation12 + $0x98] sm:$0xff]
    %v3448 = vld [vmem:[#allocation12 + $0xa0] sm:$0xff]
    %v3449 = vld [vmem:[#allocation12 + $0xa8] sm:$0xff]
    %v3450 = vld [vmem:[#allocation12 + $0xb0] sm:$0xff]
    %v3451 = vld [vmem:[#allocation12 + $0xb8] sm:$0xff]
    %v3452 = vld [vmem:[#allocation12 + $0xc0] sm:$0xff]
    %v3453 = vld [vmem:[#allocation12 + $0xc8] sm:$0xff]
    %v3454 = vld [vmem:[#allocation12 + $0xd0] sm:$0xff]
    %v3455 = vld [vmem:[#allocation12 + $0xd8] sm:$0xff]
    %v3456 = vld [vmem:[#allocation12 + $0xe0] sm:$0xff]
    %v3457 = vld [vmem:[#allocation12 + $0xe8] sm:$0xff]
    %v3458 = vld [vmem:[#allocation12 + $0xf0] sm:$0xff]
    %v3459 = vld [vmem:[#allocation12 + $0xf8] sm:$0xff]
    %v3460 = vld [vmem:[%s6] sm:$0xf]
    %v3462 = vperm.slane %v3460, 0
    %v3463 = vperm.slane %v3460, 1
    %v3464 = vperm.slane %v3460, 2
    %v3465 = vperm.slane %v3460, 3
    %v3502 = vunpack.c.l.b16 %v3428
    %v3503 = vunpack.c.h.b16 %v3428
    %v3504 = vunpack.c.l.b16 %v3429
    %v3505 = vunpack.c.h.b16 %v3429
    %v3506 = vunpack.c.l.b16 %v3430
    %v3507 = vunpack.c.h.b16 %v3430
    %v3508 = vunpack.c.l.b16 %v3431
    %v3509 = vunpack.c.h.b16 %v3431
    %v3510 = vunpack.c.l.b16 %v3432
    %v3511 = vunpack.c.h.b16 %v3432
    %v3512 = vunpack.c.l.b16 %v3433
    %v3513 = vunpack.c.h.b16 %v3433
    %v3514 = vunpack.c.l.b16 %v3434
    %v3515 = vunpack.c.h.b16 %v3434
    %v3516 = vunpack.c.l.b16 %v3435
    %v3517 = vunpack.c.h.b16 %v3435
    %v3518 = vunpack.c.l.b16 %v3436
    %v3519 = vunpack.c.h.b16 %v3436
    %v3520 = vunpack.c.l.b16 %v3437
    %v3521 = vunpack.c.h.b16 %v3437
    %v3522 = vunpack.c.l.b16 %v3438
    %v3523 = vunpack.c.h.b16 %v3438
    %v3524 = vunpack.c.l.b16 %v3439
    %v3525 = vunpack.c.h.b16 %v3439
    %v3526 = vunpack.c.l.b16 %v3440
    %v3527 = vunpack.c.h.b16 %v3440
    %v3528 = vunpack.c.l.b16 %v3441
    %v3529 = vunpack.c.h.b16 %v3441
    %v3530 = vunpack.c.l.b16 %v3442
    %v3531 = vunpack.c.h.b16 %v3442
    %v3532 = vunpack.c.l.b16 %v3443
    %v3533 = vunpack.c.h.b16 %v3443
    %v3534 = vunpack.c.l.b16 %v3444
    %v3535 = vunpack.c.h.b16 %v3444
    %v3536 = vunpack.c.l.b16 %v3445
    %v3537 = vunpack.c.h.b16 %v3445
    %v3538 = vunpack.c.l.b16 %v3446
    %v3539 = vunpack.c.h.b16 %v3446
    %v3540 = vunpack.c.l.b16 %v3447
    %v3541 = vunpack.c.h.b16 %v3447
    %v3542 = vunpack.c.l.b16 %v3448
    %v3543 = vunpack.c.h.b16 %v3448
    %v3544 = vunpack.c.l.b16 %v3449
    %v3545 = vunpack.c.h.b16 %v3449
    %v3546 = vunpack.c.l.b16 %v3450
    %v3547 = vunpack.c.h.b16 %v3450
    %v3548 = vunpack.c.l.b16 %v3451
    %v3549 = vunpack.c.h.b16 %v3451
    %v3550 = vunpack.c.l.b16 %v3452
    %v3551 = vunpack.c.h.b16 %v3452
    %v3552 = vunpack.c.l.b16 %v3453
    %v3553 = vunpack.c.h.b16 %v3453
    %v3554 = vunpack.c.l.b16 %v3454
    %v3555 = vunpack.c.h.b16 %v3454
    %v3556 = vunpack.c.l.b16 %v3455
    %v3557 = vunpack.c.h.b16 %v3455
    %v3558 = vunpack.c.l.b16 %v3456
    %v3559 = vunpack.c.h.b16 %v3456
    %v3560 = vunpack.c.l.b16 %v3457
    %v3561 = vunpack.c.h.b16 %v3457
    %v3562 = vunpack.c.l.b16 %v3458
    %v3563 = vunpack.c.h.b16 %v3458
    %v3564 = vunpack.c.l.b16 %v3459
    %v3565 = vunpack.c.h.b16 %v3459
    %v3566 = vpack.c.b16 %v3506, %v3502
    %v3567 = vpack.c.b16 %v3507, %v3503
    %v3568 = vpack.c.b16 %v3508, %v3504
    %v3569 = vpack.c.b16 %v3509, %v3505
    %v3570 = vpack.c.b16 %v3514, %v3510
    %v3571 = vpack.c.b16 %v3515, %v3511
    %v3572 = vpack.c.b16 %v3516, %v3512
    %v3573 = vpack.c.b16 %v3517, %v3513
    %v3574 = vpack.c.b16 %v3522, %v3518
    %v3575 = vpack.c.b16 %v3523, %v3519
    %v3576 = vpack.c.b16 %v3524, %v3520
    %v3577 = vpack.c.b16 %v3525, %v3521
    %v3578 = vpack.c.b16 %v3530, %v3526
    %v3579 = vpack.c.b16 %v3531, %v3527
    %v3580 = vpack.c.b16 %v3532, %v3528
    %v3581 = vpack.c.b16 %v3533, %v3529
    %v3582 = vpack.c.b16 %v3538, %v3534
    %v3583 = vpack.c.b16 %v3539, %v3535
    %v3584 = vpack.c.b16 %v3540, %v3536
    %v3585 = vpack.c.b16 %v3541, %v3537
    %v3586 = vpack.c.b16 %v3546, %v3542
    %v3587 = vpack.c.b16 %v3547, %v3543
    %v3588 = vpack.c.b16 %v3548, %v3544
    %v3589 = vpack.c.b16 %v3549, %v3545
    %v3590 = vpack.c.b16 %v3554, %v3550
    %v3591 = vpack.c.b16 %v3555, %v3551
    %v3592 = vpack.c.b16 %v3556, %v3552
    %v3593 = vpack.c.b16 %v3557, %v3553
    %v3594 = vpack.c.b16 %v3562, %v3558
    %v3595 = vpack.c.b16 %v3563, %v3559
    %v3596 = vpack.c.b16 %v3564, %v3560
    %v3597 = vpack.c.b16 %v3565, %v3561
    %3630 = vmatpush.bf16.msra.mxu0 %v3594
    %3631 = vmatpush.bf16.msra.mxu0 %v3590
    %3632 = vmatpush.bf16.msra.mxu0 %v3586
    %3633 = vmatpush.bf16.msra.mxu0 %v3582
    %3634 = vmatpush.bf16.msra.mxu0 %v3578
    %3635 = vmatpush.bf16.msra.mxu0 %v3574
    %3636 = vmatpush.bf16.msra.mxu0 %v3570
    %3637 = vmatpush.bf16.msra.mxu0 %v3566
    %3638 = vmatmul.bf16.gmra.mxu0 %v3423
    %v3639 = vpop.f32.mrf.mxu0
    %v3640 = vadd.f32 %v3462, %v3639
    %v3641 = vpop.f32.mrf.mxu0
    %v3642 = vadd.f32 %v3462, %v3641
    %3643 = vmatmul.bf16.gmra.mxu0 %v3424
    %v3644 = vpop.f32.mrf.mxu0
    %v3645 = vadd.f32 %v3462, %v3644
    %v3646 = vpop.f32.mrf.mxu0
    %v3647 = vadd.f32 %v3462, %v3646
    %3648 = vmatmul.bf16.gmra.mxu0 %v3425
    %v3649 = vpop.f32.mrf.mxu0
    %v3650 = vadd.f32 %v3462, %v3649
    %v3651 = vpop.f32.mrf.mxu0
    %v3652 = vadd.f32 %v3462, %v3651
    %3653 = vmatmul.bf16.gmra.mxu0 %v3426
    %v3654 = vpop.f32.mrf.mxu0
    %v3655 = vadd.f32 %v3462, %v3654
    %v3656 = vpop.f32.mrf.mxu0
    %v3657 = vadd.f32 %v3462, %v3656
    %3658 = vmatmul.bf16.gmra.mxu0 %v3427
    %v3659 = vpop.f32.mrf.mxu0
    %v3660 = vadd.f32 %v3462, %v3659
    %v3661 = vpop.f32.mrf.mxu0
    %3662 = vdwg.mxu0
    %3663 = vmatpush.bf16.msra.mxu0 %v3595
    %3664 = vmatpush.bf16.msra.mxu0 %v3591
    %3665 = vmatpush.bf16.msra.mxu0 %v3587
    %3666 = vmatpush.bf16.msra.mxu0 %v3583
    %3667 = vmatpush.bf16.msra.mxu0 %v3579
    %3668 = vmatpush.bf16.msra.mxu0 %v3575
    %3669 = vmatpush.bf16.msra.mxu0 %v3571
    %3670 = vmatpush.bf16.msra.mxu0 %v3567
    %3671 = vmatmul.bf16.gmra.mxu0 %v3423
    %v3672 = vpop.f32.mrf.mxu0
    %v3673 = vadd.f32 %v3463, %v3672
    %v3674 = vpop.f32.mrf.mxu0
    %v3675 = vadd.f32 %v3463, %v3674
    %3676 = vmatmul.bf16.gmra.mxu0 %v3424
    %v3677 = vpop.f32.mrf.mxu0
    %v3678 = vadd.f32 %v3463, %v3677
    %v3679 = vpop.f32.mrf.mxu0
    %v3680 = vadd.f32 %v3463, %v3679
    %3681 = vmatmul.bf16.gmra.mxu0 %v3425
    %v3682 = vpop.f32.mrf.mxu0
    %v3683 = vadd.f32 %v3463, %v3682
    %v3684 = vpop.f32.mrf.mxu0
    %v3685 = vadd.f32 %v3463, %v3684
    %3686 = vmatmul.bf16.gmra.mxu0 %v3426
    %v3687 = vpop.f32.mrf.mxu0
    %v3688 = vadd.f32 %v3463, %v3687
    %v3689 = vpop.f32.mrf.mxu0
    %v3690 = vadd.f32 %v3463, %v3689
    %3691 = vmatmul.bf16.gmra.mxu0 %v3427
    %v3692 = vpop.f32.mrf.mxu0
    %v3693 = vadd.f32 %v3463, %v3692
    %v3694 = vpop.f32.mrf.mxu0
    %3695 = vdwg.mxu0
    %3696 = vmatpush.bf16.msra.mxu0 %v3596
    %3697 = vmatpush.bf16.msra.mxu0 %v3592
    %3698 = vmatpush.bf16.msra.mxu0 %v3588
    %3699 = vmatpush.bf16.msra.mxu0 %v3584
    %3700 = vmatpush.bf16.msra.mxu0 %v3580
    %3701 = vmatpush.bf16.msra.mxu0 %v3576
    %3702 = vmatpush.bf16.msra.mxu0 %v3572
    %3703 = vmatpush.bf16.msra.mxu0 %v3568
    %3704 = vmatmul.bf16.gmra.mxu0 %v3423
    %v3705 = vpop.f32.mrf.mxu0
    %v3706 = vadd.f32 %v3464, %v3705
    %v3707 = vpop.f32.mrf.mxu0
    %v3708 = vadd.f32 %v3464, %v3707
    %3709 = vmatmul.bf16.gmra.mxu0 %v3424
    %v3710 = vpop.f32.mrf.mxu0
    %v3711 = vadd.f32 %v3464, %v3710
    %v3712 = vpop.f32.mrf.mxu0
    %v3713 = vadd.f32 %v3464, %v3712
    %3714 = vmatmul.bf16.gmra.mxu0 %v3425
    %v3715 = vpop.f32.mrf.mxu0
    %v3716 = vadd.f32 %v3464, %v3715
    %v3717 = vpop.f32.mrf.mxu0
    %v3718 = vadd.f32 %v3464, %v3717
    %3719 = vmatmul.bf16.gmra.mxu0 %v3426
    %v3720 = vpop.f32.mrf.mxu0
    %v3721 = vadd.f32 %v3464, %v3720
    %v3722 = vpop.f32.mrf.mxu0
    %v3723 = vadd.f32 %v3464, %v3722
    %3724 = vmatmul.bf16.gmra.mxu0 %v3427
    %v3725 = vpop.f32.mrf.mxu0
    %v3726 = vadd.f32 %v3464, %v3725
    %v3727 = vpop.f32.mrf.mxu0
    %3728 = vdwg.mxu0
    %3729 = vmatpush.bf16.msra.mxu0 %v3597
    %3730 = vmatpush.bf16.msra.mxu0 %v3593
    %3731 = vmatpush.bf16.msra.mxu0 %v3589
    %3732 = vmatpush.bf16.msra.mxu0 %v3585
    %3733 = vmatpush.bf16.msra.mxu0 %v3581
    %3734 = vmatpush.bf16.msra.mxu0 %v3577
    %3735 = vmatpush.bf16.msra.mxu0 %v3573
    %3736 = vmatpush.bf16.msra.mxu0 %v3569
    %3737 = vmatmul.bf16.gmra.mxu0 %v3423
    %v3738 = vpop.f32.mrf.mxu0
    %v3739 = vadd.f32 %v3465, %v3738
    %v3740 = vpop.f32.mrf.mxu0
    %v3741 = vadd.f32 %v3465, %v3740
    %3742 = vmatmul.bf16.gmra.mxu0 %v3424
    %v3743 = vpop.f32.mrf.mxu0
    %v3744 = vadd.f32 %v3465, %v3743
    %v3745 = vpop.f32.mrf.mxu0
    %v3746 = vadd.f32 %v3465, %v3745
    %3747 = vmatmul.bf16.gmra.mxu0 %v3425
    %v3748 = vpop.f32.mrf.mxu0
    %v3749 = vadd.f32 %v3465, %v3748
    %v3750 = vpop.f32.mrf.mxu0
    %v3751 = vadd.f32 %v3465, %v3750
    %3752 = vmatmul.bf16.gmra.mxu0 %v3426
    %v3753 = vpop.f32.mrf.mxu0
    %v3754 = vadd.f32 %v3465, %v3753
    %v3755 = vpop.f32.mrf.mxu0
    %v3756 = vadd.f32 %v3465, %v3755
    %3757 = vmatmul.bf16.gmra.mxu0 %v3427
    %v3758 = vpop.f32.mrf.mxu0
    %v3759 = vadd.f32 %v3465, %v3758
    %v3760 = vpop.f32.mrf.mxu0
    %3761 = vdwg.mxu0
    %3762 = vst [vmem:[#allocation3] sm:$0xff] %v3640
    %3763 = vst [vmem:[#allocation3 + $0x8] sm:$0xff] %v3673
    %3764 = vst [vmem:[#allocation3 + $0x10] sm:$0xff] %v3706
    %3765 = vst [vmem:[#allocation3 + $0x18] sm:$0xff] %v3739
    %3766 = vst [vmem:[#allocation3 + $0x20] sm:$0xff] %v3642
    %3767 = vst [vmem:[#allocation3 + $0x28] sm:$0xff] %v3675
    %3768 = vst [vmem:[#allocation3 + $0x30] sm:$0xff] %v3708
    %3769 = vst [vmem:[#allocation3 + $0x38] sm:$0xff] %v3741
    %3770 = vst [vmem:[#allocation3 + $0x40] sm:$0xff] %v3645
    %3771 = vst [vmem:[#allocation3 + $0x48] sm:$0xff] %v3678
    %3772 = vst [vmem:[#allocation3 + $0x50] sm:$0xff] %v3711
    %3773 = vst [vmem:[#allocation3 + $0x58] sm:$0xff] %v3744
    %3774 = vst [vmem:[#allocation3 + $0x60] sm:$0xff] %v3647
    %3775 = vst [vmem:[#allocation3 + $0x68] sm:$0xff] %v3680
    %3776 = vst [vmem:[#allocation3 + $0x70] sm:$0xff] %v3713
    %3777 = vst [vmem:[#allocation3 + $0x78] sm:$0xff] %v3746
    %3778 = vst [vmem:[#allocation3 + $0x80] sm:$0xff] %v3650
    %3779 = vst [vmem:[#allocation3 + $0x88] sm:$0xff] %v3683
    %3780 = vst [vmem:[#allocation3 + $0x90] sm:$0xff] %v3716
    %3781 = vst [vmem:[#allocation3 + $0x98] sm:$0xff] %v3749
    %3782 = vst [vmem:[#allocation3 + $0xa0] sm:$0xff] %v3652
    %3783 = vst [vmem:[#allocation3 + $0xa8] sm:$0xff] %v3685
    %3784 = vst [vmem:[#allocation3 + $0xb0] sm:$0xff] %v3718
    %3785 = vst [vmem:[#allocation3 + $0xb8] sm:$0xff] %v3751
    %3786 = vst [vmem:[#allocation3 + $0xc0] sm:$0xff] %v3655
    %3787 = vst [vmem:[#allocation3 + $0xc8] sm:$0xff] %v3688
    %3788 = vst [vmem:[#allocation3 + $0xd0] sm:$0xff] %v3721
    %3789 = vst [vmem:[#allocation3 + $0xd8] sm:$0xff] %v3754
    %3790 = vst [vmem:[#allocation3 + $0xe0] sm:$0xff] %v3657
    %3791 = vst [vmem:[#allocation3 + $0xe8] sm:$0xff] %v3690
    %3792 = vst [vmem:[#allocation3 + $0xf0] sm:$0xff] %v3723
    %3793 = vst [vmem:[#allocation3 + $0xf8] sm:$0xff] %v3756
    %3794 = vst [vmem:[#allocation3 + $0x100] sm:$0xff] %v3660
    %3795 = vst [vmem:[#allocation3 + $0x108] sm:$0xff] %v3693
    %3796 = vst [vmem:[#allocation3 + $0x110] sm:$0xff] %v3726
    %3797 = vst [vmem:[#allocation3 + $0x118] sm:$0xff] %v3759
    %v3798 = vld [vmem:[%s529] sm:$0xff]
    %v3799 = vld [vmem:[%s529 + $0x8] sm:$0xff]
    %v3800 = vld [vmem:[%s529 + $0x10] sm:$0xff]
    %v3801 = vld [vmem:[%s529 + $0x18] sm:$0xff]
    %v3802 = vld [vmem:[#allocation13] sm:$0xff]
    %v3803 = vld [vmem:[#allocation13 + $0x8] sm:$0xff]
    %v3804 = vld [vmem:[#allocation13 + $0x10] sm:$0xff]
    %v3805 = vld [vmem:[#allocation13 + $0x18] sm:$0xff]
    %v3806 = vld [vmem:[#allocation13 + $0x20] sm:$0xff]
    %v3807 = vld [vmem:[#allocation13 + $0x28] sm:$0xff]
    %v3808 = vld [vmem:[#allocation13 + $0x30] sm:$0xff]
    %v3809 = vld [vmem:[#allocation13 + $0x38] sm:$0xff]
    %v3810 = vld [vmem:[#allocation13 + $0x40] sm:$0xff]
    %v3811 = vld [vmem:[#allocation13 + $0x48] sm:$0xff]
    %v3812 = vld [vmem:[#allocation13 + $0x50] sm:$0xff]
    %v3813 = vld [vmem:[#allocation13 + $0x58] sm:$0xff]
    %v3814 = vld [vmem:[#allocation13 + $0x60] sm:$0xff]
    %v3815 = vld [vmem:[#allocation13 + $0x68] sm:$0xff]
    %v3816 = vld [vmem:[#allocation13 + $0x70] sm:$0xff]
    %v3817 = vld [vmem:[#allocation13 + $0x78] sm:$0xff]
    %v3818 = vld [vmem:[#allocation13 + $0x80] sm:$0xff]
    %v3819 = vld [vmem:[#allocation13 + $0x88] sm:$0xff]
    %v3820 = vld [vmem:[#allocation13 + $0x90] sm:$0xff]
    %v3821 = vld [vmem:[#allocation13 + $0x98] sm:$0xff]
    %v3822 = vld [vmem:[#allocation13 + $0xa0] sm:$0xff]
    %v3823 = vld [vmem:[#allocation13 + $0xa8] sm:$0xff]
    %v3824 = vld [vmem:[#allocation13 + $0xb0] sm:$0xff]
    %v3825 = vld [vmem:[#allocation13 + $0xb8] sm:$0xff]
    %v3826 = vld [vmem:[#allocation13 + $0xc0] sm:$0xff]
    %v3827 = vld [vmem:[#allocation13 + $0xc8] sm:$0xff]
    %v3828 = vld [vmem:[#allocation13 + $0xd0] sm:$0xff]
    %v3829 = vld [vmem:[#allocation13 + $0xd8] sm:$0xff]
    %v3830 = vld [vmem:[#allocation13 + $0xe0] sm:$0xff]
    %v3831 = vld [vmem:[#allocation13 + $0xe8] sm:$0xff]
    %v3832 = vld [vmem:[#allocation13 + $0xf0] sm:$0xff]
    %v3833 = vld [vmem:[#allocation13 + $0xf8] sm:$0xff]
    %v3866 = vunpack.c.l.b16 %v3802
    %v3867 = vunpack.c.h.b16 %v3802
    %v3868 = vunpack.c.l.b16 %v3803
    %v3869 = vunpack.c.h.b16 %v3803
    %v3870 = vunpack.c.l.b16 %v3804
    %v3871 = vunpack.c.h.b16 %v3804
    %v3872 = vunpack.c.l.b16 %v3805
    %v3873 = vunpack.c.h.b16 %v3805
    %v3874 = vunpack.c.l.b16 %v3806
    %v3875 = vunpack.c.h.b16 %v3806
    %v3876 = vunpack.c.l.b16 %v3807
    %v3877 = vunpack.c.h.b16 %v3807
    %v3878 = vunpack.c.l.b16 %v3808
    %v3879 = vunpack.c.h.b16 %v3808
    %v3880 = vunpack.c.l.b16 %v3809
    %v3881 = vunpack.c.h.b16 %v3809
    %v3882 = vunpack.c.l.b16 %v3810
    %v3883 = vunpack.c.h.b16 %v3810
    %v3884 = vunpack.c.l.b16 %v3811
    %v3885 = vunpack.c.h.b16 %v3811
    %v3886 = vunpack.c.l.b16 %v3812
    %v3887 = vunpack.c.h.b16 %v3812
    %v3888 = vunpack.c.l.b16 %v3813
    %v3889 = vunpack.c.h.b16 %v3813
    %v3890 = vunpack.c.l.b16 %v3814
    %v3891 = vunpack.c.h.b16 %v3814
    %v3892 = vunpack.c.l.b16 %v3815
    %v3893 = vunpack.c.h.b16 %v3815
    %v3894 = vunpack.c.l.b16 %v3816
    %v3895 = vunpack.c.h.b16 %v3816
    %v3896 = vunpack.c.l.b16 %v3817
    %v3897 = vunpack.c.h.b16 %v3817
    %v3898 = vunpack.c.l.b16 %v3818
    %v3899 = vunpack.c.h.b16 %v3818
    %v3900 = vunpack.c.l.b16 %v3819
    %v3901 = vunpack.c.h.b16 %v3819
    %v3902 = vunpack.c.l.b16 %v3820
    %v3903 = vunpack.c.h.b16 %v3820
    %v3904 = vunpack.c.l.b16 %v3821
    %v3905 = vunpack.c.h.b16 %v3821
    %v3906 = vunpack.c.l.b16 %v3822
    %v3907 = vunpack.c.h.b16 %v3822
    %v3908 = vunpack.c.l.b16 %v3823
    %v3909 = vunpack.c.h.b16 %v3823
    %v3910 = vunpack.c.l.b16 %v3824
    %v3911 = vunpack.c.h.b16 %v3824
    %v3912 = vunpack.c.l.b16 %v3825
    %v3913 = vunpack.c.h.b16 %v3825
    %v3914 = vunpack.c.l.b16 %v3826
    %v3915 = vunpack.c.h.b16 %v3826
    %v3916 = vunpack.c.l.b16 %v3827
    %v3917 = vunpack.c.h.b16 %v3827
    %v3918 = vunpack.c.l.b16 %v3828
    %v3919 = vunpack.c.h.b16 %v3828
    %v3920 = vunpack.c.l.b16 %v3829
    %v3921 = vunpack.c.h.b16 %v3829
    %v3922 = vunpack.c.l.b16 %v3830
    %v3923 = vunpack.c.h.b16 %v3830
    %v3924 = vunpack.c.l.b16 %v3831
    %v3925 = vunpack.c.h.b16 %v3831
    %v3926 = vunpack.c.l.b16 %v3832
    %v3927 = vunpack.c.h.b16 %v3832
    %v3928 = vunpack.c.l.b16 %v3833
    %v3929 = vunpack.c.h.b16 %v3833
    %v3930 = vpack.c.b16 %v3870, %v3866
    %v3931 = vpack.c.b16 %v3871, %v3867
    %v3932 = vpack.c.b16 %v3872, %v3868
    %v3933 = vpack.c.b16 %v3873, %v3869
    %v3934 = vpack.c.b16 %v3878, %v3874
    %v3935 = vpack.c.b16 %v3879, %v3875
    %v3936 = vpack.c.b16 %v3880, %v3876
    %v3937 = vpack.c.b16 %v3881, %v3877
    %v3938 = vpack.c.b16 %v3886, %v3882
    %v3939 = vpack.c.b16 %v3887, %v3883
    %v3940 = vpack.c.b16 %v3888, %v3884
    %v3941 = vpack.c.b16 %v3889, %v3885
    %v3942 = vpack.c.b16 %v3894, %v3890
    %v3943 = vpack.c.b16 %v3895, %v3891
    %v3944 = vpack.c.b16 %v3896, %v3892
    %v3945 = vpack.c.b16 %v3897, %v3893
    %v3946 = vpack.c.b16 %v3902, %v3898
    %v3947 = vpack.c.b16 %v3903, %v3899
    %v3948 = vpack.c.b16 %v3904, %v3900
    %v3949 = vpack.c.b16 %v3905, %v3901
    %v3950 = vpack.c.b16 %v3910, %v3906
    %v3951 = vpack.c.b16 %v3911, %v3907
    %v3952 = vpack.c.b16 %v3912, %v3908
    %v3953 = vpack.c.b16 %v3913, %v3909
    %v3954 = vpack.c.b16 %v3918, %v3914
    %v3955 = vpack.c.b16 %v3919, %v3915
    %v3956 = vpack.c.b16 %v3920, %v3916
    %v3957 = vpack.c.b16 %v3921, %v3917
    %v3958 = vpack.c.b16 %v3926, %v3922
    %v3959 = vpack.c.b16 %v3927, %v3923
    %v3960 = vpack.c.b16 %v3928, %v3924
    %v3961 = vpack.c.b16 %v3929, %v3925
    %3994 = vmatpush.bf16.msra.mxu0 %v3958
    %3995 = vmatpush.bf16.msra.mxu0 %v3954
    %3996 = vmatpush.bf16.msra.mxu0 %v3950
    %3997 = vmatpush.bf16.msra.mxu0 %v3946
    %3998 = vmatpush.bf16.msra.mxu0 %v3942
    %3999 = vmatpush.bf16.msra.mxu0 %v3938
    %4000 = vmatpush.bf16.msra.mxu0 %v3934
    %4001 = vmatpush.bf16.msra.mxu0 %v3930
    %4002 = vmatmul.bf16.gmra.mxu0 0
    %v4003 = vpop.f32.mrf.mxu0
    %v4004 = vadd.f32 0.0, %v4003
    %v4005 = vpop.f32.mrf.mxu0
    %4006 = vdwg.mxu0
    %4007 = vmatpush.bf16.msra.mxu0 %v3959
    %4008 = vmatpush.bf16.msra.mxu0 %v3955
    %4009 = vmatpush.bf16.msra.mxu0 %v3951
    %4010 = vmatpush.bf16.msra.mxu0 %v3947
    %4011 = vmatpush.bf16.msra.mxu0 %v3943
    %4012 = vmatpush.bf16.msra.mxu0 %v3939
    %4013 = vmatpush.bf16.msra.mxu0 %v3935
    %4014 = vmatpush.bf16.msra.mxu0 %v3931
    %4015 = vmatmul.bf16.gmra.mxu0 0
    %v4016 = vpop.f32.mrf.mxu0
    %v4017 = vadd.f32 0.0, %v4016
    %v4018 = vpop.f32.mrf.mxu0
    %4019 = vdwg.mxu0
    %4020 = vmatpush.bf16.msra.mxu0 %v3960
    %4021 = vmatpush.bf16.msra.mxu0 %v3956
    %4022 = vmatpush.bf16.msra.mxu0 %v3952
    %4023 = vmatpush.bf16.msra.mxu0 %v3948
    %4024 = vmatpush.bf16.msra.mxu0 %v3944
    %4025 = vmatpush.bf16.msra.mxu0 %v3940
    %4026 = vmatpush.bf16.msra.mxu0 %v3936
    %4027 = vmatpush.bf16.msra.mxu0 %v3932
    %4028 = vmatmul.bf16.gmra.mxu0 0
    %v4029 = vpop.f32.mrf.mxu0
    %v4030 = vadd.f32 0.0, %v4029
    %v4031 = vpop.f32.mrf.mxu0
    %4032 = vdwg.mxu0
    %4033 = vmatpush.bf16.msra.mxu0 %v3961
    %4034 = vmatpush.bf16.msra.mxu0 %v3957
    %4035 = vmatpush.bf16.msra.mxu0 %v3953
    %4036 = vmatpush.bf16.msra.mxu0 %v3949
    %4037 = vmatpush.bf16.msra.mxu0 %v3945
    %4038 = vmatpush.bf16.msra.mxu0 %v3941
    %4039 = vmatpush.bf16.msra.mxu0 %v3937
    %4040 = vmatpush.bf16.msra.mxu0 %v3933
    %4041 = vmatmul.bf16.gmra.mxu0 0
    %v4042 = vpop.f32.mrf.mxu0
    %v4043 = vadd.f32 0.0, %v4042
    %v4044 = vpop.f32.mrf.mxu0
    %4045 = vdwg.mxu0
    %v4046 = vadd.f32 %v3798, %v4004
    %v4047 = vadd.f32 %v3799, %v4017
    %v4048 = vadd.f32 %v3800, %v4030
    %v4049 = vadd.f32 %v3801, %v4043
    %v4050 = vxor.u32 %v4046, 2147483648
    %v4051 = vmul.f32 %v4050, 1.442695
    %v4052 = vpow.pop %v4051
    %v4053 = vadd.f32 %v4052, 1.0
    %v4054 = vrcp.pop %v4053
    %v4055 = vmul.f32 %v4053, %v4054
    %v4056 = vsub.f32 1.0, %v4055
    %v4057 = vmul.f32 %v4054, %v4056
    %v4058 = vadd.f32 %v4054, %v4057
    %vm4059 = vweird.f32 %v4053
    %vm4060 = vweird.f32 %v4054
    %vm4061 = vmor %vm4059, %vm4060
    %v4062 = vsel %vm4061, %v4054, %v4058
    %v4063 = vand.u32 2147483647, %v4053
    %vm4064 = vcmp.eq.f32.partialorder %v4063, 8.507059e+37
    %v4065 = vand.u32 %v4053, 2147483648
    %v4066 = vor.u32 1.1754944e-38, %v4065
    %v4067 = vsel %vm4064, %v4066, %v4062
    %v4068 = vmul.f32 1.0, %v4067
    %v4069 = vxor.u32 %v4047, 2147483648
    %v4070 = vmul.f32 %v4069, 1.442695
    %v4071 = vpow.pop %v4070
    %v4072 = vadd.f32 %v4071, 1.0
    %v4073 = vrcp.pop %v4072
    %v4074 = vmul.f32 %v4072, %v4073
    %v4075 = vsub.f32 1.0, %v4074
    %v4076 = vmul.f32 %v4073, %v4075
    %v4077 = vadd.f32 %v4073, %v4076
    %vm4078 = vweird.f32 %v4072
    %vm4079 = vweird.f32 %v4073
    %vm4080 = vmor %vm4078, %vm4079
    %v4081 = vsel %vm4080, %v4073, %v4077
    %v4082 = vand.u32 2147483647, %v4072
    %vm4083 = vcmp.eq.f32.partialorder %v4082, 8.507059e+37
    %v4084 = vand.u32 %v4072, 2147483648
    %v4085 = vor.u32 1.1754944e-38, %v4084
    %v4086 = vsel %vm4083, %v4085, %v4081
    %v4087 = vmul.f32 1.0, %v4086
    %v4088 = vtanh.pop %v4048
    %v4089 = vxor.u32 %v4049, 2147483648
    %v4090 = vmul.f32 %v4089, 1.442695
    %v4091 = vpow.pop %v4090
    %v4092 = vadd.f32 %v4091, 1.0
    %v4093 = vrcp.pop %v4092
    %v4094 = vmul.f32 %v4092, %v4093
    %v4095 = vsub.f32 1.0, %v4094
    %v4096 = vmul.f32 %v4093, %v4095
    %v4097 = vadd.f32 %v4093, %v4096
    %vm4098 = vweird.f32 %v4092
    %vm4099 = vweird.f32 %v4093
    %vm4100 = vmor %vm4098, %vm4099
    %v4101 = vsel %vm4100, %v4093, %v4097
    %v4102 = vand.u32 2147483647, %v4092
    %vm4103 = vcmp.eq.f32.partialorder %v4102, 8.507059e+37
    %v4104 = vand.u32 %v4092, 2147483648
    %v4105 = vor.u32 1.1754944e-38, %v4104
    %v4106 = vsel %vm4103, %v4105, %v4101
    %v4107 = vmul.f32 1.0, %v4106
    %v4108 = vmul.f32 %v4087, 0.0
    %v4109 = vmul.f32 %v4068, %v4088
    %v4110 = vadd.f32 %v4108, %v4109
    %v4111 = vtanh.pop %v4110
    %v4112 = vmul.f32 %v4107, %v4111
    %4113 = vst [vmem:[#allocation15] sm:$0xff] %v4112
    %v4114 = vld [vmem:[%s848] sm:$0xff]
    %v4115 = vld [vmem:[%s848 + $0x8] sm:$0xff]
    %v4116 = vld [vmem:[%s848 + $0x10] sm:$0xff]
    %v4117 = vld [vmem:[%s848 + $0x18] sm:$0xff]
    %v4118 = vpack.c.bf16 %v4112, %v4112
    %v4119 = vld [vmem:[#allocation13] sm:$0xff]
    %v4120 = vld [vmem:[#allocation13 + $0x8] sm:$0xff]
    %v4121 = vld [vmem:[#allocation13 + $0x10] sm:$0xff]
    %v4122 = vld [vmem:[#allocation13 + $0x18] sm:$0xff]
    %v4123 = vld [vmem:[#allocation13 + $0x20] sm:$0xff]
    %v4124 = vld [vmem:[#allocation13 + $0x28] sm:$0xff]
    %v4125 = vld [vmem:[#allocation13 + $0x30] sm:$0xff]
    %v4126 = vld [vmem:[#allocation13 + $0x38] sm:$0xff]
    %v4127 = vld [vmem:[#allocation13 + $0x40] sm:$0xff]
    %v4128 = vld [vmem:[#allocation13 + $0x48] sm:$0xff]
    %v4129 = vld [vmem:[#allocation13 + $0x50] sm:$0xff]
    %v4130 = vld [vmem:[#allocation13 + $0x58] sm:$0xff]
    %v4131 = vld [vmem:[#allocation13 + $0x60] sm:$0xff]
    %v4132 = vld [vmem:[#allocation13 + $0x68] sm:$0xff]
    %v4133 = vld [vmem:[#allocation13 + $0x70] sm:$0xff]
    %v4134 = vld [vmem:[#allocation13 + $0x78] sm:$0xff]
    %v4135 = vld [vmem:[#allocation13 + $0x80] sm:$0xff]
    %v4136 = vld [vmem:[#allocation13 + $0x88] sm:$0xff]
    %v4137 = vld [vmem:[#allocation13 + $0x90] sm:$0xff]
    %v4138 = vld [vmem:[#allocation13 + $0x98] sm:$0xff]
    %v4139 = vld [vmem:[#allocation13 + $0xa0] sm:$0xff]
    %v4140 = vld [vmem:[#allocation13 + $0xa8] sm:$0xff]
    %v4141 = vld [vmem:[#allocation13 + $0xb0] sm:$0xff]
    %v4142 = vld [vmem:[#allocation13 + $0xb8] sm:$0xff]
    %v4143 = vld [vmem:[#allocation13 + $0xc0] sm:$0xff]
    %v4144 = vld [vmem:[#allocation13 + $0xc8] sm:$0xff]
    %v4145 = vld [vmem:[#allocation13 + $0xd0] sm:$0xff]
    %v4146 = vld [vmem:[#allocation13 + $0xd8] sm:$0xff]
    %v4147 = vld [vmem:[#allocation13 + $0xe0] sm:$0xff]
    %v4148 = vld [vmem:[#allocation13 + $0xe8] sm:$0xff]
    %v4149 = vld [vmem:[#allocation13 + $0xf0] sm:$0xff]
    %v4150 = vld [vmem:[#allocation13 + $0xf8] sm:$0xff]
    %v4183 = vunpack.c.l.b16 %v4119
    %v4184 = vunpack.c.h.b16 %v4119
    %v4185 = vunpack.c.l.b16 %v4120
    %v4186 = vunpack.c.h.b16 %v4120
    %v4187 = vunpack.c.l.b16 %v4121
    %v4188 = vunpack.c.h.b16 %v4121
    %v4189 = vunpack.c.l.b16 %v4122
    %v4190 = vunpack.c.h.b16 %v4122
    %v4191 = vunpack.c.l.b16 %v4123
    %v4192 = vunpack.c.h.b16 %v4123
    %v4193 = vunpack.c.l.b16 %v4124
    %v4194 = vunpack.c.h.b16 %v4124
    %v4195 = vunpack.c.l.b16 %v4125
    %v4196 = vunpack.c.h.b16 %v4125
    %v4197 = vunpack.c.l.b16 %v4126
    %v4198 = vunpack.c.h.b16 %v4126
    %v4199 = vunpack.c.l.b16 %v4127
    %v4200 = vunpack.c.h.b16 %v4127
    %v4201 = vunpack.c.l.b16 %v4128
    %v4202 = vunpack.c.h.b16 %v4128
    %v4203 = vunpack.c.l.b16 %v4129
    %v4204 = vunpack.c.h.b16 %v4129
    %v4205 = vunpack.c.l.b16 %v4130
    %v4206 = vunpack.c.h.b16 %v4130
    %v4207 = vunpack.c.l.b16 %v4131
    %v4208 = vunpack.c.h.b16 %v4131
    %v4209 = vunpack.c.l.b16 %v4132
    %v4210 = vunpack.c.h.b16 %v4132
    %v4211 = vunpack.c.l.b16 %v4133
    %v4212 = vunpack.c.h.b16 %v4133
    %v4213 = vunpack.c.l.b16 %v4134
    %v4214 = vunpack.c.h.b16 %v4134
    %v4215 = vunpack.c.l.b16 %v4135
    %v4216 = vunpack.c.h.b16 %v4135
    %v4217 = vunpack.c.l.b16 %v4136
    %v4218 = vunpack.c.h.b16 %v4136
    %v4219 = vunpack.c.l.b16 %v4137
    %v4220 = vunpack.c.h.b16 %v4137
    %v4221 = vunpack.c.l.b16 %v4138
    %v4222 = vunpack.c.h.b16 %v4138
    %v4223 = vunpack.c.l.b16 %v4139
    %v4224 = vunpack.c.h.b16 %v4139
    %v4225 = vunpack.c.l.b16 %v4140
    %v4226 = vunpack.c.h.b16 %v4140
    %v4227 = vunpack.c.l.b16 %v4141
    %v4228 = vunpack.c.h.b16 %v4141
    %v4229 = vunpack.c.l.b16 %v4142
    %v4230 = vunpack.c.h.b16 %v4142
    %v4231 = vunpack.c.l.b16 %v4143
    %v4232 = vunpack.c.h.b16 %v4143
    %v4233 = vunpack.c.l.b16 %v4144
    %v4234 = vunpack.c.h.b16 %v4144
    %v4235 = vunpack.c.l.b16 %v4145
    %v4236 = vunpack.c.h.b16 %v4145
    %v4237 = vunpack.c.l.b16 %v4146
    %v4238 = vunpack.c.h.b16 %v4146
    %v4239 = vunpack.c.l.b16 %v4147
    %v4240 = vunpack.c.h.b16 %v4147
    %v4241 = vunpack.c.l.b16 %v4148
    %v4242 = vunpack.c.h.b16 %v4148
    %v4243 = vunpack.c.l.b16 %v4149
    %v4244 = vunpack.c.h.b16 %v4149
    %v4245 = vunpack.c.l.b16 %v4150
    %v4246 = vunpack.c.h.b16 %v4150
    %v4247 = vpack.c.b16 %v4187, %v4183
    %v4248 = vpack.c.b16 %v4188, %v4184
    %v4249 = vpack.c.b16 %v4189, %v4185
    %v4250 = vpack.c.b16 %v4190, %v4186
    %v4251 = vpack.c.b16 %v4195, %v4191
    %v4252 = vpack.c.b16 %v4196, %v4192
    %v4253 = vpack.c.b16 %v4197, %v4193
    %v4254 = vpack.c.b16 %v4198, %v4194
    %v4255 = vpack.c.b16 %v4203, %v4199
    %v4256 = vpack.c.b16 %v4204, %v4200
    %v4257 = vpack.c.b16 %v4205, %v4201
    %v4258 = vpack.c.b16 %v4206, %v4202
    %v4259 = vpack.c.b16 %v4211, %v4207
    %v4260 = vpack.c.b16 %v4212, %v4208
    %v4261 = vpack.c.b16 %v4213, %v4209
    %v4262 = vpack.c.b16 %v4214, %v4210
    %v4263 = vpack.c.b16 %v4219, %v4215
    %v4264 = vpack.c.b16 %v4220, %v4216
    %v4265 = vpack.c.b16 %v4221, %v4217
    %v4266 = vpack.c.b16 %v4222, %v4218
    %v4267 = vpack.c.b16 %v4227, %v4223
    %v4268 = vpack.c.b16 %v4228, %v4224
    %v4269 = vpack.c.b16 %v4229, %v4225
    %v4270 = vpack.c.b16 %v4230, %v4226
    %v4271 = vpack.c.b16 %v4235, %v4231
    %v4272 = vpack.c.b16 %v4236, %v4232
    %v4273 = vpack.c.b16 %v4237, %v4233
    %v4274 = vpack.c.b16 %v4238, %v4234
    %v4275 = vpack.c.b16 %v4243, %v4239
    %v4276 = vpack.c.b16 %v4244, %v4240
    %v4277 = vpack.c.b16 %v4245, %v4241
    %v4278 = vpack.c.b16 %v4246, %v4242
    %4311 = vmatpush.bf16.msra.mxu0 %v4275
    %4312 = vmatpush.bf16.msra.mxu0 %v4271
    %4313 = vmatpush.bf16.msra.mxu0 %v4267
    %4314 = vmatpush.bf16.msra.mxu0 %v4263
    %4315 = vmatpush.bf16.msra.mxu0 %v4259
    %4316 = vmatpush.bf16.msra.mxu0 %v4255
    %4317 = vmatpush.bf16.msra.mxu0 %v4251
    %4318 = vmatpush.bf16.msra.mxu0 %v4247
    %4319 = vmatmul.bf16.gmra.mxu0 %v4118
    %v4320 = vpop.f32.mrf.mxu0
    %v4321 = vadd.f32 0.0, %v4320
    %v4322 = vpop.f32.mrf.mxu0
    %4323 = vdwg.mxu0
    %4324 = vmatpush.bf16.msra.mxu0 %v4276
    %4325 = vmatpush.bf16.msra.mxu0 %v4272
    %4326 = vmatpush.bf16.msra.mxu0 %v4268
    %4327 = vmatpush.bf16.msra.mxu0 %v4264
    %4328 = vmatpush.bf16.msra.mxu0 %v4260
    %4329 = vmatpush.bf16.msra.mxu0 %v4256
    %4330 = vmatpush.bf16.msra.mxu0 %v4252
    %4331 = vmatpush.bf16.msra.mxu0 %v4248
    %4332 = vmatmul.bf16.gmra.mxu0 %v4118
    %v4333 = vpop.f32.mrf.mxu0
    %v4334 = vadd.f32 0.0, %v4333
    %v4335 = vpop.f32.mrf.mxu0
    %4336 = vdwg.mxu0
    %4337 = vmatpush.bf16.msra.mxu0 %v4277
    %4338 = vmatpush.bf16.msra.mxu0 %v4273
    %4339 = vmatpush.bf16.msra.mxu0 %v4269
    %4340 = vmatpush.bf16.msra.mxu0 %v4265
    %4341 = vmatpush.bf16.msra.mxu0 %v4261
    %4342 = vmatpush.bf16.msra.mxu0 %v4257
    %4343 = vmatpush.bf16.msra.mxu0 %v4253
    %4344 = vmatpush.bf16.msra.mxu0 %v4249
    %4345 = vmatmul.bf16.gmra.mxu0 %v4118
    %v4346 = vpop.f32.mrf.mxu0
    %v4347 = vadd.f32 0.0, %v4346
    %v4348 = vpop.f32.mrf.mxu0
    %4349 = vdwg.mxu0
    %4350 = vmatpush.bf16.msra.mxu0 %v4278
    %4351 = vmatpush.bf16.msra.mxu0 %v4274
    %4352 = vmatpush.bf16.msra.mxu0 %v4270
    %4353 = vmatpush.bf16.msra.mxu0 %v4266
    %4354 = vmatpush.bf16.msra.mxu0 %v4262
    %4355 = vmatpush.bf16.msra.mxu0 %v4258
    %4356 = vmatpush.bf16.msra.mxu0 %v4254
    %4357 = vmatpush.bf16.msra.mxu0 %v4250
    %4358 = vmatmul.bf16.gmra.mxu0 %v4118
    %v4359 = vpop.f32.mrf.mxu0
    %v4360 = vadd.f32 0.0, %v4359
    %v4361 = vpop.f32.mrf.mxu0
    %4362 = vdwg.mxu0
    %v4363 = vadd.f32 %v4114, %v4321
    %v4364 = vadd.f32 %v4115, %v4334
    %v4365 = vadd.f32 %v4116, %v4347
    %v4366 = vadd.f32 %v4117, %v4360
    %v4367 = vxor.u32 %v4363, 2147483648
    %v4368 = vmul.f32 %v4367, 1.442695
    %v4369 = vpow.pop %v4368
    %v4370 = vadd.f32 %v4369, 1.0
    %v4371 = vrcp.pop %v4370
    %v4372 = vmul.f32 %v4370, %v4371
    %v4373 = vsub.f32 1.0, %v4372
    %v4374 = vmul.f32 %v4371, %v4373
    %v4375 = vadd.f32 %v4371, %v4374
    %vm4376 = vweird.f32 %v4370
    %vm4377 = vweird.f32 %v4371
    %vm4378 = vmor %vm4376, %vm4377
    %v4379 = vsel %vm4378, %v4371, %v4375
    %v4380 = vand.u32 2147483647, %v4370
    %vm4381 = vcmp.eq.f32.partialorder %v4380, 8.507059e+37
    %v4382 = vand.u32 %v4370, 2147483648
    %v4383 = vor.u32 1.1754944e-38, %v4382
    %v4384 = vsel %vm4381, %v4383, %v4379
    %v4385 = vmul.f32 1.0, %v4384
    %v4386 = vxor.u32 %v4364, 2147483648
    %v4387 = vmul.f32 %v4386, 1.442695
    %v4388 = vpow.pop %v4387
    %v4389 = vadd.f32 %v4388, 1.0
    %v4390 = vrcp.pop %v4389
    %v4391 = vmul.f32 %v4389, %v4390
    %v4392 = vsub.f32 1.0, %v4391
    %v4393 = vmul.f32 %v4390, %v4392
    %v4394 = vadd.f32 %v4390, %v4393
    %vm4395 = vweird.f32 %v4389
    %vm4396 = vweird.f32 %v4390
    %vm4397 = vmor %vm4395, %vm4396
    %v4398 = vsel %vm4397, %v4390, %v4394
    %v4399 = vand.u32 2147483647, %v4389
    %vm4400 = vcmp.eq.f32.partialorder %v4399, 8.507059e+37
    %v4401 = vand.u32 %v4389, 2147483648
    %v4402 = vor.u32 1.1754944e-38, %v4401
    %v4403 = vsel %vm4400, %v4402, %v4398
    %v4404 = vmul.f32 1.0, %v4403
    %v4405 = vtanh.pop %v4365
    %v4406 = vxor.u32 %v4366, 2147483648
    %v4407 = vmul.f32 %v4406, 1.442695
    %v4408 = vpow.pop %v4407
    %v4409 = vadd.f32 %v4408, 1.0
    %v4410 = vrcp.pop %v4409
    %v4411 = vmul.f32 %v4409, %v4410
    %v4412 = vsub.f32 1.0, %v4411
    %v4413 = vmul.f32 %v4410, %v4412
    %v4414 = vadd.f32 %v4410, %v4413
    %vm4415 = vweird.f32 %v4409
    %vm4416 = vweird.f32 %v4410
    %vm4417 = vmor %vm4415, %vm4416
    %v4418 = vsel %vm4417, %v4410, %v4414
    %v4419 = vand.u32 2147483647, %v4409
    %vm4420 = vcmp.eq.f32.partialorder %v4419, 8.507059e+37
    %v4421 = vand.u32 %v4409, 2147483648
    %v4422 = vor.u32 1.1754944e-38, %v4421
    %v4423 = vsel %vm4420, %v4422, %v4418
    %v4424 = vmul.f32 1.0, %v4423
    %v4425 = vmul.f32 %v4404, %v4110
    %v4426 = vmul.f32 %v4385, %v4405
    %v4427 = vadd.f32 %v4425, %v4426
    %v4428 = vtanh.pop %v4427
    %v4429 = vmul.f32 %v4424, %v4428
    %s4430 = scalar_lea.vmem [#allocation15], 8
    %4431 = vst [vmem:[%s4430] sm:$0xff] %v4429
    %v4432 = vld [vmem:[%s1169] sm:$0xff]
    %v4433 = vld [vmem:[%s1169 + $0x8] sm:$0xff]
    %v4434 = vld [vmem:[%s1169 + $0x10] sm:$0xff]
    %v4435 = vld [vmem:[%s1169 + $0x18] sm:$0xff]
    %v4436 = vpack.c.bf16 %v4429, %v4429
    %v4437 = vld [vmem:[#allocation13] sm:$0xff]
    %v4438 = vld [vmem:[#allocation13 + $0x8] sm:$0xff]
    %v4439 = vld [vmem:[#allocation13 + $0x10] sm:$0xff]
    %v4440 = vld [vmem:[#allocation13 + $0x18] sm:$0xff]
    %v4441 = vld [vmem:[#allocation13 + $0x20] sm:$0xff]
    %v4442 = vld [vmem:[#allocation13 + $0x28] sm:$0xff]
    %v4443 = vld [vmem:[#allocation13 + $0x30] sm:$0xff]
    %v4444 = vld [vmem:[#allocation13 + $0x38] sm:$0xff]
    %v4445 = vld [vmem:[#allocation13 + $0x40] sm:$0xff]
    %v4446 = vld [vmem:[#allocation13 + $0x48] sm:$0xff]
    %v4447 = vld [vmem:[#allocation13 + $0x50] sm:$0xff]
    %v4448 = vld [vmem:[#allocation13 + $0x58] sm:$0xff]
    %v4449 = vld [vmem:[#allocation13 + $0x60] sm:$0xff]
    %v4450 = vld [vmem:[#allocation13 + $0x68] sm:$0xff]
    %v4451 = vld [vmem:[#allocation13 + $0x70] sm:$0xff]
    %v4452 = vld [vmem:[#allocation13 + $0x78] sm:$0xff]
    %v4453 = vld [vmem:[#allocation13 + $0x80] sm:$0xff]
    %v4454 = vld [vmem:[#allocation13 + $0x88] sm:$0xff]
    %v4455 = vld [vmem:[#allocation13 + $0x90] sm:$0xff]
    %v4456 = vld [vmem:[#allocation13 + $0x98] sm:$0xff]
    %v4457 = vld [vmem:[#allocation13 + $0xa0] sm:$0xff]
    %v4458 = vld [vmem:[#allocation13 + $0xa8] sm:$0xff]
    %v4459 = vld [vmem:[#allocation13 + $0xb0] sm:$0xff]
    %v4460 = vld [vmem:[#allocation13 + $0xb8] sm:$0xff]
    %v4461 = vld [vmem:[#allocation13 + $0xc0] sm:$0xff]
    %v4462 = vld [vmem:[#allocation13 + $0xc8] sm:$0xff]
    %v4463 = vld [vmem:[#allocation13 + $0xd0] sm:$0xff]
    %v4464 = vld [vmem:[#allocation13 + $0xd8] sm:$0xff]
    %v4465 = vld [vmem:[#allocation13 + $0xe0] sm:$0xff]
    %v4466 = vld [vmem:[#allocation13 + $0xe8] sm:$0xff]
    %v4467 = vld [vmem:[#allocation13 + $0xf0] sm:$0xff]
    %v4468 = vld [vmem:[#allocation13 + $0xf8] sm:$0xff]
    %v4501 = vunpack.c.l.b16 %v4437
    %v4502 = vunpack.c.h.b16 %v4437
    %v4503 = vunpack.c.l.b16 %v4438
    %v4504 = vunpack.c.h.b16 %v4438
    %v4505 = vunpack.c.l.b16 %v4439
    %v4506 = vunpack.c.h.b16 %v4439
    %v4507 = vunpack.c.l.b16 %v4440
    %v4508 = vunpack.c.h.b16 %v4440
    %v4509 = vunpack.c.l.b16 %v4441
    %v4510 = vunpack.c.h.b16 %v4441
    %v4511 = vunpack.c.l.b16 %v4442
    %v4512 = vunpack.c.h.b16 %v4442
    %v4513 = vunpack.c.l.b16 %v4443
    %v4514 = vunpack.c.h.b16 %v4443
    %v4515 = vunpack.c.l.b16 %v4444
    %v4516 = vunpack.c.h.b16 %v4444
    %v4517 = vunpack.c.l.b16 %v4445
    %v4518 = vunpack.c.h.b16 %v4445
    %v4519 = vunpack.c.l.b16 %v4446
    %v4520 = vunpack.c.h.b16 %v4446
    %v4521 = vunpack.c.l.b16 %v4447
    %v4522 = vunpack.c.h.b16 %v4447
    %v4523 = vunpack.c.l.b16 %v4448
    %v4524 = vunpack.c.h.b16 %v4448
    %v4525 = vunpack.c.l.b16 %v4449
    %v4526 = vunpack.c.h.b16 %v4449
    %v4527 = vunpack.c.l.b16 %v4450
    %v4528 = vunpack.c.h.b16 %v4450
    %v4529 = vunpack.c.l.b16 %v4451
    %v4530 = vunpack.c.h.b16 %v4451
    %v4531 = vunpack.c.l.b16 %v4452
    %v4532 = vunpack.c.h.b16 %v4452
    %v4533 = vunpack.c.l.b16 %v4453
    %v4534 = vunpack.c.h.b16 %v4453
    %v4535 = vunpack.c.l.b16 %v4454
    %v4536 = vunpack.c.h.b16 %v4454
    %v4537 = vunpack.c.l.b16 %v4455
    %v4538 = vunpack.c.h.b16 %v4455
    %v4539 = vunpack.c.l.b16 %v4456
    %v4540 = vunpack.c.h.b16 %v4456
    %v4541 = vunpack.c.l.b16 %v4457
    %v4542 = vunpack.c.h.b16 %v4457
    %v4543 = vunpack.c.l.b16 %v4458
    %v4544 = vunpack.c.h.b16 %v4458
    %v4545 = vunpack.c.l.b16 %v4459
    %v4546 = vunpack.c.h.b16 %v4459
    %v4547 = vunpack.c.l.b16 %v4460
    %v4548 = vunpack.c.h.b16 %v4460
    %v4549 = vunpack.c.l.b16 %v4461
    %v4550 = vunpack.c.h.b16 %v4461
    %v4551 = vunpack.c.l.b16 %v4462
    %v4552 = vunpack.c.h.b16 %v4462
    %v4553 = vunpack.c.l.b16 %v4463
    %v4554 = vunpack.c.h.b16 %v4463
    %v4555 = vunpack.c.l.b16 %v4464
    %v4556 = vunpack.c.h.b16 %v4464
    %v4557 = vunpack.c.l.b16 %v4465
    %v4558 = vunpack.c.h.b16 %v4465
    %v4559 = vunpack.c.l.b16 %v4466
    %v4560 = vunpack.c.h.b16 %v4466
    %v4561 = vunpack.c.l.b16 %v4467
    %v4562 = vunpack.c.h.b16 %v4467
    %v4563 = vunpack.c.l.b16 %v4468
    %v4564 = vunpack.c.h.b16 %v4468
    %v4565 = vpack.c.b16 %v4505, %v4501
    %v4566 = vpack.c.b16 %v4506, %v4502
    %v4567 = vpack.c.b16 %v4507, %v4503
    %v4568 = vpack.c.b16 %v4508, %v4504
    %v4569 = vpack.c.b16 %v4513, %v4509
    %v4570 = vpack.c.b16 %v4514, %v4510
    %v4571 = vpack.c.b16 %v4515, %v4511
    %v4572 = vpack.c.b16 %v4516, %v4512
    %v4573 = vpack.c.b16 %v4521, %v4517
    %v4574 = vpack.c.b16 %v4522, %v4518
    %v4575 = vpack.c.b16 %v4523, %v4519
    %v4576 = vpack.c.b16 %v4524, %v4520
    %v4577 = vpack.c.b16 %v4529, %v4525
    %v4578 = vpack.c.b16 %v4530, %v4526
    %v4579 = vpack.c.b16 %v4531, %v4527
    %v4580 = vpack.c.b16 %v4532, %v4528
    %v4581 = vpack.c.b16 %v4537, %v4533
    %v4582 = vpack.c.b16 %v4538, %v4534
    %v4583 = vpack.c.b16 %v4539, %v4535
    %v4584 = vpack.c.b16 %v4540, %v4536
    %v4585 = vpack.c.b16 %v4545, %v4541
    %v4586 = vpack.c.b16 %v4546, %v4542
    %v4587 = vpack.c.b16 %v4547, %v4543
    %v4588 = vpack.c.b16 %v4548, %v4544
    %v4589 = vpack.c.b16 %v4553, %v4549
    %v4590 = vpack.c.b16 %v4554, %v4550
    %v4591 = vpack.c.b16 %v4555, %v4551
    %v4592 = vpack.c.b16 %v4556, %v4552
    %v4593 = vpack.c.b16 %v4561, %v4557
    %v4594 = vpack.c.b16 %v4562, %v4558
    %v4595 = vpack.c.b16 %v4563, %v4559
    %v4596 = vpack.c.b16 %v4564, %v4560
    %4629 = vmatpush.bf16.msra.mxu0 %v4593
    %4630 = vmatpush.bf16.msra.mxu0 %v4589
    %4631 = vmatpush.bf16.msra.mxu0 %v4585
    %4632 = vmatpush.bf16.msra.mxu0 %v4581
    %4633 = vmatpush.bf16.msra.mxu0 %v4577
    %4634 = vmatpush.bf16.msra.mxu0 %v4573
    %4635 = vmatpush.bf16.msra.mxu0 %v4569
    %4636 = vmatpush.bf16.msra.mxu0 %v4565
    %4637 = vmatmul.bf16.gmra.mxu0 %v4436
    %v4638 = vpop.f32.mrf.mxu0
    %v4639 = vadd.f32 0.0, %v4638
    %v4640 = vpop.f32.mrf.mxu0
    %4641 = vdwg.mxu0
    %4642 = vmatpush.bf16.msra.mxu0 %v4594
    %4643 = vmatpush.bf16.msra.mxu0 %v4590
    %4644 = vmatpush.bf16.msra.mxu0 %v4586
    %4645 = vmatpush.bf16.msra.mxu0 %v4582
    %4646 = vmatpush.bf16.msra.mxu0 %v4578
    %4647 = vmatpush.bf16.msra.mxu0 %v4574
    %4648 = vmatpush.bf16.msra.mxu0 %v4570
    %4649 = vmatpush.bf16.msra.mxu0 %v4566
    %4650 = vmatmul.bf16.gmra.mxu0 %v4436
    %v4651 = vpop.f32.mrf.mxu0
    %v4652 = vadd.f32 0.0, %v4651
    %v4653 = vpop.f32.mrf.mxu0
    %4654 = vdwg.mxu0
    %4655 = vmatpush.bf16.msra.mxu0 %v4595
    %4656 = vmatpush.bf16.msra.mxu0 %v4591
    %4657 = vmatpush.bf16.msra.mxu0 %v4587
    %4658 = vmatpush.bf16.msra.mxu0 %v4583
    %4659 = vmatpush.bf16.msra.mxu0 %v4579
    %4660 = vmatpush.bf16.msra.mxu0 %v4575
    %4661 = vmatpush.bf16.msra.mxu0 %v4571
    %4662 = vmatpush.bf16.msra.mxu0 %v4567
    %4663 = vmatmul.bf16.gmra.mxu0 %v4436
    %v4664 = vpop.f32.mrf.mxu0
    %v4665 = vadd.f32 0.0, %v4664
    %v4666 = vpop.f32.mrf.mxu0
    %4667 = vdwg.mxu0
    %4668 = vmatpush.bf16.msra.mxu0 %v4596
    %4669 = vmatpush.bf16.msra.mxu0 %v4592
    %4670 = vmatpush.bf16.msra.mxu0 %v4588
    %4671 = vmatpush.bf16.msra.mxu0 %v4584
    %4672 = vmatpush.bf16.msra.mxu0 %v4580
    %4673 = vmatpush.bf16.msra.mxu0 %v4576
    %4674 = vmatpush.bf16.msra.mxu0 %v4572
    %4675 = vmatpush.bf16.msra.mxu0 %v4568
    %4676 = vmatmul.bf16.gmra.mxu0 %v4436
    %v4677 = vpop.f32.mrf.mxu0
    %v4678 = vadd.f32 0.0, %v4677
    %v4679 = vpop.f32.mrf.mxu0
    %4680 = vdwg.mxu0
    %v4681 = vadd.f32 %v4432, %v4639
    %v4682 = vadd.f32 %v4433, %v4652
    %v4683 = vadd.f32 %v4434, %v4665
    %v4684 = vadd.f32 %v4435, %v4678
    %v4685 = vxor.u32 %v4681, 2147483648
    %v4686 = vmul.f32 %v4685, 1.442695
    %v4687 = vpow.pop %v4686
    %v4688 = vadd.f32 %v4687, 1.0
    %v4689 = vrcp.pop %v4688
    %v4690 = vmul.f32 %v4688, %v4689
    %v4691 = vsub.f32 1.0, %v4690
    %v4692 = vmul.f32 %v4689, %v4691
    %v4693 = vadd.f32 %v4689, %v4692
    %vm4694 = vweird.f32 %v4688
    %vm4695 = vweird.f32 %v4689
    %vm4696 = vmor %vm4694, %vm4695
    %v4697 = vsel %vm4696, %v4689, %v4693
    %v4698 = vand.u32 2147483647, %v4688
    %vm4699 = vcmp.eq.f32.partialorder %v4698, 8.507059e+37
    %v4700 = vand.u32 %v4688, 2147483648
    %v4701 = vor.u32 1.1754944e-38, %v4700
    %v4702 = vsel %vm4699, %v4701, %v4697
    %v4703 = vmul.f32 1.0, %v4702
    %v4704 = vxor.u32 %v4682, 2147483648
    %v4705 = vmul.f32 %v4704, 1.442695
    %v4706 = vpow.pop %v4705
    %v4707 = vadd.f32 %v4706, 1.0
    %v4708 = vrcp.pop %v4707
    %v4709 = vmul.f32 %v4707, %v4708
    %v4710 = vsub.f32 1.0, %v4709
    %v4711 = vmul.f32 %v4708, %v4710
    %v4712 = vadd.f32 %v4708, %v4711
    %vm4713 = vweird.f32 %v4707
    %vm4714 = vweird.f32 %v4708
    %vm4715 = vmor %vm4713, %vm4714
    %v4716 = vsel %vm4715, %v4708, %v4712
    %v4717 = vand.u32 2147483647, %v4707
    %vm4718 = vcmp.eq.f32.partialorder %v4717, 8.507059e+37
    %v4719 = vand.u32 %v4707, 2147483648
    %v4720 = vor.u32 1.1754944e-38, %v4719
    %v4721 = vsel %vm4718, %v4720, %v4716
    %v4722 = vmul.f32 1.0, %v4721
    %v4723 = vtanh.pop %v4683
    %v4724 = vxor.u32 %v4684, 2147483648
    %v4725 = vmul.f32 %v4724, 1.442695
    %v4726 = vpow.pop %v4725
    %v4727 = vadd.f32 %v4726, 1.0
    %v4728 = vrcp.pop %v4727
    %v4729 = vmul.f32 %v4727, %v4728
    %v4730 = vsub.f32 1.0, %v4729
    %v4731 = vmul.f32 %v4728, %v4730
    %v4732 = vadd.f32 %v4728, %v4731
    %vm4733 = vweird.f32 %v4727
    %vm4734 = vweird.f32 %v4728
    %vm4735 = vmor %vm4733, %vm4734
    %v4736 = vsel %vm4735, %v4728, %v4732
    %v4737 = vand.u32 2147483647, %v4727
    %vm4738 = vcmp.eq.f32.partialorder %v4737, 8.507059e+37
    %v4739 = vand.u32 %v4727, 2147483648
    %v4740 = vor.u32 1.1754944e-38, %v4739
    %v4741 = vsel %vm4738, %v4740, %v4736
    %v4742 = vmul.f32 1.0, %v4741
    %v4743 = vmul.f32 %v4722, %v4427
    %v4744 = vmul.f32 %v4703, %v4723
    %v4745 = vadd.f32 %v4743, %v4744
    %v4746 = vtanh.pop %v4745
    %v4747 = vmul.f32 %v4742, %v4746
    %s4748 = scalar_lea.vmem [#allocation15], 16
    %4749 = vst [vmem:[%s4748] sm:$0xff] %v4747
    %v4750 = vld [vmem:[%s1490] sm:$0xff]
    %v4751 = vld [vmem:[%s1490 + $0x8] sm:$0xff]
    %v4752 = vld [vmem:[%s1490 + $0x10] sm:$0xff]
    %v4753 = vld [vmem:[%s1490 + $0x18] sm:$0xff]
    %v4754 = vpack.c.bf16 %v4747, %v4747
    %v4755 = vld [vmem:[#allocation13] sm:$0xff]
    %v4756 = vld [vmem:[#allocation13 + $0x8] sm:$0xff]
    %v4757 = vld [vmem:[#allocation13 + $0x10] sm:$0xff]
    %v4758 = vld [vmem:[#allocation13 + $0x18] sm:$0xff]
    %v4759 = vld [vmem:[#allocation13 + $0x20] sm:$0xff]
    %v4760 = vld [vmem:[#allocation13 + $0x28] sm:$0xff]
    %v4761 = vld [vmem:[#allocation13 + $0x30] sm:$0xff]
    %v4762 = vld [vmem:[#allocation13 + $0x38] sm:$0xff]
    %v4763 = vld [vmem:[#allocation13 + $0x40] sm:$0xff]
    %v4764 = vld [vmem:[#allocation13 + $0x48] sm:$0xff]
    %v4765 = vld [vmem:[#allocation13 + $0x50] sm:$0xff]
    %v4766 = vld [vmem:[#allocation13 + $0x58] sm:$0xff]
    %v4767 = vld [vmem:[#allocation13 + $0x60] sm:$0xff]
    %v4768 = vld [vmem:[#allocation13 + $0x68] sm:$0xff]
    %v4769 = vld [vmem:[#allocation13 + $0x70] sm:$0xff]
    %v4770 = vld [vmem:[#allocation13 + $0x78] sm:$0xff]
    %v4771 = vld [vmem:[#allocation13 + $0x80] sm:$0xff]
    %v4772 = vld [vmem:[#allocation13 + $0x88] sm:$0xff]
    %v4773 = vld [vmem:[#allocation13 + $0x90] sm:$0xff]
    %v4774 = vld [vmem:[#allocation13 + $0x98] sm:$0xff]
    %v4775 = vld [vmem:[#allocation13 + $0xa0] sm:$0xff]
    %v4776 = vld [vmem:[#allocation13 + $0xa8] sm:$0xff]
    %v4777 = vld [vmem:[#allocation13 + $0xb0] sm:$0xff]
    %v4778 = vld [vmem:[#allocation13 + $0xb8] sm:$0xff]
    %v4779 = vld [vmem:[#allocation13 + $0xc0] sm:$0xff]
    %v4780 = vld [vmem:[#allocation13 + $0xc8] sm:$0xff]
    %v4781 = vld [vmem:[#allocation13 + $0xd0] sm:$0xff]
    %v4782 = vld [vmem:[#allocation13 + $0xd8] sm:$0xff]
    %v4783 = vld [vmem:[#allocation13 + $0xe0] sm:$0xff]
    %v4784 = vld [vmem:[#allocation13 + $0xe8] sm:$0xff]
    %v4785 = vld [vmem:[#allocation13 + $0xf0] sm:$0xff]
    %v4786 = vld [vmem:[#allocation13 + $0xf8] sm:$0xff]
    %v4819 = vunpack.c.l.b16 %v4755
    %v4820 = vunpack.c.h.b16 %v4755
    %v4821 = vunpack.c.l.b16 %v4756
    %v4822 = vunpack.c.h.b16 %v4756
    %v4823 = vunpack.c.l.b16 %v4757
    %v4824 = vunpack.c.h.b16 %v4757
    %v4825 = vunpack.c.l.b16 %v4758
    %v4826 = vunpack.c.h.b16 %v4758
    %v4827 = vunpack.c.l.b16 %v4759
    %v4828 = vunpack.c.h.b16 %v4759
    %v4829 = vunpack.c.l.b16 %v4760
    %v4830 = vunpack.c.h.b16 %v4760
    %v4831 = vunpack.c.l.b16 %v4761
    %v4832 = vunpack.c.h.b16 %v4761
    %v4833 = vunpack.c.l.b16 %v4762
    %v4834 = vunpack.c.h.b16 %v4762
    %v4835 = vunpack.c.l.b16 %v4763
    %v4836 = vunpack.c.h.b16 %v4763
    %v4837 = vunpack.c.l.b16 %v4764
    %v4838 = vunpack.c.h.b16 %v4764
    %v4839 = vunpack.c.l.b16 %v4765
    %v4840 = vunpack.c.h.b16 %v4765
    %v4841 = vunpack.c.l.b16 %v4766
    %v4842 = vunpack.c.h.b16 %v4766
    %v4843 = vunpack.c.l.b16 %v4767
    %v4844 = vunpack.c.h.b16 %v4767
    %v4845 = vunpack.c.l.b16 %v4768
    %v4846 = vunpack.c.h.b16 %v4768
    %v4847 = vunpack.c.l.b16 %v4769
    %v4848 = vunpack.c.h.b16 %v4769
    %v4849 = vunpack.c.l.b16 %v4770
    %v4850 = vunpack.c.h.b16 %v4770
    %v4851 = vunpack.c.l.b16 %v4771
    %v4852 = vunpack.c.h.b16 %v4771
    %v4853 = vunpack.c.l.b16 %v4772
    %v4854 = vunpack.c.h.b16 %v4772
    %v4855 = vunpack.c.l.b16 %v4773
    %v4856 = vunpack.c.h.b16 %v4773
    %v4857 = vunpack.c.l.b16 %v4774
    %v4858 = vunpack.c.h.b16 %v4774
    %v4859 = vunpack.c.l.b16 %v4775
    %v4860 = vunpack.c.h.b16 %v4775
    %v4861 = vunpack.c.l.b16 %v4776
    %v4862 = vunpack.c.h.b16 %v4776
    %v4863 = vunpack.c.l.b16 %v4777
    %v4864 = vunpack.c.h.b16 %v4777
    %v4865 = vunpack.c.l.b16 %v4778
    %v4866 = vunpack.c.h.b16 %v4778
    %v4867 = vunpack.c.l.b16 %v4779
    %v4868 = vunpack.c.h.b16 %v4779
    %v4869 = vunpack.c.l.b16 %v4780
    %v4870 = vunpack.c.h.b16 %v4780
    %v4871 = vunpack.c.l.b16 %v4781
    %v4872 = vunpack.c.h.b16 %v4781
    %v4873 = vunpack.c.l.b16 %v4782
    %v4874 = vunpack.c.h.b16 %v4782
    %v4875 = vunpack.c.l.b16 %v4783
    %v4876 = vunpack.c.h.b16 %v4783
    %v4877 = vunpack.c.l.b16 %v4784
    %v4878 = vunpack.c.h.b16 %v4784
    %v4879 = vunpack.c.l.b16 %v4785
    %v4880 = vunpack.c.h.b16 %v4785
    %v4881 = vunpack.c.l.b16 %v4786
    %v4882 = vunpack.c.h.b16 %v4786
    %v4883 = vpack.c.b16 %v4823, %v4819
    %v4884 = vpack.c.b16 %v4824, %v4820
    %v4885 = vpack.c.b16 %v4825, %v4821
    %v4886 = vpack.c.b16 %v4826, %v4822
    %v4887 = vpack.c.b16 %v4831, %v4827
    %v4888 = vpack.c.b16 %v4832, %v4828
    %v4889 = vpack.c.b16 %v4833, %v4829
    %v4890 = vpack.c.b16 %v4834, %v4830
    %v4891 = vpack.c.b16 %v4839, %v4835
    %v4892 = vpack.c.b16 %v4840, %v4836
    %v4893 = vpack.c.b16 %v4841, %v4837
    %v4894 = vpack.c.b16 %v4842, %v4838
    %v4895 = vpack.c.b16 %v4847, %v4843
    %v4896 = vpack.c.b16 %v4848, %v4844
    %v4897 = vpack.c.b16 %v4849, %v4845
    %v4898 = vpack.c.b16 %v4850, %v4846
    %v4899 = vpack.c.b16 %v4855, %v4851
    %v4900 = vpack.c.b16 %v4856, %v4852
    %v4901 = vpack.c.b16 %v4857, %v4853
    %v4902 = vpack.c.b16 %v4858, %v4854
    %v4903 = vpack.c.b16 %v4863, %v4859
    %v4904 = vpack.c.b16 %v4864, %v4860
    %v4905 = vpack.c.b16 %v4865, %v4861
    %v4906 = vpack.c.b16 %v4866, %v4862
    %v4907 = vpack.c.b16 %v4871, %v4867
    %v4908 = vpack.c.b16 %v4872, %v4868
    %v4909 = vpack.c.b16 %v4873, %v4869
    %v4910 = vpack.c.b16 %v4874, %v4870
    %v4911 = vpack.c.b16 %v4879, %v4875
    %v4912 = vpack.c.b16 %v4880, %v4876
    %v4913 = vpack.c.b16 %v4881, %v4877
    %v4914 = vpack.c.b16 %v4882, %v4878
    %4947 = vmatpush.bf16.msra.mxu0 %v4911
    %4948 = vmatpush.bf16.msra.mxu0 %v4907
    %4949 = vmatpush.bf16.msra.mxu0 %v4903
    %4950 = vmatpush.bf16.msra.mxu0 %v4899
    %4951 = vmatpush.bf16.msra.mxu0 %v4895
    %4952 = vmatpush.bf16.msra.mxu0 %v4891
    %4953 = vmatpush.bf16.msra.mxu0 %v4887
    %4954 = vmatpush.bf16.msra.mxu0 %v4883
    %4955 = vmatmul.bf16.gmra.mxu0 %v4754
    %v4956 = vpop.f32.mrf.mxu0
    %v4957 = vadd.f32 0.0, %v4956
    %v4958 = vpop.f32.mrf.mxu0
    %4959 = vdwg.mxu0
    %4960 = vmatpush.bf16.msra.mxu0 %v4912
    %4961 = vmatpush.bf16.msra.mxu0 %v4908
    %4962 = vmatpush.bf16.msra.mxu0 %v4904
    %4963 = vmatpush.bf16.msra.mxu0 %v4900
    %4964 = vmatpush.bf16.msra.mxu0 %v4896
    %4965 = vmatpush.bf16.msra.mxu0 %v4892
    %4966 = vmatpush.bf16.msra.mxu0 %v4888
    %4967 = vmatpush.bf16.msra.mxu0 %v4884
    %4968 = vmatmul.bf16.gmra.mxu0 %v4754
    %v4969 = vpop.f32.mrf.mxu0
    %v4970 = vadd.f32 0.0, %v4969
    %v4971 = vpop.f32.mrf.mxu0
    %4972 = vdwg.mxu0
    %4973 = vmatpush.bf16.msra.mxu0 %v4913
    %4974 = vmatpush.bf16.msra.mxu0 %v4909
    %4975 = vmatpush.bf16.msra.mxu0 %v4905
    %4976 = vmatpush.bf16.msra.mxu0 %v4901
    %4977 = vmatpush.bf16.msra.mxu0 %v4897
    %4978 = vmatpush.bf16.msra.mxu0 %v4893
    %4979 = vmatpush.bf16.msra.mxu0 %v4889
    %4980 = vmatpush.bf16.msra.mxu0 %v4885
    %4981 = vmatmul.bf16.gmra.mxu0 %v4754
    %v4982 = vpop.f32.mrf.mxu0
    %v4983 = vadd.f32 0.0, %v4982
    %v4984 = vpop.f32.mrf.mxu0
    %4985 = vdwg.mxu0
    %4986 = vmatpush.bf16.msra.mxu0 %v4914
    %4987 = vmatpush.bf16.msra.mxu0 %v4910
    %4988 = vmatpush.bf16.msra.mxu0 %v4906
    %4989 = vmatpush.bf16.msra.mxu0 %v4902
    %4990 = vmatpush.bf16.msra.mxu0 %v4898
    %4991 = vmatpush.bf16.msra.mxu0 %v4894
    %4992 = vmatpush.bf16.msra.mxu0 %v4890
    %4993 = vmatpush.bf16.msra.mxu0 %v4886
    %4994 = vmatmul.bf16.gmra.mxu0 %v4754
    %v4995 = vpop.f32.mrf.mxu0
    %v4996 = vadd.f32 0.0, %v4995
    %v4997 = vpop.f32.mrf.mxu0
    %4998 = vdwg.mxu0
    %v4999 = vadd.f32 %v4750, %v4957
    %v5000 = vadd.f32 %v4751, %v4970
    %v5001 = vadd.f32 %v4752, %v4983
    %v5002 = vadd.f32 %v4753, %v4996
    %v5003 = vxor.u32 %v4999, 2147483648
    %v5004 = vmul.f32 %v5003, 1.442695
    %v5005 = vpow.pop %v5004
    %v5006 = vadd.f32 %v5005, 1.0
    %v5007 = vrcp.pop %v5006
    %v5008 = vmul.f32 %v5006, %v5007
    %v5009 = vsub.f32 1.0, %v5008
    %v5010 = vmul.f32 %v5007, %v5009
    %v5011 = vadd.f32 %v5007, %v5010
    %vm5012 = vweird.f32 %v5006
    %vm5013 = vweird.f32 %v5007
    %vm5014 = vmor %vm5012, %vm5013
    %v5015 = vsel %vm5014, %v5007, %v5011
    %v5016 = vand.u32 2147483647, %v5006
    %vm5017 = vcmp.eq.f32.partialorder %v5016, 8.507059e+37
    %v5018 = vand.u32 %v5006, 2147483648
    %v5019 = vor.u32 1.1754944e-38, %v5018
    %v5020 = vsel %vm5017, %v5019, %v5015
    %v5021 = vmul.f32 1.0, %v5020
    %v5022 = vxor.u32 %v5000, 2147483648
    %v5023 = vmul.f32 %v5022, 1.442695
    %v5024 = vpow.pop %v5023
    %v5025 = vadd.f32 %v5024, 1.0
    %v5026 = vrcp.pop %v5025
    %v5027 = vmul.f32 %v5025, %v5026
    %v5028 = vsub.f32 1.0, %v5027
    %v5029 = vmul.f32 %v5026, %v5028
    %v5030 = vadd.f32 %v5026, %v5029
    %vm5031 = vweird.f32 %v5025
    %vm5032 = vweird.f32 %v5026
    %vm5033 = vmor %vm5031, %vm5032
    %v5034 = vsel %vm5033, %v5026, %v5030
    %v5035 = vand.u32 2147483647, %v5025
    %vm5036 = vcmp.eq.f32.partialorder %v5035, 8.507059e+37
    %v5037 = vand.u32 %v5025, 2147483648
    %v5038 = vor.u32 1.1754944e-38, %v5037
    %v5039 = vsel %vm5036, %v5038, %v5034
    %v5040 = vmul.f32 1.0, %v5039
    %v5041 = vtanh.pop %v5001
    %v5042 = vxor.u32 %v5002, 2147483648
    %v5043 = vmul.f32 %v5042, 1.442695
    %v5044 = vpow.pop %v5043
    %v5045 = vadd.f32 %v5044, 1.0
    %v5046 = vrcp.pop %v5045
    %v5047 = vmul.f32 %v5045, %v5046
    %v5048 = vsub.f32 1.0, %v5047
    %v5049 = vmul.f32 %v5046, %v5048
    %v5050 = vadd.f32 %v5046, %v5049
    %vm5051 = vweird.f32 %v5045
    %vm5052 = vweird.f32 %v5046
    %vm5053 = vmor %vm5051, %vm5052
    %v5054 = vsel %vm5053, %v5046, %v5050
    %v5055 = vand.u32 2147483647, %v5045
    %vm5056 = vcmp.eq.f32.partialorder %v5055, 8.507059e+37
    %v5057 = vand.u32 %v5045, 2147483648
    %v5058 = vor.u32 1.1754944e-38, %v5057
    %v5059 = vsel %vm5056, %v5058, %v5054
    %v5060 = vmul.f32 1.0, %v5059
    %v5061 = vmul.f32 %v5040, %v4745
    %v5062 = vmul.f32 %v5021, %v5041
    %v5063 = vadd.f32 %v5061, %v5062
    %v5064 = vtanh.pop %v5063
    %v5065 = vmul.f32 %v5060, %v5064
    %s5066 = scalar_lea.vmem [#allocation15], 24
    %5067 = vst [vmem:[%s5066] sm:$0xff] %v5065
    %v5068 = vld [vmem:[%s1811] sm:$0xff]
    %v5069 = vld [vmem:[%s1811 + $0x8] sm:$0xff]
    %v5070 = vld [vmem:[%s1811 + $0x10] sm:$0xff]
    %v5071 = vld [vmem:[%s1811 + $0x18] sm:$0xff]
    %v5072 = vpack.c.bf16 %v5065, %v5065
    %v5073 = vld [vmem:[#allocation13] sm:$0xff]
    %v5074 = vld [vmem:[#allocation13 + $0x8] sm:$0xff]
    %v5075 = vld [vmem:[#allocation13 + $0x10] sm:$0xff]
    %v5076 = vld [vmem:[#allocation13 + $0x18] sm:$0xff]
    %v5077 = vld [vmem:[#allocation13 + $0x20] sm:$0xff]
    %v5078 = vld [vmem:[#allocation13 + $0x28] sm:$0xff]
    %v5079 = vld [vmem:[#allocation13 + $0x30] sm:$0xff]
    %v5080 = vld [vmem:[#allocation13 + $0x38] sm:$0xff]
    %v5081 = vld [vmem:[#allocation13 + $0x40] sm:$0xff]
    %v5082 = vld [vmem:[#allocation13 + $0x48] sm:$0xff]
    %v5083 = vld [vmem:[#allocation13 + $0x50] sm:$0xff]
    %v5084 = vld [vmem:[#allocation13 + $0x58] sm:$0xff]
    %v5085 = vld [vmem:[#allocation13 + $0x60] sm:$0xff]
    %v5086 = vld [vmem:[#allocation13 + $0x68] sm:$0xff]
    %v5087 = vld [vmem:[#allocation13 + $0x70] sm:$0xff]
    %v5088 = vld [vmem:[#allocation13 + $0x78] sm:$0xff]
    %v5089 = vld [vmem:[#allocation13 + $0x80] sm:$0xff]
    %v5090 = vld [vmem:[#allocation13 + $0x88] sm:$0xff]
    %v5091 = vld [vmem:[#allocation13 + $0x90] sm:$0xff]
    %v5092 = vld [vmem:[#allocation13 + $0x98] sm:$0xff]
    %v5093 = vld [vmem:[#allocation13 + $0xa0] sm:$0xff]
    %v5094 = vld [vmem:[#allocation13 + $0xa8] sm:$0xff]
    %v5095 = vld [vmem:[#allocation13 + $0xb0] sm:$0xff]
    %v5096 = vld [vmem:[#allocation13 + $0xb8] sm:$0xff]
    %v5097 = vld [vmem:[#allocation13 + $0xc0] sm:$0xff]
    %v5098 = vld [vmem:[#allocation13 + $0xc8] sm:$0xff]
    %v5099 = vld [vmem:[#allocation13 + $0xd0] sm:$0xff]
    %v5100 = vld [vmem:[#allocation13 + $0xd8] sm:$0xff]
    %v5101 = vld [vmem:[#allocation13 + $0xe0] sm:$0xff]
    %v5102 = vld [vmem:[#allocation13 + $0xe8] sm:$0xff]
    %v5103 = vld [vmem:[#allocation13 + $0xf0] sm:$0xff]
    %v5104 = vld [vmem:[#allocation13 + $0xf8] sm:$0xff]
    %v5137 = vunpack.c.l.b16 %v5073
    %v5138 = vunpack.c.h.b16 %v5073
    %v5139 = vunpack.c.l.b16 %v5074
    %v5140 = vunpack.c.h.b16 %v5074
    %v5141 = vunpack.c.l.b16 %v5075
    %v5142 = vunpack.c.h.b16 %v5075
    %v5143 = vunpack.c.l.b16 %v5076
    %v5144 = vunpack.c.h.b16 %v5076
    %v5145 = vunpack.c.l.b16 %v5077
    %v5146 = vunpack.c.h.b16 %v5077
    %v5147 = vunpack.c.l.b16 %v5078
    %v5148 = vunpack.c.h.b16 %v5078
    %v5149 = vunpack.c.l.b16 %v5079
    %v5150 = vunpack.c.h.b16 %v5079
    %v5151 = vunpack.c.l.b16 %v5080
    %v5152 = vunpack.c.h.b16 %v5080
    %v5153 = vunpack.c.l.b16 %v5081
    %v5154 = vunpack.c.h.b16 %v5081
    %v5155 = vunpack.c.l.b16 %v5082
    %v5156 = vunpack.c.h.b16 %v5082
    %v5157 = vunpack.c.l.b16 %v5083
    %v5158 = vunpack.c.h.b16 %v5083
    %v5159 = vunpack.c.l.b16 %v5084
    %v5160 = vunpack.c.h.b16 %v5084
    %v5161 = vunpack.c.l.b16 %v5085
    %v5162 = vunpack.c.h.b16 %v5085
    %v5163 = vunpack.c.l.b16 %v5086
    %v5164 = vunpack.c.h.b16 %v5086
    %v5165 = vunpack.c.l.b16 %v5087
    %v5166 = vunpack.c.h.b16 %v5087
    %v5167 = vunpack.c.l.b16 %v5088
    %v5168 = vunpack.c.h.b16 %v5088
    %v5169 = vunpack.c.l.b16 %v5089
    %v5170 = vunpack.c.h.b16 %v5089
    %v5171 = vunpack.c.l.b16 %v5090
    %v5172 = vunpack.c.h.b16 %v5090
    %v5173 = vunpack.c.l.b16 %v5091
    %v5174 = vunpack.c.h.b16 %v5091
    %v5175 = vunpack.c.l.b16 %v5092
    %v5176 = vunpack.c.h.b16 %v5092
    %v5177 = vunpack.c.l.b16 %v5093
    %v5178 = vunpack.c.h.b16 %v5093
    %v5179 = vunpack.c.l.b16 %v5094
    %v5180 = vunpack.c.h.b16 %v5094
    %v5181 = vunpack.c.l.b16 %v5095
    %v5182 = vunpack.c.h.b16 %v5095
    %v5183 = vunpack.c.l.b16 %v5096
    %v5184 = vunpack.c.h.b16 %v5096
    %v5185 = vunpack.c.l.b16 %v5097
    %v5186 = vunpack.c.h.b16 %v5097
    %v5187 = vunpack.c.l.b16 %v5098
    %v5188 = vunpack.c.h.b16 %v5098
    %v5189 = vunpack.c.l.b16 %v5099
    %v5190 = vunpack.c.h.b16 %v5099
    %v5191 = vunpack.c.l.b16 %v5100
    %v5192 = vunpack.c.h.b16 %v5100
    %v5193 = vunpack.c.l.b16 %v5101
    %v5194 = vunpack.c.h.b16 %v5101
    %v5195 = vunpack.c.l.b16 %v5102
    %v5196 = vunpack.c.h.b16 %v5102
    %v5197 = vunpack.c.l.b16 %v5103
    %v5198 = vunpack.c.h.b16 %v5103
    %v5199 = vunpack.c.l.b16 %v5104
    %v5200 = vunpack.c.h.b16 %v5104
    %v5201 = vpack.c.b16 %v5141, %v5137
    %v5202 = vpack.c.b16 %v5142, %v5138
    %v5203 = vpack.c.b16 %v5143, %v5139
    %v5204 = vpack.c.b16 %v5144, %v5140
    %v5205 = vpack.c.b16 %v5149, %v5145
    %v5206 = vpack.c.b16 %v5150, %v5146
    %v5207 = vpack.c.b16 %v5151, %v5147
    %v5208 = vpack.c.b16 %v5152, %v5148
    %v5209 = vpack.c.b16 %v5157, %v5153
    %v5210 = vpack.c.b16 %v5158, %v5154
    %v5211 = vpack.c.b16 %v5159, %v5155
    %v5212 = vpack.c.b16 %v5160, %v5156
    %v5213 = vpack.c.b16 %v5165, %v5161
    %v5214 = vpack.c.b16 %v5166, %v5162
    %v5215 = vpack.c.b16 %v5167, %v5163
    %v5216 = vpack.c.b16 %v5168, %v5164
    %v5217 = vpack.c.b16 %v5173, %v5169
    %v5218 = vpack.c.b16 %v5174, %v5170
    %v5219 = vpack.c.b16 %v5175, %v5171
    %v5220 = vpack.c.b16 %v5176, %v5172
    %v5221 = vpack.c.b16 %v5181, %v5177
    %v5222 = vpack.c.b16 %v5182, %v5178
    %v5223 = vpack.c.b16 %v5183, %v5179
    %v5224 = vpack.c.b16 %v5184, %v5180
    %v5225 = vpack.c.b16 %v5189, %v5185
    %v5226 = vpack.c.b16 %v5190, %v5186
    %v5227 = vpack.c.b16 %v5191, %v5187
    %v5228 = vpack.c.b16 %v5192, %v5188
    %v5229 = vpack.c.b16 %v5197, %v5193
    %v5230 = vpack.c.b16 %v5198, %v5194
    %v5231 = vpack.c.b16 %v5199, %v5195
    %v5232 = vpack.c.b16 %v5200, %v5196
    %5265 = vmatpush.bf16.msra.mxu0 %v5229
    %5266 = vmatpush.bf16.msra.mxu0 %v5225
    %5267 = vmatpush.bf16.msra.mxu0 %v5221
    %5268 = vmatpush.bf16.msra.mxu0 %v5217
    %5269 = vmatpush.bf16.msra.mxu0 %v5213
    %5270 = vmatpush.bf16.msra.mxu0 %v5209
    %5271 = vmatpush.bf16.msra.mxu0 %v5205
    %5272 = vmatpush.bf16.msra.mxu0 %v5201
    %5273 = vmatmul.bf16.gmra.mxu0 %v5072
    %v5274 = vpop.f32.mrf.mxu0
    %v5275 = vadd.f32 0.0, %v5274
    %v5276 = vpop.f32.mrf.mxu0
    %5277 = vdwg.mxu0
    %5278 = vmatpush.bf16.msra.mxu0 %v5230
    %5279 = vmatpush.bf16.msra.mxu0 %v5226
    %5280 = vmatpush.bf16.msra.mxu0 %v5222
    %5281 = vmatpush.bf16.msra.mxu0 %v5218
    %5282 = vmatpush.bf16.msra.mxu0 %v5214
    %5283 = vmatpush.bf16.msra.mxu0 %v5210
    %5284 = vmatpush.bf16.msra.mxu0 %v5206
    %5285 = vmatpush.bf16.msra.mxu0 %v5202
    %5286 = vmatmul.bf16.gmra.mxu0 %v5072
    %v5287 = vpop.f32.mrf.mxu0
    %v5288 = vadd.f32 0.0, %v5287
    %v5289 = vpop.f32.mrf.mxu0
    %5290 = vdwg.mxu0
    %5291 = vmatpush.bf16.msra.mxu0 %v5231
    %5292 = vmatpush.bf16.msra.mxu0 %v5227
    %5293 = vmatpush.bf16.msra.mxu0 %v5223
    %5294 = vmatpush.bf16.msra.mxu0 %v5219
    %5295 = vmatpush.bf16.msra.mxu0 %v5215
    %5296 = vmatpush.bf16.msra.mxu0 %v5211
    %5297 = vmatpush.bf16.msra.mxu0 %v5207
    %5298 = vmatpush.bf16.msra.mxu0 %v5203
    %5299 = vmatmul.bf16.gmra.mxu0 %v5072
    %v5300 = vpop.f32.mrf.mxu0
    %v5301 = vadd.f32 0.0, %v5300
    %v5302 = vpop.f32.mrf.mxu0
    %5303 = vdwg.mxu0
    %5304 = vmatpush.bf16.msra.mxu0 %v5232
    %5305 = vmatpush.bf16.msra.mxu0 %v5228
    %5306 = vmatpush.bf16.msra.mxu0 %v5224
    %5307 = vmatpush.bf16.msra.mxu0 %v5220
    %5308 = vmatpush.bf16.msra.mxu0 %v5216
    %5309 = vmatpush.bf16.msra.mxu0 %v5212
    %5310 = vmatpush.bf16.msra.mxu0 %v5208
    %5311 = vmatpush.bf16.msra.mxu0 %v5204
    %5312 = vmatmul.bf16.gmra.mxu0 %v5072
    %v5313 = vpop.f32.mrf.mxu0
    %v5314 = vadd.f32 0.0, %v5313
    %v5315 = vpop.f32.mrf.mxu0
    %5316 = vdwg.mxu0
    %v5317 = vadd.f32 %v5068, %v5275
    %v5318 = vadd.f32 %v5069, %v5288
    %v5319 = vadd.f32 %v5070, %v5301
    %v5320 = vadd.f32 %v5071, %v5314
    %v5321 = vxor.u32 %v5317, 2147483648
    %v5322 = vmul.f32 %v5321, 1.442695
    %v5323 = vpow.pop %v5322
    %v5324 = vadd.f32 %v5323, 1.0
    %v5325 = vrcp.pop %v5324
    %v5326 = vmul.f32 %v5324, %v5325
    %v5327 = vsub.f32 1.0, %v5326
    %v5328 = vmul.f32 %v5325, %v5327
    %v5329 = vadd.f32 %v5325, %v5328
    %vm5330 = vweird.f32 %v5324
    %vm5331 = vweird.f32 %v5325
    %vm5332 = vmor %vm5330, %vm5331
    %v5333 = vsel %vm5332, %v5325, %v5329
    %v5334 = vand.u32 2147483647, %v5324
    %vm5335 = vcmp.eq.f32.partialorder %v5334, 8.507059e+37
    %v5336 = vand.u32 %v5324, 2147483648
    %v5337 = vor.u32 1.1754944e-38, %v5336
    %v5338 = vsel %vm5335, %v5337, %v5333
    %v5339 = vmul.f32 1.0, %v5338
    %v5340 = vxor.u32 %v5318, 2147483648
    %v5341 = vmul.f32 %v5340, 1.442695
    %v5342 = vpow.pop %v5341
    %v5343 = vadd.f32 %v5342, 1.0
    %v5344 = vrcp.pop %v5343
    %v5345 = vmul.f32 %v5343, %v5344
    %v5346 = vsub.f32 1.0, %v5345
    %v5347 = vmul.f32 %v5344, %v5346
    %v5348 = vadd.f32 %v5344, %v5347
    %vm5349 = vweird.f32 %v5343
    %vm5350 = vweird.f32 %v5344
    %vm5351 = vmor %vm5349, %vm5350
    %v5352 = vsel %vm5351, %v5344, %v5348
    %v5353 = vand.u32 2147483647, %v5343
    %vm5354 = vcmp.eq.f32.partialorder %v5353, 8.507059e+37
    %v5355 = vand.u32 %v5343, 2147483648
    %v5356 = vor.u32 1.1754944e-38, %v5355
    %v5357 = vsel %vm5354, %v5356, %v5352
    %v5358 = vmul.f32 1.0, %v5357
    %v5359 = vtanh.pop %v5319
    %v5360 = vxor.u32 %v5320, 2147483648
    %v5361 = vmul.f32 %v5360, 1.442695
    %v5362 = vpow.pop %v5361
    %v5363 = vadd.f32 %v5362, 1.0
    %v5364 = vrcp.pop %v5363
    %v5365 = vmul.f32 %v5363, %v5364
    %v5366 = vsub.f32 1.0, %v5365
    %v5367 = vmul.f32 %v5364, %v5366
    %v5368 = vadd.f32 %v5364, %v5367
    %vm5369 = vweird.f32 %v5363
    %vm5370 = vweird.f32 %v5364
    %vm5371 = vmor %vm5369, %vm5370
    %v5372 = vsel %vm5371, %v5364, %v5368
    %v5373 = vand.u32 2147483647, %v5363
    %vm5374 = vcmp.eq.f32.partialorder %v5373, 8.507059e+37
    %v5375 = vand.u32 %v5363, 2147483648
    %v5376 = vor.u32 1.1754944e-38, %v5375
    %v5377 = vsel %vm5374, %v5376, %v5372
    %v5378 = vmul.f32 1.0, %v5377
    %v5379 = vmul.f32 %v5358, %v5063
    %v5380 = vmul.f32 %v5339, %v5359
    %v5381 = vadd.f32 %v5379, %v5380
    %v5382 = vtanh.pop %v5381
    %v5383 = vmul.f32 %v5378, %v5382
    %s5384 = scalar_lea.vmem [#allocation15], 32
    %5385 = vst [vmem:[%s5384] sm:$0xff] %v5383
    %v5386 = vld [vmem:[%s2132] sm:$0xff]
    %v5387 = vld [vmem:[%s2132 + $0x8] sm:$0xff]
    %v5388 = vld [vmem:[%s2132 + $0x10] sm:$0xff]
    %v5389 = vld [vmem:[%s2132 + $0x18] sm:$0xff]
    %v5390 = vpack.c.bf16 %v5383, %v5383
    %v5391 = vld [vmem:[#allocation13] sm:$0xff]
    %v5392 = vld [vmem:[#allocation13 + $0x8] sm:$0xff]
    %v5393 = vld [vmem:[#allocation13 + $0x10] sm:$0xff]
    %v5394 = vld [vmem:[#allocation13 + $0x18] sm:$0xff]
    %v5395 = vld [vmem:[#allocation13 + $0x20] sm:$0xff]
    %v5396 = vld [vmem:[#allocation13 + $0x28] sm:$0xff]
    %v5397 = vld [vmem:[#allocation13 + $0x30] sm:$0xff]
    %v5398 = vld [vmem:[#allocation13 + $0x38] sm:$0xff]
    %v5399 = vld [vmem:[#allocation13 + $0x40] sm:$0xff]
    %v5400 = vld [vmem:[#allocation13 + $0x48] sm:$0xff]
    %v5401 = vld [vmem:[#allocation13 + $0x50] sm:$0xff]
    %v5402 = vld [vmem:[#allocation13 + $0x58] sm:$0xff]
    %v5403 = vld [vmem:[#allocation13 + $0x60] sm:$0xff]
    %v5404 = vld [vmem:[#allocation13 + $0x68] sm:$0xff]
    %v5405 = vld [vmem:[#allocation13 + $0x70] sm:$0xff]
    %v5406 = vld [vmem:[#allocation13 + $0x78] sm:$0xff]
    %v5407 = vld [vmem:[#allocation13 + $0x80] sm:$0xff]
    %v5408 = vld [vmem:[#allocation13 + $0x88] sm:$0xff]
    %v5409 = vld [vmem:[#allocation13 + $0x90] sm:$0xff]
    %v5410 = vld [vmem:[#allocation13 + $0x98] sm:$0xff]
    %v5411 = vld [vmem:[#allocation13 + $0xa0] sm:$0xff]
    %v5412 = vld [vmem:[#allocation13 + $0xa8] sm:$0xff]
    %v5413 = vld [vmem:[#allocation13 + $0xb0] sm:$0xff]
    %v5414 = vld [vmem:[#allocation13 + $0xb8] sm:$0xff]
    %v5415 = vld [vmem:[#allocation13 + $0xc0] sm:$0xff]
    %v5416 = vld [vmem:[#allocation13 + $0xc8] sm:$0xff]
    %v5417 = vld [vmem:[#allocation13 + $0xd0] sm:$0xff]
    %v5418 = vld [vmem:[#allocation13 + $0xd8] sm:$0xff]
    %v5419 = vld [vmem:[#allocation13 + $0xe0] sm:$0xff]
    %v5420 = vld [vmem:[#allocation13 + $0xe8] sm:$0xff]
    %v5421 = vld [vmem:[#allocation13 + $0xf0] sm:$0xff]
    %v5422 = vld [vmem:[#allocation13 + $0xf8] sm:$0xff]
    %v5455 = vunpack.c.l.b16 %v5391
    %v5456 = vunpack.c.h.b16 %v5391
    %v5457 = vunpack.c.l.b16 %v5392
    %v5458 = vunpack.c.h.b16 %v5392
    %v5459 = vunpack.c.l.b16 %v5393
    %v5460 = vunpack.c.h.b16 %v5393
    %v5461 = vunpack.c.l.b16 %v5394
    %v5462 = vunpack.c.h.b16 %v5394
    %v5463 = vunpack.c.l.b16 %v5395
    %v5464 = vunpack.c.h.b16 %v5395
    %v5465 = vunpack.c.l.b16 %v5396
    %v5466 = vunpack.c.h.b16 %v5396
    %v5467 = vunpack.c.l.b16 %v5397
    %v5468 = vunpack.c.h.b16 %v5397
    %v5469 = vunpack.c.l.b16 %v5398
    %v5470 = vunpack.c.h.b16 %v5398
    %v5471 = vunpack.c.l.b16 %v5399
    %v5472 = vunpack.c.h.b16 %v5399
    %v5473 = vunpack.c.l.b16 %v5400
    %v5474 = vunpack.c.h.b16 %v5400
    %v5475 = vunpack.c.l.b16 %v5401
    %v5476 = vunpack.c.h.b16 %v5401
    %v5477 = vunpack.c.l.b16 %v5402
    %v5478 = vunpack.c.h.b16 %v5402
    %v5479 = vunpack.c.l.b16 %v5403
    %v5480 = vunpack.c.h.b16 %v5403
    %v5481 = vunpack.c.l.b16 %v5404
    %v5482 = vunpack.c.h.b16 %v5404
    %v5483 = vunpack.c.l.b16 %v5405
    %v5484 = vunpack.c.h.b16 %v5405
    %v5485 = vunpack.c.l.b16 %v5406
    %v5486 = vunpack.c.h.b16 %v5406
    %v5487 = vunpack.c.l.b16 %v5407
    %v5488 = vunpack.c.h.b16 %v5407
    %v5489 = vunpack.c.l.b16 %v5408
    %v5490 = vunpack.c.h.b16 %v5408
    %v5491 = vunpack.c.l.b16 %v5409
    %v5492 = vunpack.c.h.b16 %v5409
    %v5493 = vunpack.c.l.b16 %v5410
    %v5494 = vunpack.c.h.b16 %v5410
    %v5495 = vunpack.c.l.b16 %v5411
    %v5496 = vunpack.c.h.b16 %v5411
    %v5497 = vunpack.c.l.b16 %v5412
    %v5498 = vunpack.c.h.b16 %v5412
    %v5499 = vunpack.c.l.b16 %v5413
    %v5500 = vunpack.c.h.b16 %v5413
    %v5501 = vunpack.c.l.b16 %v5414
    %v5502 = vunpack.c.h.b16 %v5414
    %v5503 = vunpack.c.l.b16 %v5415
    %v5504 = vunpack.c.h.b16 %v5415
    %v5505 = vunpack.c.l.b16 %v5416
    %v5506 = vunpack.c.h.b16 %v5416
    %v5507 = vunpack.c.l.b16 %v5417
    %v5508 = vunpack.c.h.b16 %v5417
    %v5509 = vunpack.c.l.b16 %v5418
    %v5510 = vunpack.c.h.b16 %v5418
    %v5511 = vunpack.c.l.b16 %v5419
    %v5512 = vunpack.c.h.b16 %v5419
    %v5513 = vunpack.c.l.b16 %v5420
    %v5514 = vunpack.c.h.b16 %v5420
    %v5515 = vunpack.c.l.b16 %v5421
    %v5516 = vunpack.c.h.b16 %v5421
    %v5517 = vunpack.c.l.b16 %v5422
    %v5518 = vunpack.c.h.b16 %v5422
    %v5519 = vpack.c.b16 %v5459, %v5455
    %v5520 = vpack.c.b16 %v5460, %v5456
    %v5521 = vpack.c.b16 %v5461, %v5457
    %v5522 = vpack.c.b16 %v5462, %v5458
    %v5523 = vpack.c.b16 %v5467, %v5463
    %v5524 = vpack.c.b16 %v5468, %v5464
    %v5525 = vpack.c.b16 %v5469, %v5465
    %v5526 = vpack.c.b16 %v5470, %v5466
    %v5527 = vpack.c.b16 %v5475, %v5471
    %v5528 = vpack.c.b16 %v5476, %v5472
    %v5529 = vpack.c.b16 %v5477, %v5473
    %v5530 = vpack.c.b16 %v5478, %v5474
    %v5531 = vpack.c.b16 %v5483, %v5479
    %v5532 = vpack.c.b16 %v5484, %v5480
    %v5533 = vpack.c.b16 %v5485, %v5481
    %v5534 = vpack.c.b16 %v5486, %v5482
    %v5535 = vpack.c.b16 %v5491, %v5487
    %v5536 = vpack.c.b16 %v5492, %v5488
    %v5537 = vpack.c.b16 %v5493, %v5489
    %v5538 = vpack.c.b16 %v5494, %v5490
    %v5539 = vpack.c.b16 %v5499, %v5495
    %v5540 = vpack.c.b16 %v5500, %v5496
    %v5541 = vpack.c.b16 %v5501, %v5497
    %v5542 = vpack.c.b16 %v5502, %v5498
    %v5543 = vpack.c.b16 %v5507, %v5503
    %v5544 = vpack.c.b16 %v5508, %v5504
    %v5545 = vpack.c.b16 %v5509, %v5505
    %v5546 = vpack.c.b16 %v5510, %v5506
    %v5547 = vpack.c.b16 %v5515, %v5511
    %v5548 = vpack.c.b16 %v5516, %v5512
    %v5549 = vpack.c.b16 %v5517, %v5513
    %v5550 = vpack.c.b16 %v5518, %v5514
    %5583 = vmatpush.bf16.msra.mxu0 %v5547
    %5584 = vmatpush.bf16.msra.mxu0 %v5543
    %5585 = vmatpush.bf16.msra.mxu0 %v5539
    %5586 = vmatpush.bf16.msra.mxu0 %v5535
    %5587 = vmatpush.bf16.msra.mxu0 %v5531
    %5588 = vmatpush.bf16.msra.mxu0 %v5527
    %5589 = vmatpush.bf16.msra.mxu0 %v5523
    %5590 = vmatpush.bf16.msra.mxu0 %v5519
    %5591 = vmatmul.bf16.gmra.mxu0 %v5390
    %v5592 = vpop.f32.mrf.mxu0
    %v5593 = vadd.f32 0.0, %v5592
    %v5594 = vpop.f32.mrf.mxu0
    %5595 = vdwg.mxu0
    %5596 = vmatpush.bf16.msra.mxu0 %v5548
    %5597 = vmatpush.bf16.msra.mxu0 %v5544
    %5598 = vmatpush.bf16.msra.mxu0 %v5540
    %5599 = vmatpush.bf16.msra.mxu0 %v5536
    %5600 = vmatpush.bf16.msra.mxu0 %v5532
    %5601 = vmatpush.bf16.msra.mxu0 %v5528
    %5602 = vmatpush.bf16.msra.mxu0 %v5524
    %5603 = vmatpush.bf16.msra.mxu0 %v5520
    %5604 = vmatmul.bf16.gmra.mxu0 %v5390
    %v5605 = vpop.f32.mrf.mxu0
    %v5606 = vadd.f32 0.0, %v5605
    %v5607 = vpop.f32.mrf.mxu0
    %5608 = vdwg.mxu0
    %5609 = vmatpush.bf16.msra.mxu0 %v5549
    %5610 = vmatpush.bf16.msra.mxu0 %v5545
    %5611 = vmatpush.bf16.msra.mxu0 %v5541
    %5612 = vmatpush.bf16.msra.mxu0 %v5537
    %5613 = vmatpush.bf16.msra.mxu0 %v5533
    %5614 = vmatpush.bf16.msra.mxu0 %v5529
    %5615 = vmatpush.bf16.msra.mxu0 %v5525
    %5616 = vmatpush.bf16.msra.mxu0 %v5521
    %5617 = vmatmul.bf16.gmra.mxu0 %v5390
    %v5618 = vpop.f32.mrf.mxu0
    %v5619 = vadd.f32 0.0, %v5618
    %v5620 = vpop.f32.mrf.mxu0
    %5621 = vdwg.mxu0
    %5622 = vmatpush.bf16.msra.mxu0 %v5550
    %5623 = vmatpush.bf16.msra.mxu0 %v5546
    %5624 = vmatpush.bf16.msra.mxu0 %v5542
    %5625 = vmatpush.bf16.msra.mxu0 %v5538
    %5626 = vmatpush.bf16.msra.mxu0 %v5534
    %5627 = vmatpush.bf16.msra.mxu0 %v5530
    %5628 = vmatpush.bf16.msra.mxu0 %v5526
    %5629 = vmatpush.bf16.msra.mxu0 %v5522
    %5630 = vmatmul.bf16.gmra.mxu0 %v5390
    %v5631 = vpop.f32.mrf.mxu0
    %v5632 = vadd.f32 0.0, %v5631
    %v5633 = vpop.f32.mrf.mxu0
    %5634 = vdwg.mxu0
    %v5635 = vadd.f32 %v5386, %v5593
    %v5636 = vadd.f32 %v5387, %v5606
    %v5637 = vadd.f32 %v5388, %v5619
    %v5638 = vadd.f32 %v5389, %v5632
    %v5639 = vxor.u32 %v5635, 2147483648
    %v5640 = vmul.f32 %v5639, 1.442695
    %v5641 = vpow.pop %v5640
    %v5642 = vadd.f32 %v5641, 1.0
    %v5643 = vrcp.pop %v5642
    %v5644 = vmul.f32 %v5642, %v5643
    %v5645 = vsub.f32 1.0, %v5644
    %v5646 = vmul.f32 %v5643, %v5645
    %v5647 = vadd.f32 %v5643, %v5646
    %vm5648 = vweird.f32 %v5642
    %vm5649 = vweird.f32 %v5643
    %vm5650 = vmor %vm5648, %vm5649
    %v5651 = vsel %vm5650, %v5643, %v5647
    %v5652 = vand.u32 2147483647, %v5642
    %vm5653 = vcmp.eq.f32.partialorder %v5652, 8.507059e+37
    %v5654 = vand.u32 %v5642, 2147483648
    %v5655 = vor.u32 1.1754944e-38, %v5654
    %v5656 = vsel %vm5653, %v5655, %v5651
    %v5657 = vmul.f32 1.0, %v5656
    %v5658 = vxor.u32 %v5636, 2147483648
    %v5659 = vmul.f32 %v5658, 1.442695
    %v5660 = vpow.pop %v5659
    %v5661 = vadd.f32 %v5660, 1.0
    %v5662 = vrcp.pop %v5661
    %v5663 = vmul.f32 %v5661, %v5662
    %v5664 = vsub.f32 1.0, %v5663
    %v5665 = vmul.f32 %v5662, %v5664
    %v5666 = vadd.f32 %v5662, %v5665
    %vm5667 = vweird.f32 %v5661
    %vm5668 = vweird.f32 %v5662
    %vm5669 = vmor %vm5667, %vm5668
    %v5670 = vsel %vm5669, %v5662, %v5666
    %v5671 = vand.u32 2147483647, %v5661
    %vm5672 = vcmp.eq.f32.partialorder %v5671, 8.507059e+37
    %v5673 = vand.u32 %v5661, 2147483648
    %v5674 = vor.u32 1.1754944e-38, %v5673
    %v5675 = vsel %vm5672, %v5674, %v5670
    %v5676 = vmul.f32 1.0, %v5675
    %v5677 = vtanh.pop %v5637
    %v5678 = vxor.u32 %v5638, 2147483648
    %v5679 = vmul.f32 %v5678, 1.442695
    %v5680 = vpow.pop %v5679
    %v5681 = vadd.f32 %v5680, 1.0
    %v5682 = vrcp.pop %v5681
    %v5683 = vmul.f32 %v5681, %v5682
    %v5684 = vsub.f32 1.0, %v5683
    %v5685 = vmul.f32 %v5682, %v5684
    %v5686 = vadd.f32 %v5682, %v5685
    %vm5687 = vweird.f32 %v5681
    %vm5688 = vweird.f32 %v5682
    %vm5689 = vmor %vm5687, %vm5688
    %v5690 = vsel %vm5689, %v5682, %v5686
    %v5691 = vand.u32 2147483647, %v5681
    %vm5692 = vcmp.eq.f32.partialorder %v5691, 8.507059e+37
    %v5693 = vand.u32 %v5681, 2147483648
    %v5694 = vor.u32 1.1754944e-38, %v5693
    %v5695 = vsel %vm5692, %v5694, %v5690
    %v5696 = vmul.f32 1.0, %v5695
    %v5697 = vmul.f32 %v5676, %v5381
    %v5698 = vmul.f32 %v5657, %v5677
    %v5699 = vadd.f32 %v5697, %v5698
    %v5700 = vtanh.pop %v5699
    %v5701 = vmul.f32 %v5696, %v5700
    %s5702 = scalar_lea.vmem [#allocation15], 40
    %5703 = vst [vmem:[%s5702] sm:$0xff] %v5701
    %v5704 = vld [vmem:[%s2453] sm:$0xff]
    %v5705 = vld [vmem:[%s2453 + $0x8] sm:$0xff]
    %v5706 = vld [vmem:[%s2453 + $0x10] sm:$0xff]
    %v5707 = vld [vmem:[%s2453 + $0x18] sm:$0xff]
    %v5708 = vpack.c.bf16 %v5701, %v5701
    %v5709 = vld [vmem:[#allocation13] sm:$0xff]
    %v5710 = vld [vmem:[#allocation13 + $0x8] sm:$0xff]
    %v5711 = vld [vmem:[#allocation13 + $0x10] sm:$0xff]
    %v5712 = vld [vmem:[#allocation13 + $0x18] sm:$0xff]
    %v5713 = vld [vmem:[#allocation13 + $0x20] sm:$0xff]
    %v5714 = vld [vmem:[#allocation13 + $0x28] sm:$0xff]
    %v5715 = vld [vmem:[#allocation13 + $0x30] sm:$0xff]
    %v5716 = vld [vmem:[#allocation13 + $0x38] sm:$0xff]
    %v5717 = vld [vmem:[#allocation13 + $0x40] sm:$0xff]
    %v5718 = vld [vmem:[#allocation13 + $0x48] sm:$0xff]
    %v5719 = vld [vmem:[#allocation13 + $0x50] sm:$0xff]
    %v5720 = vld [vmem:[#allocation13 + $0x58] sm:$0xff]
    %v5721 = vld [vmem:[#allocation13 + $0x60] sm:$0xff]
    %v5722 = vld [vmem:[#allocation13 + $0x68] sm:$0xff]
    %v5723 = vld [vmem:[#allocation13 + $0x70] sm:$0xff]
    %v5724 = vld [vmem:[#allocation13 + $0x78] sm:$0xff]
    %v5725 = vld [vmem:[#allocation13 + $0x80] sm:$0xff]
    %v5726 = vld [vmem:[#allocation13 + $0x88] sm:$0xff]
    %v5727 = vld [vmem:[#allocation13 + $0x90] sm:$0xff]
    %v5728 = vld [vmem:[#allocation13 + $0x98] sm:$0xff]
    %v5729 = vld [vmem:[#allocation13 + $0xa0] sm:$0xff]
    %v5730 = vld [vmem:[#allocation13 + $0xa8] sm:$0xff]
    %v5731 = vld [vmem:[#allocation13 + $0xb0] sm:$0xff]
    %v5732 = vld [vmem:[#allocation13 + $0xb8] sm:$0xff]
    %v5733 = vld [vmem:[#allocation13 + $0xc0] sm:$0xff]
    %v5734 = vld [vmem:[#allocation13 + $0xc8] sm:$0xff]
    %v5735 = vld [vmem:[#allocation13 + $0xd0] sm:$0xff]
    %v5736 = vld [vmem:[#allocation13 + $0xd8] sm:$0xff]
    %v5737 = vld [vmem:[#allocation13 + $0xe0] sm:$0xff]
    %v5738 = vld [vmem:[#allocation13 + $0xe8] sm:$0xff]
    %v5739 = vld [vmem:[#allocation13 + $0xf0] sm:$0xff]
    %v5740 = vld [vmem:[#allocation13 + $0xf8] sm:$0xff]
    %v5773 = vunpack.c.l.b16 %v5709
    %v5774 = vunpack.c.h.b16 %v5709
    %v5775 = vunpack.c.l.b16 %v5710
    %v5776 = vunpack.c.h.b16 %v5710
    %v5777 = vunpack.c.l.b16 %v5711
    %v5778 = vunpack.c.h.b16 %v5711
    %v5779 = vunpack.c.l.b16 %v5712
    %v5780 = vunpack.c.h.b16 %v5712
    %v5781 = vunpack.c.l.b16 %v5713
    %v5782 = vunpack.c.h.b16 %v5713
    %v5783 = vunpack.c.l.b16 %v5714
    %v5784 = vunpack.c.h.b16 %v5714
    %v5785 = vunpack.c.l.b16 %v5715
    %v5786 = vunpack.c.h.b16 %v5715
    %v5787 = vunpack.c.l.b16 %v5716
    %v5788 = vunpack.c.h.b16 %v5716
    %v5789 = vunpack.c.l.b16 %v5717
    %v5790 = vunpack.c.h.b16 %v5717
    %v5791 = vunpack.c.l.b16 %v5718
    %v5792 = vunpack.c.h.b16 %v5718
    %v5793 = vunpack.c.l.b16 %v5719
    %v5794 = vunpack.c.h.b16 %v5719
    %v5795 = vunpack.c.l.b16 %v5720
    %v5796 = vunpack.c.h.b16 %v5720
    %v5797 = vunpack.c.l.b16 %v5721
    %v5798 = vunpack.c.h.b16 %v5721
    %v5799 = vunpack.c.l.b16 %v5722
    %v5800 = vunpack.c.h.b16 %v5722
    %v5801 = vunpack.c.l.b16 %v5723
    %v5802 = vunpack.c.h.b16 %v5723
    %v5803 = vunpack.c.l.b16 %v5724
    %v5804 = vunpack.c.h.b16 %v5724
    %v5805 = vunpack.c.l.b16 %v5725
    %v5806 = vunpack.c.h.b16 %v5725
    %v5807 = vunpack.c.l.b16 %v5726
    %v5808 = vunpack.c.h.b16 %v5726
    %v5809 = vunpack.c.l.b16 %v5727
    %v5810 = vunpack.c.h.b16 %v5727
    %v5811 = vunpack.c.l.b16 %v5728
    %v5812 = vunpack.c.h.b16 %v5728
    %v5813 = vunpack.c.l.b16 %v5729
    %v5814 = vunpack.c.h.b16 %v5729
    %v5815 = vunpack.c.l.b16 %v5730
    %v5816 = vunpack.c.h.b16 %v5730
    %v5817 = vunpack.c.l.b16 %v5731
    %v5818 = vunpack.c.h.b16 %v5731
    %v5819 = vunpack.c.l.b16 %v5732
    %v5820 = vunpack.c.h.b16 %v5732
    %v5821 = vunpack.c.l.b16 %v5733
    %v5822 = vunpack.c.h.b16 %v5733
    %v5823 = vunpack.c.l.b16 %v5734
    %v5824 = vunpack.c.h.b16 %v5734
    %v5825 = vunpack.c.l.b16 %v5735
    %v5826 = vunpack.c.h.b16 %v5735
    %v5827 = vunpack.c.l.b16 %v5736
    %v5828 = vunpack.c.h.b16 %v5736
    %v5829 = vunpack.c.l.b16 %v5737
    %v5830 = vunpack.c.h.b16 %v5737
    %v5831 = vunpack.c.l.b16 %v5738
    %v5832 = vunpack.c.h.b16 %v5738
    %v5833 = vunpack.c.l.b16 %v5739
    %v5834 = vunpack.c.h.b16 %v5739
    %v5835 = vunpack.c.l.b16 %v5740
    %v5836 = vunpack.c.h.b16 %v5740
    %v5837 = vpack.c.b16 %v5777, %v5773
    %v5838 = vpack.c.b16 %v5778, %v5774
    %v5839 = vpack.c.b16 %v5779, %v5775
    %v5840 = vpack.c.b16 %v5780, %v5776
    %v5841 = vpack.c.b16 %v5785, %v5781
    %v5842 = vpack.c.b16 %v5786, %v5782
    %v5843 = vpack.c.b16 %v5787, %v5783
    %v5844 = vpack.c.b16 %v5788, %v5784
    %v5845 = vpack.c.b16 %v5793, %v5789
    %v5846 = vpack.c.b16 %v5794, %v5790
    %v5847 = vpack.c.b16 %v5795, %v5791
    %v5848 = vpack.c.b16 %v5796, %v5792
    %v5849 = vpack.c.b16 %v5801, %v5797
    %v5850 = vpack.c.b16 %v5802, %v5798
    %v5851 = vpack.c.b16 %v5803, %v5799
    %v5852 = vpack.c.b16 %v5804, %v5800
    %v5853 = vpack.c.b16 %v5809, %v5805
    %v5854 = vpack.c.b16 %v5810, %v5806
    %v5855 = vpack.c.b16 %v5811, %v5807
    %v5856 = vpack.c.b16 %v5812, %v5808
    %v5857 = vpack.c.b16 %v5817, %v5813
    %v5858 = vpack.c.b16 %v5818, %v5814
    %v5859 = vpack.c.b16 %v5819, %v5815
    %v5860 = vpack.c.b16 %v5820, %v5816
    %v5861 = vpack.c.b16 %v5825, %v5821
    %v5862 = vpack.c.b16 %v5826, %v5822
    %v5863 = vpack.c.b16 %v5827, %v5823
    %v5864 = vpack.c.b16 %v5828, %v5824
    %v5865 = vpack.c.b16 %v5833, %v5829
    %v5866 = vpack.c.b16 %v5834, %v5830
    %v5867 = vpack.c.b16 %v5835, %v5831
    %v5868 = vpack.c.b16 %v5836, %v5832
    %5901 = vmatpush.bf16.msra.mxu0 %v5865
    %5902 = vmatpush.bf16.msra.mxu0 %v5861
    %5903 = vmatpush.bf16.msra.mxu0 %v5857
    %5904 = vmatpush.bf16.msra.mxu0 %v5853
    %5905 = vmatpush.bf16.msra.mxu0 %v5849
    %5906 = vmatpush.bf16.msra.mxu0 %v5845
    %5907 = vmatpush.bf16.msra.mxu0 %v5841
    %5908 = vmatpush.bf16.msra.mxu0 %v5837
    %5909 = vmatmul.bf16.gmra.mxu0 %v5708
    %v5910 = vpop.f32.mrf.mxu0
    %v5911 = vadd.f32 0.0, %v5910
    %v5912 = vpop.f32.mrf.mxu0
    %5913 = vdwg.mxu0
    %5914 = vmatpush.bf16.msra.mxu0 %v5866
    %5915 = vmatpush.bf16.msra.mxu0 %v5862
    %5916 = vmatpush.bf16.msra.mxu0 %v5858
    %5917 = vmatpush.bf16.msra.mxu0 %v5854
    %5918 = vmatpush.bf16.msra.mxu0 %v5850
    %5919 = vmatpush.bf16.msra.mxu0 %v5846
    %5920 = vmatpush.bf16.msra.mxu0 %v5842
    %5921 = vmatpush.bf16.msra.mxu0 %v5838
    %5922 = vmatmul.bf16.gmra.mxu0 %v5708
    %v5923 = vpop.f32.mrf.mxu0
    %v5924 = vadd.f32 0.0, %v5923
    %v5925 = vpop.f32.mrf.mxu0
    %5926 = vdwg.mxu0
    %5927 = vmatpush.bf16.msra.mxu0 %v5867
    %5928 = vmatpush.bf16.msra.mxu0 %v5863
    %5929 = vmatpush.bf16.msra.mxu0 %v5859
    %5930 = vmatpush.bf16.msra.mxu0 %v5855
    %5931 = vmatpush.bf16.msra.mxu0 %v5851
    %5932 = vmatpush.bf16.msra.mxu0 %v5847
    %5933 = vmatpush.bf16.msra.mxu0 %v5843
    %5934 = vmatpush.bf16.msra.mxu0 %v5839
    %5935 = vmatmul.bf16.gmra.mxu0 %v5708
    %v5936 = vpop.f32.mrf.mxu0
    %v5937 = vadd.f32 0.0, %v5936
    %v5938 = vpop.f32.mrf.mxu0
    %5939 = vdwg.mxu0
    %5940 = vmatpush.bf16.msra.mxu0 %v5868
    %5941 = vmatpush.bf16.msra.mxu0 %v5864
    %5942 = vmatpush.bf16.msra.mxu0 %v5860
    %5943 = vmatpush.bf16.msra.mxu0 %v5856
    %5944 = vmatpush.bf16.msra.mxu0 %v5852
    %5945 = vmatpush.bf16.msra.mxu0 %v5848
    %5946 = vmatpush.bf16.msra.mxu0 %v5844
    %5947 = vmatpush.bf16.msra.mxu0 %v5840
    %5948 = vmatmul.bf16.gmra.mxu0 %v5708
    %v5949 = vpop.f32.mrf.mxu0
    %v5950 = vadd.f32 0.0, %v5949
    %v5951 = vpop.f32.mrf.mxu0
    %5952 = vdwg.mxu0
    %v5953 = vadd.f32 %v5704, %v5911
    %v5954 = vadd.f32 %v5705, %v5924
    %v5955 = vadd.f32 %v5706, %v5937
    %v5956 = vadd.f32 %v5707, %v5950
    %v5957 = vxor.u32 %v5953, 2147483648
    %v5958 = vmul.f32 %v5957, 1.442695
    %v5959 = vpow.pop %v5958
    %v5960 = vadd.f32 %v5959, 1.0
    %v5961 = vrcp.pop %v5960
    %v5962 = vmul.f32 %v5960, %v5961
    %v5963 = vsub.f32 1.0, %v5962
    %v5964 = vmul.f32 %v5961, %v5963
    %v5965 = vadd.f32 %v5961, %v5964
    %vm5966 = vweird.f32 %v5960
    %vm5967 = vweird.f32 %v5961
    %vm5968 = vmor %vm5966, %vm5967
    %v5969 = vsel %vm5968, %v5961, %v5965
    %v5970 = vand.u32 2147483647, %v5960
    %vm5971 = vcmp.eq.f32.partialorder %v5970, 8.507059e+37
    %v5972 = vand.u32 %v5960, 2147483648
    %v5973 = vor.u32 1.1754944e-38, %v5972
    %v5974 = vsel %vm5971, %v5973, %v5969
    %v5975 = vmul.f32 1.0, %v5974
    %v5976 = vxor.u32 %v5954, 2147483648
    %v5977 = vmul.f32 %v5976, 1.442695
    %v5978 = vpow.pop %v5977
    %v5979 = vadd.f32 %v5978, 1.0
    %v5980 = vrcp.pop %v5979
    %v5981 = vmul.f32 %v5979, %v5980
    %v5982 = vsub.f32 1.0, %v5981
    %v5983 = vmul.f32 %v5980, %v5982
    %v5984 = vadd.f32 %v5980, %v5983
    %vm5985 = vweird.f32 %v5979
    %vm5986 = vweird.f32 %v5980
    %vm5987 = vmor %vm5985, %vm5986
    %v5988 = vsel %vm5987, %v5980, %v5984
    %v5989 = vand.u32 2147483647, %v5979
    %vm5990 = vcmp.eq.f32.partialorder %v5989, 8.507059e+37
    %v5991 = vand.u32 %v5979, 2147483648
    %v5992 = vor.u32 1.1754944e-38, %v5991
    %v5993 = vsel %vm5990, %v5992, %v5988
    %v5994 = vmul.f32 1.0, %v5993
    %v5995 = vtanh.pop %v5955
    %v5996 = vxor.u32 %v5956, 2147483648
    %v5997 = vmul.f32 %v5996, 1.442695
    %v5998 = vpow.pop %v5997
    %v5999 = vadd.f32 %v5998, 1.0
    %v6000 = vrcp.pop %v5999
    %v6001 = vmul.f32 %v5999, %v6000
    %v6002 = vsub.f32 1.0, %v6001
    %v6003 = vmul.f32 %v6000, %v6002
    %v6004 = vadd.f32 %v6000, %v6003
    %vm6005 = vweird.f32 %v5999
    %vm6006 = vweird.f32 %v6000
    %vm6007 = vmor %vm6005, %vm6006
    %v6008 = vsel %vm6007, %v6000, %v6004
    %v6009 = vand.u32 2147483647, %v5999
    %vm6010 = vcmp.eq.f32.partialorder %v6009, 8.507059e+37
    %v6011 = vand.u32 %v5999, 2147483648
    %v6012 = vor.u32 1.1754944e-38, %v6011
    %v6013 = vsel %vm6010, %v6012, %v6008
    %v6014 = vmul.f32 1.0, %v6013
    %v6015 = vmul.f32 %v5994, %v5699
    %v6016 = vmul.f32 %v5975, %v5995
    %v6017 = vadd.f32 %v6015, %v6016
    %v6018 = vtanh.pop %v6017
    %v6019 = vmul.f32 %v6014, %v6018
    %s6020 = scalar_lea.vmem [#allocation15], 48
    %6021 = vst [vmem:[%s6020] sm:$0xff] %v6019
    %v6022 = vld [vmem:[%s2774] sm:$0xff]
    %v6023 = vld [vmem:[%s2774 + $0x8] sm:$0xff]
    %v6024 = vld [vmem:[%s2774 + $0x10] sm:$0xff]
    %v6025 = vld [vmem:[%s2774 + $0x18] sm:$0xff]
    %v6026 = vpack.c.bf16 %v6019, %v6019
    %v6027 = vld [vmem:[#allocation13] sm:$0xff]
    %v6028 = vld [vmem:[#allocation13 + $0x8] sm:$0xff]
    %v6029 = vld [vmem:[#allocation13 + $0x10] sm:$0xff]
    %v6030 = vld [vmem:[#allocation13 + $0x18] sm:$0xff]
    %v6031 = vld [vmem:[#allocation13 + $0x20] sm:$0xff]
    %v6032 = vld [vmem:[#allocation13 + $0x28] sm:$0xff]
    %v6033 = vld [vmem:[#allocation13 + $0x30] sm:$0xff]
    %v6034 = vld [vmem:[#allocation13 + $0x38] sm:$0xff]
    %v6035 = vld [vmem:[#allocation13 + $0x40] sm:$0xff]
    %v6036 = vld [vmem:[#allocation13 + $0x48] sm:$0xff]
    %v6037 = vld [vmem:[#allocation13 + $0x50] sm:$0xff]
    %v6038 = vld [vmem:[#allocation13 + $0x58] sm:$0xff]
    %v6039 = vld [vmem:[#allocation13 + $0x60] sm:$0xff]
    %v6040 = vld [vmem:[#allocation13 + $0x68] sm:$0xff]
    %v6041 = vld [vmem:[#allocation13 + $0x70] sm:$0xff]
    %v6042 = vld [vmem:[#allocation13 + $0x78] sm:$0xff]
    %v6043 = vld [vmem:[#allocation13 + $0x80] sm:$0xff]
    %v6044 = vld [vmem:[#allocation13 + $0x88] sm:$0xff]
    %v6045 = vld [vmem:[#allocation13 + $0x90] sm:$0xff]
    %v6046 = vld [vmem:[#allocation13 + $0x98] sm:$0xff]
    %v6047 = vld [vmem:[#allocation13 + $0xa0] sm:$0xff]
    %v6048 = vld [vmem:[#allocation13 + $0xa8] sm:$0xff]
    %v6049 = vld [vmem:[#allocation13 + $0xb0] sm:$0xff]
    %v6050 = vld [vmem:[#allocation13 + $0xb8] sm:$0xff]
    %v6051 = vld [vmem:[#allocation13 + $0xc0] sm:$0xff]
    %v6052 = vld [vmem:[#allocation13 + $0xc8] sm:$0xff]
    %v6053 = vld [vmem:[#allocation13 + $0xd0] sm:$0xff]
    %v6054 = vld [vmem:[#allocation13 + $0xd8] sm:$0xff]
    %v6055 = vld [vmem:[#allocation13 + $0xe0] sm:$0xff]
    %v6056 = vld [vmem:[#allocation13 + $0xe8] sm:$0xff]
    %v6057 = vld [vmem:[#allocation13 + $0xf0] sm:$0xff]
    %v6058 = vld [vmem:[#allocation13 + $0xf8] sm:$0xff]
    %v6091 = vunpack.c.l.b16 %v6027
    %v6092 = vunpack.c.h.b16 %v6027
    %v6093 = vunpack.c.l.b16 %v6028
    %v6094 = vunpack.c.h.b16 %v6028
    %v6095 = vunpack.c.l.b16 %v6029
    %v6096 = vunpack.c.h.b16 %v6029
    %v6097 = vunpack.c.l.b16 %v6030
    %v6098 = vunpack.c.h.b16 %v6030
    %v6099 = vunpack.c.l.b16 %v6031
    %v6100 = vunpack.c.h.b16 %v6031
    %v6101 = vunpack.c.l.b16 %v6032
    %v6102 = vunpack.c.h.b16 %v6032
    %v6103 = vunpack.c.l.b16 %v6033
    %v6104 = vunpack.c.h.b16 %v6033
    %v6105 = vunpack.c.l.b16 %v6034
    %v6106 = vunpack.c.h.b16 %v6034
    %v6107 = vunpack.c.l.b16 %v6035
    %v6108 = vunpack.c.h.b16 %v6035
    %v6109 = vunpack.c.l.b16 %v6036
    %v6110 = vunpack.c.h.b16 %v6036
    %v6111 = vunpack.c.l.b16 %v6037
    %v6112 = vunpack.c.h.b16 %v6037
    %v6113 = vunpack.c.l.b16 %v6038
    %v6114 = vunpack.c.h.b16 %v6038
    %v6115 = vunpack.c.l.b16 %v6039
    %v6116 = vunpack.c.h.b16 %v6039
    %v6117 = vunpack.c.l.b16 %v6040
    %v6118 = vunpack.c.h.b16 %v6040
    %v6119 = vunpack.c.l.b16 %v6041
    %v6120 = vunpack.c.h.b16 %v6041
    %v6121 = vunpack.c.l.b16 %v6042
    %v6122 = vunpack.c.h.b16 %v6042
    %v6123 = vunpack.c.l.b16 %v6043
    %v6124 = vunpack.c.h.b16 %v6043
    %v6125 = vunpack.c.l.b16 %v6044
    %v6126 = vunpack.c.h.b16 %v6044
    %v6127 = vunpack.c.l.b16 %v6045
    %v6128 = vunpack.c.h.b16 %v6045
    %v6129 = vunpack.c.l.b16 %v6046
    %v6130 = vunpack.c.h.b16 %v6046
    %v6131 = vunpack.c.l.b16 %v6047
    %v6132 = vunpack.c.h.b16 %v6047
    %v6133 = vunpack.c.l.b16 %v6048
    %v6134 = vunpack.c.h.b16 %v6048
    %v6135 = vunpack.c.l.b16 %v6049
    %v6136 = vunpack.c.h.b16 %v6049
    %v6137 = vunpack.c.l.b16 %v6050
    %v6138 = vunpack.c.h.b16 %v6050
    %v6139 = vunpack.c.l.b16 %v6051
    %v6140 = vunpack.c.h.b16 %v6051
    %v6141 = vunpack.c.l.b16 %v6052
    %v6142 = vunpack.c.h.b16 %v6052
    %v6143 = vunpack.c.l.b16 %v6053
    %v6144 = vunpack.c.h.b16 %v6053
    %v6145 = vunpack.c.l.b16 %v6054
    %v6146 = vunpack.c.h.b16 %v6054
    %v6147 = vunpack.c.l.b16 %v6055
    %v6148 = vunpack.c.h.b16 %v6055
    %v6149 = vunpack.c.l.b16 %v6056
    %v6150 = vunpack.c.h.b16 %v6056
    %v6151 = vunpack.c.l.b16 %v6057
    %v6152 = vunpack.c.h.b16 %v6057
    %v6153 = vunpack.c.l.b16 %v6058
    %v6154 = vunpack.c.h.b16 %v6058
    %v6155 = vpack.c.b16 %v6095, %v6091
    %v6156 = vpack.c.b16 %v6096, %v6092
    %v6157 = vpack.c.b16 %v6097, %v6093
    %v6158 = vpack.c.b16 %v6098, %v6094
    %v6159 = vpack.c.b16 %v6103, %v6099
    %v6160 = vpack.c.b16 %v6104, %v6100
    %v6161 = vpack.c.b16 %v6105, %v6101
    %v6162 = vpack.c.b16 %v6106, %v6102
    %v6163 = vpack.c.b16 %v6111, %v6107
    %v6164 = vpack.c.b16 %v6112, %v6108
    %v6165 = vpack.c.b16 %v6113, %v6109
    %v6166 = vpack.c.b16 %v6114, %v6110
    %v6167 = vpack.c.b16 %v6119, %v6115
    %v6168 = vpack.c.b16 %v6120, %v6116
    %v6169 = vpack.c.b16 %v6121, %v6117
    %v6170 = vpack.c.b16 %v6122, %v6118
    %v6171 = vpack.c.b16 %v6127, %v6123
    %v6172 = vpack.c.b16 %v6128, %v6124
    %v6173 = vpack.c.b16 %v6129, %v6125
    %v6174 = vpack.c.b16 %v6130, %v6126
    %v6175 = vpack.c.b16 %v6135, %v6131
    %v6176 = vpack.c.b16 %v6136, %v6132
    %v6177 = vpack.c.b16 %v6137, %v6133
    %v6178 = vpack.c.b16 %v6138, %v6134
    %v6179 = vpack.c.b16 %v6143, %v6139
    %v6180 = vpack.c.b16 %v6144, %v6140
    %v6181 = vpack.c.b16 %v6145, %v6141
    %v6182 = vpack.c.b16 %v6146, %v6142
    %v6183 = vpack.c.b16 %v6151, %v6147
    %v6184 = vpack.c.b16 %v6152, %v6148
    %v6185 = vpack.c.b16 %v6153, %v6149
    %v6186 = vpack.c.b16 %v6154, %v6150
    %6219 = vmatpush.bf16.msra.mxu0 %v6183
    %6220 = vmatpush.bf16.msra.mxu0 %v6179
    %6221 = vmatpush.bf16.msra.mxu0 %v6175
    %6222 = vmatpush.bf16.msra.mxu0 %v6171
    %6223 = vmatpush.bf16.msra.mxu0 %v6167
    %6224 = vmatpush.bf16.msra.mxu0 %v6163
    %6225 = vmatpush.bf16.msra.mxu0 %v6159
    %6226 = vmatpush.bf16.msra.mxu0 %v6155
    %6227 = vmatmul.bf16.gmra.mxu0 %v6026
    %v6228 = vpop.f32.mrf.mxu0
    %v6229 = vadd.f32 0.0, %v6228
    %v6230 = vpop.f32.mrf.mxu0
    %6231 = vdwg.mxu0
    %6232 = vmatpush.bf16.msra.mxu0 %v6184
    %6233 = vmatpush.bf16.msra.mxu0 %v6180
    %6234 = vmatpush.bf16.msra.mxu0 %v6176
    %6235 = vmatpush.bf16.msra.mxu0 %v6172
    %6236 = vmatpush.bf16.msra.mxu0 %v6168
    %6237 = vmatpush.bf16.msra.mxu0 %v6164
    %6238 = vmatpush.bf16.msra.mxu0 %v6160
    %6239 = vmatpush.bf16.msra.mxu0 %v6156
    %6240 = vmatmul.bf16.gmra.mxu0 %v6026
    %v6241 = vpop.f32.mrf.mxu0
    %v6242 = vadd.f32 0.0, %v6241
    %v6243 = vpop.f32.mrf.mxu0
    %6244 = vdwg.mxu0
    %6245 = vmatpush.bf16.msra.mxu0 %v6185
    %6246 = vmatpush.bf16.msra.mxu0 %v6181
    %6247 = vmatpush.bf16.msra.mxu0 %v6177
    %6248 = vmatpush.bf16.msra.mxu0 %v6173
    %6249 = vmatpush.bf16.msra.mxu0 %v6169
    %6250 = vmatpush.bf16.msra.mxu0 %v6165
    %6251 = vmatpush.bf16.msra.mxu0 %v6161
    %6252 = vmatpush.bf16.msra.mxu0 %v6157
    %6253 = vmatmul.bf16.gmra.mxu0 %v6026
    %v6254 = vpop.f32.mrf.mxu0
    %v6255 = vadd.f32 0.0, %v6254
    %v6256 = vpop.f32.mrf.mxu0
    %6257 = vdwg.mxu0
    %6258 = vmatpush.bf16.msra.mxu0 %v6186
    %6259 = vmatpush.bf16.msra.mxu0 %v6182
    %6260 = vmatpush.bf16.msra.mxu0 %v6178
    %6261 = vmatpush.bf16.msra.mxu0 %v6174
    %6262 = vmatpush.bf16.msra.mxu0 %v6170
    %6263 = vmatpush.bf16.msra.mxu0 %v6166
    %6264 = vmatpush.bf16.msra.mxu0 %v6162
    %6265 = vmatpush.bf16.msra.mxu0 %v6158
    %6266 = vmatmul.bf16.gmra.mxu0 %v6026
    %v6267 = vpop.f32.mrf.mxu0
    %v6268 = vadd.f32 0.0, %v6267
    %v6269 = vpop.f32.mrf.mxu0
    %6270 = vdwg.mxu0
    %v6271 = vadd.f32 %v6022, %v6229
    %v6272 = vadd.f32 %v6023, %v6242
    %v6273 = vadd.f32 %v6024, %v6255
    %v6274 = vadd.f32 %v6025, %v6268
    %v6275 = vxor.u32 %v6271, 2147483648
    %v6276 = vmul.f32 %v6275, 1.442695
    %v6277 = vpow.pop %v6276
    %v6278 = vadd.f32 %v6277, 1.0
    %v6279 = vrcp.pop %v6278
    %v6280 = vmul.f32 %v6278, %v6279
    %v6281 = vsub.f32 1.0, %v6280
    %v6282 = vmul.f32 %v6279, %v6281
    %v6283 = vadd.f32 %v6279, %v6282
    %vm6284 = vweird.f32 %v6278
    %vm6285 = vweird.f32 %v6279
    %vm6286 = vmor %vm6284, %vm6285
    %v6287 = vsel %vm6286, %v6279, %v6283
    %v6288 = vand.u32 2147483647, %v6278
    %vm6289 = vcmp.eq.f32.partialorder %v6288, 8.507059e+37
    %v6290 = vand.u32 %v6278, 2147483648
    %v6291 = vor.u32 1.1754944e-38, %v6290
    %v6292 = vsel %vm6289, %v6291, %v6287
    %v6293 = vmul.f32 1.0, %v6292
    %v6294 = vxor.u32 %v6272, 2147483648
    %v6295 = vmul.f32 %v6294, 1.442695
    %v6296 = vpow.pop %v6295
    %v6297 = vadd.f32 %v6296, 1.0
    %v6298 = vrcp.pop %v6297
    %v6299 = vmul.f32 %v6297, %v6298
    %v6300 = vsub.f32 1.0, %v6299
    %v6301 = vmul.f32 %v6298, %v6300
    %v6302 = vadd.f32 %v6298, %v6301
    %vm6303 = vweird.f32 %v6297
    %vm6304 = vweird.f32 %v6298
    %vm6305 = vmor %vm6303, %vm6304
    %v6306 = vsel %vm6305, %v6298, %v6302
    %v6307 = vand.u32 2147483647, %v6297
    %vm6308 = vcmp.eq.f32.partialorder %v6307, 8.507059e+37
    %v6309 = vand.u32 %v6297, 2147483648
    %v6310 = vor.u32 1.1754944e-38, %v6309
    %v6311 = vsel %vm6308, %v6310, %v6306
    %v6312 = vmul.f32 1.0, %v6311
    %v6313 = vtanh.pop %v6273
    %v6314 = vxor.u32 %v6274, 2147483648
    %v6315 = vmul.f32 %v6314, 1.442695
    %v6316 = vpow.pop %v6315
    %v6317 = vadd.f32 %v6316, 1.0
    %v6318 = vrcp.pop %v6317
    %v6319 = vmul.f32 %v6317, %v6318
    %v6320 = vsub.f32 1.0, %v6319
    %v6321 = vmul.f32 %v6318, %v6320
    %v6322 = vadd.f32 %v6318, %v6321
    %vm6323 = vweird.f32 %v6317
    %vm6324 = vweird.f32 %v6318
    %vm6325 = vmor %vm6323, %vm6324
    %v6326 = vsel %vm6325, %v6318, %v6322
    %v6327 = vand.u32 2147483647, %v6317
    %vm6328 = vcmp.eq.f32.partialorder %v6327, 8.507059e+37
    %v6329 = vand.u32 %v6317, 2147483648
    %v6330 = vor.u32 1.1754944e-38, %v6329
    %v6331 = vsel %vm6328, %v6330, %v6326
    %v6332 = vmul.f32 1.0, %v6331
    %v6333 = vmul.f32 %v6312, %v6017
    %v6334 = vmul.f32 %v6293, %v6313
    %v6335 = vadd.f32 %v6333, %v6334
    %v6336 = vtanh.pop %v6335
    %v6337 = vmul.f32 %v6332, %v6336
    %s6338 = scalar_lea.vmem [#allocation15], 56
    %6339 = vst [vmem:[%s6338] sm:$0xff] %v6337
    %v6340 = vld [vmem:[%s3095] sm:$0xff]
    %v6341 = vld [vmem:[%s3095 + $0x8] sm:$0xff]
    %v6342 = vld [vmem:[%s3095 + $0x10] sm:$0xff]
    %v6343 = vld [vmem:[%s3095 + $0x18] sm:$0xff]
    %v6344 = vpack.c.bf16 %v6337, %v6337
    %v6345 = vld [vmem:[#allocation13] sm:$0xff]
    %v6346 = vld [vmem:[#allocation13 + $0x8] sm:$0xff]
    %v6347 = vld [vmem:[#allocation13 + $0x10] sm:$0xff]
    %v6348 = vld [vmem:[#allocation13 + $0x18] sm:$0xff]
    %v6349 = vld [vmem:[#allocation13 + $0x20] sm:$0xff]
    %v6350 = vld [vmem:[#allocation13 + $0x28] sm:$0xff]
    %v6351 = vld [vmem:[#allocation13 + $0x30] sm:$0xff]
    %v6352 = vld [vmem:[#allocation13 + $0x38] sm:$0xff]
    %v6353 = vld [vmem:[#allocation13 + $0x40] sm:$0xff]
    %v6354 = vld [vmem:[#allocation13 + $0x48] sm:$0xff]
    %v6355 = vld [vmem:[#allocation13 + $0x50] sm:$0xff]
    %v6356 = vld [vmem:[#allocation13 + $0x58] sm:$0xff]
    %v6357 = vld [vmem:[#allocation13 + $0x60] sm:$0xff]
    %v6358 = vld [vmem:[#allocation13 + $0x68] sm:$0xff]
    %v6359 = vld [vmem:[#allocation13 + $0x70] sm:$0xff]
    %v6360 = vld [vmem:[#allocation13 + $0x78] sm:$0xff]
    %v6361 = vld [vmem:[#allocation13 + $0x80] sm:$0xff]
    %v6362 = vld [vmem:[#allocation13 + $0x88] sm:$0xff]
    %v6363 = vld [vmem:[#allocation13 + $0x90] sm:$0xff]
    %v6364 = vld [vmem:[#allocation13 + $0x98] sm:$0xff]
    %v6365 = vld [vmem:[#allocation13 + $0xa0] sm:$0xff]
    %v6366 = vld [vmem:[#allocation13 + $0xa8] sm:$0xff]
    %v6367 = vld [vmem:[#allocation13 + $0xb0] sm:$0xff]
    %v6368 = vld [vmem:[#allocation13 + $0xb8] sm:$0xff]
    %v6369 = vld [vmem:[#allocation13 + $0xc0] sm:$0xff]
    %v6370 = vld [vmem:[#allocation13 + $0xc8] sm:$0xff]
    %v6371 = vld [vmem:[#allocation13 + $0xd0] sm:$0xff]
    %v6372 = vld [vmem:[#allocation13 + $0xd8] sm:$0xff]
    %v6373 = vld [vmem:[#allocation13 + $0xe0] sm:$0xff]
    %v6374 = vld [vmem:[#allocation13 + $0xe8] sm:$0xff]
    %v6375 = vld [vmem:[#allocation13 + $0xf0] sm:$0xff]
    %v6376 = vld [vmem:[#allocation13 + $0xf8] sm:$0xff]
    %v6409 = vunpack.c.l.b16 %v6345
    %v6410 = vunpack.c.h.b16 %v6345
    %v6411 = vunpack.c.l.b16 %v6346
    %v6412 = vunpack.c.h.b16 %v6346
    %v6413 = vunpack.c.l.b16 %v6347
    %v6414 = vunpack.c.h.b16 %v6347
    %v6415 = vunpack.c.l.b16 %v6348
    %v6416 = vunpack.c.h.b16 %v6348
    %v6417 = vunpack.c.l.b16 %v6349
    %v6418 = vunpack.c.h.b16 %v6349
    %v6419 = vunpack.c.l.b16 %v6350
    %v6420 = vunpack.c.h.b16 %v6350
    %v6421 = vunpack.c.l.b16 %v6351
    %v6422 = vunpack.c.h.b16 %v6351
    %v6423 = vunpack.c.l.b16 %v6352
    %v6424 = vunpack.c.h.b16 %v6352
    %v6425 = vunpack.c.l.b16 %v6353
    %v6426 = vunpack.c.h.b16 %v6353
    %v6427 = vunpack.c.l.b16 %v6354
    %v6428 = vunpack.c.h.b16 %v6354
    %v6429 = vunpack.c.l.b16 %v6355
    %v6430 = vunpack.c.h.b16 %v6355
    %v6431 = vunpack.c.l.b16 %v6356
    %v6432 = vunpack.c.h.b16 %v6356
    %v6433 = vunpack.c.l.b16 %v6357
    %v6434 = vunpack.c.h.b16 %v6357
    %v6435 = vunpack.c.l.b16 %v6358
    %v6436 = vunpack.c.h.b16 %v6358
    %v6437 = vunpack.c.l.b16 %v6359
    %v6438 = vunpack.c.h.b16 %v6359
    %v6439 = vunpack.c.l.b16 %v6360
    %v6440 = vunpack.c.h.b16 %v6360
    %v6441 = vunpack.c.l.b16 %v6361
    %v6442 = vunpack.c.h.b16 %v6361
    %v6443 = vunpack.c.l.b16 %v6362
    %v6444 = vunpack.c.h.b16 %v6362
    %v6445 = vunpack.c.l.b16 %v6363
    %v6446 = vunpack.c.h.b16 %v6363
    %v6447 = vunpack.c.l.b16 %v6364
    %v6448 = vunpack.c.h.b16 %v6364
    %v6449 = vunpack.c.l.b16 %v6365
    %v6450 = vunpack.c.h.b16 %v6365
    %v6451 = vunpack.c.l.b16 %v6366
    %v6452 = vunpack.c.h.b16 %v6366
    %v6453 = vunpack.c.l.b16 %v6367
    %v6454 = vunpack.c.h.b16 %v6367
    %v6455 = vunpack.c.l.b16 %v6368
    %v6456 = vunpack.c.h.b16 %v6368
    %v6457 = vunpack.c.l.b16 %v6369
    %v6458 = vunpack.c.h.b16 %v6369
    %v6459 = vunpack.c.l.b16 %v6370
    %v6460 = vunpack.c.h.b16 %v6370
    %v6461 = vunpack.c.l.b16 %v6371
    %v6462 = vunpack.c.h.b16 %v6371
    %v6463 = vunpack.c.l.b16 %v6372
    %v6464 = vunpack.c.h.b16 %v6372
    %v6465 = vunpack.c.l.b16 %v6373
    %v6466 = vunpack.c.h.b16 %v6373
    %v6467 = vunpack.c.l.b16 %v6374
    %v6468 = vunpack.c.h.b16 %v6374
    %v6469 = vunpack.c.l.b16 %v6375
    %v6470 = vunpack.c.h.b16 %v6375
    %v6471 = vunpack.c.l.b16 %v6376
    %v6472 = vunpack.c.h.b16 %v6376
    %v6473 = vpack.c.b16 %v6413, %v6409
    %v6474 = vpack.c.b16 %v6414, %v6410
    %v6475 = vpack.c.b16 %v6415, %v6411
    %v6476 = vpack.c.b16 %v6416, %v6412
    %v6477 = vpack.c.b16 %v6421, %v6417
    %v6478 = vpack.c.b16 %v6422, %v6418
    %v6479 = vpack.c.b16 %v6423, %v6419
    %v6480 = vpack.c.b16 %v6424, %v6420
    %v6481 = vpack.c.b16 %v6429, %v6425
    %v6482 = vpack.c.b16 %v6430, %v6426
    %v6483 = vpack.c.b16 %v6431, %v6427
    %v6484 = vpack.c.b16 %v6432, %v6428
    %v6485 = vpack.c.b16 %v6437, %v6433
    %v6486 = vpack.c.b16 %v6438, %v6434
    %v6487 = vpack.c.b16 %v6439, %v6435
    %v6488 = vpack.c.b16 %v6440, %v6436
    %v6489 = vpack.c.b16 %v6445, %v6441
    %v6490 = vpack.c.b16 %v6446, %v6442
    %v6491 = vpack.c.b16 %v6447, %v6443
    %v6492 = vpack.c.b16 %v6448, %v6444
    %v6493 = vpack.c.b16 %v6453, %v6449
    %v6494 = vpack.c.b16 %v6454, %v6450
    %v6495 = vpack.c.b16 %v6455, %v6451
    %v6496 = vpack.c.b16 %v6456, %v6452
    %v6497 = vpack.c.b16 %v6461, %v6457
    %v6498 = vpack.c.b16 %v6462, %v6458
    %v6499 = vpack.c.b16 %v6463, %v6459
    %v6500 = vpack.c.b16 %v6464, %v6460
    %v6501 = vpack.c.b16 %v6469, %v6465
    %v6502 = vpack.c.b16 %v6470, %v6466
    %v6503 = vpack.c.b16 %v6471, %v6467
    %v6504 = vpack.c.b16 %v6472, %v6468
    %6537 = vmatpush.bf16.msra.mxu0 %v6501
    %6538 = vmatpush.bf16.msra.mxu0 %v6497
    %6539 = vmatpush.bf16.msra.mxu0 %v6493
    %6540 = vmatpush.bf16.msra.mxu0 %v6489
    %6541 = vmatpush.bf16.msra.mxu0 %v6485
    %6542 = vmatpush.bf16.msra.mxu0 %v6481
    %6543 = vmatpush.bf16.msra.mxu0 %v6477
    %6544 = vmatpush.bf16.msra.mxu0 %v6473
    %6545 = vmatmul.bf16.gmra.mxu0 %v6344
    %v6546 = vpop.f32.mrf.mxu0
    %v6547 = vadd.f32 0.0, %v6546
    %v6548 = vpop.f32.mrf.mxu0
    %6549 = vdwg.mxu0
    %6550 = vmatpush.bf16.msra.mxu0 %v6502
    %6551 = vmatpush.bf16.msra.mxu0 %v6498
    %6552 = vmatpush.bf16.msra.mxu0 %v6494
    %6553 = vmatpush.bf16.msra.mxu0 %v6490
    %6554 = vmatpush.bf16.msra.mxu0 %v6486
    %6555 = vmatpush.bf16.msra.mxu0 %v6482
    %6556 = vmatpush.bf16.msra.mxu0 %v6478
    %6557 = vmatpush.bf16.msra.mxu0 %v6474
    %6558 = vmatmul.bf16.gmra.mxu0 %v6344
    %v6559 = vpop.f32.mrf.mxu0
    %v6560 = vadd.f32 0.0, %v6559
    %v6561 = vpop.f32.mrf.mxu0
    %6562 = vdwg.mxu0
    %6563 = vmatpush.bf16.msra.mxu0 %v6503
    %6564 = vmatpush.bf16.msra.mxu0 %v6499
    %6565 = vmatpush.bf16.msra.mxu0 %v6495
    %6566 = vmatpush.bf16.msra.mxu0 %v6491
    %6567 = vmatpush.bf16.msra.mxu0 %v6487
    %6568 = vmatpush.bf16.msra.mxu0 %v6483
    %6569 = vmatpush.bf16.msra.mxu0 %v6479
    %6570 = vmatpush.bf16.msra.mxu0 %v6475
    %6571 = vmatmul.bf16.gmra.mxu0 %v6344
    %v6572 = vpop.f32.mrf.mxu0
    %v6573 = vadd.f32 0.0, %v6572
    %v6574 = vpop.f32.mrf.mxu0
    %6575 = vdwg.mxu0
    %6576 = vmatpush.bf16.msra.mxu0 %v6504
    %6577 = vmatpush.bf16.msra.mxu0 %v6500
    %6578 = vmatpush.bf16.msra.mxu0 %v6496
    %6579 = vmatpush.bf16.msra.mxu0 %v6492
    %6580 = vmatpush.bf16.msra.mxu0 %v6488
    %6581 = vmatpush.bf16.msra.mxu0 %v6484
    %6582 = vmatpush.bf16.msra.mxu0 %v6480
    %6583 = vmatpush.bf16.msra.mxu0 %v6476
    %6584 = vmatmul.bf16.gmra.mxu0 %v6344
    %v6585 = vpop.f32.mrf.mxu0
    %v6586 = vadd.f32 0.0, %v6585
    %v6587 = vpop.f32.mrf.mxu0
    %6588 = vdwg.mxu0
    %v6589 = vadd.f32 %v6340, %v6547
    %v6590 = vadd.f32 %v6341, %v6560
    %v6591 = vadd.f32 %v6342, %v6573
    %v6592 = vadd.f32 %v6343, %v6586
    %v6593 = vxor.u32 %v6589, 2147483648
    %v6594 = vmul.f32 %v6593, 1.442695
    %v6595 = vpow.pop %v6594
    %v6596 = vadd.f32 %v6595, 1.0
    %v6597 = vrcp.pop %v6596
    %v6598 = vmul.f32 %v6596, %v6597
    %v6599 = vsub.f32 1.0, %v6598
    %v6600 = vmul.f32 %v6597, %v6599
    %v6601 = vadd.f32 %v6597, %v6600
    %vm6602 = vweird.f32 %v6596
    %vm6603 = vweird.f32 %v6597
    %vm6604 = vmor %vm6602, %vm6603
    %v6605 = vsel %vm6604, %v6597, %v6601
    %v6606 = vand.u32 2147483647, %v6596
    %vm6607 = vcmp.eq.f32.partialorder %v6606, 8.507059e+37
    %v6608 = vand.u32 %v6596, 2147483648
    %v6609 = vor.u32 1.1754944e-38, %v6608
    %v6610 = vsel %vm6607, %v6609, %v6605
    %v6611 = vmul.f32 1.0, %v6610
    %v6612 = vxor.u32 %v6590, 2147483648
    %v6613 = vmul.f32 %v6612, 1.442695
    %v6614 = vpow.pop %v6613
    %v6615 = vadd.f32 %v6614, 1.0
    %v6616 = vrcp.pop %v6615
    %v6617 = vmul.f32 %v6615, %v6616
    %v6618 = vsub.f32 1.0, %v6617
    %v6619 = vmul.f32 %v6616, %v6618
    %v6620 = vadd.f32 %v6616, %v6619
    %vm6621 = vweird.f32 %v6615
    %vm6622 = vweird.f32 %v6616
    %vm6623 = vmor %vm6621, %vm6622
    %v6624 = vsel %vm6623, %v6616, %v6620
    %v6625 = vand.u32 2147483647, %v6615
    %vm6626 = vcmp.eq.f32.partialorder %v6625, 8.507059e+37
    %v6627 = vand.u32 %v6615, 2147483648
    %v6628 = vor.u32 1.1754944e-38, %v6627
    %v6629 = vsel %vm6626, %v6628, %v6624
    %v6630 = vmul.f32 1.0, %v6629
    %v6631 = vtanh.pop %v6591
    %v6632 = vxor.u32 %v6592, 2147483648
    %v6633 = vmul.f32 %v6632, 1.442695
    %v6634 = vpow.pop %v6633
    %v6635 = vadd.f32 %v6634, 1.0
    %v6636 = vrcp.pop %v6635
    %v6637 = vmul.f32 %v6635, %v6636
    %v6638 = vsub.f32 1.0, %v6637
    %v6639 = vmul.f32 %v6636, %v6638
    %v6640 = vadd.f32 %v6636, %v6639
    %vm6641 = vweird.f32 %v6635
    %vm6642 = vweird.f32 %v6636
    %vm6643 = vmor %vm6641, %vm6642
    %v6644 = vsel %vm6643, %v6636, %v6640
    %v6645 = vand.u32 2147483647, %v6635
    %vm6646 = vcmp.eq.f32.partialorder %v6645, 8.507059e+37
    %v6647 = vand.u32 %v6635, 2147483648
    %v6648 = vor.u32 1.1754944e-38, %v6647
    %v6649 = vsel %vm6646, %v6648, %v6644
    %v6650 = vmul.f32 1.0, %v6649
    %v6651 = vmul.f32 %v6630, %v6335
    %v6652 = vmul.f32 %v6611, %v6631
    %v6653 = vadd.f32 %v6651, %v6652
    %v6654 = vtanh.pop %v6653
    %v6655 = vmul.f32 %v6650, %v6654
    %s6656 = scalar_lea.vmem [#allocation15], 64
    %6657 = vst [vmem:[%s6656] sm:$0xff] %v6655
    // Predicated region
    $region54: #{tpu_custom_call.1} parent=1 // pred_check
      _
    $region55: #{tpu_custom_call.1} parent=1 // pred_check_branch
      %6659 = sbr.rel (0) target = $region57
    $region56: #{tpu_custom_call.1} parent=1 // pred_region
      %6661 = vsyncadd [#allocation6], 0
      %s6662 = sshll.u32 [#allocation15], 4
      %s6663 = int_to_ptr.vmem [resolvable:$true] %s6662
      %s6664 = sshll.u32 %s7, 4
      %s6665 = int_to_ptr.hbm [resolvable:$true] %s6664
      %6670 = dma.vmem_to_hbm [thread:$0]  %s6663, 1152, %s6665, [#allocation6], 128, 128, 8
    $region57: #{tpu_custom_call.1} parent=1 // pred_fallthru
      _
    // Predicated region
    $region58: #{tpu_custom_call.1} parent=1 // pred_check
      _
    $region59: #{tpu_custom_call.1} parent=1 // pred_check_branch
      %6672 = sbr.rel (0) target = $region61
    $region60: #{tpu_custom_call.1} parent=1 // pred_region
      %6674 = dma.done [#allocation6], 1152
    $region61: #{tpu_custom_call.1} parent=1 // pred_fallthru
      _
    %6675 = vsyncpa [#allocation5], 1
    %6676 = vsyncpa [#allocation8], 1
    %6677 = vsyncpa [#allocation11], 1
    %6678 = vsyncpa [#allocation14], 1
    %6679 = vsyncpa [#allocation6], 1

</llo_original>
